<compile_context>
chip_gen: v7x
topology: tpu7x:2x2x1
jax: 0.10.0
libtpu: 0.0.40
codegen_flags: <defaults>
</compile_context>

<pallas_src>
import functools

import numpy as np
import jax
import jax.numpy as jnp
from jax.experimental import pallas as pl
from jax.experimental.pallas import tpu as pltpu

# ----------------------------------------------------------------------------
# Fixed LeNet geometry (32x32 RGB input is required so that fc1 sees 16*5*5).
# ----------------------------------------------------------------------------
H0, W0, C0, C0P = 32, 32, 3, 8       # input; channels padded 3 -> 8
L0 = W0 * C0P                        # 256 input lanes  (lane = w*8 + c)
H1, Q1, C1P = 28, 14, 8              # conv1 out 28x28x6 (pad->8); pooled 14x14
H2, Q2, C2 = 10, 5, 16               # conv2 out 10x10x16;          pooled 5x5
LP = 128                             # padded activation lanes (112->128, 80->128)
NPAD = 128                           # fc lane padding (lane-dense output)


# ------------------------------------------------------------------- kernel --
def _fused_conv_pool(src_ref, w_ref, b_ref, dst_ref, h_out, q_out, k_lanes, tb):
    """5x5 valid conv (banded taps) + bias + ReLU + 2x2 maxpool, fully fused.

    src_ref : (rows, tb, k_lanes) bf16   w_ref : (5, k_lanes, 2*LP) bf16
    b_ref   : (1, LP) f32                dst_ref: (q_out, tb, LP) bf16
    Even/odd output-column phases live in lanes [0:LP] / [LP:2*LP] of w_ref.
    """
    f32 = jnp.float32
    acc = None
    for i in range(5):                                     # 5 kernel rows
        lhs = src_ref[i:i + h_out].reshape(h_out * tb, k_lanes)   # free reshape
        part = jnp.dot(lhs, w_ref[i], preferred_element_type=f32)
        acc = part if acc is None else acc + part          # (h_out*tb, 2*LP)
    # width-direction max-pool == max over the two column-parity phases
    s = jnp.maximum(acc[:, :LP], acc[:, LP:])              # (h_out*tb, LP)
    # height-direction max-pool: rows (2p, 2p+1) are adjacent TB-blocks
    s = s.reshape(q_out, 2 * tb, LP)
    z = jnp.maximum(s[:, :tb], s[:, tb:])                  # (q_out, tb, LP)
    # bias + ReLU epilogue (f32), one full lane-dense block store
    dst_ref[...] = jnp.maximum(z + b_ref[...], 0.0).astype(dst_ref.dtype)


def _lenet_kernel(x_ref, w1_ref, b1_ref, w2_ref, b2_ref,
                  wf1_ref, fb1_ref, wf2_ref, fb2_ref, wf3_ref, fb3_ref,
                  out_ref, z1_ref, z2_ref):
    f32 = jnp.float32
    bf16 = jnp.bfloat16
    tb = x_ref.shape[1]

    # ---- conv1 (5x5, 3->6) + ReLU + pool ----
    _fused_conv_pool(x_ref, w1_ref, b1_ref, z1_ref, H1, Q1, L0, tb)
    # ---- conv2 (5x5, 6->16) + ReLU + pool ----
    _fused_conv_pool(z1_ref, w2_ref, b2_ref, z2_ref, H2, Q2, LP, tb)

    # ---- fc1 (400->120) + ReLU (flatten order folded into wf1 layout) ----
    h = None
    for r in range(Q2):                                    # 5 pooled rows
        part = jnp.dot(z2_ref[r], wf1_ref[r], preferred_element_type=f32)
        h = part if h is None else h + part                # (tb, 128) f32
    h = jnp.maximum(h + fb1_ref[...], 0.0).astype(bf16)
    # ---- fc2 (120->84) + ReLU ----
    h = jnp.maximum(jnp.dot(h, wf2_ref[...], preferred_element_type=f32)
                    + fb2_ref[...], 0.0).astype(bf16)
    # ---- fc3 (84->classes), lane-dense (tb, 128) store ----
    out_ref[...] = (jnp.dot(h, wf3_ref[...], preferred_element_type=f32)
                    + fb3_ref[...])


# ------------------------------------------------------- one-time weight prep
def prepare_params(p, classes):
    """Pre-lay-out all weights once: banded conv weights (even|odd phases
    concatenated along N, each padded to 128 lanes), padded bf16 fc weights."""
    assert classes <= NPAD
    c1w = np.asarray(p['conv1_w'], np.float32)    # (6, 3, 5, 5)  OIHW
    c1b = np.asarray(p['conv1_b'], np.float32)
    c2w = np.asarray(p['conv2_w'], np.float32)    # (16, 6, 5, 5)
    c2b = np.asarray(p['conv2_b'], np.float32)
    f1w = np.asarray(p['fc1_w'], np.float32)      # (120, 400)
    f1b = np.asarray(p['fc1_b'], np.float32)
    f2w = np.asarray(p['fc2_w'], np.float32)      # (84, 120)
    f2b = np.asarray(p['fc2_b'], np.float32)
    f3w = np.asarray(p['fc3_w'], np.float32)      # (classes, 84)
    f3b = np.asarray(p['fc3_b'], np.float32)

    # conv1 banded weights: (5 taps, 256 input lanes, even|odd -> 256 lanes)
    w1 = np.zeros((5, L0, 2 * LP), np.float32)
    b1 = np.zeros((1, LP), np.float32)
    for i in range(5):
        for j in range(5):
            blk = c1w[:, :, i, j].T               # (3, 6) = [cin, cout]
            for q in range(Q1):
                re = (2 * q + j) * C0P             # even output column 2q
                ro = (2 * q + 1 + j) * C0P         # odd  output column 2q+1
                w1[i, re:re + 3, q * C1P:q * C1P + 6] = blk
                w1[i, ro:ro + 3, LP + q * C1P:LP + q * C1P + 6] = blk
    for q in range(Q1):
        b1[0, q * C1P:q * C1P + 6] = c1b

    # conv2 banded weights (input = pooled conv1 map, lane = s*8 + c, K pad 128)
    w2 = np.zeros((5, LP, 2 * LP), np.float32)
    b2 = np.zeros((1, LP), np.float32)
    for i in range(5):
        for j in range(5):
            blk = c2w[:, :, i, j].T               # (6, 16)
            for q in range(Q2):
                re = (2 * q + j) * C1P
                ro = (2 * q + 1 + j) * C1P
                w2[i, re:re + 6, q * C2:q * C2 + 16] = blk
                w2[i, ro:ro + 6, LP + q * C2:LP + q * C2 + 16] = blk
    for q in range(Q2):
        b2[0, q * C2:q * C2 + 16] = c2b

    # fc1: fold PyTorch's (C,H,W) flatten order into one (128,128) block per
    # pooled row (K padded 80->128, N padded 120->128, pads are zero).
    f1r = f1w.reshape(120, C2, Q2, Q2)            # [n, c, h, w]
    wf1 = np.zeros((Q2, LP, NPAD), np.float32)
    for r in range(Q2):
        for q in range(Q2):
            wf1[r, q * C2:q * C2 + 16, :120] = f1r[:, :, r, q].T   # (16, 120)
    fb1 = np.zeros((1, NPAD), np.float32); fb1[0, :120] = f1b

    wf2 = np.zeros((NPAD, NPAD), np.float32); wf2[:120, :84] = f2w.T
    fb2 = np.zeros((1, NPAD), np.float32); fb2[0, :84] = f2b
    wf3 = np.zeros((NPAD, NPAD), np.float32); wf3[:84, :classes] = f3w.T
    fb3 = np.zeros((1, NPAD), np.float32); fb3[0, :classes] = f3b

    bf = lambda a: jnp.asarray(a, jnp.bfloat16)   # MXU inputs in bf16
    fp = lambda a: jnp.asarray(a, jnp.float32)    # epilogue biases stay f32
    return dict(w1=bf(w1), b1=fp(b1), w2=bf(w2), b2=fp(b2),
                wf1=bf(wf1), fb1=fp(fb1), wf2=bf(wf2), fb2=fp(fb2),
                wf3=bf(wf3), fb3=fp(fb3))


# -------------------------------------------------------------- input packing
def pack_inputs(x_nchw, tb):
    """NCHW f32 -> (H0, B_padded, 256) bf16, lane = w*8 + c, batch padded to tb.
    In production, do this once upstream in the data pipeline."""
    B = x_nchw.shape[0]
    bp = ((B + tb - 1) // tb) * tb
    x = jnp.transpose(x_nchw, (0, 2, 3, 1))                       # NHWC
    x = jnp.pad(x, ((0, bp - B), (0, 0), (0, 0), (0, C0P - C0)))  # C 3->8
    x = x.reshape(bp, H0, L0)
    x = jnp.transpose(x, (1, 0, 2))                               # (H0, bp, L0)
    return x.astype(jnp.bfloat16)


# ------------------------------------------------------------------- forward --
def lenet_forward(x_nchw, wp, *, classes, tb=16):
    B = x_nchw.shape[0]
    x = pack_inputs(x_nchw, tb)
    bp = x.shape[1]
    steps = bp // tb

    def pinned(shape):                 # whole array, resident across all steps
        zeros = (0,) * len(shape)
        return pl.BlockSpec(shape, lambda s: zeros)

    out = pl.pallas_call(
        _lenet_kernel,
        out_shape=jax.ShapeDtypeStruct((bp, NPAD), jnp.float32),
        grid_spec=pltpu.PrefetchScalarGridSpec(
            num_scalar_prefetch=0,
            grid=(steps,),
            in_specs=[
                pl.BlockSpec((H0, tb, L0), lambda s: (0, s, 0)),  # image tile
                pinned((5, L0, 2 * LP)),   # conv1 weights (even|odd phases)
                pinned((1, LP)),           # conv1 bias
                pinned((5, LP, 2 * LP)),   # conv2 weights
                pinned((1, LP)),           # conv2 bias
                pinned((Q2, LP, NPAD)),    # fc1 (flatten folded, padded)
                pinned((1, NPAD)),         # fc1 bias
                pinned((NPAD, NPAD)),      # fc2
                pinned((1, NPAD)),         # fc2 bias
                pinned((NPAD, NPAD)),      # fc3
                pinned((1, NPAD)),         # fc3 bias
            ],
            out_specs=pl.BlockSpec((tb, NPAD), lambda s: (s, 0)),
            scratch_shapes=[
                pltpu.VMEM((Q1, tb, LP), jnp.bfloat16),   # z1: pooled conv1
                pltpu.VMEM((Q2, tb, LP), jnp.bfloat16),   # z2: pooled conv2
            ],
        ),
        compiler_params=pltpu.CompilerParams(
            dimension_semantics=("parallel",),
            vmem_limit_bytes=32 * 1024 * 1024),
    )(x, wp['w1'], wp['b1'], wp['w2'], wp['b2'],
      wp['wf1'], wp['fb1'], wp['wf2'], wp['fb2'], wp['wf3'], wp['fb3'])
    return out[:B, :classes]


# ----------------------------------------------------------- pure-JAX reference
def lenet_reference(x_nchw, p):
    def conv(x, w, b):
        y = jax.lax.conv_general_dilated(
            x, w, window_strides=(1, 1), padding='VALID',
            dimension_numbers=('NCHW', 'OIHW', 'NCHW'))
        return y + b.reshape(1, -1, 1, 1)

    def pool(x):
        return jax.lax.reduce_window(x, -jnp.inf, jax.lax.max,
                                     (1, 1, 2, 2), (1, 1, 2, 2), 'VALID')

    y = pool(jnp.maximum(conv(x_nchw, p['conv1_w'], p['conv1_b']), 0.0))
    y = pool(jnp.maximum(conv(y, p['conv2_w'], p['conv2_b']), 0.0))
    y = y.reshape(y.shape[0], -1)                       # (C,H,W) flatten order
    y = jnp.maximum(y @ p['fc1_w'].T + p['fc1_b'], 0.0)
    y = jnp.maximum(y @ p['fc2_w'].T + p['fc2_b'], 0.0)
    return y @ p['fc3_w'].T + p['fc3_b']


# ---------------------------------------------------------------------- setup --
def init_params(key, classes):
    ks = jax.random.split(key, 5)

    def xavier_normal(k, shape, fan_in, fan_out):
        std = (2.0 / (fan_in + fan_out)) ** 0.5
        return std * jax.random.normal(k, shape, jnp.float32)

    # initialize_weights(): conv = xavier_normal, linear = N(0, 0.1), biases 0.
    return {
        'conv1_w': xavier_normal(ks[0], (6, 3, 5, 5), 3 * 25, 6 * 25),
        'conv1_b': jnp.zeros((6,), jnp.float32),
        'conv2_w': xavier_normal(ks[1], (16, 6, 5, 5), 6 * 25, 16 * 25),
        'conv2_b': jnp.zeros((16,), jnp.float32),
        'fc1_w': 0.1 * jax.random.normal(ks[2], (120, 400), jnp.float32),
        'fc1_b': jnp.zeros((120,), jnp.float32),
        'fc2_w': 0.1 * jax.random.normal(ks[3], (84, 120), jnp.float32),
        'fc2_b': jnp.zeros((84,), jnp.float32),
        'fc3_w': 0.1 * jax.random.normal(ks[4], (classes, 84), jnp.float32),
        'fc3_b': jnp.zeros((classes,), jnp.float32),
    }


if __name__ == "__main__":
    classes = 10
    TB = 16                         # images per grid step (multiple of 8)
    key = jax.random.PRNGKey(0)
    kx, kp = jax.random.split(key)

    # 32x32 input is required so the flattened feature map is 16*5*5 = 400.
    # B=32 -> 2 batched grid steps (exercises the megacore-parallel grid).
    x = jax.random.normal(kx, (32, 3, 32, 32), jnp.float32)   # NCHW like PyTorch
    params = init_params(kp, classes)
    prepped = prepare_params(params, classes)                 # one-time layout

    fwd = jax.jit(functools.partial(lenet_forward, classes=classes, tb=TB))
    out = fwd(x, prepped)
    jax.block_until_ready(out)

    assert out.shape == (32, classes), out.shape
    assert bool(jnp.all(jnp.isfinite(out)))

    ref = lenet_reference(x, params)
    # bf16 MXU inputs with f32 accumulation -> tolerance sized accordingly.
    np.testing.assert_allclose(np.asarray(out), np.asarray(ref),
                               rtol=5e-2, atol=1e-1)
    print("KERNEL_OK")
</pallas_src>

<mosaic_0001>
module attributes {stable_mosaic.version = 11 : i64} {
  func.func @_lenet_kernel(%arg0: i32, %arg1: memref<32x16x256xbf16, #tpu.memory_space<vmem>>, %arg2: memref<5x256x256xbf16, #tpu.memory_space<vmem>>, %arg3: memref<1x128xf32, #tpu.memory_space<vmem>>, %arg4: memref<5x128x256xbf16, #tpu.memory_space<vmem>>, %arg5: memref<1x128xf32, #tpu.memory_space<vmem>>, %arg6: memref<5x128x128xbf16, #tpu.memory_space<vmem>>, %arg7: memref<1x128xf32, #tpu.memory_space<vmem>>, %arg8: memref<128x128xbf16, #tpu.memory_space<vmem>>, %arg9: memref<1x128xf32, #tpu.memory_space<vmem>>, %arg10: memref<128x128xbf16, #tpu.memory_space<vmem>>, %arg11: memref<1x128xf32, #tpu.memory_space<vmem>>, %arg12: memref<16x128xf32, #tpu.memory_space<vmem>>, %arg13: memref<14x16x128xbf16, #tpu.memory_space<vmem>>, %arg14: memref<5x16x128xbf16, #tpu.memory_space<vmem>>) attributes {dimension_semantics = [#tpu.dimension_semantics<parallel>], iteration_bounds = array<i64: 2>, scalar_prefetch = 0 : i64, scratch_operands = 2 : i64, tpu.core_type = #tpu.core_type<tc>, window_params = [{transform_indices = @transform_0, window_bounds = array<i64: 32, 16, 256>}, {pipeline_mode = #tpu.pipeline_mode<synchronous>, transform_indices = @transform_1, window_bounds = array<i64: 5, 256, 256>}, {pipeline_mode = #tpu.pipeline_mode<synchronous>, transform_indices = @transform_2, window_bounds = array<i64: 1, 128>}, {pipeline_mode = #tpu.pipeline_mode<synchronous>, transform_indices = @transform_3, window_bounds = array<i64: 5, 128, 256>}, {pipeline_mode = #tpu.pipeline_mode<synchronous>, transform_indices = @transform_4, window_bounds = array<i64: 1, 128>}, {pipeline_mode = #tpu.pipeline_mode<synchronous>, transform_indices = @transform_5, window_bounds = array<i64: 5, 128, 128>}, {pipeline_mode = #tpu.pipeline_mode<synchronous>, transform_indices = @transform_6, window_bounds = array<i64: 1, 128>}, {pipeline_mode = #tpu.pipeline_mode<synchronous>, transform_indices = @transform_7, window_bounds = array<i64: 128, 128>}, {pipeline_mode = #tpu.pipeline_mode<synchronous>, transform_indices = @transform_8, window_bounds = array<i64: 1, 128>}, {pipeline_mode = #tpu.pipeline_mode<synchronous>, transform_indices = @transform_9, window_bounds = array<i64: 128, 128>}, {pipeline_mode = #tpu.pipeline_mode<synchronous>, transform_indices = @transform_10, window_bounds = array<i64: 1, 128>}, {transform_indices = @transform_11, window_bounds = array<i64: 16, 128>}]} {
    %c0 = arith.constant 0 : index
    %c0_0 = arith.constant 0 : index
    %c0_1 = arith.constant 0 : index
    %0 = vector.load %arg1[%c0, %c0_0, %c0_1] : memref<32x16x256xbf16, #tpu.memory_space<vmem>>, vector<28x16x256xbf16>
    %1 = vector.shape_cast %0 : vector<28x16x256xbf16> to vector<448x256xbf16>
    %c0_2 = arith.constant 0 : index
    %c0_3 = arith.constant 0 : index
    %c0_4 = arith.constant 0 : index
    %2 = vector.load %arg2[%c0_2, %c0_3, %c0_4] : memref<5x256x256xbf16, #tpu.memory_space<vmem>>, vector<1x256x256xbf16>
    %3 = vector.shape_cast %2 : vector<1x256x256xbf16> to vector<256x256xbf16>
    %cst = arith.constant dense<0.000000e+00> : vector<448x256xf32>
    %4 = tpu.matmul %1, %3, %cst {dimension_numbers = #tpu.dot_dimension_numbers<[1], [0], [0], [1], [0, 0, 1, 1], [], []>} : vector<448x256xbf16>, vector<256x256xbf16>, vector<448x256xf32> -> vector<448x256xf32>
    %c1 = arith.constant 1 : index
    %c0_5 = arith.constant 0 : index
    %c0_6 = arith.constant 0 : index
    %5 = vector.load %arg1[%c1, %c0_5, %c0_6] : memref<32x16x256xbf16, #tpu.memory_space<vmem>>, vector<28x16x256xbf16>
    %6 = vector.shape_cast %5 : vector<28x16x256xbf16> to vector<448x256xbf16>
    %c1_7 = arith.constant 1 : index
    %c0_8 = arith.constant 0 : index
    %c0_9 = arith.constant 0 : index
    %7 = vector.load %arg2[%c1_7, %c0_8, %c0_9] : memref<5x256x256xbf16, #tpu.memory_space<vmem>>, vector<1x256x256xbf16>
    %8 = vector.shape_cast %7 : vector<1x256x256xbf16> to vector<256x256xbf16>
    %cst_10 = arith.constant dense<0.000000e+00> : vector<448x256xf32>
    %9 = tpu.matmul %6, %8, %cst_10 {dimension_numbers = #tpu.dot_dimension_numbers<[1], [0], [0], [1], [0, 0, 1, 1], [], []>} : vector<448x256xbf16>, vector<256x256xbf16>, vector<448x256xf32> -> vector<448x256xf32>
    %10 = arith.addf %4, %9 : vector<448x256xf32>
    %c2 = arith.constant 2 : index
    %c0_11 = arith.constant 0 : index
    %c0_12 = arith.constant 0 : index
    %11 = vector.load %arg1[%c2, %c0_11, %c0_12] : memref<32x16x256xbf16, #tpu.memory_space<vmem>>, vector<28x16x256xbf16>
    %12 = vector.shape_cast %11 : vector<28x16x256xbf16> to vector<448x256xbf16>
    %c2_13 = arith.constant 2 : index
    %c0_14 = arith.constant 0 : index
    %c0_15 = arith.constant 0 : index
    %13 = vector.load %arg2[%c2_13, %c0_14, %c0_15] : memref<5x256x256xbf16, #tpu.memory_space<vmem>>, vector<1x256x256xbf16>
    %14 = vector.shape_cast %13 : vector<1x256x256xbf16> to vector<256x256xbf16>
    %cst_16 = arith.constant dense<0.000000e+00> : vector<448x256xf32>
    %15 = tpu.matmul %12, %14, %cst_16 {dimension_numbers = #tpu.dot_dimension_numbers<[1], [0], [0], [1], [0, 0, 1, 1], [], []>} : vector<448x256xbf16>, vector<256x256xbf16>, vector<448x256xf32> -> vector<448x256xf32>
    %16 = arith.addf %10, %15 : vector<448x256xf32>
    %c3 = arith.constant 3 : index
    %c0_17 = arith.constant 0 : index
    %c0_18 = arith.constant 0 : index
    %17 = vector.load %arg1[%c3, %c0_17, %c0_18] : memref<32x16x256xbf16, #tpu.memory_space<vmem>>, vector<28x16x256xbf16>
    %18 = vector.shape_cast %17 : vector<28x16x256xbf16> to vector<448x256xbf16>
    %c3_19 = arith.constant 3 : index
    %c0_20 = arith.constant 0 : index
    %c0_21 = arith.constant 0 : index
    %19 = vector.load %arg2[%c3_19, %c0_20, %c0_21] : memref<5x256x256xbf16, #tpu.memory_space<vmem>>, vector<1x256x256xbf16>
    %20 = vector.shape_cast %19 : vector<1x256x256xbf16> to vector<256x256xbf16>
    %cst_22 = arith.constant dense<0.000000e+00> : vector<448x256xf32>
    %21 = tpu.matmul %18, %20, %cst_22 {dimension_numbers = #tpu.dot_dimension_numbers<[1], [0], [0], [1], [0, 0, 1, 1], [], []>} : vector<448x256xbf16>, vector<256x256xbf16>, vector<448x256xf32> -> vector<448x256xf32>
    %22 = arith.addf %16, %21 : vector<448x256xf32>
    %c4 = arith.constant 4 : index
    %c0_23 = arith.constant 0 : index
    %c0_24 = arith.constant 0 : index
    %23 = vector.load %arg1[%c4, %c0_23, %c0_24] : memref<32x16x256xbf16, #tpu.memory_space<vmem>>, vector<28x16x256xbf16>
    %24 = vector.shape_cast %23 : vector<28x16x256xbf16> to vector<448x256xbf16>
    %c4_25 = arith.constant 4 : index
    %c0_26 = arith.constant 0 : index
    %c0_27 = arith.constant 0 : index
    %25 = vector.load %arg2[%c4_25, %c0_26, %c0_27] : memref<5x256x256xbf16, #tpu.memory_space<vmem>>, vector<1x256x256xbf16>
    %26 = vector.shape_cast %25 : vector<1x256x256xbf16> to vector<256x256xbf16>
    %cst_28 = arith.constant dense<0.000000e+00> : vector<448x256xf32>
    %27 = tpu.matmul %24, %26, %cst_28 {dimension_numbers = #tpu.dot_dimension_numbers<[1], [0], [0], [1], [0, 0, 1, 1], [], []>} : vector<448x256xbf16>, vector<256x256xbf16>, vector<448x256xf32> -> vector<448x256xf32>
    %28 = arith.addf %22, %27 : vector<448x256xf32>
    %29 = vector.extract_strided_slice %28 {offsets = [0, 0], sizes = [448, 128], strides = [1, 1]} : vector<448x256xf32> to vector<448x128xf32>
    %30 = vector.extract_strided_slice %28 {offsets = [0, 128], sizes = [448, 128], strides = [1, 1]} : vector<448x256xf32> to vector<448x128xf32>
    %31 = arith.maximumf %29, %30 : vector<448x128xf32>
    %32 = vector.shape_cast %31 : vector<448x128xf32> to vector<14x32x128xf32>
    %33 = vector.extract_strided_slice %32 {offsets = [0, 0, 0], sizes = [14, 16, 128], strides = [1, 1, 1]} : vector<14x32x128xf32> to vector<14x16x128xf32>
    %34 = vector.extract_strided_slice %32 {offsets = [0, 16, 0], sizes = [14, 16, 128], strides = [1, 1, 1]} : vector<14x32x128xf32> to vector<14x16x128xf32>
    %35 = arith.maximumf %33, %34 : vector<14x16x128xf32>
    %c0_29 = arith.constant 0 : index
    %c0_30 = arith.constant 0 : index
    %36 = vector.load %arg3[%c0_29, %c0_30] : memref<1x128xf32, #tpu.memory_space<vmem>>, vector<1x128xf32>
    %37 = vector.shape_cast %36 : vector<1x128xf32> to vector<1x1x128xf32>
    %38 = vector.broadcast %37 : vector<1x1x128xf32> to vector<14x16x128xf32>
    %39 = arith.addf %35, %38 : vector<14x16x128xf32>
    %cst_31 = arith.constant 0.000000e+00 : f32
    %40 = vector.broadcast %cst_31 : f32 to vector<14x16x128xf32>
    %41 = arith.maximumf %39, %40 : vector<14x16x128xf32>
    %42 = arith.truncf %41 : vector<14x16x128xf32> to vector<14x16x128xbf16>
    %c0_32 = arith.constant 0 : index
    %c0_33 = arith.constant 0 : index
    %c0_34 = arith.constant 0 : index
    %43 = vector.load %arg13[%c0_32, %c0_33, %c0_34] : memref<14x16x128xbf16, #tpu.memory_space<vmem>>, vector<14x16x128xbf16>
    tpu.vector_store %arg13[%c0_32, %c0_33, %c0_34], %42 {strides = array<i32>} : memref<14x16x128xbf16, #tpu.memory_space<vmem>>, vector<14x16x128xbf16>,
    %c0_35 = arith.constant 0 : index
    %c0_36 = arith.constant 0 : index
    %c0_37 = arith.constant 0 : index
    %44 = vector.load %arg13[%c0_35, %c0_36, %c0_37] : memref<14x16x128xbf16, #tpu.memory_space<vmem>>, vector<10x16x128xbf16>
    %45 = vector.shape_cast %44 : vector<10x16x128xbf16> to vector<160x128xbf16>
    %c0_38 = arith.constant 0 : index
    %c0_39 = arith.constant 0 : index
    %c0_40 = arith.constant 0 : index
    %46 = vector.load %arg4[%c0_38, %c0_39, %c0_40] : memref<5x128x256xbf16, #tpu.memory_space<vmem>>, vector<1x128x256xbf16>
    %47 = vector.shape_cast %46 : vector<1x128x256xbf16> to vector<128x256xbf16>
    %cst_41 = arith.constant dense<0.000000e+00> : vector<160x256xf32>
    %48 = tpu.matmul %45, %47, %cst_41 {dimension_numbers = #tpu.dot_dimension_numbers<[1], [0], [0], [1], [0, 0, 1, 1], [], []>} : vector<160x128xbf16>, vector<128x256xbf16>, vector<160x256xf32> -> vector<160x256xf32>
    %c1_42 = arith.constant 1 : index
    %c0_43 = arith.constant 0 : index
    %c0_44 = arith.constant 0 : index
    %49 = vector.load %arg13[%c1_42, %c0_43, %c0_44] : memref<14x16x128xbf16, #tpu.memory_space<vmem>>, vector<10x16x128xbf16>
    %50 = vector.shape_cast %49 : vector<10x16x128xbf16> to vector<160x128xbf16>
    %c1_45 = arith.constant 1 : index
    %c0_46 = arith.constant 0 : index
    %c0_47 = arith.constant 0 : index
    %51 = vector.load %arg4[%c1_45, %c0_46, %c0_47] : memref<5x128x256xbf16, #tpu.memory_space<vmem>>, vector<1x128x256xbf16>
    %52 = vector.shape_cast %51 : vector<1x128x256xbf16> to vector<128x256xbf16>
    %cst_48 = arith.constant dense<0.000000e+00> : vector<160x256xf32>
    %53 = tpu.matmul %50, %52, %cst_48 {dimension_numbers = #tpu.dot_dimension_numbers<[1], [0], [0], [1], [0, 0, 1, 1], [], []>} : vector<160x128xbf16>, vector<128x256xbf16>, vector<160x256xf32> -> vector<160x256xf32>
    %54 = arith.addf %48, %53 : vector<160x256xf32>
    %c2_49 = arith.constant 2 : index
    %c0_50 = arith.constant 0 : index
    %c0_51 = arith.constant 0 : index
    %55 = vector.load %arg13[%c2_49, %c0_50, %c0_51] : memref<14x16x128xbf16, #tpu.memory_space<vmem>>, vector<10x16x128xbf16>
    %56 = vector.shape_cast %55 : vector<10x16x128xbf16> to vector<160x128xbf16>
    %c2_52 = arith.constant 2 : index
    %c0_53 = arith.constant 0 : index
    %c0_54 = arith.constant 0 : index
    %57 = vector.load %arg4[%c2_52, %c0_53, %c0_54] : memref<5x128x256xbf16, #tpu.memory_space<vmem>>, vector<1x128x256xbf16>
    %58 = vector.shape_cast %57 : vector<1x128x256xbf16> to vector<128x256xbf16>
    %cst_55 = arith.constant dense<0.000000e+00> : vector<160x256xf32>
    %59 = tpu.matmul %56, %58, %cst_55 {dimension_numbers = #tpu.dot_dimension_numbers<[1], [0], [0], [1], [0, 0, 1, 1], [], []>} : vector<160x128xbf16>, vector<128x256xbf16>, vector<160x256xf32> -> vector<160x256xf32>
    %60 = arith.addf %54, %59 : vector<160x256xf32>
    %c3_56 = arith.constant 3 : index
    %c0_57 = arith.constant 0 : index
    %c0_58 = arith.constant 0 : index
    %61 = vector.load %arg13[%c3_56, %c0_57, %c0_58] : memref<14x16x128xbf16, #tpu.memory_space<vmem>>, vector<10x16x128xbf16>
    %62 = vector.shape_cast %61 : vector<10x16x128xbf16> to vector<160x128xbf16>
    %c3_59 = arith.constant 3 : index
    %c0_60 = arith.constant 0 : index
    %c0_61 = arith.constant 0 : index
    %63 = vector.load %arg4[%c3_59, %c0_60, %c0_61] : memref<5x128x256xbf16, #tpu.memory_space<vmem>>, vector<1x128x256xbf16>
    %64 = vector.shape_cast %63 : vector<1x128x256xbf16> to vector<128x256xbf16>
    %cst_62 = arith.constant dense<0.000000e+00> : vector<160x256xf32>
    %65 = tpu.matmul %62, %64, %cst_62 {dimension_numbers = #tpu.dot_dimension_numbers<[1], [0], [0], [1], [0, 0, 1, 1], [], []>} : vector<160x128xbf16>, vector<128x256xbf16>, vector<160x256xf32> -> vector<160x256xf32>
    %66 = arith.addf %60, %65 : vector<160x256xf32>
    %c4_63 = arith.constant 4 : index
    %c0_64 = arith.constant 0 : index
    %c0_65 = arith.constant 0 : index
    %67 = vector.load %arg13[%c4_63, %c0_64, %c0_65] : memref<14x16x128xbf16, #tpu.memory_space<vmem>>, vector<10x16x128xbf16>
    %68 = vector.shape_cast %67 : vector<10x16x128xbf16> to vector<160x128xbf16>
    %c4_66 = arith.constant 4 : index
    %c0_67 = arith.constant 0 : index
    %c0_68 = arith.constant 0 : index
    %69 = vector.load %arg4[%c4_66, %c0_67, %c0_68] : memref<5x128x256xbf16, #tpu.memory_space<vmem>>, vector<1x128x256xbf16>
    %70 = vector.shape_cast %69 : vector<1x128x256xbf16> to vector<128x256xbf16>
    %cst_69 = arith.constant dense<0.000000e+00> : vector<160x256xf32>
    %71 = tpu.matmul %68, %70, %cst_69 {dimension_numbers = #tpu.dot_dimension_numbers<[1], [0], [0], [1], [0, 0, 1, 1], [], []>} : vector<160x128xbf16>, vector<128x256xbf16>, vector<160x256xf32> -> vector<160x256xf32>
    %72 = arith.addf %66, %71 : vector<160x256xf32>
    %73 = vector.extract_strided_slice %72 {offsets = [0, 0], sizes = [160, 128], strides = [1, 1]} : vector<160x256xf32> to vector<160x128xf32>
    %74 = vector.extract_strided_slice %72 {offsets = [0, 128], sizes = [160, 128], strides = [1, 1]} : vector<160x256xf32> to vector<160x128xf32>
    %75 = arith.maximumf %73, %74 : vector<160x128xf32>
    %76 = vector.shape_cast %75 : vector<160x128xf32> to vector<5x32x128xf32>
    %77 = vector.extract_strided_slice %76 {offsets = [0, 0, 0], sizes = [5, 16, 128], strides = [1, 1, 1]} : vector<5x32x128xf32> to vector<5x16x128xf32>
    %78 = vector.extract_strided_slice %76 {offsets = [0, 16, 0], sizes = [5, 16, 128], strides = [1, 1, 1]} : vector<5x32x128xf32> to vector<5x16x128xf32>
    %79 = arith.maximumf %77, %78 : vector<5x16x128xf32>
    %c0_70 = arith.constant 0 : index
    %c0_71 = arith.constant 0 : index
    %80 = vector.load %arg5[%c0_70, %c0_71] : memref<1x128xf32, #tpu.memory_space<vmem>>, vector<1x128xf32>
    %81 = vector.shape_cast %80 : vector<1x128xf32> to vector<1x1x128xf32>
    %82 = vector.broadcast %81 : vector<1x1x128xf32> to vector<5x16x128xf32>
    %83 = arith.addf %79, %82 : vector<5x16x128xf32>
    %cst_72 = arith.constant 0.000000e+00 : f32
    %84 = vector.broadcast %cst_72 : f32 to vector<5x16x128xf32>
    %85 = arith.maximumf %83, %84 : vector<5x16x128xf32>
    %86 = arith.truncf %85 : vector<5x16x128xf32> to vector<5x16x128xbf16>
    %c0_73 = arith.constant 0 : index
    %c0_74 = arith.constant 0 : index
    %c0_75 = arith.constant 0 : index
    %87 = vector.load %arg14[%c0_73, %c0_74, %c0_75] : memref<5x16x128xbf16, #tpu.memory_space<vmem>>, vector<5x16x128xbf16>
    tpu.vector_store %arg14[%c0_73, %c0_74, %c0_75], %86 {strides = array<i32>} : memref<5x16x128xbf16, #tpu.memory_space<vmem>>, vector<5x16x128xbf16>,
    %c0_76 = arith.constant 0 : index
    %c0_77 = arith.constant 0 : index
    %c0_78 = arith.constant 0 : index
    %88 = vector.load %arg14[%c0_76, %c0_77, %c0_78] : memref<5x16x128xbf16, #tpu.memory_space<vmem>>, vector<1x16x128xbf16>
    %89 = vector.shape_cast %88 : vector<1x16x128xbf16> to vector<16x128xbf16>
    %c0_79 = arith.constant 0 : index
    %c0_80 = arith.constant 0 : index
    %c0_81 = arith.constant 0 : index
    %90 = vector.load %arg6[%c0_79, %c0_80, %c0_81] : memref<5x128x128xbf16, #tpu.memory_space<vmem>>, vector<1x128x128xbf16>
    %91 = vector.shape_cast %90 : vector<1x128x128xbf16> to vector<128x128xbf16>
    %cst_82 = arith.constant dense<0.000000e+00> : vector<16x128xf32>
    %92 = tpu.matmul %89, %91, %cst_82 {dimension_numbers = #tpu.dot_dimension_numbers<[1], [0], [0], [1], [0, 0, 1, 1], [], []>} : vector<16x128xbf16>, vector<128x128xbf16>, vector<16x128xf32> -> vector<16x128xf32>
    %c1_83 = arith.constant 1 : index
    %c0_84 = arith.constant 0 : index
    %c0_85 = arith.constant 0 : index
    %93 = vector.load %arg14[%c1_83, %c0_84, %c0_85] : memref<5x16x128xbf16, #tpu.memory_space<vmem>>, vector<1x16x128xbf16>
    %94 = vector.shape_cast %93 : vector<1x16x128xbf16> to vector<16x128xbf16>
    %c1_86 = arith.constant 1 : index
    %c0_87 = arith.constant 0 : index
    %c0_88 = arith.constant 0 : index
    %95 = vector.load %arg6[%c1_86, %c0_87, %c0_88] : memref<5x128x128xbf16, #tpu.memory_space<vmem>>, vector<1x128x128xbf16>
    %96 = vector.shape_cast %95 : vector<1x128x128xbf16> to vector<128x128xbf16>
    %cst_89 = arith.constant dense<0.000000e+00> : vector<16x128xf32>
    %97 = tpu.matmul %94, %96, %cst_89 {dimension_numbers = #tpu.dot_dimension_numbers<[1], [0], [0], [1], [0, 0, 1, 1], [], []>} : vector<16x128xbf16>, vector<128x128xbf16>, vector<16x128xf32> -> vector<16x128xf32>
    %98 = arith.addf %92, %97 : vector<16x128xf32>
    %c2_90 = arith.constant 2 : index
    %c0_91 = arith.constant 0 : index
    %c0_92 = arith.constant 0 : index
    %99 = vector.load %arg14[%c2_90, %c0_91, %c0_92] : memref<5x16x128xbf16, #tpu.memory_space<vmem>>, vector<1x16x128xbf16>
    %100 = vector.shape_cast %99 : vector<1x16x128xbf16> to vector<16x128xbf16>
    %c2_93 = arith.constant 2 : index
    %c0_94 = arith.constant 0 : index
    %c0_95 = arith.constant 0 : index
    %101 = vector.load %arg6[%c2_93, %c0_94, %c0_95] : memref<5x128x128xbf16, #tpu.memory_space<vmem>>, vector<1x128x128xbf16>
    %102 = vector.shape_cast %101 : vector<1x128x128xbf16> to vector<128x128xbf16>
    %cst_96 = arith.constant dense<0.000000e+00> : vector<16x128xf32>
    %103 = tpu.matmul %100, %102, %cst_96 {dimension_numbers = #tpu.dot_dimension_numbers<[1], [0], [0], [1], [0, 0, 1, 1], [], []>} : vector<16x128xbf16>, vector<128x128xbf16>, vector<16x128xf32> -> vector<16x128xf32>
    %104 = arith.addf %98, %103 : vector<16x128xf32>
    %c3_97 = arith.constant 3 : index
    %c0_98 = arith.constant 0 : index
    %c0_99 = arith.constant 0 : index
    %105 = vector.load %arg14[%c3_97, %c0_98, %c0_99] : memref<5x16x128xbf16, #tpu.memory_space<vmem>>, vector<1x16x128xbf16>
    %106 = vector.shape_cast %105 : vector<1x16x128xbf16> to vector<16x128xbf16>
    %c3_100 = arith.constant 3 : index
    %c0_101 = arith.constant 0 : index
    %c0_102 = arith.constant 0 : index
    %107 = vector.load %arg6[%c3_100, %c0_101, %c0_102] : memref<5x128x128xbf16, #tpu.memory_space<vmem>>, vector<1x128x128xbf16>
    %108 = vector.shape_cast %107 : vector<1x128x128xbf16> to vector<128x128xbf16>
    %cst_103 = arith.constant dense<0.000000e+00> : vector<16x128xf32>
    %109 = tpu.matmul %106, %108, %cst_103 {dimension_numbers = #tpu.dot_dimension_numbers<[1], [0], [0], [1], [0, 0, 1, 1], [], []>} : vector<16x128xbf16>, vector<128x128xbf16>, vector<16x128xf32> -> vector<16x128xf32>
    %110 = arith.addf %104, %109 : vector<16x128xf32>
    %c4_104 = arith.constant 4 : index
    %c0_105 = arith.constant 0 : index
    %c0_106 = arith.constant 0 : index
    %111 = vector.load %arg14[%c4_104, %c0_105, %c0_106] : memref<5x16x128xbf16, #tpu.memory_space<vmem>>, vector<1x16x128xbf16>
    %112 = vector.shape_cast %111 : vector<1x16x128xbf16> to vector<16x128xbf16>
    %c4_107 = arith.constant 4 : index
    %c0_108 = arith.constant 0 : index
    %c0_109 = arith.constant 0 : index
    %113 = vector.load %arg6[%c4_107, %c0_108, %c0_109] : memref<5x128x128xbf16, #tpu.memory_space<vmem>>, vector<1x128x128xbf16>
    %114 = vector.shape_cast %113 : vector<1x128x128xbf16> to vector<128x128xbf16>
    %cst_110 = arith.constant dense<0.000000e+00> : vector<16x128xf32>
    %115 = tpu.matmul %112, %114, %cst_110 {dimension_numbers = #tpu.dot_dimension_numbers<[1], [0], [0], [1], [0, 0, 1, 1], [], []>} : vector<16x128xbf16>, vector<128x128xbf16>, vector<16x128xf32> -> vector<16x128xf32>
    %116 = arith.addf %110, %115 : vector<16x128xf32>
    %c0_111 = arith.constant 0 : index
    %c0_112 = arith.constant 0 : index
    %117 = vector.load %arg7[%c0_111, %c0_112] : memref<1x128xf32, #tpu.memory_space<vmem>>, vector<1x128xf32>
    %118 = vector.broadcast %117 : vector<1x128xf32> to vector<16x128xf32>
    %119 = arith.addf %116, %118 : vector<16x128xf32>
    %cst_113 = arith.constant 0.000000e+00 : f32
    %120 = vector.broadcast %cst_113 : f32 to vector<16x128xf32>
    %121 = arith.maximumf %119, %120 : vector<16x128xf32>
    %122 = arith.truncf %121 : vector<16x128xf32> to vector<16x128xbf16>
    %c0_114 = arith.constant 0 : index
    %c0_115 = arith.constant 0 : index
    %123 = vector.load %arg8[%c0_114, %c0_115] : memref<128x128xbf16, #tpu.memory_space<vmem>>, vector<128x128xbf16>
    %cst_116 = arith.constant dense<0.000000e+00> : vector<16x128xf32>
    %124 = tpu.matmul %122, %123, %cst_116 {dimension_numbers = #tpu.dot_dimension_numbers<[1], [0], [0], [1], [0, 0, 1, 1], [], []>} : vector<16x128xbf16>, vector<128x128xbf16>, vector<16x128xf32> -> vector<16x128xf32>
    %c0_117 = arith.constant 0 : index
    %c0_118 = arith.constant 0 : index
    %125 = vector.load %arg9[%c0_117, %c0_118] : memref<1x128xf32, #tpu.memory_space<vmem>>, vector<1x128xf32>
    %126 = vector.broadcast %125 : vector<1x128xf32> to vector<16x128xf32>
    %127 = arith.addf %124, %126 : vector<16x128xf32>
    %cst_119 = arith.constant 0.000000e+00 : f32
    %128 = vector.broadcast %cst_119 : f32 to vector<16x128xf32>
    %129 = arith.maximumf %127, %128 : vector<16x128xf32>
    %130 = arith.truncf %129 : vector<16x128xf32> to vector<16x128xbf16>
    %c0_120 = arith.constant 0 : index
    %c0_121 = arith.constant 0 : index
    %131 = vector.load %arg10[%c0_120, %c0_121] : memref<128x128xbf16, #tpu.memory_space<vmem>>, vector<128x128xbf16>
    %cst_122 = arith.constant dense<0.000000e+00> : vector<16x128xf32>
    %132 = tpu.matmul %130, %131, %cst_122 {dimension_numbers = #tpu.dot_dimension_numbers<[1], [0], [0], [1], [0, 0, 1, 1], [], []>} : vector<16x128xbf16>, vector<128x128xbf16>, vector<16x128xf32> -> vector<16x128xf32>
    %c0_123 = arith.constant 0 : index
    %c0_124 = arith.constant 0 : index
    %133 = vector.load %arg11[%c0_123, %c0_124] : memref<1x128xf32, #tpu.memory_space<vmem>>, vector<1x128xf32>
    %134 = vector.broadcast %133 : vector<1x128xf32> to vector<16x128xf32>
    %135 = arith.addf %132, %134 : vector<16x128xf32>
    %c0_125 = arith.constant 0 : index
    %c0_126 = arith.constant 0 : index
    %136 = vector.load %arg12[%c0_125, %c0_126] : memref<16x128xf32, #tpu.memory_space<vmem>>, vector<16x128xf32>
    tpu.vector_store %arg12[%c0_125, %c0_126], %135 {strides = array<i32>} : memref<16x128xf32, #tpu.memory_space<vmem>>, vector<16x128xf32>,
    return
  }
  func.func @transform_0(%arg0: i32) -> (i32, i32, i32) {
    %c0_i32 = arith.constant 0 : i32
    %c0_i32_0 = arith.constant 0 : i32
    %c0_i32_1 = arith.constant 0 : i32
    return %c0_i32, %arg0, %c0_i32_0 : i32, i32, i32
  }
  func.func @transform_1(%arg0: i32) -> (i32, i32, i32) {
    %c0_i32 = arith.constant 0 : i32
    %c0_i32_0 = arith.constant 0 : i32
    %c0_i32_1 = arith.constant 0 : i32
    %c0_i32_2 = arith.constant 0 : i32
    return %c0_i32, %c0_i32_0, %c0_i32_1 : i32, i32, i32
  }
  func.func @transform_2(%arg0: i32) -> (i32, i32) {
    %c0_i32 = arith.constant 0 : i32
    %c0_i32_0 = arith.constant 0 : i32
    %c0_i32_1 = arith.constant 0 : i32
    return %c0_i32, %c0_i32_0 : i32, i32
  }
  func.func @transform_3(%arg0: i32) -> (i32, i32, i32) {
    %c0_i32 = arith.constant 0 : i32
    %c0_i32_0 = arith.constant 0 : i32
    %c0_i32_1 = arith.constant 0 : i32
    %c0_i32_2 = arith.constant 0 : i32
    return %c0_i32, %c0_i32_0, %c0_i32_1 : i32, i32, i32
  }
  func.func @transform_4(%arg0: i32) -> (i32, i32) {
    %c0_i32 = arith.constant 0 : i32
    %c0_i32_0 = arith.constant 0 : i32
    %c0_i32_1 = arith.constant 0 : i32
    return %c0_i32, %c0_i32_0 : i32, i32
  }
  func.func @transform_5(%arg0: i32) -> (i32, i32, i32) {
    %c0_i32 = arith.constant 0 : i32
    %c0_i32_0 = arith.constant 0 : i32
    %c0_i32_1 = arith.constant 0 : i32
    %c0_i32_2 = arith.constant 0 : i32
    return %c0_i32, %c0_i32_0, %c0_i32_1 : i32, i32, i32
  }
  func.func @transform_6(%arg0: i32) -> (i32, i32) {
    %c0_i32 = arith.constant 0 : i32
    %c0_i32_0 = arith.constant 0 : i32
    %c0_i32_1 = arith.constant 0 : i32
    return %c0_i32, %c0_i32_0 : i32, i32
  }
  func.func @transform_7(%arg0: i32) -> (i32, i32) {
    %c0_i32 = arith.constant 0 : i32
    %c0_i32_0 = arith.constant 0 : i32
    %c0_i32_1 = arith.constant 0 : i32
    return %c0_i32, %c0_i32_0 : i32, i32
  }
  func.func @transform_8(%arg0: i32) -> (i32, i32) {
    %c0_i32 = arith.constant 0 : i32
    %c0_i32_0 = arith.constant 0 : i32
    %c0_i32_1 = arith.constant 0 : i32
    return %c0_i32, %c0_i32_0 : i32, i32
  }
  func.func @transform_9(%arg0: i32) -> (i32, i32) {
    %c0_i32 = arith.constant 0 : i32
    %c0_i32_0 = arith.constant 0 : i32
    %c0_i32_1 = arith.constant 0 : i32
    return %c0_i32, %c0_i32_0 : i32, i32
  }
  func.func @transform_10(%arg0: i32) -> (i32, i32) {
    %c0_i32 = arith.constant 0 : i32
    %c0_i32_0 = arith.constant 0 : i32
    %c0_i32_1 = arith.constant 0 : i32
    return %c0_i32, %c0_i32_0 : i32, i32
  }
  func.func @transform_11(%arg0: i32) -> (i32, i32) {
    %c0_i32 = arith.constant 0 : i32
    %c0_i32_0 = arith.constant 0 : i32
    return %arg0, %c0_i32 : i32, i32
  }
}

</mosaic_0001>

<llo_original>
// kernel: lenet_forward.1
$region0: #{lenet_forward.1}
  #allocation0 [shape = 'u32[]', space=smem, size = 0x4, offset = 0x4, fixed_abs, tag = 'smem constant byte address 0x4 - core index']
  #allocation1 [shape = 'u32[144,128]{1,0:T(1,128)}', space=vmem, size = 0x12000, scoped, tag = 'internal scratch']
  #allocation2 [shape = 'bf16[14,16,128]{2,1,0:T(16,128)(2,1)}', space=vmem, size = 0xe000, scoped, tag = 'scratch operand']
  #allocation3 [shape = 'bf16[5,16,128]{2,1,0:T(16,128)(2,1)}', space=vmem, size = 0x5000, scoped, tag = 'scratch operand']
  %s0 = inlined_call_operand.vmem [shape: bf16[32,32,256], index: 0, kind: input, shape index: {}]
  %s1 = inlined_call_operand.vmem [shape: bf16[5,256,256], index: 1, kind: input, shape index: {}]
  %s2 = inlined_call_operand.vmem [shape: f32[1,128], index: 2, kind: input, shape index: {}]
  %s3 = inlined_call_operand.vmem [shape: bf16[5,128,256], index: 3, kind: input, shape index: {}]
  %s4 = inlined_call_operand.vmem [shape: f32[1,128], index: 4, kind: input, shape index: {}]
  %s5 = inlined_call_operand.vmem [shape: bf16[5,128,128], index: 5, kind: input, shape index: {}]
  %s6 = inlined_call_operand.vmem [shape: f32[1,128], index: 6, kind: input, shape index: {}]
  %s7 = inlined_call_operand.vmem [shape: bf16[128,128], index: 7, kind: input, shape index: {}]
  %s8 = inlined_call_operand.vmem [shape: f32[1,128], index: 8, kind: input, shape index: {}]
  %s9 = inlined_call_operand.vmem [shape: bf16[128,128], index: 9, kind: input, shape index: {}]
  %s10 = inlined_call_operand.vmem [shape: f32[1,128], index: 10, kind: input, shape index: {}]
  %s11 = inlined_call_operand.vmem [shape: f32[32,128], index: 11, kind: output, shape index: {}]
  %s12 = sld [smem:[#allocation0]]
  $region115: #{lenet_forward.1} parent=0
    _
  %s14 = ssub.s32 1, %s12
  %s15 = scalar_select 0, %s14, %s12
  $region1: #{lenet_forward.1} parent=0
    #allocation4 [shape = 'u8[524288]{0}', space=vmem, size = 0x80000, scoped, tag = 'input window, operand 0']
    loop: start=0, step=1, limit=4
    $region2: #{lenet_forward.1} parent=1 // loop_pre_header
      _
    $region3: #{lenet_forward.1} parent=1 // loop_header
      %s17 = sphi 0, %s21
      %p18 = scmp.ge.s32.totalorder %s17, 4
      %s27 = sphi 0, %s29
      %s30 = sphi 0, %s27
      %s31 = sphi 0, %s30
      %s47 = sphi 0, %s31
      %s51 = sphi 0, %s51
      %s53 = sphi 0, %s51
      %s54 = sphi 0, %s53
      %s68 = sphi 0, %s54
      %s72 = sphi 0, %s72
      %s74 = sphi 0, %s72
      %s75 = sphi 0, %s74
      %s89 = sphi 0, %s75
      %s93 = sphi 0, %s93
      %s95 = sphi 0, %s93
      %s96 = sphi 0, %s95
      %s110 = sphi 0, %s96
      %s114 = sphi 0, %s114
      %s116 = sphi 0, %s114
      %s117 = sphi 0, %s116
      %s131 = sphi 0, %s117
      %s135 = sphi 0, %s135
      %s137 = sphi 0, %s135
      %s138 = sphi 0, %s137
      %s152 = sphi 0, %s138
      %s156 = sphi 0, %s156
      %s158 = sphi 0, %s156
      %s159 = sphi 0, %s158
      %s173 = sphi 0, %s159
      %s177 = sphi 0, %s177
      %s179 = sphi 0, %s177
      %s180 = sphi 0, %s179
      %s194 = sphi 0, %s180
      %s198 = sphi 0, %s198
      %s200 = sphi 0, %s198
      %s201 = sphi 0, %s200
      %s215 = sphi 0, %s201
      %s219 = sphi 0, %s219
      %s221 = sphi 0, %s219
      %s222 = sphi 0, %s221
      %s236 = sphi 0, %s222
      %s240 = sphi 0, %s240
      %s242 = sphi 0, %s240
      %s243 = sphi 0, %s242
      %s257 = sphi 0, %s243
      %s263 = sphi 0, %s265
      %s266 = sphi 0, %s263
      %s267 = sphi 0, %s266
      %s283 = sphi 0, %s267
    $region4: #{lenet_forward.1} parent=1 // loop_header_branch
      %20 = sbr.rel (%p18) target = $region8
    $region5: #{lenet_forward.1} parent=1 // loop_body
      %s22 = ssub.s32 %s17, 1
      %s23 = ssub.s32 %s17, 2
      %s24 = sadd.s32 %s17, 1
      %s25 = ssub.s32 %s17, %s24
      %p26 = scmp.eq.s32.totalorder %s25, 0
      %s28 = sadd.s32 %s27, 1
      %s29 = scalar_select %p26, %s27, %s28
      %p32 = pneg %p26
      %p33 = scmp.eq.s32.totalorder %s17, 1
      %p34 = por %p32, %p33
      %p35 = scmp.ne.s32.totalorder %s27, %s30
      %p36 = scmp.eq.s32.totalorder %s17, 0
      %p37 = por %p35, %p36
      %p38 = scmp.ne.s32.totalorder %s27, %s30
      %p39 = scmp.eq.s32.totalorder %s22, 1
      %p40 = por %p38, %p39
      %p41 = scmp.ne.s32.totalorder %s30, %s31
      %p42 = scmp.eq.s32.totalorder %s22, 0
      %p43 = por %p41, %p42
      %p44 = scmp.ne.s32.totalorder %s30, %s31
      %p45 = scmp.eq.s32.totalorder %s23, 1
      %p46 = por %p44, %p45
      %p48 = scmp.ne.s32.totalorder %s31, %s47
      %p49 = scmp.eq.s32.totalorder %s23, 0
      %p50 = por %p48, %p49
      %s52 = sadd.s32 %s51, 1
      %p55 = scmp.eq.s32.totalorder %s17, 1
      %p56 = scmp.ne.s32.totalorder %s51, %s53
      %p57 = scmp.eq.s32.totalorder %s17, 0
      %p58 = por %p56, %p57
      %p59 = scmp.ne.s32.totalorder %s51, %s53
      %p60 = scmp.eq.s32.totalorder %s22, 1
      %p61 = por %p59, %p60
      %p62 = scmp.ne.s32.totalorder %s53, %s54
      %p63 = scmp.eq.s32.totalorder %s22, 0
      %p64 = por %p62, %p63
      %p65 = scmp.ne.s32.totalorder %s53, %s54
      %p66 = scmp.eq.s32.totalorder %s23, 1
      %p67 = por %p65, %p66
      %p69 = scmp.ne.s32.totalorder %s54, %s68
      %p70 = scmp.eq.s32.totalorder %s23, 0
      %p71 = por %p69, %p70
      %s73 = sadd.s32 %s72, 1
      %p76 = scmp.eq.s32.totalorder %s17, 1
      %p77 = scmp.ne.s32.totalorder %s72, %s74
      %p78 = scmp.eq.s32.totalorder %s17, 0
      %p79 = por %p77, %p78
      %p80 = scmp.ne.s32.totalorder %s72, %s74
      %p81 = scmp.eq.s32.totalorder %s22, 1
      %p82 = por %p80, %p81
      %p83 = scmp.ne.s32.totalorder %s74, %s75
      %p84 = scmp.eq.s32.totalorder %s22, 0
      %p85 = por %p83, %p84
      %p86 = scmp.ne.s32.totalorder %s74, %s75
      %p87 = scmp.eq.s32.totalorder %s23, 1
      %p88 = por %p86, %p87
      %p90 = scmp.ne.s32.totalorder %s75, %s89
      %p91 = scmp.eq.s32.totalorder %s23, 0
      %p92 = por %p90, %p91
      %s94 = sadd.s32 %s93, 1
      %p97 = scmp.eq.s32.totalorder %s17, 1
      %p98 = scmp.ne.s32.totalorder %s93, %s95
      %p99 = scmp.eq.s32.totalorder %s17, 0
      %p100 = por %p98, %p99
      %p101 = scmp.ne.s32.totalorder %s93, %s95
      %p102 = scmp.eq.s32.totalorder %s22, 1
      %p103 = por %p101, %p102
      %p104 = scmp.ne.s32.totalorder %s95, %s96
      %p105 = scmp.eq.s32.totalorder %s22, 0
      %p106 = por %p104, %p105
      %p107 = scmp.ne.s32.totalorder %s95, %s96
      %p108 = scmp.eq.s32.totalorder %s23, 1
      %p109 = por %p107, %p108
      %p111 = scmp.ne.s32.totalorder %s96, %s110
      %p112 = scmp.eq.s32.totalorder %s23, 0
      %p113 = por %p111, %p112
      %s115 = sadd.s32 %s114, 1
      %p118 = scmp.eq.s32.totalorder %s17, 1
      %p119 = scmp.ne.s32.totalorder %s114, %s116
      %p120 = scmp.eq.s32.totalorder %s17, 0
      %p121 = por %p119, %p120
      %p122 = scmp.ne.s32.totalorder %s114, %s116
      %p123 = scmp.eq.s32.totalorder %s22, 1
      %p124 = por %p122, %p123
      %p125 = scmp.ne.s32.totalorder %s116, %s117
      %p126 = scmp.eq.s32.totalorder %s22, 0
      %p127 = por %p125, %p126
      %p128 = scmp.ne.s32.totalorder %s116, %s117
      %p129 = scmp.eq.s32.totalorder %s23, 1
      %p130 = por %p128, %p129
      %p132 = scmp.ne.s32.totalorder %s117, %s131
      %p133 = scmp.eq.s32.totalorder %s23, 0
      %p134 = por %p132, %p133
      %s136 = sadd.s32 %s135, 1
      %p139 = scmp.eq.s32.totalorder %s17, 1
      %p140 = scmp.ne.s32.totalorder %s135, %s137
      %p141 = scmp.eq.s32.totalorder %s17, 0
      %p142 = por %p140, %p141
      %p143 = scmp.ne.s32.totalorder %s135, %s137
      %p144 = scmp.eq.s32.totalorder %s22, 1
      %p145 = por %p143, %p144
      %p146 = scmp.ne.s32.totalorder %s137, %s138
      %p147 = scmp.eq.s32.totalorder %s22, 0
      %p148 = por %p146, %p147
      %p149 = scmp.ne.s32.totalorder %s137, %s138
      %p150 = scmp.eq.s32.totalorder %s23, 1
      %p151 = por %p149, %p150
      %p153 = scmp.ne.s32.totalorder %s138, %s152
      %p154 = scmp.eq.s32.totalorder %s23, 0
      %p155 = por %p153, %p154
      %s157 = sadd.s32 %s156, 1
      %p160 = scmp.eq.s32.totalorder %s17, 1
      %p161 = scmp.ne.s32.totalorder %s156, %s158
      %p162 = scmp.eq.s32.totalorder %s17, 0
      %p163 = por %p161, %p162
      %p164 = scmp.ne.s32.totalorder %s156, %s158
      %p165 = scmp.eq.s32.totalorder %s22, 1
      %p166 = por %p164, %p165
      %p167 = scmp.ne.s32.totalorder %s158, %s159
      %p168 = scmp.eq.s32.totalorder %s22, 0
      %p169 = por %p167, %p168
      %p170 = scmp.ne.s32.totalorder %s158, %s159
      %p171 = scmp.eq.s32.totalorder %s23, 1
      %p172 = por %p170, %p171
      %p174 = scmp.ne.s32.totalorder %s159, %s173
      %p175 = scmp.eq.s32.totalorder %s23, 0
      %p176 = por %p174, %p175
      %s178 = sadd.s32 %s177, 1
      %p181 = scmp.eq.s32.totalorder %s17, 1
      %p182 = scmp.ne.s32.totalorder %s177, %s179
      %p183 = scmp.eq.s32.totalorder %s17, 0
      %p184 = por %p182, %p183
      %p185 = scmp.ne.s32.totalorder %s177, %s179
      %p186 = scmp.eq.s32.totalorder %s22, 1
      %p187 = por %p185, %p186
      %p188 = scmp.ne.s32.totalorder %s179, %s180
      %p189 = scmp.eq.s32.totalorder %s22, 0
      %p190 = por %p188, %p189
      %p191 = scmp.ne.s32.totalorder %s179, %s180
      %p192 = scmp.eq.s32.totalorder %s23, 1
      %p193 = por %p191, %p192
      %p195 = scmp.ne.s32.totalorder %s180, %s194
      %p196 = scmp.eq.s32.totalorder %s23, 0
      %p197 = por %p195, %p196
      %s199 = sadd.s32 %s198, 1
      %p202 = scmp.eq.s32.totalorder %s17, 1
      %p203 = scmp.ne.s32.totalorder %s198, %s200
      %p204 = scmp.eq.s32.totalorder %s17, 0
      %p205 = por %p203, %p204
      %p206 = scmp.ne.s32.totalorder %s198, %s200
      %p207 = scmp.eq.s32.totalorder %s22, 1
      %p208 = por %p206, %p207
      %p209 = scmp.ne.s32.totalorder %s200, %s201
      %p210 = scmp.eq.s32.totalorder %s22, 0
      %p211 = por %p209, %p210
      %p212 = scmp.ne.s32.totalorder %s200, %s201
      %p213 = scmp.eq.s32.totalorder %s23, 1
      %p214 = por %p212, %p213
      %p216 = scmp.ne.s32.totalorder %s201, %s215
      %p217 = scmp.eq.s32.totalorder %s23, 0
      %p218 = por %p216, %p217
      %s220 = sadd.s32 %s219, 1
      %p223 = scmp.eq.s32.totalorder %s17, 1
      %p224 = scmp.ne.s32.totalorder %s219, %s221
      %p225 = scmp.eq.s32.totalorder %s17, 0
      %p226 = por %p224, %p225
      %p227 = scmp.ne.s32.totalorder %s219, %s221
      %p228 = scmp.eq.s32.totalorder %s22, 1
      %p229 = por %p227, %p228
      %p230 = scmp.ne.s32.totalorder %s221, %s222
      %p231 = scmp.eq.s32.totalorder %s22, 0
      %p232 = por %p230, %p231
      %p233 = scmp.ne.s32.totalorder %s221, %s222
      %p234 = scmp.eq.s32.totalorder %s23, 1
      %p235 = por %p233, %p234
      %p237 = scmp.ne.s32.totalorder %s222, %s236
      %p238 = scmp.eq.s32.totalorder %s23, 0
      %p239 = por %p237, %p238
      %s241 = sadd.s32 %s240, 1
      %p244 = scmp.eq.s32.totalorder %s17, 1
      %p245 = scmp.ne.s32.totalorder %s240, %s242
      %p246 = scmp.eq.s32.totalorder %s17, 0
      %p247 = por %p245, %p246
      %p248 = scmp.ne.s32.totalorder %s240, %s242
      %p249 = scmp.eq.s32.totalorder %s22, 1
      %p250 = por %p248, %p249
      %p251 = scmp.ne.s32.totalorder %s242, %s243
      %p252 = scmp.eq.s32.totalorder %s22, 0
      %p253 = por %p251, %p252
      %p254 = scmp.ne.s32.totalorder %s242, %s243
      %p255 = scmp.eq.s32.totalorder %s23, 1
      %p256 = por %p254, %p255
      %p258 = scmp.ne.s32.totalorder %s243, %s257
      %p259 = scmp.eq.s32.totalorder %s23, 0
      %p260 = por %p258, %p259
      %s261 = ssub.s32 %s17, %s24
      %p262 = scmp.eq.s32.totalorder %s261, 0
      %s264 = sadd.s32 %s263, 1
      %s265 = scalar_select %p262, %s263, %s264
      %p268 = pneg %p262
      %p269 = scmp.eq.s32.totalorder %s17, 1
      %p270 = por %p268, %p269
      %p271 = scmp.ne.s32.totalorder %s263, %s266
      %p272 = scmp.eq.s32.totalorder %s17, 0
      %p273 = por %p271, %p272
      %p274 = scmp.ne.s32.totalorder %s263, %s266
      %p275 = scmp.eq.s32.totalorder %s22, 1
      %p276 = por %p274, %p275
      %p277 = scmp.ne.s32.totalorder %s266, %s267
      %p278 = scmp.eq.s32.totalorder %s22, 0
      %p279 = por %p277, %p278
      %p280 = scmp.ne.s32.totalorder %s266, %s267
      %p281 = scmp.eq.s32.totalorder %s23, 1
      %p282 = por %p280, %p281
      %p284 = scmp.ne.s32.totalorder %s267, %s283
      %p285 = scmp.eq.s32.totalorder %s23, 0
      %p286 = por %p284, %p285
      %p287 = scmp.le.s32.totalorder 1, %s17
      %p288 = scmp.lt.s32.totalorder %s17, 3
      %p289 = pnand %p287, %p288
      %p290 = pneg %p289
      // Predicated region
      $region9: #{lenet_forward.1} parent=5 // pred_check
        _
      $region10: #{lenet_forward.1} parent=5 // pred_check_branch
        %292 = sbr.rel (%p289) target = $region12
      $region11: #{lenet_forward.1} parent=5 // pred_region
        %s293 = ssub.s32 %s17, 1
        // Predicated region
        $region13: #{lenet_forward.1} parent=11 // pred_check
          %p294 = pneg %p64
        $region14: #{lenet_forward.1} parent=11 // pred_check_branch
          %296 = sbr.rel (%p294) target = $region16
        $region15: #{lenet_forward.1} parent=11 // pred_region
          _
        $region16: #{lenet_forward.1} parent=11 // pred_fallthru
          _
        // Predicated region
        $region17: #{lenet_forward.1} parent=11 // pred_check
          %p297 = pneg %p85
        $region18: #{lenet_forward.1} parent=11 // pred_check_branch
          %299 = sbr.rel (%p297) target = $region20
        $region19: #{lenet_forward.1} parent=11 // pred_region
          _
        $region20: #{lenet_forward.1} parent=11 // pred_fallthru
          _
        // Predicated region
        $region21: #{lenet_forward.1} parent=11 // pred_check
          %p300 = pneg %p106
        $region22: #{lenet_forward.1} parent=11 // pred_check_branch
          %302 = sbr.rel (%p300) target = $region24
        $region23: #{lenet_forward.1} parent=11 // pred_region
          _
        $region24: #{lenet_forward.1} parent=11 // pred_fallthru
          _
        // Predicated region
        $region25: #{lenet_forward.1} parent=11 // pred_check
          %p303 = pneg %p127
        $region26: #{lenet_forward.1} parent=11 // pred_check_branch
          %305 = sbr.rel (%p303) target = $region28
        $region27: #{lenet_forward.1} parent=11 // pred_region
          _
        $region28: #{lenet_forward.1} parent=11 // pred_fallthru
          _
        // Predicated region
        $region29: #{lenet_forward.1} parent=11 // pred_check
          %p306 = pneg %p148
        $region30: #{lenet_forward.1} parent=11 // pred_check_branch
          %308 = sbr.rel (%p306) target = $region32
        $region31: #{lenet_forward.1} parent=11 // pred_region
          _
        $region32: #{lenet_forward.1} parent=11 // pred_fallthru
          _
        // Predicated region
        $region33: #{lenet_forward.1} parent=11 // pred_check
          %p309 = pneg %p169
        $region34: #{lenet_forward.1} parent=11 // pred_check_branch
          %311 = sbr.rel (%p309) target = $region36
        $region35: #{lenet_forward.1} parent=11 // pred_region
          _
        $region36: #{lenet_forward.1} parent=11 // pred_fallthru
          _
        // Predicated region
        $region37: #{lenet_forward.1} parent=11 // pred_check
          %p312 = pneg %p190
        $region38: #{lenet_forward.1} parent=11 // pred_check_branch
          %314 = sbr.rel (%p312) target = $region40
        $region39: #{lenet_forward.1} parent=11 // pred_region
          _
        $region40: #{lenet_forward.1} parent=11 // pred_fallthru
          _
        // Predicated region
        $region41: #{lenet_forward.1} parent=11 // pred_check
          %p315 = pneg %p211
        $region42: #{lenet_forward.1} parent=11 // pred_check_branch
          %317 = sbr.rel (%p315) target = $region44
        $region43: #{lenet_forward.1} parent=11 // pred_region
          _
        $region44: #{lenet_forward.1} parent=11 // pred_fallthru
          _
        // Predicated region
        $region45: #{lenet_forward.1} parent=11 // pred_check
          %p318 = pneg %p232
        $region46: #{lenet_forward.1} parent=11 // pred_check_branch
          %320 = sbr.rel (%p318) target = $region48
        $region47: #{lenet_forward.1} parent=11 // pred_region
          _
        $region48: #{lenet_forward.1} parent=11 // pred_fallthru
          _
        // Predicated region
        $region49: #{lenet_forward.1} parent=11 // pred_check
          %p321 = pneg %p253
        $region50: #{lenet_forward.1} parent=11 // pred_check_branch
          %323 = sbr.rel (%p321) target = $region52
        $region51: #{lenet_forward.1} parent=11 // pred_region
          _
        $region52: #{lenet_forward.1} parent=11 // pred_fallthru
          _
      $region12: #{lenet_forward.1} parent=5 // pred_fallthru
        _
      %p324 = scmp.lt.s32.totalorder %s17, 2
      // Predicated region
      $region53: #{lenet_forward.1} parent=5 // pred_check
        %p325 = pneg %p324
      $region54: #{lenet_forward.1} parent=5 // pred_check_branch
        %327 = sbr.rel (%p325) target = $region56
      $region55: #{lenet_forward.1} parent=5 // pred_region
        // Predicated region
        $region57: #{lenet_forward.1} parent=55 // pred_check
          %p328 = pneg %p37
        $region58: #{lenet_forward.1} parent=55 // pred_check_branch
          %330 = sbr.rel (%p328) target = $region60
        $region59: #{lenet_forward.1} parent=55 // pred_region
          %s331 = sand.u32 %s27, 1
          %s332 = sand.u32 %s27, 1
          %s333 = smul.addr %s332, 512
          %s334 = scalar_lea.vmem [#allocation4], %s333
          %s335 = smul.u32 2, %s17
          %s336 = smul.addr %s335, 2
          %s337 = smul.addr %s336, 4
          %s338 = scalar_lea.vmem %s0, %s337
          // Predicated region
          $region61: #{lenet_forward.1} parent=59 // pred_check
            _
          $region62: #{lenet_forward.1} parent=59 // pred_check_branch
            %340 = sbr.rel (0) target = $region64
          $region63: #{lenet_forward.1} parent=59 // pred_region
            // Predicated region
            $region65: #{lenet_forward.1} parent=63 // pred_check
              _
            $region66: #{lenet_forward.1} parent=63 // pred_check_branch
              %342 = sbr.rel (0) target = $region68
            $region67: #{lenet_forward.1} parent=63 // pred_region
              // Predicated region
              $region80: #{lenet_forward.1} parent=67 // pred_check
                _
              $region81: #{lenet_forward.1} parent=67 // pred_check_branch
                %483 = sbr.rel (0) target = $region83
              $region82: #{lenet_forward.1} parent=67 // pred_region
                loop: start=0, step=1, limit=1
                $region84: #{lenet_forward.1} parent=82 // loop_pre_header
                  _
                $region85: #{lenet_forward.1} parent=82 // loop_header
                  %s485 = sphi 0, %s489
                  %p486 = scmp.ge.s32.totalorder %s485, 1
                  %s490 = sphi %s338, %s338
                  %s491 = sphi %s334, %s334
                $region86: #{lenet_forward.1} parent=82 // loop_header_branch
                  %488 = sbr.rel (%p486) target = $region90
                $region87: #{lenet_forward.1} parent=82 // loop_body
                  %v492 = vld [vmem:[%s490] sm:$0xff]
                  %493 = vst [vmem:[%s491] sm:$0xff] %v492
                  %v494 = vld [vmem:[%s490 + $0x8] sm:$0xff]
                  %495 = vst [vmem:[%s491 + $0x8] sm:$0xff] %v494
                  %v496 = vld [vmem:[%s490 + $0x20] sm:$0xff]
                  %497 = vst [vmem:[%s491 + $0x10] sm:$0xff] %v496
                  %v498 = vld [vmem:[%s490 + $0x28] sm:$0xff]
                  %499 = vst [vmem:[%s491 + $0x18] sm:$0xff] %v498
                  %v500 = vld [vmem:[%s490 + $0x40] sm:$0xff]
                  %501 = vst [vmem:[%s491 + $0x20] sm:$0xff] %v500
                  %v502 = vld [vmem:[%s490 + $0x48] sm:$0xff]
                  %503 = vst [vmem:[%s491 + $0x28] sm:$0xff] %v502
                  %v504 = vld [vmem:[%s490 + $0x60] sm:$0xff]
                  %505 = vst [vmem:[%s491 + $0x30] sm:$0xff] %v504
                  %v506 = vld [vmem:[%s490 + $0x68] sm:$0xff]
                  %507 = vst [vmem:[%s491 + $0x38] sm:$0xff] %v506
                  %v508 = vld [vmem:[%s490 + $0x80] sm:$0xff]
                  %509 = vst [vmem:[%s491 + $0x40] sm:$0xff] %v508
                  %v510 = vld [vmem:[%s490 + $0x88] sm:$0xff]
                  %511 = vst [vmem:[%s491 + $0x48] sm:$0xff] %v510
                  %v512 = vld [vmem:[%s490 + $0xa0] sm:$0xff]
                  %513 = vst [vmem:[%s491 + $0x50] sm:$0xff] %v512
                  %v514 = vld [vmem:[%s490 + $0xa8] sm:$0xff]
                  %515 = vst [vmem:[%s491 + $0x58] sm:$0xff] %v514
                  %v516 = vld [vmem:[%s490 + $0xc0] sm:$0xff]
                  %517 = vst [vmem:[%s491 + $0x60] sm:$0xff] %v516
                  %v518 = vld [vmem:[%s490 + $0xc8] sm:$0xff]
                  %519 = vst [vmem:[%s491 + $0x68] sm:$0xff] %v518
                  %v520 = vld [vmem:[%s490 + $0xe0] sm:$0xff]
                  %521 = vst [vmem:[%s491 + $0x70] sm:$0xff] %v520
                  %v522 = vld [vmem:[%s490 + $0xe8] sm:$0xff]
                  %523 = vst [vmem:[%s491 + $0x78] sm:$0xff] %v522
                  %v524 = vld [vmem:[%s490 + $0x100] sm:$0xff]
                  %525 = vst [vmem:[%s491 + $0x80] sm:$0xff] %v524
                  %v526 = vld [vmem:[%s490 + $0x108] sm:$0xff]
                  %527 = vst [vmem:[%s491 + $0x88] sm:$0xff] %v526
                  %v528 = vld [vmem:[%s490 + $0x120] sm:$0xff]
                  %529 = vst [vmem:[%s491 + $0x90] sm:$0xff] %v528
                  %v530 = vld [vmem:[%s490 + $0x128] sm:$0xff]
                  %531 = vst [vmem:[%s491 + $0x98] sm:$0xff] %v530
                  %v532 = vld [vmem:[%s490 + $0x140] sm:$0xff]
                  %533 = vst [vmem:[%s491 + $0xa0] sm:$0xff] %v532
                  %v534 = vld [vmem:[%s490 + $0x148] sm:$0xff]
                  %535 = vst [vmem:[%s491 + $0xa8] sm:$0xff] %v534
                  %v536 = vld [vmem:[%s490 + $0x160] sm:$0xff]
                  %537 = vst [vmem:[%s491 + $0xb0] sm:$0xff] %v536
                  %v538 = vld [vmem:[%s490 + $0x168] sm:$0xff]
                  %539 = vst [vmem:[%s491 + $0xb8] sm:$0xff] %v538
                  %v540 = vld [vmem:[%s490 + $0x180] sm:$0xff]
                  %541 = vst [vmem:[%s491 + $0xc0] sm:$0xff] %v540
                  %v542 = vld [vmem:[%s490 + $0x188] sm:$0xff]
                  %543 = vst [vmem:[%s491 + $0xc8] sm:$0xff] %v542
                  %v544 = vld [vmem:[%s490 + $0x1a0] sm:$0xff]
                  %545 = vst [vmem:[%s491 + $0xd0] sm:$0xff] %v544
                  %v546 = vld [vmem:[%s490 + $0x1a8] sm:$0xff]
                  %547 = vst [vmem:[%s491 + $0xd8] sm:$0xff] %v546
                  %v548 = vld [vmem:[%s490 + $0x1c0] sm:$0xff]
                  %549 = vst [vmem:[%s491 + $0xe0] sm:$0xff] %v548
                  %v550 = vld [vmem:[%s490 + $0x1c8] sm:$0xff]
                  %551 = vst [vmem:[%s491 + $0xe8] sm:$0xff] %v550
                  %v552 = vld [vmem:[%s490 + $0x1e0] sm:$0xff]
                  %553 = vst [vmem:[%s491 + $0xf0] sm:$0xff] %v552
                  %v554 = vld [vmem:[%s490 + $0x1e8] sm:$0xff]
                  %555 = vst [vmem:[%s491 + $0xf8] sm:$0xff] %v554
                  %v556 = vld [vmem:[%s490 + $0x200] sm:$0xff]
                  %557 = vst [vmem:[%s491 + $0x100] sm:$0xff] %v556
                  %v558 = vld [vmem:[%s490 + $0x208] sm:$0xff]
                  %559 = vst [vmem:[%s491 + $0x108] sm:$0xff] %v558
                  %v560 = vld [vmem:[%s490 + $0x220] sm:$0xff]
                  %561 = vst [vmem:[%s491 + $0x110] sm:$0xff] %v560
                  %v562 = vld [vmem:[%s490 + $0x228] sm:$0xff]
                  %563 = vst [vmem:[%s491 + $0x118] sm:$0xff] %v562
                  %v564 = vld [vmem:[%s490 + $0x240] sm:$0xff]
                  %565 = vst [vmem:[%s491 + $0x120] sm:$0xff] %v564
                  %v566 = vld [vmem:[%s490 + $0x248] sm:$0xff]
                  %567 = vst [vmem:[%s491 + $0x128] sm:$0xff] %v566
                  %v568 = vld [vmem:[%s490 + $0x260] sm:$0xff]
                  %569 = vst [vmem:[%s491 + $0x130] sm:$0xff] %v568
                  %v570 = vld [vmem:[%s490 + $0x268] sm:$0xff]
                  %571 = vst [vmem:[%s491 + $0x138] sm:$0xff] %v570
                  %v572 = vld [vmem:[%s490 + $0x280] sm:$0xff]
                  %573 = vst [vmem:[%s491 + $0x140] sm:$0xff] %v572
                  %v574 = vld [vmem:[%s490 + $0x288] sm:$0xff]
                  %575 = vst [vmem:[%s491 + $0x148] sm:$0xff] %v574
                  %v576 = vld [vmem:[%s490 + $0x2a0] sm:$0xff]
                  %577 = vst [vmem:[%s491 + $0x150] sm:$0xff] %v576
                  %v578 = vld [vmem:[%s490 + $0x2a8] sm:$0xff]
                  %579 = vst [vmem:[%s491 + $0x158] sm:$0xff] %v578
                  %v580 = vld [vmem:[%s490 + $0x2c0] sm:$0xff]
                  %581 = vst [vmem:[%s491 + $0x160] sm:$0xff] %v580
                  %v582 = vld [vmem:[%s490 + $0x2c8] sm:$0xff]
                  %583 = vst [vmem:[%s491 + $0x168] sm:$0xff] %v582
                  %v584 = vld [vmem:[%s490 + $0x2e0] sm:$0xff]
                  %585 = vst [vmem:[%s491 + $0x170] sm:$0xff] %v584
                  %v586 = vld [vmem:[%s490 + $0x2e8] sm:$0xff]
                  %587 = vst [vmem:[%s491 + $0x178] sm:$0xff] %v586
                  %v588 = vld [vmem:[%s490 + $0x300] sm:$0xff]
                  %589 = vst [vmem:[%s491 + $0x180] sm:$0xff] %v588
                  %v590 = vld [vmem:[%s490 + $0x308] sm:$0xff]
                  %591 = vst [vmem:[%s491 + $0x188] sm:$0xff] %v590
                  %v592 = vld [vmem:[%s490 + $0x320] sm:$0xff]
                  %593 = vst [vmem:[%s491 + $0x190] sm:$0xff] %v592
                  %v594 = vld [vmem:[%s490 + $0x328] sm:$0xff]
                  %595 = vst [vmem:[%s491 + $0x198] sm:$0xff] %v594
                  %v596 = vld [vmem:[%s490 + $0x340] sm:$0xff]
                  %597 = vst [vmem:[%s491 + $0x1a0] sm:$0xff] %v596
                  %v598 = vld [vmem:[%s490 + $0x348] sm:$0xff]
                  %599 = vst [vmem:[%s491 + $0x1a8] sm:$0xff] %v598
                  %v600 = vld [vmem:[%s490 + $0x360] sm:$0xff]
                  %601 = vst [vmem:[%s491 + $0x1b0] sm:$0xff] %v600
                  %v602 = vld [vmem:[%s490 + $0x368] sm:$0xff]
                  %603 = vst [vmem:[%s491 + $0x1b8] sm:$0xff] %v602
                  %v604 = vld [vmem:[%s490 + $0x380] sm:$0xff]
                  %605 = vst [vmem:[%s491 + $0x1c0] sm:$0xff] %v604
                  %v606 = vld [vmem:[%s490 + $0x388] sm:$0xff]
                  %607 = vst [vmem:[%s491 + $0x1c8] sm:$0xff] %v606
                  %v608 = vld [vmem:[%s490 + $0x3a0] sm:$0xff]
                  %609 = vst [vmem:[%s491 + $0x1d0] sm:$0xff] %v608
                  %v610 = vld [vmem:[%s490 + $0x3a8] sm:$0xff]
                  %611 = vst [vmem:[%s491 + $0x1d8] sm:$0xff] %v610
                  %v612 = vld [vmem:[%s490 + $0x3c0] sm:$0xff]
                  %613 = vst [vmem:[%s491 + $0x1e0] sm:$0xff] %v612
                  %v614 = vld [vmem:[%s490 + $0x3c8] sm:$0xff]
                  %615 = vst [vmem:[%s491 + $0x1e8] sm:$0xff] %v614
                  %v616 = vld [vmem:[%s490 + $0x3e0] sm:$0xff]
                  %617 = vst [vmem:[%s491 + $0x1f0] sm:$0xff] %v616
                  %v618 = vld [vmem:[%s490 + $0x3e8] sm:$0xff]
                  %619 = vst [vmem:[%s491 + $0x1f8] sm:$0xff] %v618
                $region88: #{lenet_forward.1} parent=82 // loop_footer
                  %s489 = sadd.s32 1, %s485
                $region89: #{lenet_forward.1} parent=82 // loop_footer_branch
                  %484 = sbr.rel target = $region85
                $region90: #{lenet_forward.1} parent=82 // loop_exit
                  _
              $region83: #{lenet_forward.1} parent=67 // pred_fallthru
                _
              // Predicated region
              $region91: #{lenet_forward.1} parent=67 // pred_check
                _
              $region92: #{lenet_forward.1} parent=67 // pred_check_branch
                %621 = sbr.rel target = $region94
              $region93: #{lenet_forward.1} parent=67 // pred_region
                _
              $region94: #{lenet_forward.1} parent=67 // pred_fallthru
                _
            $region68: #{lenet_forward.1} parent=63 // pred_fallthru
              _
            // Predicated region
            $region69: #{lenet_forward.1} parent=63 // pred_check
              _
            $region70: #{lenet_forward.1} parent=63 // pred_check_branch
              %344 = sbr.rel target = $region72
            $region71: #{lenet_forward.1} parent=63 // pred_region
              loop: start=0, step=1, limit=1
              $region73: #{lenet_forward.1} parent=71 // loop_pre_header
                _
              $region74: #{lenet_forward.1} parent=71 // loop_header
                %s347 = sphi 0, %s351
                %p348 = scmp.ge.s32.totalorder %s347, 1
                %s352 = sphi %s338, %s338
                %s353 = sphi %s334, %s334
              $region75: #{lenet_forward.1} parent=71 // loop_header_branch
                %350 = sbr.rel (%p348) target = $region79
              $region76: #{lenet_forward.1} parent=71 // loop_body
                %v354 = vld [vmem:[%s352] sm:$0xff]
                %355 = vst [vmem:[%s353] sm:$0xff] %v354
                %v356 = vld [vmem:[%s352 + $0x8] sm:$0xff]
                %357 = vst [vmem:[%s353 + $0x8] sm:$0xff] %v356
                %v358 = vld [vmem:[%s352 + $0x20] sm:$0xff]
                %359 = vst [vmem:[%s353 + $0x10] sm:$0xff] %v358
                %v360 = vld [vmem:[%s352 + $0x28] sm:$0xff]
                %361 = vst [vmem:[%s353 + $0x18] sm:$0xff] %v360
                %v362 = vld [vmem:[%s352 + $0x40] sm:$0xff]
                %363 = vst [vmem:[%s353 + $0x20] sm:$0xff] %v362
                %v364 = vld [vmem:[%s352 + $0x48] sm:$0xff]
                %365 = vst [vmem:[%s353 + $0x28] sm:$0xff] %v364
                %v366 = vld [vmem:[%s352 + $0x60] sm:$0xff]
                %367 = vst [vmem:[%s353 + $0x30] sm:$0xff] %v366
                %v368 = vld [vmem:[%s352 + $0x68] sm:$0xff]
                %369 = vst [vmem:[%s353 + $0x38] sm:$0xff] %v368
                %v370 = vld [vmem:[%s352 + $0x80] sm:$0xff]
                %371 = vst [vmem:[%s353 + $0x40] sm:$0xff] %v370
                %v372 = vld [vmem:[%s352 + $0x88] sm:$0xff]
                %373 = vst [vmem:[%s353 + $0x48] sm:$0xff] %v372
                %v374 = vld [vmem:[%s352 + $0xa0] sm:$0xff]
                %375 = vst [vmem:[%s353 + $0x50] sm:$0xff] %v374
                %v376 = vld [vmem:[%s352 + $0xa8] sm:$0xff]
                %377 = vst [vmem:[%s353 + $0x58] sm:$0xff] %v376
                %v378 = vld [vmem:[%s352 + $0xc0] sm:$0xff]
                %379 = vst [vmem:[%s353 + $0x60] sm:$0xff] %v378
                %v380 = vld [vmem:[%s352 + $0xc8] sm:$0xff]
                %381 = vst [vmem:[%s353 + $0x68] sm:$0xff] %v380
                %v382 = vld [vmem:[%s352 + $0xe0] sm:$0xff]
                %383 = vst [vmem:[%s353 + $0x70] sm:$0xff] %v382
                %v384 = vld [vmem:[%s352 + $0xe8] sm:$0xff]
                %385 = vst [vmem:[%s353 + $0x78] sm:$0xff] %v384
                %v386 = vld [vmem:[%s352 + $0x100] sm:$0xff]
                %387 = vst [vmem:[%s353 + $0x80] sm:$0xff] %v386
                %v388 = vld [vmem:[%s352 + $0x108] sm:$0xff]
                %389 = vst [vmem:[%s353 + $0x88] sm:$0xff] %v388
                %v390 = vld [vmem:[%s352 + $0x120] sm:$0xff]
                %391 = vst [vmem:[%s353 + $0x90] sm:$0xff] %v390
                %v392 = vld [vmem:[%s352 + $0x128] sm:$0xff]
                %393 = vst [vmem:[%s353 + $0x98] sm:$0xff] %v392
                %v394 = vld [vmem:[%s352 + $0x140] sm:$0xff]
                %395 = vst [vmem:[%s353 + $0xa0] sm:$0xff] %v394
                %v396 = vld [vmem:[%s352 + $0x148] sm:$0xff]
                %397 = vst [vmem:[%s353 + $0xa8] sm:$0xff] %v396
                %v398 = vld [vmem:[%s352 + $0x160] sm:$0xff]
                %399 = vst [vmem:[%s353 + $0xb0] sm:$0xff] %v398
                %v400 = vld [vmem:[%s352 + $0x168] sm:$0xff]
                %401 = vst [vmem:[%s353 + $0xb8] sm:$0xff] %v400
                %v402 = vld [vmem:[%s352 + $0x180] sm:$0xff]
                %403 = vst [vmem:[%s353 + $0xc0] sm:$0xff] %v402
                %v404 = vld [vmem:[%s352 + $0x188] sm:$0xff]
                %405 = vst [vmem:[%s353 + $0xc8] sm:$0xff] %v404
                %v406 = vld [vmem:[%s352 + $0x1a0] sm:$0xff]
                %407 = vst [vmem:[%s353 + $0xd0] sm:$0xff] %v406
                %v408 = vld [vmem:[%s352 + $0x1a8] sm:$0xff]
                %409 = vst [vmem:[%s353 + $0xd8] sm:$0xff] %v408
                %v410 = vld [vmem:[%s352 + $0x1c0] sm:$0xff]
                %411 = vst [vmem:[%s353 + $0xe0] sm:$0xff] %v410
                %v412 = vld [vmem:[%s352 + $0x1c8] sm:$0xff]
                %413 = vst [vmem:[%s353 + $0xe8] sm:$0xff] %v412
                %v414 = vld [vmem:[%s352 + $0x1e0] sm:$0xff]
                %415 = vst [vmem:[%s353 + $0xf0] sm:$0xff] %v414
                %v416 = vld [vmem:[%s352 + $0x1e8] sm:$0xff]
                %417 = vst [vmem:[%s353 + $0xf8] sm:$0xff] %v416
                %v418 = vld [vmem:[%s352 + $0x200] sm:$0xff]
                %419 = vst [vmem:[%s353 + $0x100] sm:$0xff] %v418
                %v420 = vld [vmem:[%s352 + $0x208] sm:$0xff]
                %421 = vst [vmem:[%s353 + $0x108] sm:$0xff] %v420
                %v422 = vld [vmem:[%s352 + $0x220] sm:$0xff]
                %423 = vst [vmem:[%s353 + $0x110] sm:$0xff] %v422
                %v424 = vld [vmem:[%s352 + $0x228] sm:$0xff]
                %425 = vst [vmem:[%s353 + $0x118] sm:$0xff] %v424
                %v426 = vld [vmem:[%s352 + $0x240] sm:$0xff]
                %427 = vst [vmem:[%s353 + $0x120] sm:$0xff] %v426
                %v428 = vld [vmem:[%s352 + $0x248] sm:$0xff]
                %429 = vst [vmem:[%s353 + $0x128] sm:$0xff] %v428
                %v430 = vld [vmem:[%s352 + $0x260] sm:$0xff]
                %431 = vst [vmem:[%s353 + $0x130] sm:$0xff] %v430
                %v432 = vld [vmem:[%s352 + $0x268] sm:$0xff]
                %433 = vst [vmem:[%s353 + $0x138] sm:$0xff] %v432
                %v434 = vld [vmem:[%s352 + $0x280] sm:$0xff]
                %435 = vst [vmem:[%s353 + $0x140] sm:$0xff] %v434
                %v436 = vld [vmem:[%s352 + $0x288] sm:$0xff]
                %437 = vst [vmem:[%s353 + $0x148] sm:$0xff] %v436
                %v438 = vld [vmem:[%s352 + $0x2a0] sm:$0xff]
                %439 = vst [vmem:[%s353 + $0x150] sm:$0xff] %v438
                %v440 = vld [vmem:[%s352 + $0x2a8] sm:$0xff]
                %441 = vst [vmem:[%s353 + $0x158] sm:$0xff] %v440
                %v442 = vld [vmem:[%s352 + $0x2c0] sm:$0xff]
                %443 = vst [vmem:[%s353 + $0x160] sm:$0xff] %v442
                %v444 = vld [vmem:[%s352 + $0x2c8] sm:$0xff]
                %445 = vst [vmem:[%s353 + $0x168] sm:$0xff] %v444
                %v446 = vld [vmem:[%s352 + $0x2e0] sm:$0xff]
                %447 = vst [vmem:[%s353 + $0x170] sm:$0xff] %v446
                %v448 = vld [vmem:[%s352 + $0x2e8] sm:$0xff]
                %449 = vst [vmem:[%s353 + $0x178] sm:$0xff] %v448
                %v450 = vld [vmem:[%s352 + $0x300] sm:$0xff]
                %451 = vst [vmem:[%s353 + $0x180] sm:$0xff] %v450
                %v452 = vld [vmem:[%s352 + $0x308] sm:$0xff]
                %453 = vst [vmem:[%s353 + $0x188] sm:$0xff] %v452
                %v454 = vld [vmem:[%s352 + $0x320] sm:$0xff]
                %455 = vst [vmem:[%s353 + $0x190] sm:$0xff] %v454
                %v456 = vld [vmem:[%s352 + $0x328] sm:$0xff]
                %457 = vst [vmem:[%s353 + $0x198] sm:$0xff] %v456
                %v458 = vld [vmem:[%s352 + $0x340] sm:$0xff]
                %459 = vst [vmem:[%s353 + $0x1a0] sm:$0xff] %v458
                %v460 = vld [vmem:[%s352 + $0x348] sm:$0xff]
                %461 = vst [vmem:[%s353 + $0x1a8] sm:$0xff] %v460
                %v462 = vld [vmem:[%s352 + $0x360] sm:$0xff]
                %463 = vst [vmem:[%s353 + $0x1b0] sm:$0xff] %v462
                %v464 = vld [vmem:[%s352 + $0x368] sm:$0xff]
                %465 = vst [vmem:[%s353 + $0x1b8] sm:$0xff] %v464
                %v466 = vld [vmem:[%s352 + $0x380] sm:$0xff]
                %467 = vst [vmem:[%s353 + $0x1c0] sm:$0xff] %v466
                %v468 = vld [vmem:[%s352 + $0x388] sm:$0xff]
                %469 = vst [vmem:[%s353 + $0x1c8] sm:$0xff] %v468
                %v470 = vld [vmem:[%s352 + $0x3a0] sm:$0xff]
                %471 = vst [vmem:[%s353 + $0x1d0] sm:$0xff] %v470
                %v472 = vld [vmem:[%s352 + $0x3a8] sm:$0xff]
                %473 = vst [vmem:[%s353 + $0x1d8] sm:$0xff] %v472
                %v474 = vld [vmem:[%s352 + $0x3c0] sm:$0xff]
                %475 = vst [vmem:[%s353 + $0x1e0] sm:$0xff] %v474
                %v476 = vld [vmem:[%s352 + $0x3c8] sm:$0xff]
                %477 = vst [vmem:[%s353 + $0x1e8] sm:$0xff] %v476
                %v478 = vld [vmem:[%s352 + $0x3e0] sm:$0xff]
                %479 = vst [vmem:[%s353 + $0x1f0] sm:$0xff] %v478
                %v480 = vld [vmem:[%s352 + $0x3e8] sm:$0xff]
                %481 = vst [vmem:[%s353 + $0x1f8] sm:$0xff] %v480
              $region77: #{lenet_forward.1} parent=71 // loop_footer
                %s351 = sadd.s32 1, %s347
              $region78: #{lenet_forward.1} parent=71 // loop_footer_branch
                %346 = sbr.rel target = $region74
              $region79: #{lenet_forward.1} parent=71 // loop_exit
                _
            $region72: #{lenet_forward.1} parent=63 // pred_fallthru
              _
          $region64: #{lenet_forward.1} parent=59 // pred_fallthru
            _
          %622 = vnop
        $region60: #{lenet_forward.1} parent=55 // pred_fallthru
          _
      $region56: #{lenet_forward.1} parent=5 // pred_fallthru
        _
      %p623 = scmp.le.s32.totalorder 1, %s17
      %p624 = scmp.lt.s32.totalorder %s17, 3
      %p625 = pnand %p623, %p624
      %p626 = pneg %p625
      // Predicated region
      $region95: #{lenet_forward.1} parent=5 // pred_check
        _
      $region96: #{lenet_forward.1} parent=5 // pred_check_branch
        %628 = sbr.rel (%p625) target = $region98
      $region97: #{lenet_forward.1} parent=5 // pred_region
        %s629 = ssub.s32 %s17, 1
        %s630 = sand.u32 %s30, 1
        %s631 = sand.u32 %s30, 1
        %s632 = smul.addr %s631, 512
        %s633 = scalar_lea.vmem [#allocation4], %s632
        // Predicated region
        $region99: #{lenet_forward.1} parent=97 // pred_check
          %p634 = pneg %p43
        $region100: #{lenet_forward.1} parent=97 // pred_check_branch
          %636 = sbr.rel (%p634) target = $region102
        $region101: #{lenet_forward.1} parent=97 // pred_region
          _
        $region102: #{lenet_forward.1} parent=97 // pred_fallthru
          _
        %s637 = sand.u32 %s30, 1
        %s638 = sand.u32 %s30, 1
        %s639 = smul.addr %s638, 512
        %s640 = scalar_lea.vmem [#allocation4], %s639
        %p641 = pneg %p43
        %p642 = pneg %p40
        %p643 = pneg %p64
        %p644 = pneg %p61
        %p645 = pneg %p85
        %p646 = pneg %p82
        %p647 = pneg %p106
        %p648 = pneg %p103
        %p649 = pneg %p127
        %p650 = pneg %p124
        %p651 = pneg %p148
        %p652 = pneg %p145
        %p653 = pneg %p169
        %p654 = pneg %p166
        %p655 = pneg %p190
        %p656 = pneg %p187
        %p657 = pneg %p211
        %p658 = pneg %p208
        %p659 = pneg %p232
        %p660 = pneg %p229
        %p661 = pneg %p253
        %p662 = pneg %p250
        %p663 = pneg %p279
        %p664 = pneg %p276
        %s665 = smul.u32 2, %s22
        %p666 = scmp.lt.s32.totalorder %s665, 3
        %s667 = scalar_select %p666, %s665, 3
        %s668 = smul.addr %s667, 8
        %s669 = scalar_lea.vmem %s11, %s668
        %s670 = smul.u32 2, %s22
        %s671 = smul.u32 2, %s22
        %p672 = scmp.lt.s32.totalorder %s671, 3
        %s673 = scalar_select %p672, %s671, 3
        %s674 = smul.addr %s673, 8
        %s675 = scalar_lea.vmem %s11, %s674
        %s676 = smul.u32 2, %s22
        %v678 = vld [vmem:[%s633] sm:$0xff]
        %v679 = vld [vmem:[%s633 + $0x8] sm:$0xff]
        %v680 = vld [vmem:[%s633 + $0x10] sm:$0xff]
        %v681 = vld [vmem:[%s633 + $0x18] sm:$0xff]
        %v682 = vld [vmem:[%s633 + $0x20] sm:$0xff]
        %v683 = vld [vmem:[%s633 + $0x28] sm:$0xff]
        %v684 = vld [vmem:[%s633 + $0x30] sm:$0xff]
        %v685 = vld [vmem:[%s633 + $0x38] sm:$0xff]
        %v686 = vld [vmem:[%s633 + $0x40] sm:$0xff]
        %v687 = vld [vmem:[%s633 + $0x48] sm:$0xff]
        %v688 = vld [vmem:[%s633 + $0x50] sm:$0xff]
        %v689 = vld [vmem:[%s633 + $0x58] sm:$0xff]
        %v690 = vld [vmem:[%s633 + $0x60] sm:$0xff]
        %v691 = vld [vmem:[%s633 + $0x68] sm:$0xff]
        %v692 = vld [vmem:[%s633 + $0x70] sm:$0xff]
        %v693 = vld [vmem:[%s633 + $0x78] sm:$0xff]
        %v694 = vld [vmem:[%s633 + $0x80] sm:$0xff]
        %v695 = vld [vmem:[%s633 + $0x88] sm:$0xff]
        %v696 = vld [vmem:[%s633 + $0x90] sm:$0xff]
        %v697 = vld [vmem:[%s633 + $0x98] sm:$0xff]
        %v698 = vld [vmem:[%s633 + $0xa0] sm:$0xff]
        %v699 = vld [vmem:[%s633 + $0xa8] sm:$0xff]
        %v700 = vld [vmem:[%s633 + $0xb0] sm:$0xff]
        %v701 = vld [vmem:[%s633 + $0xb8] sm:$0xff]
        %v702 = vld [vmem:[%s633 + $0xc0] sm:$0xff]
        %v703 = vld [vmem:[%s633 + $0xc8] sm:$0xff]
        %v704 = vld [vmem:[%s633 + $0xd0] sm:$0xff]
        %v705 = vld [vmem:[%s633 + $0xd8] sm:$0xff]
        %v706 = vld [vmem:[%s633 + $0xe0] sm:$0xff]
        %v707 = vld [vmem:[%s633 + $0xe8] sm:$0xff]
        %v708 = vld [vmem:[%s633 + $0xf0] sm:$0xff]
        %v709 = vld [vmem:[%s633 + $0xf8] sm:$0xff]
        %v710 = vld [vmem:[%s633 + $0x100] sm:$0xff]
        %v711 = vld [vmem:[%s633 + $0x108] sm:$0xff]
        %v712 = vld [vmem:[%s633 + $0x110] sm:$0xff]
        %v713 = vld [vmem:[%s633 + $0x118] sm:$0xff]
        %v714 = vld [vmem:[%s633 + $0x120] sm:$0xff]
        %v715 = vld [vmem:[%s633 + $0x128] sm:$0xff]
        %v716 = vld [vmem:[%s633 + $0x130] sm:$0xff]
        %v717 = vld [vmem:[%s633 + $0x138] sm:$0xff]
        %v718 = vld [vmem:[%s633 + $0x140] sm:$0xff]
        %v719 = vld [vmem:[%s633 + $0x148] sm:$0xff]
        %v720 = vld [vmem:[%s633 + $0x150] sm:$0xff]
        %v721 = vld [vmem:[%s633 + $0x158] sm:$0xff]
        %v722 = vld [vmem:[%s633 + $0x160] sm:$0xff]
        %v723 = vld [vmem:[%s633 + $0x168] sm:$0xff]
        %v724 = vld [vmem:[%s633 + $0x170] sm:$0xff]
        %v725 = vld [vmem:[%s633 + $0x178] sm:$0xff]
        %v726 = vld [vmem:[%s633 + $0x180] sm:$0xff]
        %v727 = vld [vmem:[%s633 + $0x188] sm:$0xff]
        %v728 = vld [vmem:[%s633 + $0x190] sm:$0xff]
        %v729 = vld [vmem:[%s633 + $0x198] sm:$0xff]
        %v730 = vld [vmem:[%s633 + $0x1a0] sm:$0xff]
        %v731 = vld [vmem:[%s633 + $0x1a8] sm:$0xff]
        %v732 = vld [vmem:[%s633 + $0x1b0] sm:$0xff]
        %v733 = vld [vmem:[%s633 + $0x1b8] sm:$0xff]
        %v734 = vld [vmem:[%s1] sm:$0xff]
        %v735 = vld [vmem:[%s1 + $0x8] sm:$0xff]
        %v736 = vld [vmem:[%s1 + $0x10] sm:$0xff]
        %v737 = vld [vmem:[%s1 + $0x18] sm:$0xff]
        %v738 = vld [vmem:[%s1 + $0x20] sm:$0xff]
        %v739 = vld [vmem:[%s1 + $0x28] sm:$0xff]
        %v740 = vld [vmem:[%s1 + $0x30] sm:$0xff]
        %v741 = vld [vmem:[%s1 + $0x38] sm:$0xff]
        %v742 = vld [vmem:[%s1 + $0x40] sm:$0xff]
        %v743 = vld [vmem:[%s1 + $0x48] sm:$0xff]
        %v744 = vld [vmem:[%s1 + $0x50] sm:$0xff]
        %v745 = vld [vmem:[%s1 + $0x58] sm:$0xff]
        %v746 = vld [vmem:[%s1 + $0x60] sm:$0xff]
        %v747 = vld [vmem:[%s1 + $0x68] sm:$0xff]
        %v748 = vld [vmem:[%s1 + $0x70] sm:$0xff]
        %v749 = vld [vmem:[%s1 + $0x78] sm:$0xff]
        %v750 = vld [vmem:[%s1 + $0x80] sm:$0xff]
        %v751 = vld [vmem:[%s1 + $0x88] sm:$0xff]
        %v752 = vld [vmem:[%s1 + $0x90] sm:$0xff]
        %v753 = vld [vmem:[%s1 + $0x98] sm:$0xff]
        %v754 = vld [vmem:[%s1 + $0xa0] sm:$0xff]
        %v755 = vld [vmem:[%s1 + $0xa8] sm:$0xff]
        %v756 = vld [vmem:[%s1 + $0xb0] sm:$0xff]
        %v757 = vld [vmem:[%s1 + $0xb8] sm:$0xff]
        %v758 = vld [vmem:[%s1 + $0xc0] sm:$0xff]
        %v759 = vld [vmem:[%s1 + $0xc8] sm:$0xff]
        %v760 = vld [vmem:[%s1 + $0xd0] sm:$0xff]
        %v761 = vld [vmem:[%s1 + $0xd8] sm:$0xff]
        %v762 = vld [vmem:[%s1 + $0xe0] sm:$0xff]
        %v763 = vld [vmem:[%s1 + $0xe8] sm:$0xff]
        %v764 = vld [vmem:[%s1 + $0xf0] sm:$0xff]
        %v765 = vld [vmem:[%s1 + $0xf8] sm:$0xff]
        %s766 = scalar_lea.vmem %s633, 16 [#allocation4]
        %v767 = vld [vmem:[%s766] sm:$0xff]
        %v768 = vld [vmem:[%s766 + $0x8] sm:$0xff]
        %v769 = vld [vmem:[%s766 + $0x10] sm:$0xff]
        %v770 = vld [vmem:[%s766 + $0x18] sm:$0xff]
        %v771 = vld [vmem:[%s766 + $0x20] sm:$0xff]
        %v772 = vld [vmem:[%s766 + $0x28] sm:$0xff]
        %v773 = vld [vmem:[%s766 + $0x30] sm:$0xff]
        %v774 = vld [vmem:[%s766 + $0x38] sm:$0xff]
        %v775 = vld [vmem:[%s766 + $0x40] sm:$0xff]
        %v776 = vld [vmem:[%s766 + $0x48] sm:$0xff]
        %v777 = vld [vmem:[%s766 + $0x50] sm:$0xff]
        %v778 = vld [vmem:[%s766 + $0x58] sm:$0xff]
        %v779 = vld [vmem:[%s766 + $0x60] sm:$0xff]
        %v780 = vld [vmem:[%s766 + $0x68] sm:$0xff]
        %v781 = vld [vmem:[%s766 + $0x70] sm:$0xff]
        %v782 = vld [vmem:[%s766 + $0x78] sm:$0xff]
        %v783 = vld [vmem:[%s766 + $0x80] sm:$0xff]
        %v784 = vld [vmem:[%s766 + $0x88] sm:$0xff]
        %v785 = vld [vmem:[%s766 + $0x90] sm:$0xff]
        %v786 = vld [vmem:[%s766 + $0x98] sm:$0xff]
        %v787 = vld [vmem:[%s766 + $0xa0] sm:$0xff]
        %v788 = vld [vmem:[%s766 + $0xa8] sm:$0xff]
        %v789 = vld [vmem:[%s766 + $0xb0] sm:$0xff]
        %v790 = vld [vmem:[%s766 + $0xb8] sm:$0xff]
        %v791 = vld [vmem:[%s766 + $0xc0] sm:$0xff]
        %v792 = vld [vmem:[%s766 + $0xc8] sm:$0xff]
        %v793 = vld [vmem:[%s766 + $0xd0] sm:$0xff]
        %v794 = vld [vmem:[%s766 + $0xd8] sm:$0xff]
        %v795 = vld [vmem:[%s766 + $0xe0] sm:$0xff]
        %v796 = vld [vmem:[%s766 + $0xe8] sm:$0xff]
        %v797 = vld [vmem:[%s766 + $0xf0] sm:$0xff]
        %v798 = vld [vmem:[%s766 + $0xf8] sm:$0xff]
        %v799 = vld [vmem:[%s766 + $0x100] sm:$0xff]
        %v800 = vld [vmem:[%s766 + $0x108] sm:$0xff]
        %v801 = vld [vmem:[%s766 + $0x110] sm:$0xff]
        %v802 = vld [vmem:[%s766 + $0x118] sm:$0xff]
        %v803 = vld [vmem:[%s766 + $0x120] sm:$0xff]
        %v804 = vld [vmem:[%s766 + $0x128] sm:$0xff]
        %v805 = vld [vmem:[%s766 + $0x130] sm:$0xff]
        %v806 = vld [vmem:[%s766 + $0x138] sm:$0xff]
        %v807 = vld [vmem:[%s766 + $0x140] sm:$0xff]
        %v808 = vld [vmem:[%s766 + $0x148] sm:$0xff]
        %v809 = vld [vmem:[%s766 + $0x150] sm:$0xff]
        %v810 = vld [vmem:[%s766 + $0x158] sm:$0xff]
        %v811 = vld [vmem:[%s766 + $0x160] sm:$0xff]
        %v812 = vld [vmem:[%s766 + $0x168] sm:$0xff]
        %v813 = vld [vmem:[%s766 + $0x170] sm:$0xff]
        %v814 = vld [vmem:[%s766 + $0x178] sm:$0xff]
        %v815 = vld [vmem:[%s766 + $0x180] sm:$0xff]
        %v816 = vld [vmem:[%s766 + $0x188] sm:$0xff]
        %v817 = vld [vmem:[%s766 + $0x190] sm:$0xff]
        %v818 = vld [vmem:[%s766 + $0x198] sm:$0xff]
        %v819 = vld [vmem:[%s766 + $0x1a0] sm:$0xff]
        %v820 = vld [vmem:[%s766 + $0x1a8] sm:$0xff]
        %v821 = vld [vmem:[%s766 + $0x1b0] sm:$0xff]
        %v822 = vld [vmem:[%s766 + $0x1b8] sm:$0xff]
        %s823 = scalar_lea.vmem %s1, 256
        %v824 = vld [vmem:[%s823] sm:$0xff]
        %v825 = vld [vmem:[%s823 + $0x8] sm:$0xff]
        %v826 = vld [vmem:[%s823 + $0x10] sm:$0xff]
        %v827 = vld [vmem:[%s823 + $0x18] sm:$0xff]
        %v828 = vld [vmem:[%s823 + $0x20] sm:$0xff]
        %v829 = vld [vmem:[%s823 + $0x28] sm:$0xff]
        %v830 = vld [vmem:[%s823 + $0x30] sm:$0xff]
        %v831 = vld [vmem:[%s823 + $0x38] sm:$0xff]
        %v832 = vld [vmem:[%s823 + $0x40] sm:$0xff]
        %v833 = vld [vmem:[%s823 + $0x48] sm:$0xff]
        %v834 = vld [vmem:[%s823 + $0x50] sm:$0xff]
        %v835 = vld [vmem:[%s823 + $0x58] sm:$0xff]
        %v836 = vld [vmem:[%s823 + $0x60] sm:$0xff]
        %v837 = vld [vmem:[%s823 + $0x68] sm:$0xff]
        %v838 = vld [vmem:[%s823 + $0x70] sm:$0xff]
        %v839 = vld [vmem:[%s823 + $0x78] sm:$0xff]
        %v840 = vld [vmem:[%s823 + $0x80] sm:$0xff]
        %v841 = vld [vmem:[%s823 + $0x88] sm:$0xff]
        %v842 = vld [vmem:[%s823 + $0x90] sm:$0xff]
        %v843 = vld [vmem:[%s823 + $0x98] sm:$0xff]
        %v844 = vld [vmem:[%s823 + $0xa0] sm:$0xff]
        %v845 = vld [vmem:[%s823 + $0xa8] sm:$0xff]
        %v846 = vld [vmem:[%s823 + $0xb0] sm:$0xff]
        %v847 = vld [vmem:[%s823 + $0xb8] sm:$0xff]
        %v848 = vld [vmem:[%s823 + $0xc0] sm:$0xff]
        %v849 = vld [vmem:[%s823 + $0xc8] sm:$0xff]
        %v850 = vld [vmem:[%s823 + $0xd0] sm:$0xff]
        %v851 = vld [vmem:[%s823 + $0xd8] sm:$0xff]
        %v852 = vld [vmem:[%s823 + $0xe0] sm:$0xff]
        %v853 = vld [vmem:[%s823 + $0xe8] sm:$0xff]
        %v854 = vld [vmem:[%s823 + $0xf0] sm:$0xff]
        %v855 = vld [vmem:[%s823 + $0xf8] sm:$0xff]
        %v912 = vunpack.c.l.b16 %v767
        %v913 = vunpack.c.h.b16 %v767
        %v914 = vunpack.c.l.b16 %v768
        %v915 = vunpack.c.h.b16 %v768
        %v916 = vunpack.c.l.b16 %v769
        %v917 = vunpack.c.h.b16 %v769
        %v918 = vunpack.c.l.b16 %v770
        %v919 = vunpack.c.h.b16 %v770
        %v920 = vunpack.c.l.b16 %v771
        %v921 = vunpack.c.h.b16 %v771
        %v922 = vunpack.c.l.b16 %v772
        %v923 = vunpack.c.h.b16 %v772
        %v924 = vunpack.c.l.b16 %v773
        %v925 = vunpack.c.h.b16 %v773
        %v926 = vunpack.c.l.b16 %v774
        %v927 = vunpack.c.h.b16 %v774
        %v928 = vunpack.c.l.b16 %v775
        %v929 = vunpack.c.h.b16 %v775
        %v930 = vunpack.c.l.b16 %v776
        %v931 = vunpack.c.h.b16 %v776
        %v932 = vunpack.c.l.b16 %v777
        %v933 = vunpack.c.h.b16 %v777
        %v934 = vunpack.c.l.b16 %v778
        %v935 = vunpack.c.h.b16 %v778
        %v936 = vunpack.c.l.b16 %v779
        %v937 = vunpack.c.h.b16 %v779
        %v938 = vunpack.c.l.b16 %v780
        %v939 = vunpack.c.h.b16 %v780
        %v940 = vunpack.c.l.b16 %v781
        %v941 = vunpack.c.h.b16 %v781
        %v942 = vunpack.c.l.b16 %v782
        %v943 = vunpack.c.h.b16 %v782
        %v944 = vunpack.c.l.b16 %v783
        %v945 = vunpack.c.h.b16 %v783
        %v946 = vunpack.c.l.b16 %v784
        %v947 = vunpack.c.h.b16 %v784
        %v948 = vunpack.c.l.b16 %v785
        %v949 = vunpack.c.h.b16 %v785
        %v950 = vunpack.c.l.b16 %v786
        %v951 = vunpack.c.h.b16 %v786
        %v952 = vunpack.c.l.b16 %v787
        %v953 = vunpack.c.h.b16 %v787
        %v954 = vunpack.c.l.b16 %v788
        %v955 = vunpack.c.h.b16 %v788
        %v956 = vunpack.c.l.b16 %v789
        %v957 = vunpack.c.h.b16 %v789
        %v958 = vunpack.c.l.b16 %v790
        %v959 = vunpack.c.h.b16 %v790
        %v960 = vunpack.c.l.b16 %v791
        %v961 = vunpack.c.h.b16 %v791
        %v962 = vunpack.c.l.b16 %v792
        %v963 = vunpack.c.h.b16 %v792
        %v964 = vunpack.c.l.b16 %v793
        %v965 = vunpack.c.h.b16 %v793
        %v966 = vunpack.c.l.b16 %v794
        %v967 = vunpack.c.h.b16 %v794
        %v968 = vunpack.c.l.b16 %v795
        %v969 = vunpack.c.h.b16 %v795
        %v970 = vunpack.c.l.b16 %v796
        %v971 = vunpack.c.h.b16 %v796
        %v972 = vunpack.c.l.b16 %v797
        %v973 = vunpack.c.h.b16 %v797
        %v974 = vunpack.c.l.b16 %v798
        %v975 = vunpack.c.h.b16 %v798
        %v976 = vunpack.c.l.b16 %v799
        %v977 = vunpack.c.h.b16 %v799
        %v978 = vunpack.c.l.b16 %v800
        %v979 = vunpack.c.h.b16 %v800
        %v980 = vunpack.c.l.b16 %v801
        %v981 = vunpack.c.h.b16 %v801
        %v982 = vunpack.c.l.b16 %v802
        %v983 = vunpack.c.h.b16 %v802
        %v984 = vunpack.c.l.b16 %v803
        %v985 = vunpack.c.h.b16 %v803
        %v986 = vunpack.c.l.b16 %v804
        %v987 = vunpack.c.h.b16 %v804
        %v988 = vunpack.c.l.b16 %v805
        %v989 = vunpack.c.h.b16 %v805
        %v990 = vunpack.c.l.b16 %v806
        %v991 = vunpack.c.h.b16 %v806
        %v992 = vunpack.c.l.b16 %v807
        %v993 = vunpack.c.h.b16 %v807
        %v994 = vunpack.c.l.b16 %v808
        %v995 = vunpack.c.h.b16 %v808
        %v996 = vunpack.c.l.b16 %v809
        %v997 = vunpack.c.h.b16 %v809
        %v998 = vunpack.c.l.b16 %v810
        %v999 = vunpack.c.h.b16 %v810
        %v1000 = vunpack.c.l.b16 %v811
        %v1001 = vunpack.c.h.b16 %v811
        %v1002 = vunpack.c.l.b16 %v812
        %v1003 = vunpack.c.h.b16 %v812
        %v1004 = vunpack.c.l.b16 %v813
        %v1005 = vunpack.c.h.b16 %v813
        %v1006 = vunpack.c.l.b16 %v814
        %v1007 = vunpack.c.h.b16 %v814
        %v1008 = vunpack.c.l.b16 %v815
        %v1009 = vunpack.c.h.b16 %v815
        %v1010 = vunpack.c.l.b16 %v816
        %v1011 = vunpack.c.h.b16 %v816
        %v1012 = vunpack.c.l.b16 %v817
        %v1013 = vunpack.c.h.b16 %v817
        %v1014 = vunpack.c.l.b16 %v818
        %v1015 = vunpack.c.h.b16 %v818
        %v1016 = vunpack.c.l.b16 %v819
        %v1017 = vunpack.c.h.b16 %v819
        %v1018 = vunpack.c.l.b16 %v820
        %v1019 = vunpack.c.h.b16 %v820
        %v1020 = vunpack.c.l.b16 %v821
        %v1021 = vunpack.c.h.b16 %v821
        %v1022 = vunpack.c.l.b16 %v822
        %v1023 = vunpack.c.h.b16 %v822
        %v1024 = vpack.c.b16 %v914, %v912
        %v1025 = vpack.c.b16 %v915, %v913
        %v1026 = vpack.c.b16 %v918, %v916
        %v1027 = vpack.c.b16 %v919, %v917
        %v1028 = vpack.c.b16 %v922, %v920
        %v1029 = vpack.c.b16 %v923, %v921
        %v1030 = vpack.c.b16 %v926, %v924
        %v1031 = vpack.c.b16 %v927, %v925
        %v1032 = vpack.c.b16 %v930, %v928
        %v1033 = vpack.c.b16 %v931, %v929
        %v1034 = vpack.c.b16 %v934, %v932
        %v1035 = vpack.c.b16 %v935, %v933
        %v1036 = vpack.c.b16 %v938, %v936
        %v1037 = vpack.c.b16 %v939, %v937
        %v1038 = vpack.c.b16 %v942, %v940
        %v1039 = vpack.c.b16 %v943, %v941
        %v1040 = vpack.c.b16 %v946, %v944
        %v1041 = vpack.c.b16 %v947, %v945
        %v1042 = vpack.c.b16 %v950, %v948
        %v1043 = vpack.c.b16 %v951, %v949
        %v1044 = vpack.c.b16 %v954, %v952
        %v1045 = vpack.c.b16 %v955, %v953
        %v1046 = vpack.c.b16 %v958, %v956
        %v1047 = vpack.c.b16 %v959, %v957
        %v1048 = vpack.c.b16 %v962, %v960
        %v1049 = vpack.c.b16 %v963, %v961
        %v1050 = vpack.c.b16 %v966, %v964
        %v1051 = vpack.c.b16 %v967, %v965
        %v1052 = vpack.c.b16 %v970, %v968
        %v1053 = vpack.c.b16 %v971, %v969
        %v1054 = vpack.c.b16 %v974, %v972
        %v1055 = vpack.c.b16 %v975, %v973
        %v1056 = vpack.c.b16 %v978, %v976
        %v1057 = vpack.c.b16 %v979, %v977
        %v1058 = vpack.c.b16 %v982, %v980
        %v1059 = vpack.c.b16 %v983, %v981
        %v1060 = vpack.c.b16 %v986, %v984
        %v1061 = vpack.c.b16 %v987, %v985
        %v1062 = vpack.c.b16 %v990, %v988
        %v1063 = vpack.c.b16 %v991, %v989
        %v1064 = vpack.c.b16 %v994, %v992
        %v1065 = vpack.c.b16 %v995, %v993
        %v1066 = vpack.c.b16 %v998, %v996
        %v1067 = vpack.c.b16 %v999, %v997
        %v1068 = vpack.c.b16 %v1002, %v1000
        %v1069 = vpack.c.b16 %v1003, %v1001
        %v1070 = vpack.c.b16 %v1006, %v1004
        %v1071 = vpack.c.b16 %v1007, %v1005
        %v1072 = vpack.c.b16 %v1010, %v1008
        %v1073 = vpack.c.b16 %v1011, %v1009
        %v1074 = vpack.c.b16 %v1014, %v1012
        %v1075 = vpack.c.b16 %v1015, %v1013
        %v1076 = vpack.c.b16 %v1018, %v1016
        %v1077 = vpack.c.b16 %v1019, %v1017
        %v1078 = vpack.c.b16 %v1022, %v1020
        %v1079 = vpack.c.b16 %v1023, %v1021
        %v1168 = vunpack.c.l.b16 %v824
        %v1169 = vunpack.c.h.b16 %v824
        %v1170 = vunpack.c.l.b16 %v825
        %v1171 = vunpack.c.h.b16 %v825
        %v1172 = vunpack.c.l.b16 %v826
        %v1173 = vunpack.c.h.b16 %v826
        %v1174 = vunpack.c.l.b16 %v827
        %v1175 = vunpack.c.h.b16 %v827
        %v1176 = vunpack.c.l.b16 %v828
        %v1177 = vunpack.c.h.b16 %v828
        %v1178 = vunpack.c.l.b16 %v829
        %v1179 = vunpack.c.h.b16 %v829
        %v1180 = vunpack.c.l.b16 %v830
        %v1181 = vunpack.c.h.b16 %v830
        %v1182 = vunpack.c.l.b16 %v831
        %v1183 = vunpack.c.h.b16 %v831
        %v1184 = vunpack.c.l.b16 %v832
        %v1185 = vunpack.c.h.b16 %v832
        %v1186 = vunpack.c.l.b16 %v833
        %v1187 = vunpack.c.h.b16 %v833
        %v1188 = vunpack.c.l.b16 %v834
        %v1189 = vunpack.c.h.b16 %v834
        %v1190 = vunpack.c.l.b16 %v835
        %v1191 = vunpack.c.h.b16 %v835
        %v1192 = vunpack.c.l.b16 %v836
        %v1193 = vunpack.c.h.b16 %v836
        %v1194 = vunpack.c.l.b16 %v837
        %v1195 = vunpack.c.h.b16 %v837
        %v1196 = vunpack.c.l.b16 %v838
        %v1197 = vunpack.c.h.b16 %v838
        %v1198 = vunpack.c.l.b16 %v839
        %v1199 = vunpack.c.h.b16 %v839
        %v1200 = vunpack.c.l.b16 %v840
        %v1201 = vunpack.c.h.b16 %v840
        %v1202 = vunpack.c.l.b16 %v841
        %v1203 = vunpack.c.h.b16 %v841
        %v1204 = vunpack.c.l.b16 %v842
        %v1205 = vunpack.c.h.b16 %v842
        %v1206 = vunpack.c.l.b16 %v843
        %v1207 = vunpack.c.h.b16 %v843
        %v1208 = vunpack.c.l.b16 %v844
        %v1209 = vunpack.c.h.b16 %v844
        %v1210 = vunpack.c.l.b16 %v845
        %v1211 = vunpack.c.h.b16 %v845
        %v1212 = vunpack.c.l.b16 %v846
        %v1213 = vunpack.c.h.b16 %v846
        %v1214 = vunpack.c.l.b16 %v847
        %v1215 = vunpack.c.h.b16 %v847
        %v1216 = vunpack.c.l.b16 %v848
        %v1217 = vunpack.c.h.b16 %v848
        %v1218 = vunpack.c.l.b16 %v849
        %v1219 = vunpack.c.h.b16 %v849
        %v1220 = vunpack.c.l.b16 %v850
        %v1221 = vunpack.c.h.b16 %v850
        %v1222 = vunpack.c.l.b16 %v851
        %v1223 = vunpack.c.h.b16 %v851
        %v1224 = vunpack.c.l.b16 %v852
        %v1225 = vunpack.c.h.b16 %v852
        %v1226 = vunpack.c.l.b16 %v853
        %v1227 = vunpack.c.h.b16 %v853
        %v1228 = vunpack.c.l.b16 %v854
        %v1229 = vunpack.c.h.b16 %v854
        %v1230 = vunpack.c.l.b16 %v855
        %v1231 = vunpack.c.h.b16 %v855
        %v1232 = vpack.c.b16 %v1170, %v1168
        %v1233 = vpack.c.b16 %v1171, %v1169
        %v1234 = vpack.c.b16 %v1174, %v1172
        %v1235 = vpack.c.b16 %v1175, %v1173
        %v1236 = vpack.c.b16 %v1178, %v1176
        %v1237 = vpack.c.b16 %v1179, %v1177
        %v1238 = vpack.c.b16 %v1182, %v1180
        %v1239 = vpack.c.b16 %v1183, %v1181
        %v1240 = vpack.c.b16 %v1186, %v1184
        %v1241 = vpack.c.b16 %v1187, %v1185
        %v1242 = vpack.c.b16 %v1190, %v1188
        %v1243 = vpack.c.b16 %v1191, %v1189
        %v1244 = vpack.c.b16 %v1194, %v1192
        %v1245 = vpack.c.b16 %v1195, %v1193
        %v1246 = vpack.c.b16 %v1198, %v1196
        %v1247 = vpack.c.b16 %v1199, %v1197
        %v1248 = vpack.c.b16 %v1202, %v1200
        %v1249 = vpack.c.b16 %v1203, %v1201
        %v1250 = vpack.c.b16 %v1206, %v1204
        %v1251 = vpack.c.b16 %v1207, %v1205
        %v1252 = vpack.c.b16 %v1210, %v1208
        %v1253 = vpack.c.b16 %v1211, %v1209
        %v1254 = vpack.c.b16 %v1214, %v1212
        %v1255 = vpack.c.b16 %v1215, %v1213
        %v1256 = vpack.c.b16 %v1218, %v1216
        %v1257 = vpack.c.b16 %v1219, %v1217
        %v1258 = vpack.c.b16 %v1222, %v1220
        %v1259 = vpack.c.b16 %v1223, %v1221
        %v1260 = vpack.c.b16 %v1226, %v1224
        %v1261 = vpack.c.b16 %v1227, %v1225
        %v1262 = vpack.c.b16 %v1230, %v1228
        %v1263 = vpack.c.b16 %v1231, %v1229
        %1296 = vmatprep.subr.bf16.mxu0 %v1233
        %1297 = vmatpush1.bf16.msra.mxu0 %v1232
        %1298 = vmatprep.subr.bf16.mxu0 %v1235
        %1299 = vmatpush1.bf16.msra.mxu0 %v1234
        %1300 = vmatprep.subr.bf16.mxu0 %v1237
        %1301 = vmatpush1.bf16.msra.mxu0 %v1236
        %1302 = vmatprep.subr.bf16.mxu0 %v1239
        %1303 = vmatpush1.bf16.msra.mxu0 %v1238
        %1304 = vmatprep.subr.bf16.mxu0 %v1241
        %1305 = vmatpush1.bf16.msra.mxu0 %v1240
        %1306 = vmatprep.subr.bf16.mxu0 %v1243
        %1307 = vmatpush1.bf16.msra.mxu0 %v1242
        %1308 = vmatprep.subr.bf16.mxu0 %v1245
        %1309 = vmatpush1.bf16.msra.mxu0 %v1244
        %1310 = vmatprep.subr.bf16.mxu0 %v1247
        %1311 = vmatpush1.bf16.msra.mxu0 %v1246
        %1312 = vmatprep.subr.bf16.mxu0 %v1249
        %1313 = vmatpush1.bf16.msra.mxu0 %v1248
        %1314 = vmatprep.subr.bf16.mxu0 %v1251
        %1315 = vmatpush1.bf16.msra.mxu0 %v1250
        %1316 = vmatprep.subr.bf16.mxu0 %v1253
        %1317 = vmatpush1.bf16.msra.mxu0 %v1252
        %1318 = vmatprep.subr.bf16.mxu0 %v1255
        %1319 = vmatpush1.bf16.msra.mxu0 %v1254
        %1320 = vmatprep.subr.bf16.mxu0 %v1257
        %1321 = vmatpush1.bf16.msra.mxu0 %v1256
        %1322 = vmatprep.subr.bf16.mxu0 %v1259
        %1323 = vmatpush1.bf16.msra.mxu0 %v1258
        %1324 = vmatprep.subr.bf16.mxu0 %v1261
        %1325 = vmatpush1.bf16.msra.mxu0 %v1260
        %1326 = vmatprep.subr.bf16.mxu0 %v1263
        %1327 = vmatpush1.bf16.msra.mxu0 %v1262
        %1328 = vmatprep.mubr.bf16.mxu0 %v1025
        %1329 = vmatmul.mubr.bf16.gmra.mrb[0].mxu0 %v1024
        %v1330 = vpop.f32.mrb[0].mxu0
        %v1331 = vadd.f32 0.0, %v1330
        %v1332 = vpop.f32.mrb[0].mxu0
        %v1333 = vadd.f32 0.0, %v1332
        %v1334 = vpop.f32.mrb[0].mxu0
        %v1335 = vadd.f32 0.0, %v1334
        %v1336 = vpop.f32.mrb[0].mxu0
        %v1337 = vadd.f32 0.0, %v1336
        %1338 = vmatprep.mubr.bf16.mxu0 %v1027
        %1339 = vmatmul.mubr.bf16.gmra.mrb[0].mxu0 %v1026
        %v1340 = vpop.f32.mrb[0].mxu0
        %v1341 = vadd.f32 0.0, %v1340
        %v1342 = vpop.f32.mrb[0].mxu0
        %v1343 = vadd.f32 0.0, %v1342
        %v1344 = vpop.f32.mrb[0].mxu0
        %v1345 = vadd.f32 0.0, %v1344
        %v1346 = vpop.f32.mrb[0].mxu0
        %v1347 = vadd.f32 0.0, %v1346
        %1348 = vmatprep.mubr.bf16.mxu0 %v1029
        %1349 = vmatmul.mubr.bf16.gmra.mrb[0].mxu0 %v1028
        %v1350 = vpop.f32.mrb[0].mxu0
        %v1351 = vadd.f32 0.0, %v1350
        %v1352 = vpop.f32.mrb[0].mxu0
        %v1353 = vadd.f32 0.0, %v1352
        %v1354 = vpop.f32.mrb[0].mxu0
        %v1355 = vadd.f32 0.0, %v1354
        %v1356 = vpop.f32.mrb[0].mxu0
        %v1357 = vadd.f32 0.0, %v1356
        %1358 = vmatprep.mubr.bf16.mxu0 %v1031
        %1359 = vmatmul.mubr.bf16.gmra.mrb[0].mxu0 %v1030
        %v1360 = vpop.f32.mrb[0].mxu0
        %v1361 = vadd.f32 0.0, %v1360
        %v1362 = vpop.f32.mrb[0].mxu0
        %v1363 = vadd.f32 0.0, %v1362
        %v1364 = vpop.f32.mrb[0].mxu0
        %v1365 = vadd.f32 0.0, %v1364
        %v1366 = vpop.f32.mrb[0].mxu0
        %v1367 = vadd.f32 0.0, %v1366
        %1368 = vmatprep.mubr.bf16.mxu0 %v1033
        %1369 = vmatmul.mubr.bf16.gmra.mrb[0].mxu0 %v1032
        %v1370 = vpop.f32.mrb[0].mxu0
        %v1371 = vadd.f32 0.0, %v1370
        %v1372 = vpop.f32.mrb[0].mxu0
        %v1373 = vadd.f32 0.0, %v1372
        %v1374 = vpop.f32.mrb[0].mxu0
        %v1375 = vadd.f32 0.0, %v1374
        %v1376 = vpop.f32.mrb[0].mxu0
        %v1377 = vadd.f32 0.0, %v1376
        %1378 = vmatprep.mubr.bf16.mxu0 %v1035
        %1379 = vmatmul.mubr.bf16.gmra.mrb[0].mxu0 %v1034
        %v1380 = vpop.f32.mrb[0].mxu0
        %v1381 = vadd.f32 0.0, %v1380
        %v1382 = vpop.f32.mrb[0].mxu0
        %v1383 = vadd.f32 0.0, %v1382
        %v1384 = vpop.f32.mrb[0].mxu0
        %v1385 = vadd.f32 0.0, %v1384
        %v1386 = vpop.f32.mrb[0].mxu0
        %v1387 = vadd.f32 0.0, %v1386
        %1388 = vmatprep.mubr.bf16.mxu0 %v1037
        %1389 = vmatmul.mubr.bf16.gmra.mrb[0].mxu0 %v1036
        %v1390 = vpop.f32.mrb[0].mxu0
        %v1391 = vadd.f32 0.0, %v1390
        %v1392 = vpop.f32.mrb[0].mxu0
        %v1393 = vadd.f32 0.0, %v1392
        %v1394 = vpop.f32.mrb[0].mxu0
        %v1395 = vadd.f32 0.0, %v1394
        %v1396 = vpop.f32.mrb[0].mxu0
        %v1397 = vadd.f32 0.0, %v1396
        %1398 = vmatprep.mubr.bf16.mxu0 %v1039
        %1399 = vmatmul.mubr.bf16.gmra.mrb[0].mxu0 %v1038
        %v1400 = vpop.f32.mrb[0].mxu0
        %v1401 = vadd.f32 0.0, %v1400
        %v1402 = vpop.f32.mrb[0].mxu0
        %v1403 = vadd.f32 0.0, %v1402
        %v1404 = vpop.f32.mrb[0].mxu0
        %v1405 = vadd.f32 0.0, %v1404
        %v1406 = vpop.f32.mrb[0].mxu0
        %v1407 = vadd.f32 0.0, %v1406
        %1408 = vmatprep.mubr.bf16.mxu0 %v1041
        %1409 = vmatmul.mubr.bf16.gmra.mrb[0].mxu0 %v1040
        %v1410 = vpop.f32.mrb[0].mxu0
        %v1411 = vadd.f32 0.0, %v1410
        %v1412 = vpop.f32.mrb[0].mxu0
        %v1413 = vadd.f32 0.0, %v1412
        %v1414 = vpop.f32.mrb[0].mxu0
        %v1415 = vadd.f32 0.0, %v1414
        %v1416 = vpop.f32.mrb[0].mxu0
        %v1417 = vadd.f32 0.0, %v1416
        %1418 = vmatprep.mubr.bf16.mxu0 %v1043
        %1419 = vmatmul.mubr.bf16.gmra.mrb[0].mxu0 %v1042
        %v1420 = vpop.f32.mrb[0].mxu0
        %v1421 = vadd.f32 0.0, %v1420
        %v1422 = vpop.f32.mrb[0].mxu0
        %v1423 = vadd.f32 0.0, %v1422
        %v1424 = vpop.f32.mrb[0].mxu0
        %v1425 = vadd.f32 0.0, %v1424
        %v1426 = vpop.f32.mrb[0].mxu0
        %v1427 = vadd.f32 0.0, %v1426
        %1428 = vmatprep.mubr.bf16.mxu0 %v1045
        %1429 = vmatmul.mubr.bf16.gmra.mrb[0].mxu0 %v1044
        %v1430 = vpop.f32.mrb[0].mxu0
        %v1431 = vadd.f32 0.0, %v1430
        %v1432 = vpop.f32.mrb[0].mxu0
        %v1433 = vadd.f32 0.0, %v1432
        %v1434 = vpop.f32.mrb[0].mxu0
        %v1435 = vadd.f32 0.0, %v1434
        %v1436 = vpop.f32.mrb[0].mxu0
        %v1437 = vadd.f32 0.0, %v1436
        %1438 = vmatprep.mubr.bf16.mxu0 %v1047
        %1439 = vmatmul.mubr.bf16.gmra.mrb[0].mxu0 %v1046
        %v1440 = vpop.f32.mrb[0].mxu0
        %v1441 = vadd.f32 0.0, %v1440
        %v1442 = vpop.f32.mrb[0].mxu0
        %v1443 = vadd.f32 0.0, %v1442
        %v1444 = vpop.f32.mrb[0].mxu0
        %v1445 = vadd.f32 0.0, %v1444
        %v1446 = vpop.f32.mrb[0].mxu0
        %v1447 = vadd.f32 0.0, %v1446
        %1448 = vmatprep.mubr.bf16.mxu0 %v1049
        %1449 = vmatmul.mubr.bf16.gmra.mrb[0].mxu0 %v1048
        %v1450 = vpop.f32.mrb[0].mxu0
        %v1451 = vadd.f32 0.0, %v1450
        %v1452 = vpop.f32.mrb[0].mxu0
        %v1453 = vadd.f32 0.0, %v1452
        %v1454 = vpop.f32.mrb[0].mxu0
        %v1455 = vadd.f32 0.0, %v1454
        %v1456 = vpop.f32.mrb[0].mxu0
        %v1457 = vadd.f32 0.0, %v1456
        %1458 = vmatprep.mubr.bf16.mxu0 %v1051
        %1459 = vmatmul.mubr.bf16.gmra.mrb[0].mxu0 %v1050
        %v1460 = vpop.f32.mrb[0].mxu0
        %v1461 = vadd.f32 0.0, %v1460
        %v1462 = vpop.f32.mrb[0].mxu0
        %v1463 = vadd.f32 0.0, %v1462
        %v1464 = vpop.f32.mrb[0].mxu0
        %v1465 = vadd.f32 0.0, %v1464
        %v1466 = vpop.f32.mrb[0].mxu0
        %v1467 = vadd.f32 0.0, %v1466
        %1468 = vmatprep.mubr.bf16.mxu0 %v1053
        %1469 = vmatmul.mubr.bf16.gmra.mrb[0].mxu0 %v1052
        %v1470 = vpop.f32.mrb[0].mxu0
        %v1471 = vadd.f32 0.0, %v1470
        %v1472 = vpop.f32.mrb[0].mxu0
        %v1473 = vadd.f32 0.0, %v1472
        %v1474 = vpop.f32.mrb[0].mxu0
        %v1475 = vadd.f32 0.0, %v1474
        %v1476 = vpop.f32.mrb[0].mxu0
        %v1477 = vadd.f32 0.0, %v1476
        %1478 = vmatprep.mubr.bf16.mxu0 %v1055
        %1479 = vmatmul.mubr.bf16.gmra.mrb[0].mxu0 %v1054
        %v1480 = vpop.f32.mrb[0].mxu0
        %v1481 = vadd.f32 0.0, %v1480
        %v1482 = vpop.f32.mrb[0].mxu0
        %v1483 = vadd.f32 0.0, %v1482
        %v1484 = vpop.f32.mrb[0].mxu0
        %v1485 = vadd.f32 0.0, %v1484
        %v1486 = vpop.f32.mrb[0].mxu0
        %v1487 = vadd.f32 0.0, %v1486
        %1488 = vmatprep.mubr.bf16.mxu0 %v1057
        %1489 = vmatmul.mubr.bf16.gmra.mrb[0].mxu0 %v1056
        %v1490 = vpop.f32.mrb[0].mxu0
        %v1491 = vadd.f32 0.0, %v1490
        %v1492 = vpop.f32.mrb[0].mxu0
        %v1493 = vadd.f32 0.0, %v1492
        %v1494 = vpop.f32.mrb[0].mxu0
        %v1495 = vadd.f32 0.0, %v1494
        %v1496 = vpop.f32.mrb[0].mxu0
        %v1497 = vadd.f32 0.0, %v1496
        %1498 = vmatprep.mubr.bf16.mxu0 %v1059
        %1499 = vmatmul.mubr.bf16.gmra.mrb[0].mxu0 %v1058
        %v1500 = vpop.f32.mrb[0].mxu0
        %v1501 = vadd.f32 0.0, %v1500
        %v1502 = vpop.f32.mrb[0].mxu0
        %v1503 = vadd.f32 0.0, %v1502
        %v1504 = vpop.f32.mrb[0].mxu0
        %v1505 = vadd.f32 0.0, %v1504
        %v1506 = vpop.f32.mrb[0].mxu0
        %v1507 = vadd.f32 0.0, %v1506
        %1508 = vmatprep.mubr.bf16.mxu0 %v1061
        %1509 = vmatmul.mubr.bf16.gmra.mrb[0].mxu0 %v1060
        %v1510 = vpop.f32.mrb[0].mxu0
        %v1511 = vadd.f32 0.0, %v1510
        %v1512 = vpop.f32.mrb[0].mxu0
        %v1513 = vadd.f32 0.0, %v1512
        %v1514 = vpop.f32.mrb[0].mxu0
        %v1515 = vadd.f32 0.0, %v1514
        %v1516 = vpop.f32.mrb[0].mxu0
        %v1517 = vadd.f32 0.0, %v1516
        %1518 = vmatprep.mubr.bf16.mxu0 %v1063
        %1519 = vmatmul.mubr.bf16.gmra.mrb[0].mxu0 %v1062
        %v1520 = vpop.f32.mrb[0].mxu0
        %v1521 = vadd.f32 0.0, %v1520
        %v1522 = vpop.f32.mrb[0].mxu0
        %v1523 = vadd.f32 0.0, %v1522
        %v1524 = vpop.f32.mrb[0].mxu0
        %v1525 = vadd.f32 0.0, %v1524
        %v1526 = vpop.f32.mrb[0].mxu0
        %v1527 = vadd.f32 0.0, %v1526
        %1528 = vmatprep.mubr.bf16.mxu0 %v1065
        %1529 = vmatmul.mubr.bf16.gmra.mrb[0].mxu0 %v1064
        %v1530 = vpop.f32.mrb[0].mxu0
        %v1531 = vadd.f32 0.0, %v1530
        %v1532 = vpop.f32.mrb[0].mxu0
        %v1533 = vadd.f32 0.0, %v1532
        %v1534 = vpop.f32.mrb[0].mxu0
        %v1535 = vadd.f32 0.0, %v1534
        %v1536 = vpop.f32.mrb[0].mxu0
        %v1537 = vadd.f32 0.0, %v1536
        %1538 = vmatprep.mubr.bf16.mxu0 %v1067
        %1539 = vmatmul.mubr.bf16.gmra.mrb[0].mxu0 %v1066
        %v1540 = vpop.f32.mrb[0].mxu0
        %v1541 = vadd.f32 0.0, %v1540
        %v1542 = vpop.f32.mrb[0].mxu0
        %v1543 = vadd.f32 0.0, %v1542
        %v1544 = vpop.f32.mrb[0].mxu0
        %v1545 = vadd.f32 0.0, %v1544
        %v1546 = vpop.f32.mrb[0].mxu0
        %v1547 = vadd.f32 0.0, %v1546
        %1548 = vmatprep.mubr.bf16.mxu0 %v1069
        %1549 = vmatmul.mubr.bf16.gmra.mrb[0].mxu0 %v1068
        %v1550 = vpop.f32.mrb[0].mxu0
        %v1551 = vadd.f32 0.0, %v1550
        %v1552 = vpop.f32.mrb[0].mxu0
        %v1553 = vadd.f32 0.0, %v1552
        %v1554 = vpop.f32.mrb[0].mxu0
        %v1555 = vadd.f32 0.0, %v1554
        %v1556 = vpop.f32.mrb[0].mxu0
        %v1557 = vadd.f32 0.0, %v1556
        %1558 = vmatprep.mubr.bf16.mxu0 %v1071
        %1559 = vmatmul.mubr.bf16.gmra.mrb[0].mxu0 %v1070
        %v1560 = vpop.f32.mrb[0].mxu0
        %v1561 = vadd.f32 0.0, %v1560
        %v1562 = vpop.f32.mrb[0].mxu0
        %v1563 = vadd.f32 0.0, %v1562
        %v1564 = vpop.f32.mrb[0].mxu0
        %v1565 = vadd.f32 0.0, %v1564
        %v1566 = vpop.f32.mrb[0].mxu0
        %v1567 = vadd.f32 0.0, %v1566
        %1568 = vmatprep.mubr.bf16.mxu0 %v1073
        %1569 = vmatmul.mubr.bf16.gmra.mrb[0].mxu0 %v1072
        %v1570 = vpop.f32.mrb[0].mxu0
        %v1571 = vadd.f32 0.0, %v1570
        %v1572 = vpop.f32.mrb[0].mxu0
        %v1573 = vadd.f32 0.0, %v1572
        %v1574 = vpop.f32.mrb[0].mxu0
        %v1575 = vadd.f32 0.0, %v1574
        %v1576 = vpop.f32.mrb[0].mxu0
        %v1577 = vadd.f32 0.0, %v1576
        %1578 = vmatprep.mubr.bf16.mxu0 %v1075
        %1579 = vmatmul.mubr.bf16.gmra.mrb[0].mxu0 %v1074
        %v1580 = vpop.f32.mrb[0].mxu0
        %v1581 = vadd.f32 0.0, %v1580
        %v1582 = vpop.f32.mrb[0].mxu0
        %v1583 = vadd.f32 0.0, %v1582
        %v1584 = vpop.f32.mrb[0].mxu0
        %v1585 = vadd.f32 0.0, %v1584
        %v1586 = vpop.f32.mrb[0].mxu0
        %v1587 = vadd.f32 0.0, %v1586
        %1588 = vmatprep.mubr.bf16.mxu0 %v1077
        %1589 = vmatmul.mubr.bf16.gmra.mrb[0].mxu0 %v1076
        %v1590 = vpop.f32.mrb[0].mxu0
        %v1591 = vadd.f32 0.0, %v1590
        %v1592 = vpop.f32.mrb[0].mxu0
        %v1593 = vadd.f32 0.0, %v1592
        %v1594 = vpop.f32.mrb[0].mxu0
        %v1595 = vadd.f32 0.0, %v1594
        %v1596 = vpop.f32.mrb[0].mxu0
        %v1597 = vadd.f32 0.0, %v1596
        %1598 = vmatprep.mubr.bf16.mxu0 %v1079
        %1599 = vmatmul.mubr.bf16.gmra.mrb[0].mxu0 %v1078
        %v1600 = vpop.f32.mrb[0].mxu0
        %v1601 = vadd.f32 0.0, %v1600
        %v1602 = vpop.f32.mrb[0].mxu0
        %v1603 = vadd.f32 0.0, %v1602
        %v1604 = vpop.f32.mrb[0].mxu0
        %v1605 = vadd.f32 0.0, %v1604
        %v1606 = vpop.f32.mrb[0].mxu0
        %v1607 = vadd.f32 0.0, %v1606
        %1608 = vdwg.mxu0
        %v1665 = vunpack.c.l.b16 %v678
        %v1666 = vunpack.c.h.b16 %v678
        %v1667 = vunpack.c.l.b16 %v679
        %v1668 = vunpack.c.h.b16 %v679
        %v1669 = vunpack.c.l.b16 %v680
        %v1670 = vunpack.c.h.b16 %v680
        %v1671 = vunpack.c.l.b16 %v681
        %v1672 = vunpack.c.h.b16 %v681
        %v1673 = vunpack.c.l.b16 %v682
        %v1674 = vunpack.c.h.b16 %v682
        %v1675 = vunpack.c.l.b16 %v683
        %v1676 = vunpack.c.h.b16 %v683
        %v1677 = vunpack.c.l.b16 %v684
        %v1678 = vunpack.c.h.b16 %v684
        %v1679 = vunpack.c.l.b16 %v685
        %v1680 = vunpack.c.h.b16 %v685
        %v1681 = vunpack.c.l.b16 %v686
        %v1682 = vunpack.c.h.b16 %v686
        %v1683 = vunpack.c.l.b16 %v687
        %v1684 = vunpack.c.h.b16 %v687
        %v1685 = vunpack.c.l.b16 %v688
        %v1686 = vunpack.c.h.b16 %v688
        %v1687 = vunpack.c.l.b16 %v689
        %v1688 = vunpack.c.h.b16 %v689
        %v1689 = vunpack.c.l.b16 %v690
        %v1690 = vunpack.c.h.b16 %v690
        %v1691 = vunpack.c.l.b16 %v691
        %v1692 = vunpack.c.h.b16 %v691
        %v1693 = vunpack.c.l.b16 %v692
        %v1694 = vunpack.c.h.b16 %v692
        %v1695 = vunpack.c.l.b16 %v693
        %v1696 = vunpack.c.h.b16 %v693
        %v1697 = vunpack.c.l.b16 %v694
        %v1698 = vunpack.c.h.b16 %v694
        %v1699 = vunpack.c.l.b16 %v695
        %v1700 = vunpack.c.h.b16 %v695
        %v1701 = vunpack.c.l.b16 %v696
        %v1702 = vunpack.c.h.b16 %v696
        %v1703 = vunpack.c.l.b16 %v697
        %v1704 = vunpack.c.h.b16 %v697
        %v1705 = vunpack.c.l.b16 %v698
        %v1706 = vunpack.c.h.b16 %v698
        %v1707 = vunpack.c.l.b16 %v699
        %v1708 = vunpack.c.h.b16 %v699
        %v1709 = vunpack.c.l.b16 %v700
        %v1710 = vunpack.c.h.b16 %v700
        %v1711 = vunpack.c.l.b16 %v701
        %v1712 = vunpack.c.h.b16 %v701
        %v1713 = vunpack.c.l.b16 %v702
        %v1714 = vunpack.c.h.b16 %v702
        %v1715 = vunpack.c.l.b16 %v703
        %v1716 = vunpack.c.h.b16 %v703
        %v1717 = vunpack.c.l.b16 %v704
        %v1718 = vunpack.c.h.b16 %v704
        %v1719 = vunpack.c.l.b16 %v705
        %v1720 = vunpack.c.h.b16 %v705
        %v1721 = vunpack.c.l.b16 %v706
        %v1722 = vunpack.c.h.b16 %v706
        %v1723 = vunpack.c.l.b16 %v707
        %v1724 = vunpack.c.h.b16 %v707
        %v1725 = vunpack.c.l.b16 %v708
        %v1726 = vunpack.c.h.b16 %v708
        %v1727 = vunpack.c.l.b16 %v709
        %v1728 = vunpack.c.h.b16 %v709
        %v1729 = vunpack.c.l.b16 %v710
        %v1730 = vunpack.c.h.b16 %v710
        %v1731 = vunpack.c.l.b16 %v711
        %v1732 = vunpack.c.h.b16 %v711
        %v1733 = vunpack.c.l.b16 %v712
        %v1734 = vunpack.c.h.b16 %v712
        %v1735 = vunpack.c.l.b16 %v713
        %v1736 = vunpack.c.h.b16 %v713
        %v1737 = vunpack.c.l.b16 %v714
        %v1738 = vunpack.c.h.b16 %v714
        %v1739 = vunpack.c.l.b16 %v715
        %v1740 = vunpack.c.h.b16 %v715
        %v1741 = vunpack.c.l.b16 %v716
        %v1742 = vunpack.c.h.b16 %v716
        %v1743 = vunpack.c.l.b16 %v717
        %v1744 = vunpack.c.h.b16 %v717
        %v1745 = vunpack.c.l.b16 %v718
        %v1746 = vunpack.c.h.b16 %v718
        %v1747 = vunpack.c.l.b16 %v719
        %v1748 = vunpack.c.h.b16 %v719
        %v1749 = vunpack.c.l.b16 %v720
        %v1750 = vunpack.c.h.b16 %v720
        %v1751 = vunpack.c.l.b16 %v721
        %v1752 = vunpack.c.h.b16 %v721
        %v1753 = vunpack.c.l.b16 %v722
        %v1754 = vunpack.c.h.b16 %v722
        %v1755 = vunpack.c.l.b16 %v723
        %v1756 = vunpack.c.h.b16 %v723
        %v1757 = vunpack.c.l.b16 %v724
        %v1758 = vunpack.c.h.b16 %v724
        %v1759 = vunpack.c.l.b16 %v725
        %v1760 = vunpack.c.h.b16 %v725
        %v1761 = vunpack.c.l.b16 %v726
        %v1762 = vunpack.c.h.b16 %v726
        %v1763 = vunpack.c.l.b16 %v727
        %v1764 = vunpack.c.h.b16 %v727
        %v1765 = vunpack.c.l.b16 %v728
        %v1766 = vunpack.c.h.b16 %v728
        %v1767 = vunpack.c.l.b16 %v729
        %v1768 = vunpack.c.h.b16 %v729
        %v1769 = vunpack.c.l.b16 %v730
        %v1770 = vunpack.c.h.b16 %v730
        %v1771 = vunpack.c.l.b16 %v731
        %v1772 = vunpack.c.h.b16 %v731
        %v1773 = vunpack.c.l.b16 %v732
        %v1774 = vunpack.c.h.b16 %v732
        %v1775 = vunpack.c.l.b16 %v733
        %v1776 = vunpack.c.h.b16 %v733
        %v1777 = vpack.c.b16 %v1667, %v1665
        %v1778 = vpack.c.b16 %v1668, %v1666
        %v1779 = vpack.c.b16 %v1671, %v1669
        %v1780 = vpack.c.b16 %v1672, %v1670
        %v1781 = vpack.c.b16 %v1675, %v1673
        %v1782 = vpack.c.b16 %v1676, %v1674
        %v1783 = vpack.c.b16 %v1679, %v1677
        %v1784 = vpack.c.b16 %v1680, %v1678
        %v1785 = vpack.c.b16 %v1683, %v1681
        %v1786 = vpack.c.b16 %v1684, %v1682
        %v1787 = vpack.c.b16 %v1687, %v1685
        %v1788 = vpack.c.b16 %v1688, %v1686
        %v1789 = vpack.c.b16 %v1691, %v1689
        %v1790 = vpack.c.b16 %v1692, %v1690
        %v1791 = vpack.c.b16 %v1695, %v1693
        %v1792 = vpack.c.b16 %v1696, %v1694
        %v1793 = vpack.c.b16 %v1699, %v1697
        %v1794 = vpack.c.b16 %v1700, %v1698
        %v1795 = vpack.c.b16 %v1703, %v1701
        %v1796 = vpack.c.b16 %v1704, %v1702
        %v1797 = vpack.c.b16 %v1707, %v1705
        %v1798 = vpack.c.b16 %v1708, %v1706
        %v1799 = vpack.c.b16 %v1711, %v1709
        %v1800 = vpack.c.b16 %v1712, %v1710
        %v1801 = vpack.c.b16 %v1715, %v1713
        %v1802 = vpack.c.b16 %v1716, %v1714
        %v1803 = vpack.c.b16 %v1719, %v1717
        %v1804 = vpack.c.b16 %v1720, %v1718
        %v1805 = vpack.c.b16 %v1723, %v1721
        %v1806 = vpack.c.b16 %v1724, %v1722
        %v1807 = vpack.c.b16 %v1727, %v1725
        %v1808 = vpack.c.b16 %v1728, %v1726
        %v1809 = vpack.c.b16 %v1731, %v1729
        %v1810 = vpack.c.b16 %v1732, %v1730
        %v1811 = vpack.c.b16 %v1735, %v1733
        %v1812 = vpack.c.b16 %v1736, %v1734
        %v1813 = vpack.c.b16 %v1739, %v1737
        %v1814 = vpack.c.b16 %v1740, %v1738
        %v1815 = vpack.c.b16 %v1743, %v1741
        %v1816 = vpack.c.b16 %v1744, %v1742
        %v1817 = vpack.c.b16 %v1747, %v1745
        %v1818 = vpack.c.b16 %v1748, %v1746
        %v1819 = vpack.c.b16 %v1751, %v1749
        %v1820 = vpack.c.b16 %v1752, %v1750
        %v1821 = vpack.c.b16 %v1755, %v1753
        %v1822 = vpack.c.b16 %v1756, %v1754
        %v1823 = vpack.c.b16 %v1759, %v1757
        %v1824 = vpack.c.b16 %v1760, %v1758
        %v1825 = vpack.c.b16 %v1763, %v1761
        %v1826 = vpack.c.b16 %v1764, %v1762
        %v1827 = vpack.c.b16 %v1767, %v1765
        %v1828 = vpack.c.b16 %v1768, %v1766
        %v1829 = vpack.c.b16 %v1771, %v1769
        %v1830 = vpack.c.b16 %v1772, %v1770
        %v1831 = vpack.c.b16 %v1775, %v1773
        %v1832 = vpack.c.b16 %v1776, %v1774
        %v1921 = vunpack.c.l.b16 %v734
        %v1922 = vunpack.c.h.b16 %v734
        %v1923 = vunpack.c.l.b16 %v735
        %v1924 = vunpack.c.h.b16 %v735
        %v1925 = vunpack.c.l.b16 %v736
        %v1926 = vunpack.c.h.b16 %v736
        %v1927 = vunpack.c.l.b16 %v737
        %v1928 = vunpack.c.h.b16 %v737
        %v1929 = vunpack.c.l.b16 %v738
        %v1930 = vunpack.c.h.b16 %v738
        %v1931 = vunpack.c.l.b16 %v739
        %v1932 = vunpack.c.h.b16 %v739
        %v1933 = vunpack.c.l.b16 %v740
        %v1934 = vunpack.c.h.b16 %v740
        %v1935 = vunpack.c.l.b16 %v741
        %v1936 = vunpack.c.h.b16 %v741
        %v1937 = vunpack.c.l.b16 %v742
        %v1938 = vunpack.c.h.b16 %v742
        %v1939 = vunpack.c.l.b16 %v743
        %v1940 = vunpack.c.h.b16 %v743
        %v1941 = vunpack.c.l.b16 %v744
        %v1942 = vunpack.c.h.b16 %v744
        %v1943 = vunpack.c.l.b16 %v745
        %v1944 = vunpack.c.h.b16 %v745
        %v1945 = vunpack.c.l.b16 %v746
        %v1946 = vunpack.c.h.b16 %v746
        %v1947 = vunpack.c.l.b16 %v747
        %v1948 = vunpack.c.h.b16 %v747
        %v1949 = vunpack.c.l.b16 %v748
        %v1950 = vunpack.c.h.b16 %v748
        %v1951 = vunpack.c.l.b16 %v749
        %v1952 = vunpack.c.h.b16 %v749
        %v1953 = vunpack.c.l.b16 %v750
        %v1954 = vunpack.c.h.b16 %v750
        %v1955 = vunpack.c.l.b16 %v751
        %v1956 = vunpack.c.h.b16 %v751
        %v1957 = vunpack.c.l.b16 %v752
        %v1958 = vunpack.c.h.b16 %v752
        %v1959 = vunpack.c.l.b16 %v753
        %v1960 = vunpack.c.h.b16 %v753
        %v1961 = vunpack.c.l.b16 %v754
        %v1962 = vunpack.c.h.b16 %v754
        %v1963 = vunpack.c.l.b16 %v755
        %v1964 = vunpack.c.h.b16 %v755
        %v1965 = vunpack.c.l.b16 %v756
        %v1966 = vunpack.c.h.b16 %v756
        %v1967 = vunpack.c.l.b16 %v757
        %v1968 = vunpack.c.h.b16 %v757
        %v1969 = vunpack.c.l.b16 %v758
        %v1970 = vunpack.c.h.b16 %v758
        %v1971 = vunpack.c.l.b16 %v759
        %v1972 = vunpack.c.h.b16 %v759
        %v1973 = vunpack.c.l.b16 %v760
        %v1974 = vunpack.c.h.b16 %v760
        %v1975 = vunpack.c.l.b16 %v761
        %v1976 = vunpack.c.h.b16 %v761
        %v1977 = vunpack.c.l.b16 %v762
        %v1978 = vunpack.c.h.b16 %v762
        %v1979 = vunpack.c.l.b16 %v763
        %v1980 = vunpack.c.h.b16 %v763
        %v1981 = vunpack.c.l.b16 %v764
        %v1982 = vunpack.c.h.b16 %v764
        %v1983 = vunpack.c.l.b16 %v765
        %v1984 = vunpack.c.h.b16 %v765
        %v1985 = vpack.c.b16 %v1923, %v1921
        %v1986 = vpack.c.b16 %v1924, %v1922
        %v1987 = vpack.c.b16 %v1927, %v1925
        %v1988 = vpack.c.b16 %v1928, %v1926
        %v1989 = vpack.c.b16 %v1931, %v1929
        %v1990 = vpack.c.b16 %v1932, %v1930
        %v1991 = vpack.c.b16 %v1935, %v1933
        %v1992 = vpack.c.b16 %v1936, %v1934
        %v1993 = vpack.c.b16 %v1939, %v1937
        %v1994 = vpack.c.b16 %v1940, %v1938
        %v1995 = vpack.c.b16 %v1943, %v1941
        %v1996 = vpack.c.b16 %v1944, %v1942
        %v1997 = vpack.c.b16 %v1947, %v1945
        %v1998 = vpack.c.b16 %v1948, %v1946
        %v1999 = vpack.c.b16 %v1951, %v1949
        %v2000 = vpack.c.b16 %v1952, %v1950
        %v2001 = vpack.c.b16 %v1955, %v1953
        %v2002 = vpack.c.b16 %v1956, %v1954
        %v2003 = vpack.c.b16 %v1959, %v1957
        %v2004 = vpack.c.b16 %v1960, %v1958
        %v2005 = vpack.c.b16 %v1963, %v1961
        %v2006 = vpack.c.b16 %v1964, %v1962
        %v2007 = vpack.c.b16 %v1967, %v1965
        %v2008 = vpack.c.b16 %v1968, %v1966
        %v2009 = vpack.c.b16 %v1971, %v1969
        %v2010 = vpack.c.b16 %v1972, %v1970
        %v2011 = vpack.c.b16 %v1975, %v1973
        %v2012 = vpack.c.b16 %v1976, %v1974
        %v2013 = vpack.c.b16 %v1979, %v1977
        %v2014 = vpack.c.b16 %v1980, %v1978
        %v2015 = vpack.c.b16 %v1983, %v1981
        %v2016 = vpack.c.b16 %v1984, %v1982
        %2049 = vmatprep.subr.bf16.mxu0 %v1986
        %2050 = vmatpush1.bf16.msra.mxu0 %v1985
        %2051 = vmatprep.subr.bf16.mxu0 %v1988
        %2052 = vmatpush1.bf16.msra.mxu0 %v1987
        %2053 = vmatprep.subr.bf16.mxu0 %v1990
        %2054 = vmatpush1.bf16.msra.mxu0 %v1989
        %2055 = vmatprep.subr.bf16.mxu0 %v1992
        %2056 = vmatpush1.bf16.msra.mxu0 %v1991
        %2057 = vmatprep.subr.bf16.mxu0 %v1994
        %2058 = vmatpush1.bf16.msra.mxu0 %v1993
        %2059 = vmatprep.subr.bf16.mxu0 %v1996
        %2060 = vmatpush1.bf16.msra.mxu0 %v1995
        %2061 = vmatprep.subr.bf16.mxu0 %v1998
        %2062 = vmatpush1.bf16.msra.mxu0 %v1997
        %2063 = vmatprep.subr.bf16.mxu0 %v2000
        %2064 = vmatpush1.bf16.msra.mxu0 %v1999
        %2065 = vmatprep.subr.bf16.mxu0 %v2002
        %2066 = vmatpush1.bf16.msra.mxu0 %v2001
        %2067 = vmatprep.subr.bf16.mxu0 %v2004
        %2068 = vmatpush1.bf16.msra.mxu0 %v2003
        %2069 = vmatprep.subr.bf16.mxu0 %v2006
        %2070 = vmatpush1.bf16.msra.mxu0 %v2005
        %2071 = vmatprep.subr.bf16.mxu0 %v2008
        %2072 = vmatpush1.bf16.msra.mxu0 %v2007
        %2073 = vmatprep.subr.bf16.mxu0 %v2010
        %2074 = vmatpush1.bf16.msra.mxu0 %v2009
        %2075 = vmatprep.subr.bf16.mxu0 %v2012
        %2076 = vmatpush1.bf16.msra.mxu0 %v2011
        %2077 = vmatprep.subr.bf16.mxu0 %v2014
        %2078 = vmatpush1.bf16.msra.mxu0 %v2013
        %2079 = vmatprep.subr.bf16.mxu0 %v2016
        %2080 = vmatpush1.bf16.msra.mxu0 %v2015
        %2081 = vmatprep.mubr.bf16.mxu0 %v1778
        %2082 = vmatmul.mubr.bf16.gmra.mrb[0].mxu0 %v1777
        %v2083 = vpop.f32.mrb[0].mxu0
        %v2084 = vadd.f32 %v1331, %v2083
        %v2085 = vpop.f32.mrb[0].mxu0
        %v2086 = vadd.f32 %v1333, %v2085
        %v2087 = vpop.f32.mrb[0].mxu0
        %v2088 = vadd.f32 %v1335, %v2087
        %v2089 = vpop.f32.mrb[0].mxu0
        %v2090 = vadd.f32 %v1337, %v2089
        %2091 = vmatprep.mubr.bf16.mxu0 %v1780
        %2092 = vmatmul.mubr.bf16.gmra.mrb[0].mxu0 %v1779
        %v2093 = vpop.f32.mrb[0].mxu0
        %v2094 = vadd.f32 %v1341, %v2093
        %v2095 = vpop.f32.mrb[0].mxu0
        %v2096 = vadd.f32 %v1343, %v2095
        %v2097 = vpop.f32.mrb[0].mxu0
        %v2098 = vadd.f32 %v1345, %v2097
        %v2099 = vpop.f32.mrb[0].mxu0
        %v2100 = vadd.f32 %v1347, %v2099
        %2101 = vmatprep.mubr.bf16.mxu0 %v1782
        %2102 = vmatmul.mubr.bf16.gmra.mrb[0].mxu0 %v1781
        %v2103 = vpop.f32.mrb[0].mxu0
        %v2104 = vadd.f32 %v1351, %v2103
        %v2105 = vpop.f32.mrb[0].mxu0
        %v2106 = vadd.f32 %v1353, %v2105
        %v2107 = vpop.f32.mrb[0].mxu0
        %v2108 = vadd.f32 %v1355, %v2107
        %v2109 = vpop.f32.mrb[0].mxu0
        %v2110 = vadd.f32 %v1357, %v2109
        %2111 = vmatprep.mubr.bf16.mxu0 %v1784
        %2112 = vmatmul.mubr.bf16.gmra.mrb[0].mxu0 %v1783
        %v2113 = vpop.f32.mrb[0].mxu0
        %v2114 = vadd.f32 %v1361, %v2113
        %v2115 = vpop.f32.mrb[0].mxu0
        %v2116 = vadd.f32 %v1363, %v2115
        %v2117 = vpop.f32.mrb[0].mxu0
        %v2118 = vadd.f32 %v1365, %v2117
        %v2119 = vpop.f32.mrb[0].mxu0
        %v2120 = vadd.f32 %v1367, %v2119
        %2121 = vmatprep.mubr.bf16.mxu0 %v1786
        %2122 = vmatmul.mubr.bf16.gmra.mrb[0].mxu0 %v1785
        %v2123 = vpop.f32.mrb[0].mxu0
        %v2124 = vadd.f32 %v1371, %v2123
        %v2125 = vpop.f32.mrb[0].mxu0
        %v2126 = vadd.f32 %v1373, %v2125
        %v2127 = vpop.f32.mrb[0].mxu0
        %v2128 = vadd.f32 %v1375, %v2127
        %v2129 = vpop.f32.mrb[0].mxu0
        %v2130 = vadd.f32 %v1377, %v2129
        %2131 = vmatprep.mubr.bf16.mxu0 %v1788
        %2132 = vmatmul.mubr.bf16.gmra.mrb[0].mxu0 %v1787
        %v2133 = vpop.f32.mrb[0].mxu0
        %v2134 = vadd.f32 %v1381, %v2133
        %v2135 = vpop.f32.mrb[0].mxu0
        %v2136 = vadd.f32 %v1383, %v2135
        %v2137 = vpop.f32.mrb[0].mxu0
        %v2138 = vadd.f32 %v1385, %v2137
        %v2139 = vpop.f32.mrb[0].mxu0
        %v2140 = vadd.f32 %v1387, %v2139
        %2141 = vmatprep.mubr.bf16.mxu0 %v1790
        %2142 = vmatmul.mubr.bf16.gmra.mrb[0].mxu0 %v1789
        %v2143 = vpop.f32.mrb[0].mxu0
        %v2144 = vadd.f32 %v1391, %v2143
        %v2145 = vpop.f32.mrb[0].mxu0
        %v2146 = vadd.f32 %v1393, %v2145
        %v2147 = vpop.f32.mrb[0].mxu0
        %v2148 = vadd.f32 %v1395, %v2147
        %v2149 = vpop.f32.mrb[0].mxu0
        %v2150 = vadd.f32 %v1397, %v2149
        %2151 = vmatprep.mubr.bf16.mxu0 %v1792
        %2152 = vmatmul.mubr.bf16.gmra.mrb[0].mxu0 %v1791
        %v2153 = vpop.f32.mrb[0].mxu0
        %v2154 = vadd.f32 %v1401, %v2153
        %v2155 = vpop.f32.mrb[0].mxu0
        %v2156 = vadd.f32 %v1403, %v2155
        %v2157 = vpop.f32.mrb[0].mxu0
        %v2158 = vadd.f32 %v1405, %v2157
        %v2159 = vpop.f32.mrb[0].mxu0
        %v2160 = vadd.f32 %v1407, %v2159
        %2161 = vmatprep.mubr.bf16.mxu0 %v1794
        %2162 = vmatmul.mubr.bf16.gmra.mrb[0].mxu0 %v1793
        %v2163 = vpop.f32.mrb[0].mxu0
        %v2164 = vadd.f32 %v1411, %v2163
        %v2165 = vpop.f32.mrb[0].mxu0
        %v2166 = vadd.f32 %v1413, %v2165
        %v2167 = vpop.f32.mrb[0].mxu0
        %v2168 = vadd.f32 %v1415, %v2167
        %v2169 = vpop.f32.mrb[0].mxu0
        %v2170 = vadd.f32 %v1417, %v2169
        %2171 = vmatprep.mubr.bf16.mxu0 %v1796
        %2172 = vmatmul.mubr.bf16.gmra.mrb[0].mxu0 %v1795
        %v2173 = vpop.f32.mrb[0].mxu0
        %v2174 = vadd.f32 %v1421, %v2173
        %v2175 = vpop.f32.mrb[0].mxu0
        %v2176 = vadd.f32 %v1423, %v2175
        %v2177 = vpop.f32.mrb[0].mxu0
        %v2178 = vadd.f32 %v1425, %v2177
        %v2179 = vpop.f32.mrb[0].mxu0
        %v2180 = vadd.f32 %v1427, %v2179
        %2181 = vmatprep.mubr.bf16.mxu0 %v1798
        %2182 = vmatmul.mubr.bf16.gmra.mrb[0].mxu0 %v1797
        %v2183 = vpop.f32.mrb[0].mxu0
        %v2184 = vadd.f32 %v1431, %v2183
        %v2185 = vpop.f32.mrb[0].mxu0
        %v2186 = vadd.f32 %v1433, %v2185
        %v2187 = vpop.f32.mrb[0].mxu0
        %v2188 = vadd.f32 %v1435, %v2187
        %v2189 = vpop.f32.mrb[0].mxu0
        %v2190 = vadd.f32 %v1437, %v2189
        %2191 = vmatprep.mubr.bf16.mxu0 %v1800
        %2192 = vmatmul.mubr.bf16.gmra.mrb[0].mxu0 %v1799
        %v2193 = vpop.f32.mrb[0].mxu0
        %v2194 = vadd.f32 %v1441, %v2193
        %v2195 = vpop.f32.mrb[0].mxu0
        %v2196 = vadd.f32 %v1443, %v2195
        %v2197 = vpop.f32.mrb[0].mxu0
        %v2198 = vadd.f32 %v1445, %v2197
        %v2199 = vpop.f32.mrb[0].mxu0
        %v2200 = vadd.f32 %v1447, %v2199
        %2201 = vmatprep.mubr.bf16.mxu0 %v1802
        %2202 = vmatmul.mubr.bf16.gmra.mrb[0].mxu0 %v1801
        %v2203 = vpop.f32.mrb[0].mxu0
        %v2204 = vadd.f32 %v1451, %v2203
        %v2205 = vpop.f32.mrb[0].mxu0
        %v2206 = vadd.f32 %v1453, %v2205
        %v2207 = vpop.f32.mrb[0].mxu0
        %v2208 = vadd.f32 %v1455, %v2207
        %v2209 = vpop.f32.mrb[0].mxu0
        %v2210 = vadd.f32 %v1457, %v2209
        %2211 = vmatprep.mubr.bf16.mxu0 %v1804
        %2212 = vmatmul.mubr.bf16.gmra.mrb[0].mxu0 %v1803
        %v2213 = vpop.f32.mrb[0].mxu0
        %v2214 = vadd.f32 %v1461, %v2213
        %v2215 = vpop.f32.mrb[0].mxu0
        %v2216 = vadd.f32 %v1463, %v2215
        %v2217 = vpop.f32.mrb[0].mxu0
        %v2218 = vadd.f32 %v1465, %v2217
        %v2219 = vpop.f32.mrb[0].mxu0
        %v2220 = vadd.f32 %v1467, %v2219
        %2221 = vmatprep.mubr.bf16.mxu0 %v1806
        %2222 = vmatmul.mubr.bf16.gmra.mrb[0].mxu0 %v1805
        %v2223 = vpop.f32.mrb[0].mxu0
        %v2224 = vadd.f32 %v1471, %v2223
        %v2225 = vpop.f32.mrb[0].mxu0
        %v2226 = vadd.f32 %v1473, %v2225
        %v2227 = vpop.f32.mrb[0].mxu0
        %v2228 = vadd.f32 %v1475, %v2227
        %v2229 = vpop.f32.mrb[0].mxu0
        %v2230 = vadd.f32 %v1477, %v2229
        %2231 = vmatprep.mubr.bf16.mxu0 %v1808
        %2232 = vmatmul.mubr.bf16.gmra.mrb[0].mxu0 %v1807
        %v2233 = vpop.f32.mrb[0].mxu0
        %v2234 = vadd.f32 %v1481, %v2233
        %v2235 = vpop.f32.mrb[0].mxu0
        %v2236 = vadd.f32 %v1483, %v2235
        %v2237 = vpop.f32.mrb[0].mxu0
        %v2238 = vadd.f32 %v1485, %v2237
        %v2239 = vpop.f32.mrb[0].mxu0
        %v2240 = vadd.f32 %v1487, %v2239
        %2241 = vmatprep.mubr.bf16.mxu0 %v1810
        %2242 = vmatmul.mubr.bf16.gmra.mrb[0].mxu0 %v1809
        %v2243 = vpop.f32.mrb[0].mxu0
        %v2244 = vadd.f32 %v1491, %v2243
        %v2245 = vpop.f32.mrb[0].mxu0
        %v2246 = vadd.f32 %v1493, %v2245
        %v2247 = vpop.f32.mrb[0].mxu0
        %v2248 = vadd.f32 %v1495, %v2247
        %v2249 = vpop.f32.mrb[0].mxu0
        %v2250 = vadd.f32 %v1497, %v2249
        %2251 = vmatprep.mubr.bf16.mxu0 %v1812
        %2252 = vmatmul.mubr.bf16.gmra.mrb[0].mxu0 %v1811
        %v2253 = vpop.f32.mrb[0].mxu0
        %v2254 = vadd.f32 %v1501, %v2253
        %v2255 = vpop.f32.mrb[0].mxu0
        %v2256 = vadd.f32 %v1503, %v2255
        %v2257 = vpop.f32.mrb[0].mxu0
        %v2258 = vadd.f32 %v1505, %v2257
        %v2259 = vpop.f32.mrb[0].mxu0
        %v2260 = vadd.f32 %v1507, %v2259
        %2261 = vmatprep.mubr.bf16.mxu0 %v1814
        %2262 = vmatmul.mubr.bf16.gmra.mrb[0].mxu0 %v1813
        %v2263 = vpop.f32.mrb[0].mxu0
        %v2264 = vadd.f32 %v1511, %v2263
        %v2265 = vpop.f32.mrb[0].mxu0
        %v2266 = vadd.f32 %v1513, %v2265
        %v2267 = vpop.f32.mrb[0].mxu0
        %v2268 = vadd.f32 %v1515, %v2267
        %v2269 = vpop.f32.mrb[0].mxu0
        %v2270 = vadd.f32 %v1517, %v2269
        %2271 = vmatprep.mubr.bf16.mxu0 %v1816
        %2272 = vmatmul.mubr.bf16.gmra.mrb[0].mxu0 %v1815
        %v2273 = vpop.f32.mrb[0].mxu0
        %v2274 = vadd.f32 %v1521, %v2273
        %v2275 = vpop.f32.mrb[0].mxu0
        %v2276 = vadd.f32 %v1523, %v2275
        %v2277 = vpop.f32.mrb[0].mxu0
        %v2278 = vadd.f32 %v1525, %v2277
        %v2279 = vpop.f32.mrb[0].mxu0
        %v2280 = vadd.f32 %v1527, %v2279
        %2281 = vmatprep.mubr.bf16.mxu0 %v1818
        %2282 = vmatmul.mubr.bf16.gmra.mrb[0].mxu0 %v1817
        %v2283 = vpop.f32.mrb[0].mxu0
        %v2284 = vadd.f32 %v1531, %v2283
        %v2285 = vpop.f32.mrb[0].mxu0
        %v2286 = vadd.f32 %v1533, %v2285
        %v2287 = vpop.f32.mrb[0].mxu0
        %v2288 = vadd.f32 %v1535, %v2287
        %v2289 = vpop.f32.mrb[0].mxu0
        %v2290 = vadd.f32 %v1537, %v2289
        %2291 = vmatprep.mubr.bf16.mxu0 %v1820
        %2292 = vmatmul.mubr.bf16.gmra.mrb[0].mxu0 %v1819
        %v2293 = vpop.f32.mrb[0].mxu0
        %v2294 = vadd.f32 %v1541, %v2293
        %v2295 = vpop.f32.mrb[0].mxu0
        %v2296 = vadd.f32 %v1543, %v2295
        %v2297 = vpop.f32.mrb[0].mxu0
        %v2298 = vadd.f32 %v1545, %v2297
        %v2299 = vpop.f32.mrb[0].mxu0
        %v2300 = vadd.f32 %v1547, %v2299
        %2301 = vmatprep.mubr.bf16.mxu0 %v1822
        %2302 = vmatmul.mubr.bf16.gmra.mrb[0].mxu0 %v1821
        %v2303 = vpop.f32.mrb[0].mxu0
        %v2304 = vadd.f32 %v1551, %v2303
        %v2305 = vpop.f32.mrb[0].mxu0
        %v2306 = vadd.f32 %v1553, %v2305
        %v2307 = vpop.f32.mrb[0].mxu0
        %v2308 = vadd.f32 %v1555, %v2307
        %v2309 = vpop.f32.mrb[0].mxu0
        %v2310 = vadd.f32 %v1557, %v2309
        %2311 = vmatprep.mubr.bf16.mxu0 %v1824
        %2312 = vmatmul.mubr.bf16.gmra.mrb[0].mxu0 %v1823
        %v2313 = vpop.f32.mrb[0].mxu0
        %v2314 = vadd.f32 %v1561, %v2313
        %v2315 = vpop.f32.mrb[0].mxu0
        %v2316 = vadd.f32 %v1563, %v2315
        %v2317 = vpop.f32.mrb[0].mxu0
        %v2318 = vadd.f32 %v1565, %v2317
        %v2319 = vpop.f32.mrb[0].mxu0
        %v2320 = vadd.f32 %v1567, %v2319
        %2321 = vmatprep.mubr.bf16.mxu0 %v1826
        %2322 = vmatmul.mubr.bf16.gmra.mrb[0].mxu0 %v1825
        %v2323 = vpop.f32.mrb[0].mxu0
        %v2324 = vadd.f32 %v1571, %v2323
        %v2325 = vpop.f32.mrb[0].mxu0
        %v2326 = vadd.f32 %v1573, %v2325
        %v2327 = vpop.f32.mrb[0].mxu0
        %v2328 = vadd.f32 %v1575, %v2327
        %v2329 = vpop.f32.mrb[0].mxu0
        %v2330 = vadd.f32 %v1577, %v2329
        %2331 = vmatprep.mubr.bf16.mxu0 %v1828
        %2332 = vmatmul.mubr.bf16.gmra.mrb[0].mxu0 %v1827
        %v2333 = vpop.f32.mrb[0].mxu0
        %v2334 = vadd.f32 %v1581, %v2333
        %v2335 = vpop.f32.mrb[0].mxu0
        %v2336 = vadd.f32 %v1583, %v2335
        %v2337 = vpop.f32.mrb[0].mxu0
        %v2338 = vadd.f32 %v1585, %v2337
        %v2339 = vpop.f32.mrb[0].mxu0
        %v2340 = vadd.f32 %v1587, %v2339
        %2341 = vmatprep.mubr.bf16.mxu0 %v1830
        %2342 = vmatmul.mubr.bf16.gmra.mrb[0].mxu0 %v1829
        %v2343 = vpop.f32.mrb[0].mxu0
        %v2344 = vadd.f32 %v1591, %v2343
        %v2345 = vpop.f32.mrb[0].mxu0
        %v2346 = vadd.f32 %v1593, %v2345
        %v2347 = vpop.f32.mrb[0].mxu0
        %v2348 = vadd.f32 %v1595, %v2347
        %v2349 = vpop.f32.mrb[0].mxu0
        %v2350 = vadd.f32 %v1597, %v2349
        %2351 = vmatprep.mubr.bf16.mxu0 %v1832
        %2352 = vmatmul.mubr.bf16.gmra.mrb[0].mxu0 %v1831
        %v2353 = vpop.f32.mrb[0].mxu0
        %v2354 = vadd.f32 %v1601, %v2353
        %v2355 = vpop.f32.mrb[0].mxu0
        %v2356 = vadd.f32 %v1603, %v2355
        %v2357 = vpop.f32.mrb[0].mxu0
        %v2358 = vadd.f32 %v1605, %v2357
        %v2359 = vpop.f32.mrb[0].mxu0
        %v2360 = vadd.f32 %v1607, %v2359
        %2361 = vdwg.mxu0
        %s2362 = scalar_lea.vmem %s633, 32 [#allocation4]
        %v2363 = vld [vmem:[%s2362] sm:$0xff]
        %v2364 = vld [vmem:[%s2362 + $0x8] sm:$0xff]
        %v2365 = vld [vmem:[%s2362 + $0x10] sm:$0xff]
        %v2366 = vld [vmem:[%s2362 + $0x18] sm:$0xff]
        %v2367 = vld [vmem:[%s2362 + $0x20] sm:$0xff]
        %v2368 = vld [vmem:[%s2362 + $0x28] sm:$0xff]
        %v2369 = vld [vmem:[%s2362 + $0x30] sm:$0xff]
        %v2370 = vld [vmem:[%s2362 + $0x38] sm:$0xff]
        %v2371 = vld [vmem:[%s2362 + $0x40] sm:$0xff]
        %v2372 = vld [vmem:[%s2362 + $0x48] sm:$0xff]
        %v2373 = vld [vmem:[%s2362 + $0x50] sm:$0xff]
        %v2374 = vld [vmem:[%s2362 + $0x58] sm:$0xff]
        %v2375 = vld [vmem:[%s2362 + $0x60] sm:$0xff]
        %v2376 = vld [vmem:[%s2362 + $0x68] sm:$0xff]
        %v2377 = vld [vmem:[%s2362 + $0x70] sm:$0xff]
        %v2378 = vld [vmem:[%s2362 + $0x78] sm:$0xff]
        %v2379 = vld [vmem:[%s2362 + $0x80] sm:$0xff]
        %v2380 = vld [vmem:[%s2362 + $0x88] sm:$0xff]
        %v2381 = vld [vmem:[%s2362 + $0x90] sm:$0xff]
        %v2382 = vld [vmem:[%s2362 + $0x98] sm:$0xff]
        %v2383 = vld [vmem:[%s2362 + $0xa0] sm:$0xff]
        %v2384 = vld [vmem:[%s2362 + $0xa8] sm:$0xff]
        %v2385 = vld [vmem:[%s2362 + $0xb0] sm:$0xff]
        %v2386 = vld [vmem:[%s2362 + $0xb8] sm:$0xff]
        %v2387 = vld [vmem:[%s2362 + $0xc0] sm:$0xff]
        %v2388 = vld [vmem:[%s2362 + $0xc8] sm:$0xff]
        %v2389 = vld [vmem:[%s2362 + $0xd0] sm:$0xff]
        %v2390 = vld [vmem:[%s2362 + $0xd8] sm:$0xff]
        %v2391 = vld [vmem:[%s2362 + $0xe0] sm:$0xff]
        %v2392 = vld [vmem:[%s2362 + $0xe8] sm:$0xff]
        %v2393 = vld [vmem:[%s2362 + $0xf0] sm:$0xff]
        %v2394 = vld [vmem:[%s2362 + $0xf8] sm:$0xff]
        %v2395 = vld [vmem:[%s2362 + $0x100] sm:$0xff]
        %v2396 = vld [vmem:[%s2362 + $0x108] sm:$0xff]
        %v2397 = vld [vmem:[%s2362 + $0x110] sm:$0xff]
        %v2398 = vld [vmem:[%s2362 + $0x118] sm:$0xff]
        %v2399 = vld [vmem:[%s2362 + $0x120] sm:$0xff]
        %v2400 = vld [vmem:[%s2362 + $0x128] sm:$0xff]
        %v2401 = vld [vmem:[%s2362 + $0x130] sm:$0xff]
        %v2402 = vld [vmem:[%s2362 + $0x138] sm:$0xff]
        %v2403 = vld [vmem:[%s2362 + $0x140] sm:$0xff]
        %v2404 = vld [vmem:[%s2362 + $0x148] sm:$0xff]
        %v2405 = vld [vmem:[%s2362 + $0x150] sm:$0xff]
        %v2406 = vld [vmem:[%s2362 + $0x158] sm:$0xff]
        %v2407 = vld [vmem:[%s2362 + $0x160] sm:$0xff]
        %v2408 = vld [vmem:[%s2362 + $0x168] sm:$0xff]
        %v2409 = vld [vmem:[%s2362 + $0x170] sm:$0xff]
        %v2410 = vld [vmem:[%s2362 + $0x178] sm:$0xff]
        %v2411 = vld [vmem:[%s2362 + $0x180] sm:$0xff]
        %v2412 = vld [vmem:[%s2362 + $0x188] sm:$0xff]
        %v2413 = vld [vmem:[%s2362 + $0x190] sm:$0xff]
        %v2414 = vld [vmem:[%s2362 + $0x198] sm:$0xff]
        %v2415 = vld [vmem:[%s2362 + $0x1a0] sm:$0xff]
        %v2416 = vld [vmem:[%s2362 + $0x1a8] sm:$0xff]
        %v2417 = vld [vmem:[%s2362 + $0x1b0] sm:$0xff]
        %v2418 = vld [vmem:[%s2362 + $0x1b8] sm:$0xff]
        %s2419 = scalar_lea.vmem %s1, 512
        %v2420 = vld [vmem:[%s2419] sm:$0xff]
        %v2421 = vld [vmem:[%s2419 + $0x8] sm:$0xff]
        %v2422 = vld [vmem:[%s2419 + $0x10] sm:$0xff]
        %v2423 = vld [vmem:[%s2419 + $0x18] sm:$0xff]
        %v2424 = vld [vmem:[%s2419 + $0x20] sm:$0xff]
        %v2425 = vld [vmem:[%s2419 + $0x28] sm:$0xff]
        %v2426 = vld [vmem:[%s2419 + $0x30] sm:$0xff]
        %v2427 = vld [vmem:[%s2419 + $0x38] sm:$0xff]
        %v2428 = vld [vmem:[%s2419 + $0x40] sm:$0xff]
        %v2429 = vld [vmem:[%s2419 + $0x48] sm:$0xff]
        %v2430 = vld [vmem:[%s2419 + $0x50] sm:$0xff]
        %v2431 = vld [vmem:[%s2419 + $0x58] sm:$0xff]
        %v2432 = vld [vmem:[%s2419 + $0x60] sm:$0xff]
        %v2433 = vld [vmem:[%s2419 + $0x68] sm:$0xff]
        %v2434 = vld [vmem:[%s2419 + $0x70] sm:$0xff]
        %v2435 = vld [vmem:[%s2419 + $0x78] sm:$0xff]
        %v2436 = vld [vmem:[%s2419 + $0x80] sm:$0xff]
        %v2437 = vld [vmem:[%s2419 + $0x88] sm:$0xff]
        %v2438 = vld [vmem:[%s2419 + $0x90] sm:$0xff]
        %v2439 = vld [vmem:[%s2419 + $0x98] sm:$0xff]
        %v2440 = vld [vmem:[%s2419 + $0xa0] sm:$0xff]
        %v2441 = vld [vmem:[%s2419 + $0xa8] sm:$0xff]
        %v2442 = vld [vmem:[%s2419 + $0xb0] sm:$0xff]
        %v2443 = vld [vmem:[%s2419 + $0xb8] sm:$0xff]
        %v2444 = vld [vmem:[%s2419 + $0xc0] sm:$0xff]
        %v2445 = vld [vmem:[%s2419 + $0xc8] sm:$0xff]
        %v2446 = vld [vmem:[%s2419 + $0xd0] sm:$0xff]
        %v2447 = vld [vmem:[%s2419 + $0xd8] sm:$0xff]
        %v2448 = vld [vmem:[%s2419 + $0xe0] sm:$0xff]
        %v2449 = vld [vmem:[%s2419 + $0xe8] sm:$0xff]
        %v2450 = vld [vmem:[%s2419 + $0xf0] sm:$0xff]
        %v2451 = vld [vmem:[%s2419 + $0xf8] sm:$0xff]
        %v2508 = vunpack.c.l.b16 %v2363
        %v2509 = vunpack.c.h.b16 %v2363
        %v2510 = vunpack.c.l.b16 %v2364
        %v2511 = vunpack.c.h.b16 %v2364
        %v2512 = vunpack.c.l.b16 %v2365
        %v2513 = vunpack.c.h.b16 %v2365
        %v2514 = vunpack.c.l.b16 %v2366
        %v2515 = vunpack.c.h.b16 %v2366
        %v2516 = vunpack.c.l.b16 %v2367
        %v2517 = vunpack.c.h.b16 %v2367
        %v2518 = vunpack.c.l.b16 %v2368
        %v2519 = vunpack.c.h.b16 %v2368
        %v2520 = vunpack.c.l.b16 %v2369
        %v2521 = vunpack.c.h.b16 %v2369
        %v2522 = vunpack.c.l.b16 %v2370
        %v2523 = vunpack.c.h.b16 %v2370
        %v2524 = vunpack.c.l.b16 %v2371
        %v2525 = vunpack.c.h.b16 %v2371
        %v2526 = vunpack.c.l.b16 %v2372
        %v2527 = vunpack.c.h.b16 %v2372
        %v2528 = vunpack.c.l.b16 %v2373
        %v2529 = vunpack.c.h.b16 %v2373
        %v2530 = vunpack.c.l.b16 %v2374
        %v2531 = vunpack.c.h.b16 %v2374
        %v2532 = vunpack.c.l.b16 %v2375
        %v2533 = vunpack.c.h.b16 %v2375
        %v2534 = vunpack.c.l.b16 %v2376
        %v2535 = vunpack.c.h.b16 %v2376
        %v2536 = vunpack.c.l.b16 %v2377
        %v2537 = vunpack.c.h.b16 %v2377
        %v2538 = vunpack.c.l.b16 %v2378
        %v2539 = vunpack.c.h.b16 %v2378
        %v2540 = vunpack.c.l.b16 %v2379
        %v2541 = vunpack.c.h.b16 %v2379
        %v2542 = vunpack.c.l.b16 %v2380
        %v2543 = vunpack.c.h.b16 %v2380
        %v2544 = vunpack.c.l.b16 %v2381
        %v2545 = vunpack.c.h.b16 %v2381
        %v2546 = vunpack.c.l.b16 %v2382
        %v2547 = vunpack.c.h.b16 %v2382
        %v2548 = vunpack.c.l.b16 %v2383
        %v2549 = vunpack.c.h.b16 %v2383
        %v2550 = vunpack.c.l.b16 %v2384
        %v2551 = vunpack.c.h.b16 %v2384
        %v2552 = vunpack.c.l.b16 %v2385
        %v2553 = vunpack.c.h.b16 %v2385
        %v2554 = vunpack.c.l.b16 %v2386
        %v2555 = vunpack.c.h.b16 %v2386
        %v2556 = vunpack.c.l.b16 %v2387
        %v2557 = vunpack.c.h.b16 %v2387
        %v2558 = vunpack.c.l.b16 %v2388
        %v2559 = vunpack.c.h.b16 %v2388
        %v2560 = vunpack.c.l.b16 %v2389
        %v2561 = vunpack.c.h.b16 %v2389
        %v2562 = vunpack.c.l.b16 %v2390
        %v2563 = vunpack.c.h.b16 %v2390
        %v2564 = vunpack.c.l.b16 %v2391
        %v2565 = vunpack.c.h.b16 %v2391
        %v2566 = vunpack.c.l.b16 %v2392
        %v2567 = vunpack.c.h.b16 %v2392
        %v2568 = vunpack.c.l.b16 %v2393
        %v2569 = vunpack.c.h.b16 %v2393
        %v2570 = vunpack.c.l.b16 %v2394
        %v2571 = vunpack.c.h.b16 %v2394
        %v2572 = vunpack.c.l.b16 %v2395
        %v2573 = vunpack.c.h.b16 %v2395
        %v2574 = vunpack.c.l.b16 %v2396
        %v2575 = vunpack.c.h.b16 %v2396
        %v2576 = vunpack.c.l.b16 %v2397
        %v2577 = vunpack.c.h.b16 %v2397
        %v2578 = vunpack.c.l.b16 %v2398
        %v2579 = vunpack.c.h.b16 %v2398
        %v2580 = vunpack.c.l.b16 %v2399
        %v2581 = vunpack.c.h.b16 %v2399
        %v2582 = vunpack.c.l.b16 %v2400
        %v2583 = vunpack.c.h.b16 %v2400
        %v2584 = vunpack.c.l.b16 %v2401
        %v2585 = vunpack.c.h.b16 %v2401
        %v2586 = vunpack.c.l.b16 %v2402
        %v2587 = vunpack.c.h.b16 %v2402
        %v2588 = vunpack.c.l.b16 %v2403
        %v2589 = vunpack.c.h.b16 %v2403
        %v2590 = vunpack.c.l.b16 %v2404
        %v2591 = vunpack.c.h.b16 %v2404
        %v2592 = vunpack.c.l.b16 %v2405
        %v2593 = vunpack.c.h.b16 %v2405
        %v2594 = vunpack.c.l.b16 %v2406
        %v2595 = vunpack.c.h.b16 %v2406
        %v2596 = vunpack.c.l.b16 %v2407
        %v2597 = vunpack.c.h.b16 %v2407
        %v2598 = vunpack.c.l.b16 %v2408
        %v2599 = vunpack.c.h.b16 %v2408
        %v2600 = vunpack.c.l.b16 %v2409
        %v2601 = vunpack.c.h.b16 %v2409
        %v2602 = vunpack.c.l.b16 %v2410
        %v2603 = vunpack.c.h.b16 %v2410
        %v2604 = vunpack.c.l.b16 %v2411
        %v2605 = vunpack.c.h.b16 %v2411
        %v2606 = vunpack.c.l.b16 %v2412
        %v2607 = vunpack.c.h.b16 %v2412
        %v2608 = vunpack.c.l.b16 %v2413
        %v2609 = vunpack.c.h.b16 %v2413
        %v2610 = vunpack.c.l.b16 %v2414
        %v2611 = vunpack.c.h.b16 %v2414
        %v2612 = vunpack.c.l.b16 %v2415
        %v2613 = vunpack.c.h.b16 %v2415
        %v2614 = vunpack.c.l.b16 %v2416
        %v2615 = vunpack.c.h.b16 %v2416
        %v2616 = vunpack.c.l.b16 %v2417
        %v2617 = vunpack.c.h.b16 %v2417
        %v2618 = vunpack.c.l.b16 %v2418
        %v2619 = vunpack.c.h.b16 %v2418
        %v2620 = vpack.c.b16 %v2510, %v2508
        %v2621 = vpack.c.b16 %v2511, %v2509
        %v2622 = vpack.c.b16 %v2514, %v2512
        %v2623 = vpack.c.b16 %v2515, %v2513
        %v2624 = vpack.c.b16 %v2518, %v2516
        %v2625 = vpack.c.b16 %v2519, %v2517
        %v2626 = vpack.c.b16 %v2522, %v2520
        %v2627 = vpack.c.b16 %v2523, %v2521
        %v2628 = vpack.c.b16 %v2526, %v2524
        %v2629 = vpack.c.b16 %v2527, %v2525
        %v2630 = vpack.c.b16 %v2530, %v2528
        %v2631 = vpack.c.b16 %v2531, %v2529
        %v2632 = vpack.c.b16 %v2534, %v2532
        %v2633 = vpack.c.b16 %v2535, %v2533
        %v2634 = vpack.c.b16 %v2538, %v2536
        %v2635 = vpack.c.b16 %v2539, %v2537
        %v2636 = vpack.c.b16 %v2542, %v2540
        %v2637 = vpack.c.b16 %v2543, %v2541
        %v2638 = vpack.c.b16 %v2546, %v2544
        %v2639 = vpack.c.b16 %v2547, %v2545
        %v2640 = vpack.c.b16 %v2550, %v2548
        %v2641 = vpack.c.b16 %v2551, %v2549
        %v2642 = vpack.c.b16 %v2554, %v2552
        %v2643 = vpack.c.b16 %v2555, %v2553
        %v2644 = vpack.c.b16 %v2558, %v2556
        %v2645 = vpack.c.b16 %v2559, %v2557
        %v2646 = vpack.c.b16 %v2562, %v2560
        %v2647 = vpack.c.b16 %v2563, %v2561
        %v2648 = vpack.c.b16 %v2566, %v2564
        %v2649 = vpack.c.b16 %v2567, %v2565
        %v2650 = vpack.c.b16 %v2570, %v2568
        %v2651 = vpack.c.b16 %v2571, %v2569
        %v2652 = vpack.c.b16 %v2574, %v2572
        %v2653 = vpack.c.b16 %v2575, %v2573
        %v2654 = vpack.c.b16 %v2578, %v2576
        %v2655 = vpack.c.b16 %v2579, %v2577
        %v2656 = vpack.c.b16 %v2582, %v2580
        %v2657 = vpack.c.b16 %v2583, %v2581
        %v2658 = vpack.c.b16 %v2586, %v2584
        %v2659 = vpack.c.b16 %v2587, %v2585
        %v2660 = vpack.c.b16 %v2590, %v2588
        %v2661 = vpack.c.b16 %v2591, %v2589
        %v2662 = vpack.c.b16 %v2594, %v2592
        %v2663 = vpack.c.b16 %v2595, %v2593
        %v2664 = vpack.c.b16 %v2598, %v2596
        %v2665 = vpack.c.b16 %v2599, %v2597
        %v2666 = vpack.c.b16 %v2602, %v2600
        %v2667 = vpack.c.b16 %v2603, %v2601
        %v2668 = vpack.c.b16 %v2606, %v2604
        %v2669 = vpack.c.b16 %v2607, %v2605
        %v2670 = vpack.c.b16 %v2610, %v2608
        %v2671 = vpack.c.b16 %v2611, %v2609
        %v2672 = vpack.c.b16 %v2614, %v2612
        %v2673 = vpack.c.b16 %v2615, %v2613
        %v2674 = vpack.c.b16 %v2618, %v2616
        %v2675 = vpack.c.b16 %v2619, %v2617
        %v2764 = vunpack.c.l.b16 %v2420
        %v2765 = vunpack.c.h.b16 %v2420
        %v2766 = vunpack.c.l.b16 %v2421
        %v2767 = vunpack.c.h.b16 %v2421
        %v2768 = vunpack.c.l.b16 %v2422
        %v2769 = vunpack.c.h.b16 %v2422
        %v2770 = vunpack.c.l.b16 %v2423
        %v2771 = vunpack.c.h.b16 %v2423
        %v2772 = vunpack.c.l.b16 %v2424
        %v2773 = vunpack.c.h.b16 %v2424
        %v2774 = vunpack.c.l.b16 %v2425
        %v2775 = vunpack.c.h.b16 %v2425
        %v2776 = vunpack.c.l.b16 %v2426
        %v2777 = vunpack.c.h.b16 %v2426
        %v2778 = vunpack.c.l.b16 %v2427
        %v2779 = vunpack.c.h.b16 %v2427
        %v2780 = vunpack.c.l.b16 %v2428
        %v2781 = vunpack.c.h.b16 %v2428
        %v2782 = vunpack.c.l.b16 %v2429
        %v2783 = vunpack.c.h.b16 %v2429
        %v2784 = vunpack.c.l.b16 %v2430
        %v2785 = vunpack.c.h.b16 %v2430
        %v2786 = vunpack.c.l.b16 %v2431
        %v2787 = vunpack.c.h.b16 %v2431
        %v2788 = vunpack.c.l.b16 %v2432
        %v2789 = vunpack.c.h.b16 %v2432
        %v2790 = vunpack.c.l.b16 %v2433
        %v2791 = vunpack.c.h.b16 %v2433
        %v2792 = vunpack.c.l.b16 %v2434
        %v2793 = vunpack.c.h.b16 %v2434
        %v2794 = vunpack.c.l.b16 %v2435
        %v2795 = vunpack.c.h.b16 %v2435
        %v2796 = vunpack.c.l.b16 %v2436
        %v2797 = vunpack.c.h.b16 %v2436
        %v2798 = vunpack.c.l.b16 %v2437
        %v2799 = vunpack.c.h.b16 %v2437
        %v2800 = vunpack.c.l.b16 %v2438
        %v2801 = vunpack.c.h.b16 %v2438
        %v2802 = vunpack.c.l.b16 %v2439
        %v2803 = vunpack.c.h.b16 %v2439
        %v2804 = vunpack.c.l.b16 %v2440
        %v2805 = vunpack.c.h.b16 %v2440
        %v2806 = vunpack.c.l.b16 %v2441
        %v2807 = vunpack.c.h.b16 %v2441
        %v2808 = vunpack.c.l.b16 %v2442
        %v2809 = vunpack.c.h.b16 %v2442
        %v2810 = vunpack.c.l.b16 %v2443
        %v2811 = vunpack.c.h.b16 %v2443
        %v2812 = vunpack.c.l.b16 %v2444
        %v2813 = vunpack.c.h.b16 %v2444
        %v2814 = vunpack.c.l.b16 %v2445
        %v2815 = vunpack.c.h.b16 %v2445
        %v2816 = vunpack.c.l.b16 %v2446
        %v2817 = vunpack.c.h.b16 %v2446
        %v2818 = vunpack.c.l.b16 %v2447
        %v2819 = vunpack.c.h.b16 %v2447
        %v2820 = vunpack.c.l.b16 %v2448
        %v2821 = vunpack.c.h.b16 %v2448
        %v2822 = vunpack.c.l.b16 %v2449
        %v2823 = vunpack.c.h.b16 %v2449
        %v2824 = vunpack.c.l.b16 %v2450
        %v2825 = vunpack.c.h.b16 %v2450
        %v2826 = vunpack.c.l.b16 %v2451
        %v2827 = vunpack.c.h.b16 %v2451
        %v2828 = vpack.c.b16 %v2766, %v2764
        %v2829 = vpack.c.b16 %v2767, %v2765
        %v2830 = vpack.c.b16 %v2770, %v2768
        %v2831 = vpack.c.b16 %v2771, %v2769
        %v2832 = vpack.c.b16 %v2774, %v2772
        %v2833 = vpack.c.b16 %v2775, %v2773
        %v2834 = vpack.c.b16 %v2778, %v2776
        %v2835 = vpack.c.b16 %v2779, %v2777
        %v2836 = vpack.c.b16 %v2782, %v2780
        %v2837 = vpack.c.b16 %v2783, %v2781
        %v2838 = vpack.c.b16 %v2786, %v2784
        %v2839 = vpack.c.b16 %v2787, %v2785
        %v2840 = vpack.c.b16 %v2790, %v2788
        %v2841 = vpack.c.b16 %v2791, %v2789
        %v2842 = vpack.c.b16 %v2794, %v2792
        %v2843 = vpack.c.b16 %v2795, %v2793
        %v2844 = vpack.c.b16 %v2798, %v2796
        %v2845 = vpack.c.b16 %v2799, %v2797
        %v2846 = vpack.c.b16 %v2802, %v2800
        %v2847 = vpack.c.b16 %v2803, %v2801
        %v2848 = vpack.c.b16 %v2806, %v2804
        %v2849 = vpack.c.b16 %v2807, %v2805
        %v2850 = vpack.c.b16 %v2810, %v2808
        %v2851 = vpack.c.b16 %v2811, %v2809
        %v2852 = vpack.c.b16 %v2814, %v2812
        %v2853 = vpack.c.b16 %v2815, %v2813
        %v2854 = vpack.c.b16 %v2818, %v2816
        %v2855 = vpack.c.b16 %v2819, %v2817
        %v2856 = vpack.c.b16 %v2822, %v2820
        %v2857 = vpack.c.b16 %v2823, %v2821
        %v2858 = vpack.c.b16 %v2826, %v2824
        %v2859 = vpack.c.b16 %v2827, %v2825
        %2892 = vmatprep.subr.bf16.mxu0 %v2829
        %2893 = vmatpush1.bf16.msra.mxu0 %v2828
        %2894 = vmatprep.subr.bf16.mxu0 %v2831
        %2895 = vmatpush1.bf16.msra.mxu0 %v2830
        %2896 = vmatprep.subr.bf16.mxu0 %v2833
        %2897 = vmatpush1.bf16.msra.mxu0 %v2832
        %2898 = vmatprep.subr.bf16.mxu0 %v2835
        %2899 = vmatpush1.bf16.msra.mxu0 %v2834
        %2900 = vmatprep.subr.bf16.mxu0 %v2837
        %2901 = vmatpush1.bf16.msra.mxu0 %v2836
        %2902 = vmatprep.subr.bf16.mxu0 %v2839
        %2903 = vmatpush1.bf16.msra.mxu0 %v2838
        %2904 = vmatprep.subr.bf16.mxu0 %v2841
        %2905 = vmatpush1.bf16.msra.mxu0 %v2840
        %2906 = vmatprep.subr.bf16.mxu0 %v2843
        %2907 = vmatpush1.bf16.msra.mxu0 %v2842
        %2908 = vmatprep.subr.bf16.mxu0 %v2845
        %2909 = vmatpush1.bf16.msra.mxu0 %v2844
        %2910 = vmatprep.subr.bf16.mxu0 %v2847
        %2911 = vmatpush1.bf16.msra.mxu0 %v2846
        %2912 = vmatprep.subr.bf16.mxu0 %v2849
        %2913 = vmatpush1.bf16.msra.mxu0 %v2848
        %2914 = vmatprep.subr.bf16.mxu0 %v2851
        %2915 = vmatpush1.bf16.msra.mxu0 %v2850
        %2916 = vmatprep.subr.bf16.mxu0 %v2853
        %2917 = vmatpush1.bf16.msra.mxu0 %v2852
        %2918 = vmatprep.subr.bf16.mxu0 %v2855
        %2919 = vmatpush1.bf16.msra.mxu0 %v2854
        %2920 = vmatprep.subr.bf16.mxu0 %v2857
        %2921 = vmatpush1.bf16.msra.mxu0 %v2856
        %2922 = vmatprep.subr.bf16.mxu0 %v2859
        %2923 = vmatpush1.bf16.msra.mxu0 %v2858
        %2924 = vmatprep.mubr.bf16.mxu0 %v2621
        %2925 = vmatmul.mubr.bf16.gmra.mrb[0].mxu0 %v2620
        %v2926 = vpop.f32.mrb[0].mxu0
        %v2927 = vadd.f32 0.0, %v2926
        %v2928 = vpop.f32.mrb[0].mxu0
        %v2929 = vadd.f32 0.0, %v2928
        %v2930 = vpop.f32.mrb[0].mxu0
        %v2931 = vadd.f32 0.0, %v2930
        %v2932 = vpop.f32.mrb[0].mxu0
        %v2933 = vadd.f32 0.0, %v2932
        %2934 = vmatprep.mubr.bf16.mxu0 %v2623
        %2935 = vmatmul.mubr.bf16.gmra.mrb[0].mxu0 %v2622
        %v2936 = vpop.f32.mrb[0].mxu0
        %v2937 = vadd.f32 0.0, %v2936
        %v2938 = vpop.f32.mrb[0].mxu0
        %v2939 = vadd.f32 0.0, %v2938
        %v2940 = vpop.f32.mrb[0].mxu0
        %v2941 = vadd.f32 0.0, %v2940
        %v2942 = vpop.f32.mrb[0].mxu0
        %v2943 = vadd.f32 0.0, %v2942
        %2944 = vmatprep.mubr.bf16.mxu0 %v2625
        %2945 = vmatmul.mubr.bf16.gmra.mrb[0].mxu0 %v2624
        %v2946 = vpop.f32.mrb[0].mxu0
        %v2947 = vadd.f32 0.0, %v2946
        %v2948 = vpop.f32.mrb[0].mxu0
        %v2949 = vadd.f32 0.0, %v2948
        %v2950 = vpop.f32.mrb[0].mxu0
        %v2951 = vadd.f32 0.0, %v2950
        %v2952 = vpop.f32.mrb[0].mxu0
        %v2953 = vadd.f32 0.0, %v2952
        %2954 = vmatprep.mubr.bf16.mxu0 %v2627
        %2955 = vmatmul.mubr.bf16.gmra.mrb[0].mxu0 %v2626
        %v2956 = vpop.f32.mrb[0].mxu0
        %v2957 = vadd.f32 0.0, %v2956
        %v2958 = vpop.f32.mrb[0].mxu0
        %v2959 = vadd.f32 0.0, %v2958
        %v2960 = vpop.f32.mrb[0].mxu0
        %v2961 = vadd.f32 0.0, %v2960
        %v2962 = vpop.f32.mrb[0].mxu0
        %v2963 = vadd.f32 0.0, %v2962
        %2964 = vmatprep.mubr.bf16.mxu0 %v2629
        %2965 = vmatmul.mubr.bf16.gmra.mrb[0].mxu0 %v2628
        %v2966 = vpop.f32.mrb[0].mxu0
        %v2967 = vadd.f32 0.0, %v2966
        %v2968 = vpop.f32.mrb[0].mxu0
        %v2969 = vadd.f32 0.0, %v2968
        %v2970 = vpop.f32.mrb[0].mxu0
        %v2971 = vadd.f32 0.0, %v2970
        %v2972 = vpop.f32.mrb[0].mxu0
        %v2973 = vadd.f32 0.0, %v2972
        %2974 = vmatprep.mubr.bf16.mxu0 %v2631
        %2975 = vmatmul.mubr.bf16.gmra.mrb[0].mxu0 %v2630
        %v2976 = vpop.f32.mrb[0].mxu0
        %v2977 = vadd.f32 0.0, %v2976
        %v2978 = vpop.f32.mrb[0].mxu0
        %v2979 = vadd.f32 0.0, %v2978
        %v2980 = vpop.f32.mrb[0].mxu0
        %v2981 = vadd.f32 0.0, %v2980
        %v2982 = vpop.f32.mrb[0].mxu0
        %v2983 = vadd.f32 0.0, %v2982
        %2984 = vmatprep.mubr.bf16.mxu0 %v2633
        %2985 = vmatmul.mubr.bf16.gmra.mrb[0].mxu0 %v2632
        %v2986 = vpop.f32.mrb[0].mxu0
        %v2987 = vadd.f32 0.0, %v2986
        %v2988 = vpop.f32.mrb[0].mxu0
        %v2989 = vadd.f32 0.0, %v2988
        %v2990 = vpop.f32.mrb[0].mxu0
        %v2991 = vadd.f32 0.0, %v2990
        %v2992 = vpop.f32.mrb[0].mxu0
        %v2993 = vadd.f32 0.0, %v2992
        %2994 = vmatprep.mubr.bf16.mxu0 %v2635
        %2995 = vmatmul.mubr.bf16.gmra.mrb[0].mxu0 %v2634
        %v2996 = vpop.f32.mrb[0].mxu0
        %v2997 = vadd.f32 0.0, %v2996
        %v2998 = vpop.f32.mrb[0].mxu0
        %v2999 = vadd.f32 0.0, %v2998
        %v3000 = vpop.f32.mrb[0].mxu0
        %v3001 = vadd.f32 0.0, %v3000
        %v3002 = vpop.f32.mrb[0].mxu0
        %v3003 = vadd.f32 0.0, %v3002
        %3004 = vmatprep.mubr.bf16.mxu0 %v2637
        %3005 = vmatmul.mubr.bf16.gmra.mrb[0].mxu0 %v2636
        %v3006 = vpop.f32.mrb[0].mxu0
        %v3007 = vadd.f32 0.0, %v3006
        %v3008 = vpop.f32.mrb[0].mxu0
        %v3009 = vadd.f32 0.0, %v3008
        %v3010 = vpop.f32.mrb[0].mxu0
        %v3011 = vadd.f32 0.0, %v3010
        %v3012 = vpop.f32.mrb[0].mxu0
        %v3013 = vadd.f32 0.0, %v3012
        %3014 = vmatprep.mubr.bf16.mxu0 %v2639
        %3015 = vmatmul.mubr.bf16.gmra.mrb[0].mxu0 %v2638
        %v3016 = vpop.f32.mrb[0].mxu0
        %v3017 = vadd.f32 0.0, %v3016
        %v3018 = vpop.f32.mrb[0].mxu0
        %v3019 = vadd.f32 0.0, %v3018
        %v3020 = vpop.f32.mrb[0].mxu0
        %v3021 = vadd.f32 0.0, %v3020
        %v3022 = vpop.f32.mrb[0].mxu0
        %v3023 = vadd.f32 0.0, %v3022
        %3024 = vmatprep.mubr.bf16.mxu0 %v2641
        %3025 = vmatmul.mubr.bf16.gmra.mrb[0].mxu0 %v2640
        %v3026 = vpop.f32.mrb[0].mxu0
        %v3027 = vadd.f32 0.0, %v3026
        %v3028 = vpop.f32.mrb[0].mxu0
        %v3029 = vadd.f32 0.0, %v3028
        %v3030 = vpop.f32.mrb[0].mxu0
        %v3031 = vadd.f32 0.0, %v3030
        %v3032 = vpop.f32.mrb[0].mxu0
        %v3033 = vadd.f32 0.0, %v3032
        %3034 = vmatprep.mubr.bf16.mxu0 %v2643
        %3035 = vmatmul.mubr.bf16.gmra.mrb[0].mxu0 %v2642
        %v3036 = vpop.f32.mrb[0].mxu0
        %v3037 = vadd.f32 0.0, %v3036
        %v3038 = vpop.f32.mrb[0].mxu0
        %v3039 = vadd.f32 0.0, %v3038
        %v3040 = vpop.f32.mrb[0].mxu0
        %v3041 = vadd.f32 0.0, %v3040
        %v3042 = vpop.f32.mrb[0].mxu0
        %v3043 = vadd.f32 0.0, %v3042
        %3044 = vmatprep.mubr.bf16.mxu0 %v2645
        %3045 = vmatmul.mubr.bf16.gmra.mrb[0].mxu0 %v2644
        %v3046 = vpop.f32.mrb[0].mxu0
        %v3047 = vadd.f32 0.0, %v3046
        %v3048 = vpop.f32.mrb[0].mxu0
        %v3049 = vadd.f32 0.0, %v3048
        %v3050 = vpop.f32.mrb[0].mxu0
        %v3051 = vadd.f32 0.0, %v3050
        %v3052 = vpop.f32.mrb[0].mxu0
        %v3053 = vadd.f32 0.0, %v3052
        %3054 = vmatprep.mubr.bf16.mxu0 %v2647
        %3055 = vmatmul.mubr.bf16.gmra.mrb[0].mxu0 %v2646
        %v3056 = vpop.f32.mrb[0].mxu0
        %v3057 = vadd.f32 0.0, %v3056
        %v3058 = vpop.f32.mrb[0].mxu0
        %v3059 = vadd.f32 0.0, %v3058
        %v3060 = vpop.f32.mrb[0].mxu0
        %v3061 = vadd.f32 0.0, %v3060
        %v3062 = vpop.f32.mrb[0].mxu0
        %v3063 = vadd.f32 0.0, %v3062
        %3064 = vmatprep.mubr.bf16.mxu0 %v2649
        %3065 = vmatmul.mubr.bf16.gmra.mrb[0].mxu0 %v2648
        %v3066 = vpop.f32.mrb[0].mxu0
        %v3067 = vadd.f32 0.0, %v3066
        %v3068 = vpop.f32.mrb[0].mxu0
        %v3069 = vadd.f32 0.0, %v3068
        %v3070 = vpop.f32.mrb[0].mxu0
        %v3071 = vadd.f32 0.0, %v3070
        %v3072 = vpop.f32.mrb[0].mxu0
        %v3073 = vadd.f32 0.0, %v3072
        %3074 = vmatprep.mubr.bf16.mxu0 %v2651
        %3075 = vmatmul.mubr.bf16.gmra.mrb[0].mxu0 %v2650
        %v3076 = vpop.f32.mrb[0].mxu0
        %v3077 = vadd.f32 0.0, %v3076
        %v3078 = vpop.f32.mrb[0].mxu0
        %v3079 = vadd.f32 0.0, %v3078
        %v3080 = vpop.f32.mrb[0].mxu0
        %v3081 = vadd.f32 0.0, %v3080
        %v3082 = vpop.f32.mrb[0].mxu0
        %v3083 = vadd.f32 0.0, %v3082
        %3084 = vmatprep.mubr.bf16.mxu0 %v2653
        %3085 = vmatmul.mubr.bf16.gmra.mrb[0].mxu0 %v2652
        %v3086 = vpop.f32.mrb[0].mxu0
        %v3087 = vadd.f32 0.0, %v3086
        %v3088 = vpop.f32.mrb[0].mxu0
        %v3089 = vadd.f32 0.0, %v3088
        %v3090 = vpop.f32.mrb[0].mxu0
        %v3091 = vadd.f32 0.0, %v3090
        %v3092 = vpop.f32.mrb[0].mxu0
        %v3093 = vadd.f32 0.0, %v3092
        %3094 = vmatprep.mubr.bf16.mxu0 %v2655
        %3095 = vmatmul.mubr.bf16.gmra.mrb[0].mxu0 %v2654
        %v3096 = vpop.f32.mrb[0].mxu0
        %v3097 = vadd.f32 0.0, %v3096
        %v3098 = vpop.f32.mrb[0].mxu0
        %v3099 = vadd.f32 0.0, %v3098
        %v3100 = vpop.f32.mrb[0].mxu0
        %v3101 = vadd.f32 0.0, %v3100
        %v3102 = vpop.f32.mrb[0].mxu0
        %v3103 = vadd.f32 0.0, %v3102
        %3104 = vmatprep.mubr.bf16.mxu0 %v2657
        %3105 = vmatmul.mubr.bf16.gmra.mrb[0].mxu0 %v2656
        %v3106 = vpop.f32.mrb[0].mxu0
        %v3107 = vadd.f32 0.0, %v3106
        %v3108 = vpop.f32.mrb[0].mxu0
        %v3109 = vadd.f32 0.0, %v3108
        %v3110 = vpop.f32.mrb[0].mxu0
        %v3111 = vadd.f32 0.0, %v3110
        %v3112 = vpop.f32.mrb[0].mxu0
        %v3113 = vadd.f32 0.0, %v3112
        %3114 = vmatprep.mubr.bf16.mxu0 %v2659
        %3115 = vmatmul.mubr.bf16.gmra.mrb[0].mxu0 %v2658
        %v3116 = vpop.f32.mrb[0].mxu0
        %v3117 = vadd.f32 0.0, %v3116
        %v3118 = vpop.f32.mrb[0].mxu0
        %v3119 = vadd.f32 0.0, %v3118
        %v3120 = vpop.f32.mrb[0].mxu0
        %v3121 = vadd.f32 0.0, %v3120
        %v3122 = vpop.f32.mrb[0].mxu0
        %v3123 = vadd.f32 0.0, %v3122
        %3124 = vmatprep.mubr.bf16.mxu0 %v2661
        %3125 = vmatmul.mubr.bf16.gmra.mrb[0].mxu0 %v2660
        %v3126 = vpop.f32.mrb[0].mxu0
        %v3127 = vadd.f32 0.0, %v3126
        %v3128 = vpop.f32.mrb[0].mxu0
        %v3129 = vadd.f32 0.0, %v3128
        %v3130 = vpop.f32.mrb[0].mxu0
        %v3131 = vadd.f32 0.0, %v3130
        %v3132 = vpop.f32.mrb[0].mxu0
        %v3133 = vadd.f32 0.0, %v3132
        %3134 = vmatprep.mubr.bf16.mxu0 %v2663
        %3135 = vmatmul.mubr.bf16.gmra.mrb[0].mxu0 %v2662
        %v3136 = vpop.f32.mrb[0].mxu0
        %v3137 = vadd.f32 0.0, %v3136
        %v3138 = vpop.f32.mrb[0].mxu0
        %v3139 = vadd.f32 0.0, %v3138
        %v3140 = vpop.f32.mrb[0].mxu0
        %v3141 = vadd.f32 0.0, %v3140
        %v3142 = vpop.f32.mrb[0].mxu0
        %v3143 = vadd.f32 0.0, %v3142
        %3144 = vmatprep.mubr.bf16.mxu0 %v2665
        %3145 = vmatmul.mubr.bf16.gmra.mrb[0].mxu0 %v2664
        %v3146 = vpop.f32.mrb[0].mxu0
        %v3147 = vadd.f32 0.0, %v3146
        %v3148 = vpop.f32.mrb[0].mxu0
        %v3149 = vadd.f32 0.0, %v3148
        %v3150 = vpop.f32.mrb[0].mxu0
        %v3151 = vadd.f32 0.0, %v3150
        %v3152 = vpop.f32.mrb[0].mxu0
        %v3153 = vadd.f32 0.0, %v3152
        %3154 = vmatprep.mubr.bf16.mxu0 %v2667
        %3155 = vmatmul.mubr.bf16.gmra.mrb[0].mxu0 %v2666
        %v3156 = vpop.f32.mrb[0].mxu0
        %v3157 = vadd.f32 0.0, %v3156
        %v3158 = vpop.f32.mrb[0].mxu0
        %v3159 = vadd.f32 0.0, %v3158
        %v3160 = vpop.f32.mrb[0].mxu0
        %v3161 = vadd.f32 0.0, %v3160
        %v3162 = vpop.f32.mrb[0].mxu0
        %v3163 = vadd.f32 0.0, %v3162
        %3164 = vmatprep.mubr.bf16.mxu0 %v2669
        %3165 = vmatmul.mubr.bf16.gmra.mrb[0].mxu0 %v2668
        %v3166 = vpop.f32.mrb[0].mxu0
        %v3167 = vadd.f32 0.0, %v3166
        %v3168 = vpop.f32.mrb[0].mxu0
        %v3169 = vadd.f32 0.0, %v3168
        %v3170 = vpop.f32.mrb[0].mxu0
        %v3171 = vadd.f32 0.0, %v3170
        %v3172 = vpop.f32.mrb[0].mxu0
        %v3173 = vadd.f32 0.0, %v3172
        %3174 = vmatprep.mubr.bf16.mxu0 %v2671
        %3175 = vmatmul.mubr.bf16.gmra.mrb[0].mxu0 %v2670
        %v3176 = vpop.f32.mrb[0].mxu0
        %v3177 = vadd.f32 0.0, %v3176
        %v3178 = vpop.f32.mrb[0].mxu0
        %v3179 = vadd.f32 0.0, %v3178
        %v3180 = vpop.f32.mrb[0].mxu0
        %v3181 = vadd.f32 0.0, %v3180
        %v3182 = vpop.f32.mrb[0].mxu0
        %v3183 = vadd.f32 0.0, %v3182
        %3184 = vmatprep.mubr.bf16.mxu0 %v2673
        %3185 = vmatmul.mubr.bf16.gmra.mrb[0].mxu0 %v2672
        %v3186 = vpop.f32.mrb[0].mxu0
        %v3187 = vadd.f32 0.0, %v3186
        %v3188 = vpop.f32.mrb[0].mxu0
        %v3189 = vadd.f32 0.0, %v3188
        %v3190 = vpop.f32.mrb[0].mxu0
        %v3191 = vadd.f32 0.0, %v3190
        %v3192 = vpop.f32.mrb[0].mxu0
        %v3193 = vadd.f32 0.0, %v3192
        %3194 = vmatprep.mubr.bf16.mxu0 %v2675
        %3195 = vmatmul.mubr.bf16.gmra.mrb[0].mxu0 %v2674
        %v3196 = vpop.f32.mrb[0].mxu0
        %v3197 = vadd.f32 0.0, %v3196
        %v3198 = vpop.f32.mrb[0].mxu0
        %v3199 = vadd.f32 0.0, %v3198
        %v3200 = vpop.f32.mrb[0].mxu0
        %v3201 = vadd.f32 0.0, %v3200
        %v3202 = vpop.f32.mrb[0].mxu0
        %v3203 = vadd.f32 0.0, %v3202
        %3204 = vdwg.mxu0
        %v3205 = vadd.f32 %v2084, %v2927
        %v3206 = vadd.f32 %v2086, %v2929
        %v3207 = vadd.f32 %v2088, %v2931
        %v3208 = vadd.f32 %v2090, %v2933
        %v3209 = vadd.f32 %v2094, %v2937
        %v3210 = vadd.f32 %v2096, %v2939
        %v3211 = vadd.f32 %v2098, %v2941
        %v3212 = vadd.f32 %v2100, %v2943
        %v3213 = vadd.f32 %v2104, %v2947
        %v3214 = vadd.f32 %v2106, %v2949
        %v3215 = vadd.f32 %v2108, %v2951
        %v3216 = vadd.f32 %v2110, %v2953
        %v3217 = vadd.f32 %v2114, %v2957
        %v3218 = vadd.f32 %v2116, %v2959
        %v3219 = vadd.f32 %v2118, %v2961
        %v3220 = vadd.f32 %v2120, %v2963
        %v3221 = vadd.f32 %v2124, %v2967
        %v3222 = vadd.f32 %v2126, %v2969
        %v3223 = vadd.f32 %v2128, %v2971
        %v3224 = vadd.f32 %v2130, %v2973
        %v3225 = vadd.f32 %v2134, %v2977
        %v3226 = vadd.f32 %v2136, %v2979
        %v3227 = vadd.f32 %v2138, %v2981
        %v3228 = vadd.f32 %v2140, %v2983
        %v3229 = vadd.f32 %v2144, %v2987
        %v3230 = vadd.f32 %v2146, %v2989
        %v3231 = vadd.f32 %v2148, %v2991
        %v3232 = vadd.f32 %v2150, %v2993
        %v3233 = vadd.f32 %v2154, %v2997
        %v3234 = vadd.f32 %v2156, %v2999
        %v3235 = vadd.f32 %v2158, %v3001
        %v3236 = vadd.f32 %v2160, %v3003
        %v3237 = vadd.f32 %v2164, %v3007
        %v3238 = vadd.f32 %v2166, %v3009
        %v3239 = vadd.f32 %v2168, %v3011
        %v3240 = vadd.f32 %v2170, %v3013
        %v3241 = vadd.f32 %v2174, %v3017
        %v3242 = vadd.f32 %v2176, %v3019
        %v3243 = vadd.f32 %v2178, %v3021
        %v3244 = vadd.f32 %v2180, %v3023
        %v3245 = vadd.f32 %v2184, %v3027
        %v3246 = vadd.f32 %v2186, %v3029
        %v3247 = vadd.f32 %v2188, %v3031
        %v3248 = vadd.f32 %v2190, %v3033
        %v3249 = vadd.f32 %v2194, %v3037
        %v3250 = vadd.f32 %v2196, %v3039
        %v3251 = vadd.f32 %v2198, %v3041
        %v3252 = vadd.f32 %v2200, %v3043
        %v3253 = vadd.f32 %v2204, %v3047
        %v3254 = vadd.f32 %v2206, %v3049
        %v3255 = vadd.f32 %v2208, %v3051
        %v3256 = vadd.f32 %v2210, %v3053
        %v3257 = vadd.f32 %v2214, %v3057
        %v3258 = vadd.f32 %v2216, %v3059
        %v3259 = vadd.f32 %v2218, %v3061
        %v3260 = vadd.f32 %v2220, %v3063
        %v3261 = vadd.f32 %v2224, %v3067
        %v3262 = vadd.f32 %v2226, %v3069
        %v3263 = vadd.f32 %v2228, %v3071
        %v3264 = vadd.f32 %v2230, %v3073
        %v3265 = vadd.f32 %v2234, %v3077
        %v3266 = vadd.f32 %v2236, %v3079
        %v3267 = vadd.f32 %v2238, %v3081
        %v3268 = vadd.f32 %v2240, %v3083
        %v3269 = vadd.f32 %v2244, %v3087
        %v3270 = vadd.f32 %v2246, %v3089
        %v3271 = vadd.f32 %v2248, %v3091
        %v3272 = vadd.f32 %v2250, %v3093
        %v3273 = vadd.f32 %v2254, %v3097
        %v3274 = vadd.f32 %v2256, %v3099
        %v3275 = vadd.f32 %v2258, %v3101
        %v3276 = vadd.f32 %v2260, %v3103
        %v3277 = vadd.f32 %v2264, %v3107
        %v3278 = vadd.f32 %v2266, %v3109
        %v3279 = vadd.f32 %v2268, %v3111
        %v3280 = vadd.f32 %v2270, %v3113
        %v3281 = vadd.f32 %v2274, %v3117
        %v3282 = vadd.f32 %v2276, %v3119
        %v3283 = vadd.f32 %v2278, %v3121
        %v3284 = vadd.f32 %v2280, %v3123
        %v3285 = vadd.f32 %v2284, %v3127
        %v3286 = vadd.f32 %v2286, %v3129
        %v3287 = vadd.f32 %v2288, %v3131
        %v3288 = vadd.f32 %v2290, %v3133
        %v3289 = vadd.f32 %v2294, %v3137
        %v3290 = vadd.f32 %v2296, %v3139
        %v3291 = vadd.f32 %v2298, %v3141
        %v3292 = vadd.f32 %v2300, %v3143
        %v3293 = vadd.f32 %v2304, %v3147
        %v3294 = vadd.f32 %v2306, %v3149
        %v3295 = vadd.f32 %v2308, %v3151
        %v3296 = vadd.f32 %v2310, %v3153
        %v3297 = vadd.f32 %v2314, %v3157
        %v3298 = vadd.f32 %v2316, %v3159
        %v3299 = vadd.f32 %v2318, %v3161
        %v3300 = vadd.f32 %v2320, %v3163
        %v3301 = vadd.f32 %v2324, %v3167
        %v3302 = vadd.f32 %v2326, %v3169
        %v3303 = vadd.f32 %v2328, %v3171
        %v3304 = vadd.f32 %v2330, %v3173
        %v3305 = vadd.f32 %v2334, %v3177
        %v3306 = vadd.f32 %v2336, %v3179
        %v3307 = vadd.f32 %v2338, %v3181
        %v3308 = vadd.f32 %v2340, %v3183
        %v3309 = vadd.f32 %v2344, %v3187
        %v3310 = vadd.f32 %v2346, %v3189
        %v3311 = vadd.f32 %v2348, %v3191
        %v3312 = vadd.f32 %v2350, %v3193
        %v3313 = vadd.f32 %v2354, %v3197
        %v3314 = vadd.f32 %v2356, %v3199
        %v3315 = vadd.f32 %v2358, %v3201
        %v3316 = vadd.f32 %v2360, %v3203
        %s3317 = scalar_lea.vmem %s633, 48 [#allocation4]
        %v3318 = vld [vmem:[%s3317] sm:$0xff]
        %v3319 = vld [vmem:[%s3317 + $0x8] sm:$0xff]
        %v3320 = vld [vmem:[%s3317 + $0x10] sm:$0xff]
        %v3321 = vld [vmem:[%s3317 + $0x18] sm:$0xff]
        %v3322 = vld [vmem:[%s3317 + $0x20] sm:$0xff]
        %v3323 = vld [vmem:[%s3317 + $0x28] sm:$0xff]
        %v3324 = vld [vmem:[%s3317 + $0x30] sm:$0xff]
        %v3325 = vld [vmem:[%s3317 + $0x38] sm:$0xff]
        %v3326 = vld [vmem:[%s3317 + $0x40] sm:$0xff]
        %v3327 = vld [vmem:[%s3317 + $0x48] sm:$0xff]
        %v3328 = vld [vmem:[%s3317 + $0x50] sm:$0xff]
        %v3329 = vld [vmem:[%s3317 + $0x58] sm:$0xff]
        %v3330 = vld [vmem:[%s3317 + $0x60] sm:$0xff]
        %v3331 = vld [vmem:[%s3317 + $0x68] sm:$0xff]
        %v3332 = vld [vmem:[%s3317 + $0x70] sm:$0xff]
        %v3333 = vld [vmem:[%s3317 + $0x78] sm:$0xff]
        %v3334 = vld [vmem:[%s3317 + $0x80] sm:$0xff]
        %v3335 = vld [vmem:[%s3317 + $0x88] sm:$0xff]
        %v3336 = vld [vmem:[%s3317 + $0x90] sm:$0xff]
        %v3337 = vld [vmem:[%s3317 + $0x98] sm:$0xff]
        %v3338 = vld [vmem:[%s3317 + $0xa0] sm:$0xff]
        %v3339 = vld [vmem:[%s3317 + $0xa8] sm:$0xff]
        %v3340 = vld [vmem:[%s3317 + $0xb0] sm:$0xff]
        %v3341 = vld [vmem:[%s3317 + $0xb8] sm:$0xff]
        %v3342 = vld [vmem:[%s3317 + $0xc0] sm:$0xff]
        %v3343 = vld [vmem:[%s3317 + $0xc8] sm:$0xff]
        %v3344 = vld [vmem:[%s3317 + $0xd0] sm:$0xff]
        %v3345 = vld [vmem:[%s3317 + $0xd8] sm:$0xff]
        %v3346 = vld [vmem:[%s3317 + $0xe0] sm:$0xff]
        %v3347 = vld [vmem:[%s3317 + $0xe8] sm:$0xff]
        %v3348 = vld [vmem:[%s3317 + $0xf0] sm:$0xff]
        %v3349 = vld [vmem:[%s3317 + $0xf8] sm:$0xff]
        %v3350 = vld [vmem:[%s3317 + $0x100] sm:$0xff]
        %v3351 = vld [vmem:[%s3317 + $0x108] sm:$0xff]
        %v3352 = vld [vmem:[%s3317 + $0x110] sm:$0xff]
        %v3353 = vld [vmem:[%s3317 + $0x118] sm:$0xff]
        %v3354 = vld [vmem:[%s3317 + $0x120] sm:$0xff]
        %v3355 = vld [vmem:[%s3317 + $0x128] sm:$0xff]
        %v3356 = vld [vmem:[%s3317 + $0x130] sm:$0xff]
        %v3357 = vld [vmem:[%s3317 + $0x138] sm:$0xff]
        %v3358 = vld [vmem:[%s3317 + $0x140] sm:$0xff]
        %v3359 = vld [vmem:[%s3317 + $0x148] sm:$0xff]
        %v3360 = vld [vmem:[%s3317 + $0x150] sm:$0xff]
        %v3361 = vld [vmem:[%s3317 + $0x158] sm:$0xff]
        %v3362 = vld [vmem:[%s3317 + $0x160] sm:$0xff]
        %v3363 = vld [vmem:[%s3317 + $0x168] sm:$0xff]
        %v3364 = vld [vmem:[%s3317 + $0x170] sm:$0xff]
        %v3365 = vld [vmem:[%s3317 + $0x178] sm:$0xff]
        %v3366 = vld [vmem:[%s3317 + $0x180] sm:$0xff]
        %v3367 = vld [vmem:[%s3317 + $0x188] sm:$0xff]
        %v3368 = vld [vmem:[%s3317 + $0x190] sm:$0xff]
        %v3369 = vld [vmem:[%s3317 + $0x198] sm:$0xff]
        %v3370 = vld [vmem:[%s3317 + $0x1a0] sm:$0xff]
        %v3371 = vld [vmem:[%s3317 + $0x1a8] sm:$0xff]
        %v3372 = vld [vmem:[%s3317 + $0x1b0] sm:$0xff]
        %v3373 = vld [vmem:[%s3317 + $0x1b8] sm:$0xff]
        %s3374 = scalar_lea.vmem %s1, 768
        %v3375 = vld [vmem:[%s3374] sm:$0xff]
        %v3376 = vld [vmem:[%s3374 + $0x8] sm:$0xff]
        %v3377 = vld [vmem:[%s3374 + $0x10] sm:$0xff]
        %v3378 = vld [vmem:[%s3374 + $0x18] sm:$0xff]
        %v3379 = vld [vmem:[%s3374 + $0x20] sm:$0xff]
        %v3380 = vld [vmem:[%s3374 + $0x28] sm:$0xff]
        %v3381 = vld [vmem:[%s3374 + $0x30] sm:$0xff]
        %v3382 = vld [vmem:[%s3374 + $0x38] sm:$0xff]
        %v3383 = vld [vmem:[%s3374 + $0x40] sm:$0xff]
        %v3384 = vld [vmem:[%s3374 + $0x48] sm:$0xff]
        %v3385 = vld [vmem:[%s3374 + $0x50] sm:$0xff]
        %v3386 = vld [vmem:[%s3374 + $0x58] sm:$0xff]
        %v3387 = vld [vmem:[%s3374 + $0x60] sm:$0xff]
        %v3388 = vld [vmem:[%s3374 + $0x68] sm:$0xff]
        %v3389 = vld [vmem:[%s3374 + $0x70] sm:$0xff]
        %v3390 = vld [vmem:[%s3374 + $0x78] sm:$0xff]
        %v3391 = vld [vmem:[%s3374 + $0x80] sm:$0xff]
        %v3392 = vld [vmem:[%s3374 + $0x88] sm:$0xff]
        %v3393 = vld [vmem:[%s3374 + $0x90] sm:$0xff]
        %v3394 = vld [vmem:[%s3374 + $0x98] sm:$0xff]
        %v3395 = vld [vmem:[%s3374 + $0xa0] sm:$0xff]
        %v3396 = vld [vmem:[%s3374 + $0xa8] sm:$0xff]
        %v3397 = vld [vmem:[%s3374 + $0xb0] sm:$0xff]
        %v3398 = vld [vmem:[%s3374 + $0xb8] sm:$0xff]
        %v3399 = vld [vmem:[%s3374 + $0xc0] sm:$0xff]
        %v3400 = vld [vmem:[%s3374 + $0xc8] sm:$0xff]
        %v3401 = vld [vmem:[%s3374 + $0xd0] sm:$0xff]
        %v3402 = vld [vmem:[%s3374 + $0xd8] sm:$0xff]
        %v3403 = vld [vmem:[%s3374 + $0xe0] sm:$0xff]
        %v3404 = vld [vmem:[%s3374 + $0xe8] sm:$0xff]
        %v3405 = vld [vmem:[%s3374 + $0xf0] sm:$0xff]
        %v3406 = vld [vmem:[%s3374 + $0xf8] sm:$0xff]
        %v3463 = vunpack.c.l.b16 %v3318
        %v3464 = vunpack.c.h.b16 %v3318
        %v3465 = vunpack.c.l.b16 %v3319
        %v3466 = vunpack.c.h.b16 %v3319
        %v3467 = vunpack.c.l.b16 %v3320
        %v3468 = vunpack.c.h.b16 %v3320
        %v3469 = vunpack.c.l.b16 %v3321
        %v3470 = vunpack.c.h.b16 %v3321
        %v3471 = vunpack.c.l.b16 %v3322
        %v3472 = vunpack.c.h.b16 %v3322
        %v3473 = vunpack.c.l.b16 %v3323
        %v3474 = vunpack.c.h.b16 %v3323
        %v3475 = vunpack.c.l.b16 %v3324
        %v3476 = vunpack.c.h.b16 %v3324
        %v3477 = vunpack.c.l.b16 %v3325
        %v3478 = vunpack.c.h.b16 %v3325
        %v3479 = vunpack.c.l.b16 %v3326
        %v3480 = vunpack.c.h.b16 %v3326
        %v3481 = vunpack.c.l.b16 %v3327
        %v3482 = vunpack.c.h.b16 %v3327
        %v3483 = vunpack.c.l.b16 %v3328
        %v3484 = vunpack.c.h.b16 %v3328
        %v3485 = vunpack.c.l.b16 %v3329
        %v3486 = vunpack.c.h.b16 %v3329
        %v3487 = vunpack.c.l.b16 %v3330
        %v3488 = vunpack.c.h.b16 %v3330
        %v3489 = vunpack.c.l.b16 %v3331
        %v3490 = vunpack.c.h.b16 %v3331
        %v3491 = vunpack.c.l.b16 %v3332
        %v3492 = vunpack.c.h.b16 %v3332
        %v3493 = vunpack.c.l.b16 %v3333
        %v3494 = vunpack.c.h.b16 %v3333
        %v3495 = vunpack.c.l.b16 %v3334
        %v3496 = vunpack.c.h.b16 %v3334
        %v3497 = vunpack.c.l.b16 %v3335
        %v3498 = vunpack.c.h.b16 %v3335
        %v3499 = vunpack.c.l.b16 %v3336
        %v3500 = vunpack.c.h.b16 %v3336
        %v3501 = vunpack.c.l.b16 %v3337
        %v3502 = vunpack.c.h.b16 %v3337
        %v3503 = vunpack.c.l.b16 %v3338
        %v3504 = vunpack.c.h.b16 %v3338
        %v3505 = vunpack.c.l.b16 %v3339
        %v3506 = vunpack.c.h.b16 %v3339
        %v3507 = vunpack.c.l.b16 %v3340
        %v3508 = vunpack.c.h.b16 %v3340
        %v3509 = vunpack.c.l.b16 %v3341
        %v3510 = vunpack.c.h.b16 %v3341
        %v3511 = vunpack.c.l.b16 %v3342
        %v3512 = vunpack.c.h.b16 %v3342
        %v3513 = vunpack.c.l.b16 %v3343
        %v3514 = vunpack.c.h.b16 %v3343
        %v3515 = vunpack.c.l.b16 %v3344
        %v3516 = vunpack.c.h.b16 %v3344
        %v3517 = vunpack.c.l.b16 %v3345
        %v3518 = vunpack.c.h.b16 %v3345
        %v3519 = vunpack.c.l.b16 %v3346
        %v3520 = vunpack.c.h.b16 %v3346
        %v3521 = vunpack.c.l.b16 %v3347
        %v3522 = vunpack.c.h.b16 %v3347
        %v3523 = vunpack.c.l.b16 %v3348
        %v3524 = vunpack.c.h.b16 %v3348
        %v3525 = vunpack.c.l.b16 %v3349
        %v3526 = vunpack.c.h.b16 %v3349
        %v3527 = vunpack.c.l.b16 %v3350
        %v3528 = vunpack.c.h.b16 %v3350
        %v3529 = vunpack.c.l.b16 %v3351
        %v3530 = vunpack.c.h.b16 %v3351
        %v3531 = vunpack.c.l.b16 %v3352
        %v3532 = vunpack.c.h.b16 %v3352
        %v3533 = vunpack.c.l.b16 %v3353
        %v3534 = vunpack.c.h.b16 %v3353
        %v3535 = vunpack.c.l.b16 %v3354
        %v3536 = vunpack.c.h.b16 %v3354
        %v3537 = vunpack.c.l.b16 %v3355
        %v3538 = vunpack.c.h.b16 %v3355
        %v3539 = vunpack.c.l.b16 %v3356
        %v3540 = vunpack.c.h.b16 %v3356
        %v3541 = vunpack.c.l.b16 %v3357
        %v3542 = vunpack.c.h.b16 %v3357
        %v3543 = vunpack.c.l.b16 %v3358
        %v3544 = vunpack.c.h.b16 %v3358
        %v3545 = vunpack.c.l.b16 %v3359
        %v3546 = vunpack.c.h.b16 %v3359
        %v3547 = vunpack.c.l.b16 %v3360
        %v3548 = vunpack.c.h.b16 %v3360
        %v3549 = vunpack.c.l.b16 %v3361
        %v3550 = vunpack.c.h.b16 %v3361
        %v3551 = vunpack.c.l.b16 %v3362
        %v3552 = vunpack.c.h.b16 %v3362
        %v3553 = vunpack.c.l.b16 %v3363
        %v3554 = vunpack.c.h.b16 %v3363
        %v3555 = vunpack.c.l.b16 %v3364
        %v3556 = vunpack.c.h.b16 %v3364
        %v3557 = vunpack.c.l.b16 %v3365
        %v3558 = vunpack.c.h.b16 %v3365
        %v3559 = vunpack.c.l.b16 %v3366
        %v3560 = vunpack.c.h.b16 %v3366
        %v3561 = vunpack.c.l.b16 %v3367
        %v3562 = vunpack.c.h.b16 %v3367
        %v3563 = vunpack.c.l.b16 %v3368
        %v3564 = vunpack.c.h.b16 %v3368
        %v3565 = vunpack.c.l.b16 %v3369
        %v3566 = vunpack.c.h.b16 %v3369
        %v3567 = vunpack.c.l.b16 %v3370
        %v3568 = vunpack.c.h.b16 %v3370
        %v3569 = vunpack.c.l.b16 %v3371
        %v3570 = vunpack.c.h.b16 %v3371
        %v3571 = vunpack.c.l.b16 %v3372
        %v3572 = vunpack.c.h.b16 %v3372
        %v3573 = vunpack.c.l.b16 %v3373
        %v3574 = vunpack.c.h.b16 %v3373
        %v3575 = vpack.c.b16 %v3465, %v3463
        %v3576 = vpack.c.b16 %v3466, %v3464
        %v3577 = vpack.c.b16 %v3469, %v3467
        %v3578 = vpack.c.b16 %v3470, %v3468
        %v3579 = vpack.c.b16 %v3473, %v3471
        %v3580 = vpack.c.b16 %v3474, %v3472
        %v3581 = vpack.c.b16 %v3477, %v3475
        %v3582 = vpack.c.b16 %v3478, %v3476
        %v3583 = vpack.c.b16 %v3481, %v3479
        %v3584 = vpack.c.b16 %v3482, %v3480
        %v3585 = vpack.c.b16 %v3485, %v3483
        %v3586 = vpack.c.b16 %v3486, %v3484
        %v3587 = vpack.c.b16 %v3489, %v3487
        %v3588 = vpack.c.b16 %v3490, %v3488
        %v3589 = vpack.c.b16 %v3493, %v3491
        %v3590 = vpack.c.b16 %v3494, %v3492
        %v3591 = vpack.c.b16 %v3497, %v3495
        %v3592 = vpack.c.b16 %v3498, %v3496
        %v3593 = vpack.c.b16 %v3501, %v3499
        %v3594 = vpack.c.b16 %v3502, %v3500
        %v3595 = vpack.c.b16 %v3505, %v3503
        %v3596 = vpack.c.b16 %v3506, %v3504
        %v3597 = vpack.c.b16 %v3509, %v3507
        %v3598 = vpack.c.b16 %v3510, %v3508
        %v3599 = vpack.c.b16 %v3513, %v3511
        %v3600 = vpack.c.b16 %v3514, %v3512
        %v3601 = vpack.c.b16 %v3517, %v3515
        %v3602 = vpack.c.b16 %v3518, %v3516
        %v3603 = vpack.c.b16 %v3521, %v3519
        %v3604 = vpack.c.b16 %v3522, %v3520
        %v3605 = vpack.c.b16 %v3525, %v3523
        %v3606 = vpack.c.b16 %v3526, %v3524
        %v3607 = vpack.c.b16 %v3529, %v3527
        %v3608 = vpack.c.b16 %v3530, %v3528
        %v3609 = vpack.c.b16 %v3533, %v3531
        %v3610 = vpack.c.b16 %v3534, %v3532
        %v3611 = vpack.c.b16 %v3537, %v3535
        %v3612 = vpack.c.b16 %v3538, %v3536
        %v3613 = vpack.c.b16 %v3541, %v3539
        %v3614 = vpack.c.b16 %v3542, %v3540
        %v3615 = vpack.c.b16 %v3545, %v3543
        %v3616 = vpack.c.b16 %v3546, %v3544
        %v3617 = vpack.c.b16 %v3549, %v3547
        %v3618 = vpack.c.b16 %v3550, %v3548
        %v3619 = vpack.c.b16 %v3553, %v3551
        %v3620 = vpack.c.b16 %v3554, %v3552
        %v3621 = vpack.c.b16 %v3557, %v3555
        %v3622 = vpack.c.b16 %v3558, %v3556
        %v3623 = vpack.c.b16 %v3561, %v3559
        %v3624 = vpack.c.b16 %v3562, %v3560
        %v3625 = vpack.c.b16 %v3565, %v3563
        %v3626 = vpack.c.b16 %v3566, %v3564
        %v3627 = vpack.c.b16 %v3569, %v3567
        %v3628 = vpack.c.b16 %v3570, %v3568
        %v3629 = vpack.c.b16 %v3573, %v3571
        %v3630 = vpack.c.b16 %v3574, %v3572
        %v3719 = vunpack.c.l.b16 %v3375
        %v3720 = vunpack.c.h.b16 %v3375
        %v3721 = vunpack.c.l.b16 %v3376
        %v3722 = vunpack.c.h.b16 %v3376
        %v3723 = vunpack.c.l.b16 %v3377
        %v3724 = vunpack.c.h.b16 %v3377
        %v3725 = vunpack.c.l.b16 %v3378
        %v3726 = vunpack.c.h.b16 %v3378
        %v3727 = vunpack.c.l.b16 %v3379
        %v3728 = vunpack.c.h.b16 %v3379
        %v3729 = vunpack.c.l.b16 %v3380
        %v3730 = vunpack.c.h.b16 %v3380
        %v3731 = vunpack.c.l.b16 %v3381
        %v3732 = vunpack.c.h.b16 %v3381
        %v3733 = vunpack.c.l.b16 %v3382
        %v3734 = vunpack.c.h.b16 %v3382
        %v3735 = vunpack.c.l.b16 %v3383
        %v3736 = vunpack.c.h.b16 %v3383
        %v3737 = vunpack.c.l.b16 %v3384
        %v3738 = vunpack.c.h.b16 %v3384
        %v3739 = vunpack.c.l.b16 %v3385
        %v3740 = vunpack.c.h.b16 %v3385
        %v3741 = vunpack.c.l.b16 %v3386
        %v3742 = vunpack.c.h.b16 %v3386
        %v3743 = vunpack.c.l.b16 %v3387
        %v3744 = vunpack.c.h.b16 %v3387
        %v3745 = vunpack.c.l.b16 %v3388
        %v3746 = vunpack.c.h.b16 %v3388
        %v3747 = vunpack.c.l.b16 %v3389
        %v3748 = vunpack.c.h.b16 %v3389
        %v3749 = vunpack.c.l.b16 %v3390
        %v3750 = vunpack.c.h.b16 %v3390
        %v3751 = vunpack.c.l.b16 %v3391
        %v3752 = vunpack.c.h.b16 %v3391
        %v3753 = vunpack.c.l.b16 %v3392
        %v3754 = vunpack.c.h.b16 %v3392
        %v3755 = vunpack.c.l.b16 %v3393
        %v3756 = vunpack.c.h.b16 %v3393
        %v3757 = vunpack.c.l.b16 %v3394
        %v3758 = vunpack.c.h.b16 %v3394
        %v3759 = vunpack.c.l.b16 %v3395
        %v3760 = vunpack.c.h.b16 %v3395
        %v3761 = vunpack.c.l.b16 %v3396
        %v3762 = vunpack.c.h.b16 %v3396
        %v3763 = vunpack.c.l.b16 %v3397
        %v3764 = vunpack.c.h.b16 %v3397
        %v3765 = vunpack.c.l.b16 %v3398
        %v3766 = vunpack.c.h.b16 %v3398
        %v3767 = vunpack.c.l.b16 %v3399
        %v3768 = vunpack.c.h.b16 %v3399
        %v3769 = vunpack.c.l.b16 %v3400
        %v3770 = vunpack.c.h.b16 %v3400
        %v3771 = vunpack.c.l.b16 %v3401
        %v3772 = vunpack.c.h.b16 %v3401
        %v3773 = vunpack.c.l.b16 %v3402
        %v3774 = vunpack.c.h.b16 %v3402
        %v3775 = vunpack.c.l.b16 %v3403
        %v3776 = vunpack.c.h.b16 %v3403
        %v3777 = vunpack.c.l.b16 %v3404
        %v3778 = vunpack.c.h.b16 %v3404
        %v3779 = vunpack.c.l.b16 %v3405
        %v3780 = vunpack.c.h.b16 %v3405
        %v3781 = vunpack.c.l.b16 %v3406
        %v3782 = vunpack.c.h.b16 %v3406
        %v3783 = vpack.c.b16 %v3721, %v3719
        %v3784 = vpack.c.b16 %v3722, %v3720
        %v3785 = vpack.c.b16 %v3725, %v3723
        %v3786 = vpack.c.b16 %v3726, %v3724
        %v3787 = vpack.c.b16 %v3729, %v3727
        %v3788 = vpack.c.b16 %v3730, %v3728
        %v3789 = vpack.c.b16 %v3733, %v3731
        %v3790 = vpack.c.b16 %v3734, %v3732
        %v3791 = vpack.c.b16 %v3737, %v3735
        %v3792 = vpack.c.b16 %v3738, %v3736
        %v3793 = vpack.c.b16 %v3741, %v3739
        %v3794 = vpack.c.b16 %v3742, %v3740
        %v3795 = vpack.c.b16 %v3745, %v3743
        %v3796 = vpack.c.b16 %v3746, %v3744
        %v3797 = vpack.c.b16 %v3749, %v3747
        %v3798 = vpack.c.b16 %v3750, %v3748
        %v3799 = vpack.c.b16 %v3753, %v3751
        %v3800 = vpack.c.b16 %v3754, %v3752
        %v3801 = vpack.c.b16 %v3757, %v3755
        %v3802 = vpack.c.b16 %v3758, %v3756
        %v3803 = vpack.c.b16 %v3761, %v3759
        %v3804 = vpack.c.b16 %v3762, %v3760
        %v3805 = vpack.c.b16 %v3765, %v3763
        %v3806 = vpack.c.b16 %v3766, %v3764
        %v3807 = vpack.c.b16 %v3769, %v3767
        %v3808 = vpack.c.b16 %v3770, %v3768
        %v3809 = vpack.c.b16 %v3773, %v3771
        %v3810 = vpack.c.b16 %v3774, %v3772
        %v3811 = vpack.c.b16 %v3777, %v3775
        %v3812 = vpack.c.b16 %v3778, %v3776
        %v3813 = vpack.c.b16 %v3781, %v3779
        %v3814 = vpack.c.b16 %v3782, %v3780
        %3847 = vmatprep.subr.bf16.mxu0 %v3784
        %3848 = vmatpush1.bf16.msra.mxu0 %v3783
        %3849 = vmatprep.subr.bf16.mxu0 %v3786
        %3850 = vmatpush1.bf16.msra.mxu0 %v3785
        %3851 = vmatprep.subr.bf16.mxu0 %v3788
        %3852 = vmatpush1.bf16.msra.mxu0 %v3787
        %3853 = vmatprep.subr.bf16.mxu0 %v3790
        %3854 = vmatpush1.bf16.msra.mxu0 %v3789
        %3855 = vmatprep.subr.bf16.mxu0 %v3792
        %3856 = vmatpush1.bf16.msra.mxu0 %v3791
        %3857 = vmatprep.subr.bf16.mxu0 %v3794
        %3858 = vmatpush1.bf16.msra.mxu0 %v3793
        %3859 = vmatprep.subr.bf16.mxu0 %v3796
        %3860 = vmatpush1.bf16.msra.mxu0 %v3795
        %3861 = vmatprep.subr.bf16.mxu0 %v3798
        %3862 = vmatpush1.bf16.msra.mxu0 %v3797
        %3863 = vmatprep.subr.bf16.mxu0 %v3800
        %3864 = vmatpush1.bf16.msra.mxu0 %v3799
        %3865 = vmatprep.subr.bf16.mxu0 %v3802
        %3866 = vmatpush1.bf16.msra.mxu0 %v3801
        %3867 = vmatprep.subr.bf16.mxu0 %v3804
        %3868 = vmatpush1.bf16.msra.mxu0 %v3803
        %3869 = vmatprep.subr.bf16.mxu0 %v3806
        %3870 = vmatpush1.bf16.msra.mxu0 %v3805
        %3871 = vmatprep.subr.bf16.mxu0 %v3808
        %3872 = vmatpush1.bf16.msra.mxu0 %v3807
        %3873 = vmatprep.subr.bf16.mxu0 %v3810
        %3874 = vmatpush1.bf16.msra.mxu0 %v3809
        %3875 = vmatprep.subr.bf16.mxu0 %v3812
        %3876 = vmatpush1.bf16.msra.mxu0 %v3811
        %3877 = vmatprep.subr.bf16.mxu0 %v3814
        %3878 = vmatpush1.bf16.msra.mxu0 %v3813
        %3879 = vmatprep.mubr.bf16.mxu0 %v3576
        %3880 = vmatmul.mubr.bf16.gmra.mrb[0].mxu0 %v3575
        %v3881 = vpop.f32.mrb[0].mxu0
        %v3882 = vadd.f32 0.0, %v3881
        %v3883 = vpop.f32.mrb[0].mxu0
        %v3884 = vadd.f32 0.0, %v3883
        %v3885 = vpop.f32.mrb[0].mxu0
        %v3886 = vadd.f32 0.0, %v3885
        %v3887 = vpop.f32.mrb[0].mxu0
        %v3888 = vadd.f32 0.0, %v3887
        %3889 = vmatprep.mubr.bf16.mxu0 %v3578
        %3890 = vmatmul.mubr.bf16.gmra.mrb[0].mxu0 %v3577
        %v3891 = vpop.f32.mrb[0].mxu0
        %v3892 = vadd.f32 0.0, %v3891
        %v3893 = vpop.f32.mrb[0].mxu0
        %v3894 = vadd.f32 0.0, %v3893
        %v3895 = vpop.f32.mrb[0].mxu0
        %v3896 = vadd.f32 0.0, %v3895
        %v3897 = vpop.f32.mrb[0].mxu0
        %v3898 = vadd.f32 0.0, %v3897
        %3899 = vmatprep.mubr.bf16.mxu0 %v3580
        %3900 = vmatmul.mubr.bf16.gmra.mrb[0].mxu0 %v3579
        %v3901 = vpop.f32.mrb[0].mxu0
        %v3902 = vadd.f32 0.0, %v3901
        %v3903 = vpop.f32.mrb[0].mxu0
        %v3904 = vadd.f32 0.0, %v3903
        %v3905 = vpop.f32.mrb[0].mxu0
        %v3906 = vadd.f32 0.0, %v3905
        %v3907 = vpop.f32.mrb[0].mxu0
        %v3908 = vadd.f32 0.0, %v3907
        %3909 = vmatprep.mubr.bf16.mxu0 %v3582
        %3910 = vmatmul.mubr.bf16.gmra.mrb[0].mxu0 %v3581
        %v3911 = vpop.f32.mrb[0].mxu0
        %v3912 = vadd.f32 0.0, %v3911
        %v3913 = vpop.f32.mrb[0].mxu0
        %v3914 = vadd.f32 0.0, %v3913
        %v3915 = vpop.f32.mrb[0].mxu0
        %v3916 = vadd.f32 0.0, %v3915
        %v3917 = vpop.f32.mrb[0].mxu0
        %v3918 = vadd.f32 0.0, %v3917
        %3919 = vmatprep.mubr.bf16.mxu0 %v3584
        %3920 = vmatmul.mubr.bf16.gmra.mrb[0].mxu0 %v3583
        %v3921 = vpop.f32.mrb[0].mxu0
        %v3922 = vadd.f32 0.0, %v3921
        %v3923 = vpop.f32.mrb[0].mxu0
        %v3924 = vadd.f32 0.0, %v3923
        %v3925 = vpop.f32.mrb[0].mxu0
        %v3926 = vadd.f32 0.0, %v3925
        %v3927 = vpop.f32.mrb[0].mxu0
        %v3928 = vadd.f32 0.0, %v3927
        %3929 = vmatprep.mubr.bf16.mxu0 %v3586
        %3930 = vmatmul.mubr.bf16.gmra.mrb[0].mxu0 %v3585
        %v3931 = vpop.f32.mrb[0].mxu0
        %v3932 = vadd.f32 0.0, %v3931
        %v3933 = vpop.f32.mrb[0].mxu0
        %v3934 = vadd.f32 0.0, %v3933
        %v3935 = vpop.f32.mrb[0].mxu0
        %v3936 = vadd.f32 0.0, %v3935
        %v3937 = vpop.f32.mrb[0].mxu0
        %v3938 = vadd.f32 0.0, %v3937
        %3939 = vmatprep.mubr.bf16.mxu0 %v3588
        %3940 = vmatmul.mubr.bf16.gmra.mrb[0].mxu0 %v3587
        %v3941 = vpop.f32.mrb[0].mxu0
        %v3942 = vadd.f32 0.0, %v3941
        %v3943 = vpop.f32.mrb[0].mxu0
        %v3944 = vadd.f32 0.0, %v3943
        %v3945 = vpop.f32.mrb[0].mxu0
        %v3946 = vadd.f32 0.0, %v3945
        %v3947 = vpop.f32.mrb[0].mxu0
        %v3948 = vadd.f32 0.0, %v3947
        %3949 = vmatprep.mubr.bf16.mxu0 %v3590
        %3950 = vmatmul.mubr.bf16.gmra.mrb[0].mxu0 %v3589
        %v3951 = vpop.f32.mrb[0].mxu0
        %v3952 = vadd.f32 0.0, %v3951
        %v3953 = vpop.f32.mrb[0].mxu0
        %v3954 = vadd.f32 0.0, %v3953
        %v3955 = vpop.f32.mrb[0].mxu0
        %v3956 = vadd.f32 0.0, %v3955
        %v3957 = vpop.f32.mrb[0].mxu0
        %v3958 = vadd.f32 0.0, %v3957
        %3959 = vmatprep.mubr.bf16.mxu0 %v3592
        %3960 = vmatmul.mubr.bf16.gmra.mrb[0].mxu0 %v3591
        %v3961 = vpop.f32.mrb[0].mxu0
        %v3962 = vadd.f32 0.0, %v3961
        %v3963 = vpop.f32.mrb[0].mxu0
        %v3964 = vadd.f32 0.0, %v3963
        %v3965 = vpop.f32.mrb[0].mxu0
        %v3966 = vadd.f32 0.0, %v3965
        %v3967 = vpop.f32.mrb[0].mxu0
        %v3968 = vadd.f32 0.0, %v3967
        %3969 = vmatprep.mubr.bf16.mxu0 %v3594
        %3970 = vmatmul.mubr.bf16.gmra.mrb[0].mxu0 %v3593
        %v3971 = vpop.f32.mrb[0].mxu0
        %v3972 = vadd.f32 0.0, %v3971
        %v3973 = vpop.f32.mrb[0].mxu0
        %v3974 = vadd.f32 0.0, %v3973
        %v3975 = vpop.f32.mrb[0].mxu0
        %v3976 = vadd.f32 0.0, %v3975
        %v3977 = vpop.f32.mrb[0].mxu0
        %v3978 = vadd.f32 0.0, %v3977
        %3979 = vmatprep.mubr.bf16.mxu0 %v3596
        %3980 = vmatmul.mubr.bf16.gmra.mrb[0].mxu0 %v3595
        %v3981 = vpop.f32.mrb[0].mxu0
        %v3982 = vadd.f32 0.0, %v3981
        %v3983 = vpop.f32.mrb[0].mxu0
        %v3984 = vadd.f32 0.0, %v3983
        %v3985 = vpop.f32.mrb[0].mxu0
        %v3986 = vadd.f32 0.0, %v3985
        %v3987 = vpop.f32.mrb[0].mxu0
        %v3988 = vadd.f32 0.0, %v3987
        %3989 = vmatprep.mubr.bf16.mxu0 %v3598
        %3990 = vmatmul.mubr.bf16.gmra.mrb[0].mxu0 %v3597
        %v3991 = vpop.f32.mrb[0].mxu0
        %v3992 = vadd.f32 0.0, %v3991
        %v3993 = vpop.f32.mrb[0].mxu0
        %v3994 = vadd.f32 0.0, %v3993
        %v3995 = vpop.f32.mrb[0].mxu0
        %v3996 = vadd.f32 0.0, %v3995
        %v3997 = vpop.f32.mrb[0].mxu0
        %v3998 = vadd.f32 0.0, %v3997
        %3999 = vmatprep.mubr.bf16.mxu0 %v3600
        %4000 = vmatmul.mubr.bf16.gmra.mrb[0].mxu0 %v3599
        %v4001 = vpop.f32.mrb[0].mxu0
        %v4002 = vadd.f32 0.0, %v4001
        %v4003 = vpop.f32.mrb[0].mxu0
        %v4004 = vadd.f32 0.0, %v4003
        %v4005 = vpop.f32.mrb[0].mxu0
        %v4006 = vadd.f32 0.0, %v4005
        %v4007 = vpop.f32.mrb[0].mxu0
        %v4008 = vadd.f32 0.0, %v4007
        %4009 = vmatprep.mubr.bf16.mxu0 %v3602
        %4010 = vmatmul.mubr.bf16.gmra.mrb[0].mxu0 %v3601
        %v4011 = vpop.f32.mrb[0].mxu0
        %v4012 = vadd.f32 0.0, %v4011
        %v4013 = vpop.f32.mrb[0].mxu0
        %v4014 = vadd.f32 0.0, %v4013
        %v4015 = vpop.f32.mrb[0].mxu0
        %v4016 = vadd.f32 0.0, %v4015
        %v4017 = vpop.f32.mrb[0].mxu0
        %v4018 = vadd.f32 0.0, %v4017
        %4019 = vmatprep.mubr.bf16.mxu0 %v3604
        %4020 = vmatmul.mubr.bf16.gmra.mrb[0].mxu0 %v3603
        %v4021 = vpop.f32.mrb[0].mxu0
        %v4022 = vadd.f32 0.0, %v4021
        %v4023 = vpop.f32.mrb[0].mxu0
        %v4024 = vadd.f32 0.0, %v4023
        %v4025 = vpop.f32.mrb[0].mxu0
        %v4026 = vadd.f32 0.0, %v4025
        %v4027 = vpop.f32.mrb[0].mxu0
        %v4028 = vadd.f32 0.0, %v4027
        %4029 = vmatprep.mubr.bf16.mxu0 %v3606
        %4030 = vmatmul.mubr.bf16.gmra.mrb[0].mxu0 %v3605
        %v4031 = vpop.f32.mrb[0].mxu0
        %v4032 = vadd.f32 0.0, %v4031
        %v4033 = vpop.f32.mrb[0].mxu0
        %v4034 = vadd.f32 0.0, %v4033
        %v4035 = vpop.f32.mrb[0].mxu0
        %v4036 = vadd.f32 0.0, %v4035
        %v4037 = vpop.f32.mrb[0].mxu0
        %v4038 = vadd.f32 0.0, %v4037
        %4039 = vmatprep.mubr.bf16.mxu0 %v3608
        %4040 = vmatmul.mubr.bf16.gmra.mrb[0].mxu0 %v3607
        %v4041 = vpop.f32.mrb[0].mxu0
        %v4042 = vadd.f32 0.0, %v4041
        %v4043 = vpop.f32.mrb[0].mxu0
        %v4044 = vadd.f32 0.0, %v4043
        %v4045 = vpop.f32.mrb[0].mxu0
        %v4046 = vadd.f32 0.0, %v4045
        %v4047 = vpop.f32.mrb[0].mxu0
        %v4048 = vadd.f32 0.0, %v4047
        %4049 = vmatprep.mubr.bf16.mxu0 %v3610
        %4050 = vmatmul.mubr.bf16.gmra.mrb[0].mxu0 %v3609
        %v4051 = vpop.f32.mrb[0].mxu0
        %v4052 = vadd.f32 0.0, %v4051
        %v4053 = vpop.f32.mrb[0].mxu0
        %v4054 = vadd.f32 0.0, %v4053
        %v4055 = vpop.f32.mrb[0].mxu0
        %v4056 = vadd.f32 0.0, %v4055
        %v4057 = vpop.f32.mrb[0].mxu0
        %v4058 = vadd.f32 0.0, %v4057
        %4059 = vmatprep.mubr.bf16.mxu0 %v3612
        %4060 = vmatmul.mubr.bf16.gmra.mrb[0].mxu0 %v3611
        %v4061 = vpop.f32.mrb[0].mxu0
        %v4062 = vadd.f32 0.0, %v4061
        %v4063 = vpop.f32.mrb[0].mxu0
        %v4064 = vadd.f32 0.0, %v4063
        %v4065 = vpop.f32.mrb[0].mxu0
        %v4066 = vadd.f32 0.0, %v4065
        %v4067 = vpop.f32.mrb[0].mxu0
        %v4068 = vadd.f32 0.0, %v4067
        %4069 = vmatprep.mubr.bf16.mxu0 %v3614
        %4070 = vmatmul.mubr.bf16.gmra.mrb[0].mxu0 %v3613
        %v4071 = vpop.f32.mrb[0].mxu0
        %v4072 = vadd.f32 0.0, %v4071
        %v4073 = vpop.f32.mrb[0].mxu0
        %v4074 = vadd.f32 0.0, %v4073
        %v4075 = vpop.f32.mrb[0].mxu0
        %v4076 = vadd.f32 0.0, %v4075
        %v4077 = vpop.f32.mrb[0].mxu0
        %v4078 = vadd.f32 0.0, %v4077
        %4079 = vmatprep.mubr.bf16.mxu0 %v3616
        %4080 = vmatmul.mubr.bf16.gmra.mrb[0].mxu0 %v3615
        %v4081 = vpop.f32.mrb[0].mxu0
        %v4082 = vadd.f32 0.0, %v4081
        %v4083 = vpop.f32.mrb[0].mxu0
        %v4084 = vadd.f32 0.0, %v4083
        %v4085 = vpop.f32.mrb[0].mxu0
        %v4086 = vadd.f32 0.0, %v4085
        %v4087 = vpop.f32.mrb[0].mxu0
        %v4088 = vadd.f32 0.0, %v4087
        %4089 = vmatprep.mubr.bf16.mxu0 %v3618
        %4090 = vmatmul.mubr.bf16.gmra.mrb[0].mxu0 %v3617
        %v4091 = vpop.f32.mrb[0].mxu0
        %v4092 = vadd.f32 0.0, %v4091
        %v4093 = vpop.f32.mrb[0].mxu0
        %v4094 = vadd.f32 0.0, %v4093
        %v4095 = vpop.f32.mrb[0].mxu0
        %v4096 = vadd.f32 0.0, %v4095
        %v4097 = vpop.f32.mrb[0].mxu0
        %v4098 = vadd.f32 0.0, %v4097
        %4099 = vmatprep.mubr.bf16.mxu0 %v3620
        %4100 = vmatmul.mubr.bf16.gmra.mrb[0].mxu0 %v3619
        %v4101 = vpop.f32.mrb[0].mxu0
        %v4102 = vadd.f32 0.0, %v4101
        %v4103 = vpop.f32.mrb[0].mxu0
        %v4104 = vadd.f32 0.0, %v4103
        %v4105 = vpop.f32.mrb[0].mxu0
        %v4106 = vadd.f32 0.0, %v4105
        %v4107 = vpop.f32.mrb[0].mxu0
        %v4108 = vadd.f32 0.0, %v4107
        %4109 = vmatprep.mubr.bf16.mxu0 %v3622
        %4110 = vmatmul.mubr.bf16.gmra.mrb[0].mxu0 %v3621
        %v4111 = vpop.f32.mrb[0].mxu0
        %v4112 = vadd.f32 0.0, %v4111
        %v4113 = vpop.f32.mrb[0].mxu0
        %v4114 = vadd.f32 0.0, %v4113
        %v4115 = vpop.f32.mrb[0].mxu0
        %v4116 = vadd.f32 0.0, %v4115
        %v4117 = vpop.f32.mrb[0].mxu0
        %v4118 = vadd.f32 0.0, %v4117
        %4119 = vmatprep.mubr.bf16.mxu0 %v3624
        %4120 = vmatmul.mubr.bf16.gmra.mrb[0].mxu0 %v3623
        %v4121 = vpop.f32.mrb[0].mxu0
        %v4122 = vadd.f32 0.0, %v4121
        %v4123 = vpop.f32.mrb[0].mxu0
        %v4124 = vadd.f32 0.0, %v4123
        %v4125 = vpop.f32.mrb[0].mxu0
        %v4126 = vadd.f32 0.0, %v4125
        %v4127 = vpop.f32.mrb[0].mxu0
        %v4128 = vadd.f32 0.0, %v4127
        %4129 = vmatprep.mubr.bf16.mxu0 %v3626
        %4130 = vmatmul.mubr.bf16.gmra.mrb[0].mxu0 %v3625
        %v4131 = vpop.f32.mrb[0].mxu0
        %v4132 = vadd.f32 0.0, %v4131
        %v4133 = vpop.f32.mrb[0].mxu0
        %v4134 = vadd.f32 0.0, %v4133
        %v4135 = vpop.f32.mrb[0].mxu0
        %v4136 = vadd.f32 0.0, %v4135
        %v4137 = vpop.f32.mrb[0].mxu0
        %v4138 = vadd.f32 0.0, %v4137
        %4139 = vmatprep.mubr.bf16.mxu0 %v3628
        %4140 = vmatmul.mubr.bf16.gmra.mrb[0].mxu0 %v3627
        %v4141 = vpop.f32.mrb[0].mxu0
        %v4142 = vadd.f32 0.0, %v4141
        %v4143 = vpop.f32.mrb[0].mxu0
        %v4144 = vadd.f32 0.0, %v4143
        %v4145 = vpop.f32.mrb[0].mxu0
        %v4146 = vadd.f32 0.0, %v4145
        %v4147 = vpop.f32.mrb[0].mxu0
        %v4148 = vadd.f32 0.0, %v4147
        %4149 = vmatprep.mubr.bf16.mxu0 %v3630
        %4150 = vmatmul.mubr.bf16.gmra.mrb[0].mxu0 %v3629
        %v4151 = vpop.f32.mrb[0].mxu0
        %v4152 = vadd.f32 0.0, %v4151
        %v4153 = vpop.f32.mrb[0].mxu0
        %v4154 = vadd.f32 0.0, %v4153
        %v4155 = vpop.f32.mrb[0].mxu0
        %v4156 = vadd.f32 0.0, %v4155
        %v4157 = vpop.f32.mrb[0].mxu0
        %v4158 = vadd.f32 0.0, %v4157
        %4159 = vdwg.mxu0
        %v4160 = vadd.f32 %v3205, %v3882
        %v4161 = vadd.f32 %v3206, %v3884
        %v4162 = vadd.f32 %v3207, %v3886
        %v4163 = vadd.f32 %v3208, %v3888
        %v4164 = vadd.f32 %v3209, %v3892
        %v4165 = vadd.f32 %v3210, %v3894
        %v4166 = vadd.f32 %v3211, %v3896
        %v4167 = vadd.f32 %v3212, %v3898
        %v4168 = vadd.f32 %v3213, %v3902
        %v4169 = vadd.f32 %v3214, %v3904
        %v4170 = vadd.f32 %v3215, %v3906
        %v4171 = vadd.f32 %v3216, %v3908
        %v4172 = vadd.f32 %v3217, %v3912
        %v4173 = vadd.f32 %v3218, %v3914
        %v4174 = vadd.f32 %v3219, %v3916
        %v4175 = vadd.f32 %v3220, %v3918
        %v4176 = vadd.f32 %v3221, %v3922
        %v4177 = vadd.f32 %v3222, %v3924
        %v4178 = vadd.f32 %v3223, %v3926
        %v4179 = vadd.f32 %v3224, %v3928
        %v4180 = vadd.f32 %v3225, %v3932
        %v4181 = vadd.f32 %v3226, %v3934
        %v4182 = vadd.f32 %v3227, %v3936
        %v4183 = vadd.f32 %v3228, %v3938
        %v4184 = vadd.f32 %v3229, %v3942
        %v4185 = vadd.f32 %v3230, %v3944
        %v4186 = vadd.f32 %v3231, %v3946
        %v4187 = vadd.f32 %v3232, %v3948
        %v4188 = vadd.f32 %v3233, %v3952
        %v4189 = vadd.f32 %v3234, %v3954
        %v4190 = vadd.f32 %v3235, %v3956
        %v4191 = vadd.f32 %v3236, %v3958
        %v4192 = vadd.f32 %v3237, %v3962
        %v4193 = vadd.f32 %v3238, %v3964
        %v4194 = vadd.f32 %v3239, %v3966
        %v4195 = vadd.f32 %v3240, %v3968
        %v4196 = vadd.f32 %v3241, %v3972
        %v4197 = vadd.f32 %v3242, %v3974
        %v4198 = vadd.f32 %v3243, %v3976
        %v4199 = vadd.f32 %v3244, %v3978
        %v4200 = vadd.f32 %v3245, %v3982
        %v4201 = vadd.f32 %v3246, %v3984
        %v4202 = vadd.f32 %v3247, %v3986
        %v4203 = vadd.f32 %v3248, %v3988
        %v4204 = vadd.f32 %v3249, %v3992
        %v4205 = vadd.f32 %v3250, %v3994
        %v4206 = vadd.f32 %v3251, %v3996
        %v4207 = vadd.f32 %v3252, %v3998
        %v4208 = vadd.f32 %v3253, %v4002
        %v4209 = vadd.f32 %v3254, %v4004
        %v4210 = vadd.f32 %v3255, %v4006
        %v4211 = vadd.f32 %v3256, %v4008
        %v4212 = vadd.f32 %v3257, %v4012
        %v4213 = vadd.f32 %v3258, %v4014
        %v4214 = vadd.f32 %v3259, %v4016
        %v4215 = vadd.f32 %v3260, %v4018
        %v4216 = vadd.f32 %v3261, %v4022
        %v4217 = vadd.f32 %v3262, %v4024
        %v4218 = vadd.f32 %v3263, %v4026
        %v4219 = vadd.f32 %v3264, %v4028
        %v4220 = vadd.f32 %v3265, %v4032
        %v4221 = vadd.f32 %v3266, %v4034
        %v4222 = vadd.f32 %v3267, %v4036
        %v4223 = vadd.f32 %v3268, %v4038
        %v4224 = vadd.f32 %v3269, %v4042
        %v4225 = vadd.f32 %v3270, %v4044
        %v4226 = vadd.f32 %v3271, %v4046
        %v4227 = vadd.f32 %v3272, %v4048
        %v4228 = vadd.f32 %v3273, %v4052
        %v4229 = vadd.f32 %v3274, %v4054
        %v4230 = vadd.f32 %v3275, %v4056
        %v4231 = vadd.f32 %v3276, %v4058
        %v4232 = vadd.f32 %v3277, %v4062
        %v4233 = vadd.f32 %v3278, %v4064
        %v4234 = vadd.f32 %v3279, %v4066
        %v4235 = vadd.f32 %v3280, %v4068
        %v4236 = vadd.f32 %v3281, %v4072
        %v4237 = vadd.f32 %v3282, %v4074
        %v4238 = vadd.f32 %v3283, %v4076
        %v4239 = vadd.f32 %v3284, %v4078
        %v4240 = vadd.f32 %v3285, %v4082
        %v4241 = vadd.f32 %v3286, %v4084
        %v4242 = vadd.f32 %v3287, %v4086
        %v4243 = vadd.f32 %v3288, %v4088
        %v4244 = vadd.f32 %v3289, %v4092
        %v4245 = vadd.f32 %v3290, %v4094
        %v4246 = vadd.f32 %v3291, %v4096
        %v4247 = vadd.f32 %v3292, %v4098
        %v4248 = vadd.f32 %v3293, %v4102
        %v4249 = vadd.f32 %v3294, %v4104
        %v4250 = vadd.f32 %v3295, %v4106
        %v4251 = vadd.f32 %v3296, %v4108
        %v4252 = vadd.f32 %v3297, %v4112
        %v4253 = vadd.f32 %v3298, %v4114
        %v4254 = vadd.f32 %v3299, %v4116
        %v4255 = vadd.f32 %v3300, %v4118
        %v4256 = vadd.f32 %v3301, %v4122
        %v4257 = vadd.f32 %v3302, %v4124
        %v4258 = vadd.f32 %v3303, %v4126
        %v4259 = vadd.f32 %v3304, %v4128
        %v4260 = vadd.f32 %v3305, %v4132
        %v4261 = vadd.f32 %v3306, %v4134
        %v4262 = vadd.f32 %v3307, %v4136
        %v4263 = vadd.f32 %v3308, %v4138
        %v4264 = vadd.f32 %v3309, %v4142
        %v4265 = vadd.f32 %v3310, %v4144
        %v4266 = vadd.f32 %v3311, %v4146
        %v4267 = vadd.f32 %v3312, %v4148
        %v4268 = vadd.f32 %v3313, %v4152
        %v4269 = vadd.f32 %v3314, %v4154
        %v4270 = vadd.f32 %v3315, %v4156
        %v4271 = vadd.f32 %v3316, %v4158
        %s4272 = scalar_lea.vmem %s633, 64 [#allocation4]
        %v4273 = vld [vmem:[%s4272] sm:$0xff]
        %v4274 = vld [vmem:[%s4272 + $0x8] sm:$0xff]
        %v4275 = vld [vmem:[%s4272 + $0x10] sm:$0xff]
        %v4276 = vld [vmem:[%s4272 + $0x18] sm:$0xff]
        %v4277 = vld [vmem:[%s4272 + $0x20] sm:$0xff]
        %v4278 = vld [vmem:[%s4272 + $0x28] sm:$0xff]
        %v4279 = vld [vmem:[%s4272 + $0x30] sm:$0xff]
        %v4280 = vld [vmem:[%s4272 + $0x38] sm:$0xff]
        %v4281 = vld [vmem:[%s4272 + $0x40] sm:$0xff]
        %v4282 = vld [vmem:[%s4272 + $0x48] sm:$0xff]
        %v4283 = vld [vmem:[%s4272 + $0x50] sm:$0xff]
        %v4284 = vld [vmem:[%s4272 + $0x58] sm:$0xff]
        %v4285 = vld [vmem:[%s4272 + $0x60] sm:$0xff]
        %v4286 = vld [vmem:[%s4272 + $0x68] sm:$0xff]
        %v4287 = vld [vmem:[%s4272 + $0x70] sm:$0xff]
        %v4288 = vld [vmem:[%s4272 + $0x78] sm:$0xff]
        %v4289 = vld [vmem:[%s4272 + $0x80] sm:$0xff]
        %v4290 = vld [vmem:[%s4272 + $0x88] sm:$0xff]
        %v4291 = vld [vmem:[%s4272 + $0x90] sm:$0xff]
        %v4292 = vld [vmem:[%s4272 + $0x98] sm:$0xff]
        %v4293 = vld [vmem:[%s4272 + $0xa0] sm:$0xff]
        %v4294 = vld [vmem:[%s4272 + $0xa8] sm:$0xff]
        %v4295 = vld [vmem:[%s4272 + $0xb0] sm:$0xff]
        %v4296 = vld [vmem:[%s4272 + $0xb8] sm:$0xff]
        %v4297 = vld [vmem:[%s4272 + $0xc0] sm:$0xff]
        %v4298 = vld [vmem:[%s4272 + $0xc8] sm:$0xff]
        %v4299 = vld [vmem:[%s4272 + $0xd0] sm:$0xff]
        %v4300 = vld [vmem:[%s4272 + $0xd8] sm:$0xff]
        %v4301 = vld [vmem:[%s4272 + $0xe0] sm:$0xff]
        %v4302 = vld [vmem:[%s4272 + $0xe8] sm:$0xff]
        %v4303 = vld [vmem:[%s4272 + $0xf0] sm:$0xff]
        %v4304 = vld [vmem:[%s4272 + $0xf8] sm:$0xff]
        %v4305 = vld [vmem:[%s4272 + $0x100] sm:$0xff]
        %v4306 = vld [vmem:[%s4272 + $0x108] sm:$0xff]
        %v4307 = vld [vmem:[%s4272 + $0x110] sm:$0xff]
        %v4308 = vld [vmem:[%s4272 + $0x118] sm:$0xff]
        %v4309 = vld [vmem:[%s4272 + $0x120] sm:$0xff]
        %v4310 = vld [vmem:[%s4272 + $0x128] sm:$0xff]
        %v4311 = vld [vmem:[%s4272 + $0x130] sm:$0xff]
        %v4312 = vld [vmem:[%s4272 + $0x138] sm:$0xff]
        %v4313 = vld [vmem:[%s4272 + $0x140] sm:$0xff]
        %v4314 = vld [vmem:[%s4272 + $0x148] sm:$0xff]
        %v4315 = vld [vmem:[%s4272 + $0x150] sm:$0xff]
        %v4316 = vld [vmem:[%s4272 + $0x158] sm:$0xff]
        %v4317 = vld [vmem:[%s4272 + $0x160] sm:$0xff]
        %v4318 = vld [vmem:[%s4272 + $0x168] sm:$0xff]
        %v4319 = vld [vmem:[%s4272 + $0x170] sm:$0xff]
        %v4320 = vld [vmem:[%s4272 + $0x178] sm:$0xff]
        %v4321 = vld [vmem:[%s4272 + $0x180] sm:$0xff]
        %v4322 = vld [vmem:[%s4272 + $0x188] sm:$0xff]
        %v4323 = vld [vmem:[%s4272 + $0x190] sm:$0xff]
        %v4324 = vld [vmem:[%s4272 + $0x198] sm:$0xff]
        %v4325 = vld [vmem:[%s4272 + $0x1a0] sm:$0xff]
        %v4326 = vld [vmem:[%s4272 + $0x1a8] sm:$0xff]
        %v4327 = vld [vmem:[%s4272 + $0x1b0] sm:$0xff]
        %v4328 = vld [vmem:[%s4272 + $0x1b8] sm:$0xff]
        %s4329 = scalar_lea.vmem %s1, 1024
        %v4330 = vld [vmem:[%s4329] sm:$0xff]
        %v4331 = vld [vmem:[%s4329 + $0x8] sm:$0xff]
        %v4332 = vld [vmem:[%s4329 + $0x10] sm:$0xff]
        %v4333 = vld [vmem:[%s4329 + $0x18] sm:$0xff]
        %v4334 = vld [vmem:[%s4329 + $0x20] sm:$0xff]
        %v4335 = vld [vmem:[%s4329 + $0x28] sm:$0xff]
        %v4336 = vld [vmem:[%s4329 + $0x30] sm:$0xff]
        %v4337 = vld [vmem:[%s4329 + $0x38] sm:$0xff]
        %v4338 = vld [vmem:[%s4329 + $0x40] sm:$0xff]
        %v4339 = vld [vmem:[%s4329 + $0x48] sm:$0xff]
        %v4340 = vld [vmem:[%s4329 + $0x50] sm:$0xff]
        %v4341 = vld [vmem:[%s4329 + $0x58] sm:$0xff]
        %v4342 = vld [vmem:[%s4329 + $0x60] sm:$0xff]
        %v4343 = vld [vmem:[%s4329 + $0x68] sm:$0xff]
        %v4344 = vld [vmem:[%s4329 + $0x70] sm:$0xff]
        %v4345 = vld [vmem:[%s4329 + $0x78] sm:$0xff]
        %v4346 = vld [vmem:[%s4329 + $0x80] sm:$0xff]
        %v4347 = vld [vmem:[%s4329 + $0x88] sm:$0xff]
        %v4348 = vld [vmem:[%s4329 + $0x90] sm:$0xff]
        %v4349 = vld [vmem:[%s4329 + $0x98] sm:$0xff]
        %v4350 = vld [vmem:[%s4329 + $0xa0] sm:$0xff]
        %v4351 = vld [vmem:[%s4329 + $0xa8] sm:$0xff]
        %v4352 = vld [vmem:[%s4329 + $0xb0] sm:$0xff]
        %v4353 = vld [vmem:[%s4329 + $0xb8] sm:$0xff]
        %v4354 = vld [vmem:[%s4329 + $0xc0] sm:$0xff]
        %v4355 = vld [vmem:[%s4329 + $0xc8] sm:$0xff]
        %v4356 = vld [vmem:[%s4329 + $0xd0] sm:$0xff]
        %v4357 = vld [vmem:[%s4329 + $0xd8] sm:$0xff]
        %v4358 = vld [vmem:[%s4329 + $0xe0] sm:$0xff]
        %v4359 = vld [vmem:[%s4329 + $0xe8] sm:$0xff]
        %v4360 = vld [vmem:[%s4329 + $0xf0] sm:$0xff]
        %v4361 = vld [vmem:[%s4329 + $0xf8] sm:$0xff]
        %v4418 = vunpack.c.l.b16 %v4273
        %v4419 = vunpack.c.h.b16 %v4273
        %v4420 = vunpack.c.l.b16 %v4274
        %v4421 = vunpack.c.h.b16 %v4274
        %v4422 = vunpack.c.l.b16 %v4275
        %v4423 = vunpack.c.h.b16 %v4275
        %v4424 = vunpack.c.l.b16 %v4276
        %v4425 = vunpack.c.h.b16 %v4276
        %v4426 = vunpack.c.l.b16 %v4277
        %v4427 = vunpack.c.h.b16 %v4277
        %v4428 = vunpack.c.l.b16 %v4278
        %v4429 = vunpack.c.h.b16 %v4278
        %v4430 = vunpack.c.l.b16 %v4279
        %v4431 = vunpack.c.h.b16 %v4279
        %v4432 = vunpack.c.l.b16 %v4280
        %v4433 = vunpack.c.h.b16 %v4280
        %v4434 = vunpack.c.l.b16 %v4281
        %v4435 = vunpack.c.h.b16 %v4281
        %v4436 = vunpack.c.l.b16 %v4282
        %v4437 = vunpack.c.h.b16 %v4282
        %v4438 = vunpack.c.l.b16 %v4283
        %v4439 = vunpack.c.h.b16 %v4283
        %v4440 = vunpack.c.l.b16 %v4284
        %v4441 = vunpack.c.h.b16 %v4284
        %v4442 = vunpack.c.l.b16 %v4285
        %v4443 = vunpack.c.h.b16 %v4285
        %v4444 = vunpack.c.l.b16 %v4286
        %v4445 = vunpack.c.h.b16 %v4286
        %v4446 = vunpack.c.l.b16 %v4287
        %v4447 = vunpack.c.h.b16 %v4287
        %v4448 = vunpack.c.l.b16 %v4288
        %v4449 = vunpack.c.h.b16 %v4288
        %v4450 = vunpack.c.l.b16 %v4289
        %v4451 = vunpack.c.h.b16 %v4289
        %v4452 = vunpack.c.l.b16 %v4290
        %v4453 = vunpack.c.h.b16 %v4290
        %v4454 = vunpack.c.l.b16 %v4291
        %v4455 = vunpack.c.h.b16 %v4291
        %v4456 = vunpack.c.l.b16 %v4292
        %v4457 = vunpack.c.h.b16 %v4292
        %v4458 = vunpack.c.l.b16 %v4293
        %v4459 = vunpack.c.h.b16 %v4293
        %v4460 = vunpack.c.l.b16 %v4294
        %v4461 = vunpack.c.h.b16 %v4294
        %v4462 = vunpack.c.l.b16 %v4295
        %v4463 = vunpack.c.h.b16 %v4295
        %v4464 = vunpack.c.l.b16 %v4296
        %v4465 = vunpack.c.h.b16 %v4296
        %v4466 = vunpack.c.l.b16 %v4297
        %v4467 = vunpack.c.h.b16 %v4297
        %v4468 = vunpack.c.l.b16 %v4298
        %v4469 = vunpack.c.h.b16 %v4298
        %v4470 = vunpack.c.l.b16 %v4299
        %v4471 = vunpack.c.h.b16 %v4299
        %v4472 = vunpack.c.l.b16 %v4300
        %v4473 = vunpack.c.h.b16 %v4300
        %v4474 = vunpack.c.l.b16 %v4301
        %v4475 = vunpack.c.h.b16 %v4301
        %v4476 = vunpack.c.l.b16 %v4302
        %v4477 = vunpack.c.h.b16 %v4302
        %v4478 = vunpack.c.l.b16 %v4303
        %v4479 = vunpack.c.h.b16 %v4303
        %v4480 = vunpack.c.l.b16 %v4304
        %v4481 = vunpack.c.h.b16 %v4304
        %v4482 = vunpack.c.l.b16 %v4305
        %v4483 = vunpack.c.h.b16 %v4305
        %v4484 = vunpack.c.l.b16 %v4306
        %v4485 = vunpack.c.h.b16 %v4306
        %v4486 = vunpack.c.l.b16 %v4307
        %v4487 = vunpack.c.h.b16 %v4307
        %v4488 = vunpack.c.l.b16 %v4308
        %v4489 = vunpack.c.h.b16 %v4308
        %v4490 = vunpack.c.l.b16 %v4309
        %v4491 = vunpack.c.h.b16 %v4309
        %v4492 = vunpack.c.l.b16 %v4310
        %v4493 = vunpack.c.h.b16 %v4310
        %v4494 = vunpack.c.l.b16 %v4311
        %v4495 = vunpack.c.h.b16 %v4311
        %v4496 = vunpack.c.l.b16 %v4312
        %v4497 = vunpack.c.h.b16 %v4312
        %v4498 = vunpack.c.l.b16 %v4313
        %v4499 = vunpack.c.h.b16 %v4313
        %v4500 = vunpack.c.l.b16 %v4314
        %v4501 = vunpack.c.h.b16 %v4314
        %v4502 = vunpack.c.l.b16 %v4315
        %v4503 = vunpack.c.h.b16 %v4315
        %v4504 = vunpack.c.l.b16 %v4316
        %v4505 = vunpack.c.h.b16 %v4316
        %v4506 = vunpack.c.l.b16 %v4317
        %v4507 = vunpack.c.h.b16 %v4317
        %v4508 = vunpack.c.l.b16 %v4318
        %v4509 = vunpack.c.h.b16 %v4318
        %v4510 = vunpack.c.l.b16 %v4319
        %v4511 = vunpack.c.h.b16 %v4319
        %v4512 = vunpack.c.l.b16 %v4320
        %v4513 = vunpack.c.h.b16 %v4320
        %v4514 = vunpack.c.l.b16 %v4321
        %v4515 = vunpack.c.h.b16 %v4321
        %v4516 = vunpack.c.l.b16 %v4322
        %v4517 = vunpack.c.h.b16 %v4322
        %v4518 = vunpack.c.l.b16 %v4323
        %v4519 = vunpack.c.h.b16 %v4323
        %v4520 = vunpack.c.l.b16 %v4324
        %v4521 = vunpack.c.h.b16 %v4324
        %v4522 = vunpack.c.l.b16 %v4325
        %v4523 = vunpack.c.h.b16 %v4325
        %v4524 = vunpack.c.l.b16 %v4326
        %v4525 = vunpack.c.h.b16 %v4326
        %v4526 = vunpack.c.l.b16 %v4327
        %v4527 = vunpack.c.h.b16 %v4327
        %v4528 = vunpack.c.l.b16 %v4328
        %v4529 = vunpack.c.h.b16 %v4328
        %v4530 = vpack.c.b16 %v4420, %v4418
        %v4531 = vpack.c.b16 %v4421, %v4419
        %v4532 = vpack.c.b16 %v4424, %v4422
        %v4533 = vpack.c.b16 %v4425, %v4423
        %v4534 = vpack.c.b16 %v4428, %v4426
        %v4535 = vpack.c.b16 %v4429, %v4427
        %v4536 = vpack.c.b16 %v4432, %v4430
        %v4537 = vpack.c.b16 %v4433, %v4431
        %v4538 = vpack.c.b16 %v4436, %v4434
        %v4539 = vpack.c.b16 %v4437, %v4435
        %v4540 = vpack.c.b16 %v4440, %v4438
        %v4541 = vpack.c.b16 %v4441, %v4439
        %v4542 = vpack.c.b16 %v4444, %v4442
        %v4543 = vpack.c.b16 %v4445, %v4443
        %v4544 = vpack.c.b16 %v4448, %v4446
        %v4545 = vpack.c.b16 %v4449, %v4447
        %v4546 = vpack.c.b16 %v4452, %v4450
        %v4547 = vpack.c.b16 %v4453, %v4451
        %v4548 = vpack.c.b16 %v4456, %v4454
        %v4549 = vpack.c.b16 %v4457, %v4455
        %v4550 = vpack.c.b16 %v4460, %v4458
        %v4551 = vpack.c.b16 %v4461, %v4459
        %v4552 = vpack.c.b16 %v4464, %v4462
        %v4553 = vpack.c.b16 %v4465, %v4463
        %v4554 = vpack.c.b16 %v4468, %v4466
        %v4555 = vpack.c.b16 %v4469, %v4467
        %v4556 = vpack.c.b16 %v4472, %v4470
        %v4557 = vpack.c.b16 %v4473, %v4471
        %v4558 = vpack.c.b16 %v4476, %v4474
        %v4559 = vpack.c.b16 %v4477, %v4475
        %v4560 = vpack.c.b16 %v4480, %v4478
        %v4561 = vpack.c.b16 %v4481, %v4479
        %v4562 = vpack.c.b16 %v4484, %v4482
        %v4563 = vpack.c.b16 %v4485, %v4483
        %v4564 = vpack.c.b16 %v4488, %v4486
        %v4565 = vpack.c.b16 %v4489, %v4487
        %v4566 = vpack.c.b16 %v4492, %v4490
        %v4567 = vpack.c.b16 %v4493, %v4491
        %v4568 = vpack.c.b16 %v4496, %v4494
        %v4569 = vpack.c.b16 %v4497, %v4495
        %v4570 = vpack.c.b16 %v4500, %v4498
        %v4571 = vpack.c.b16 %v4501, %v4499
        %v4572 = vpack.c.b16 %v4504, %v4502
        %v4573 = vpack.c.b16 %v4505, %v4503
        %v4574 = vpack.c.b16 %v4508, %v4506
        %v4575 = vpack.c.b16 %v4509, %v4507
        %v4576 = vpack.c.b16 %v4512, %v4510
        %v4577 = vpack.c.b16 %v4513, %v4511
        %v4578 = vpack.c.b16 %v4516, %v4514
        %v4579 = vpack.c.b16 %v4517, %v4515
        %v4580 = vpack.c.b16 %v4520, %v4518
        %v4581 = vpack.c.b16 %v4521, %v4519
        %v4582 = vpack.c.b16 %v4524, %v4522
        %v4583 = vpack.c.b16 %v4525, %v4523
        %v4584 = vpack.c.b16 %v4528, %v4526
        %v4585 = vpack.c.b16 %v4529, %v4527
        %v4674 = vunpack.c.l.b16 %v4330
        %v4675 = vunpack.c.h.b16 %v4330
        %v4676 = vunpack.c.l.b16 %v4331
        %v4677 = vunpack.c.h.b16 %v4331
        %v4678 = vunpack.c.l.b16 %v4332
        %v4679 = vunpack.c.h.b16 %v4332
        %v4680 = vunpack.c.l.b16 %v4333
        %v4681 = vunpack.c.h.b16 %v4333
        %v4682 = vunpack.c.l.b16 %v4334
        %v4683 = vunpack.c.h.b16 %v4334
        %v4684 = vunpack.c.l.b16 %v4335
        %v4685 = vunpack.c.h.b16 %v4335
        %v4686 = vunpack.c.l.b16 %v4336
        %v4687 = vunpack.c.h.b16 %v4336
        %v4688 = vunpack.c.l.b16 %v4337
        %v4689 = vunpack.c.h.b16 %v4337
        %v4690 = vunpack.c.l.b16 %v4338
        %v4691 = vunpack.c.h.b16 %v4338
        %v4692 = vunpack.c.l.b16 %v4339
        %v4693 = vunpack.c.h.b16 %v4339
        %v4694 = vunpack.c.l.b16 %v4340
        %v4695 = vunpack.c.h.b16 %v4340
        %v4696 = vunpack.c.l.b16 %v4341
        %v4697 = vunpack.c.h.b16 %v4341
        %v4698 = vunpack.c.l.b16 %v4342
        %v4699 = vunpack.c.h.b16 %v4342
        %v4700 = vunpack.c.l.b16 %v4343
        %v4701 = vunpack.c.h.b16 %v4343
        %v4702 = vunpack.c.l.b16 %v4344
        %v4703 = vunpack.c.h.b16 %v4344
        %v4704 = vunpack.c.l.b16 %v4345
        %v4705 = vunpack.c.h.b16 %v4345
        %v4706 = vunpack.c.l.b16 %v4346
        %v4707 = vunpack.c.h.b16 %v4346
        %v4708 = vunpack.c.l.b16 %v4347
        %v4709 = vunpack.c.h.b16 %v4347
        %v4710 = vunpack.c.l.b16 %v4348
        %v4711 = vunpack.c.h.b16 %v4348
        %v4712 = vunpack.c.l.b16 %v4349
        %v4713 = vunpack.c.h.b16 %v4349
        %v4714 = vunpack.c.l.b16 %v4350
        %v4715 = vunpack.c.h.b16 %v4350
        %v4716 = vunpack.c.l.b16 %v4351
        %v4717 = vunpack.c.h.b16 %v4351
        %v4718 = vunpack.c.l.b16 %v4352
        %v4719 = vunpack.c.h.b16 %v4352
        %v4720 = vunpack.c.l.b16 %v4353
        %v4721 = vunpack.c.h.b16 %v4353
        %v4722 = vunpack.c.l.b16 %v4354
        %v4723 = vunpack.c.h.b16 %v4354
        %v4724 = vunpack.c.l.b16 %v4355
        %v4725 = vunpack.c.h.b16 %v4355
        %v4726 = vunpack.c.l.b16 %v4356
        %v4727 = vunpack.c.h.b16 %v4356
        %v4728 = vunpack.c.l.b16 %v4357
        %v4729 = vunpack.c.h.b16 %v4357
        %v4730 = vunpack.c.l.b16 %v4358
        %v4731 = vunpack.c.h.b16 %v4358
        %v4732 = vunpack.c.l.b16 %v4359
        %v4733 = vunpack.c.h.b16 %v4359
        %v4734 = vunpack.c.l.b16 %v4360
        %v4735 = vunpack.c.h.b16 %v4360
        %v4736 = vunpack.c.l.b16 %v4361
        %v4737 = vunpack.c.h.b16 %v4361
        %v4738 = vpack.c.b16 %v4676, %v4674
        %v4739 = vpack.c.b16 %v4677, %v4675
        %v4740 = vpack.c.b16 %v4680, %v4678
        %v4741 = vpack.c.b16 %v4681, %v4679
        %v4742 = vpack.c.b16 %v4684, %v4682
        %v4743 = vpack.c.b16 %v4685, %v4683
        %v4744 = vpack.c.b16 %v4688, %v4686
        %v4745 = vpack.c.b16 %v4689, %v4687
        %v4746 = vpack.c.b16 %v4692, %v4690
        %v4747 = vpack.c.b16 %v4693, %v4691
        %v4748 = vpack.c.b16 %v4696, %v4694
        %v4749 = vpack.c.b16 %v4697, %v4695
        %v4750 = vpack.c.b16 %v4700, %v4698
        %v4751 = vpack.c.b16 %v4701, %v4699
        %v4752 = vpack.c.b16 %v4704, %v4702
        %v4753 = vpack.c.b16 %v4705, %v4703
        %v4754 = vpack.c.b16 %v4708, %v4706
        %v4755 = vpack.c.b16 %v4709, %v4707
        %v4756 = vpack.c.b16 %v4712, %v4710
        %v4757 = vpack.c.b16 %v4713, %v4711
        %v4758 = vpack.c.b16 %v4716, %v4714
        %v4759 = vpack.c.b16 %v4717, %v4715
        %v4760 = vpack.c.b16 %v4720, %v4718
        %v4761 = vpack.c.b16 %v4721, %v4719
        %v4762 = vpack.c.b16 %v4724, %v4722
        %v4763 = vpack.c.b16 %v4725, %v4723
        %v4764 = vpack.c.b16 %v4728, %v4726
        %v4765 = vpack.c.b16 %v4729, %v4727
        %v4766 = vpack.c.b16 %v4732, %v4730
        %v4767 = vpack.c.b16 %v4733, %v4731
        %v4768 = vpack.c.b16 %v4736, %v4734
        %v4769 = vpack.c.b16 %v4737, %v4735
        %4802 = vmatprep.subr.bf16.mxu0 %v4739
        %4803 = vmatpush1.bf16.msra.mxu0 %v4738
        %4804 = vmatprep.subr.bf16.mxu0 %v4741
        %4805 = vmatpush1.bf16.msra.mxu0 %v4740
        %4806 = vmatprep.subr.bf16.mxu0 %v4743
        %4807 = vmatpush1.bf16.msra.mxu0 %v4742
        %4808 = vmatprep.subr.bf16.mxu0 %v4745
        %4809 = vmatpush1.bf16.msra.mxu0 %v4744
        %4810 = vmatprep.subr.bf16.mxu0 %v4747
        %4811 = vmatpush1.bf16.msra.mxu0 %v4746
        %4812 = vmatprep.subr.bf16.mxu0 %v4749
        %4813 = vmatpush1.bf16.msra.mxu0 %v4748
        %4814 = vmatprep.subr.bf16.mxu0 %v4751
        %4815 = vmatpush1.bf16.msra.mxu0 %v4750
        %4816 = vmatprep.subr.bf16.mxu0 %v4753
        %4817 = vmatpush1.bf16.msra.mxu0 %v4752
        %4818 = vmatprep.subr.bf16.mxu0 %v4755
        %4819 = vmatpush1.bf16.msra.mxu0 %v4754
        %4820 = vmatprep.subr.bf16.mxu0 %v4757
        %4821 = vmatpush1.bf16.msra.mxu0 %v4756
        %4822 = vmatprep.subr.bf16.mxu0 %v4759
        %4823 = vmatpush1.bf16.msra.mxu0 %v4758
        %4824 = vmatprep.subr.bf16.mxu0 %v4761
        %4825 = vmatpush1.bf16.msra.mxu0 %v4760
        %4826 = vmatprep.subr.bf16.mxu0 %v4763
        %4827 = vmatpush1.bf16.msra.mxu0 %v4762
        %4828 = vmatprep.subr.bf16.mxu0 %v4765
        %4829 = vmatpush1.bf16.msra.mxu0 %v4764
        %4830 = vmatprep.subr.bf16.mxu0 %v4767
        %4831 = vmatpush1.bf16.msra.mxu0 %v4766
        %4832 = vmatprep.subr.bf16.mxu0 %v4769
        %4833 = vmatpush1.bf16.msra.mxu0 %v4768
        %4834 = vmatprep.mubr.bf16.mxu0 %v4531
        %4835 = vmatmul.mubr.bf16.gmra.mrb[0].mxu0 %v4530
        %v4836 = vpop.f32.mrb[0].mxu0
        %v4837 = vadd.f32 0.0, %v4836
        %v4838 = vpop.f32.mrb[0].mxu0
        %v4839 = vadd.f32 0.0, %v4838
        %v4840 = vpop.f32.mrb[0].mxu0
        %v4841 = vadd.f32 0.0, %v4840
        %v4842 = vpop.f32.mrb[0].mxu0
        %v4843 = vadd.f32 0.0, %v4842
        %4844 = vmatprep.mubr.bf16.mxu0 %v4533
        %4845 = vmatmul.mubr.bf16.gmra.mrb[0].mxu0 %v4532
        %v4846 = vpop.f32.mrb[0].mxu0
        %v4847 = vadd.f32 0.0, %v4846
        %v4848 = vpop.f32.mrb[0].mxu0
        %v4849 = vadd.f32 0.0, %v4848
        %v4850 = vpop.f32.mrb[0].mxu0
        %v4851 = vadd.f32 0.0, %v4850
        %v4852 = vpop.f32.mrb[0].mxu0
        %v4853 = vadd.f32 0.0, %v4852
        %4854 = vmatprep.mubr.bf16.mxu0 %v4535
        %4855 = vmatmul.mubr.bf16.gmra.mrb[0].mxu0 %v4534
        %v4856 = vpop.f32.mrb[0].mxu0
        %v4857 = vadd.f32 0.0, %v4856
        %v4858 = vpop.f32.mrb[0].mxu0
        %v4859 = vadd.f32 0.0, %v4858
        %v4860 = vpop.f32.mrb[0].mxu0
        %v4861 = vadd.f32 0.0, %v4860
        %v4862 = vpop.f32.mrb[0].mxu0
        %v4863 = vadd.f32 0.0, %v4862
        %4864 = vmatprep.mubr.bf16.mxu0 %v4537
        %4865 = vmatmul.mubr.bf16.gmra.mrb[0].mxu0 %v4536
        %v4866 = vpop.f32.mrb[0].mxu0
        %v4867 = vadd.f32 0.0, %v4866
        %v4868 = vpop.f32.mrb[0].mxu0
        %v4869 = vadd.f32 0.0, %v4868
        %v4870 = vpop.f32.mrb[0].mxu0
        %v4871 = vadd.f32 0.0, %v4870
        %v4872 = vpop.f32.mrb[0].mxu0
        %v4873 = vadd.f32 0.0, %v4872
        %4874 = vmatprep.mubr.bf16.mxu0 %v4539
        %4875 = vmatmul.mubr.bf16.gmra.mrb[0].mxu0 %v4538
        %v4876 = vpop.f32.mrb[0].mxu0
        %v4877 = vadd.f32 0.0, %v4876
        %v4878 = vpop.f32.mrb[0].mxu0
        %v4879 = vadd.f32 0.0, %v4878
        %v4880 = vpop.f32.mrb[0].mxu0
        %v4881 = vadd.f32 0.0, %v4880
        %v4882 = vpop.f32.mrb[0].mxu0
        %v4883 = vadd.f32 0.0, %v4882
        %4884 = vmatprep.mubr.bf16.mxu0 %v4541
        %4885 = vmatmul.mubr.bf16.gmra.mrb[0].mxu0 %v4540
        %v4886 = vpop.f32.mrb[0].mxu0
        %v4887 = vadd.f32 0.0, %v4886
        %v4888 = vpop.f32.mrb[0].mxu0
        %v4889 = vadd.f32 0.0, %v4888
        %v4890 = vpop.f32.mrb[0].mxu0
        %v4891 = vadd.f32 0.0, %v4890
        %v4892 = vpop.f32.mrb[0].mxu0
        %v4893 = vadd.f32 0.0, %v4892
        %4894 = vmatprep.mubr.bf16.mxu0 %v4543
        %4895 = vmatmul.mubr.bf16.gmra.mrb[0].mxu0 %v4542
        %v4896 = vpop.f32.mrb[0].mxu0
        %v4897 = vadd.f32 0.0, %v4896
        %v4898 = vpop.f32.mrb[0].mxu0
        %v4899 = vadd.f32 0.0, %v4898
        %v4900 = vpop.f32.mrb[0].mxu0
        %v4901 = vadd.f32 0.0, %v4900
        %v4902 = vpop.f32.mrb[0].mxu0
        %v4903 = vadd.f32 0.0, %v4902
        %4904 = vmatprep.mubr.bf16.mxu0 %v4545
        %4905 = vmatmul.mubr.bf16.gmra.mrb[0].mxu0 %v4544
        %v4906 = vpop.f32.mrb[0].mxu0
        %v4907 = vadd.f32 0.0, %v4906
        %v4908 = vpop.f32.mrb[0].mxu0
        %v4909 = vadd.f32 0.0, %v4908
        %v4910 = vpop.f32.mrb[0].mxu0
        %v4911 = vadd.f32 0.0, %v4910
        %v4912 = vpop.f32.mrb[0].mxu0
        %v4913 = vadd.f32 0.0, %v4912
        %4914 = vmatprep.mubr.bf16.mxu0 %v4547
        %4915 = vmatmul.mubr.bf16.gmra.mrb[0].mxu0 %v4546
        %v4916 = vpop.f32.mrb[0].mxu0
        %v4917 = vadd.f32 0.0, %v4916
        %v4918 = vpop.f32.mrb[0].mxu0
        %v4919 = vadd.f32 0.0, %v4918
        %v4920 = vpop.f32.mrb[0].mxu0
        %v4921 = vadd.f32 0.0, %v4920
        %v4922 = vpop.f32.mrb[0].mxu0
        %v4923 = vadd.f32 0.0, %v4922
        %4924 = vmatprep.mubr.bf16.mxu0 %v4549
        %4925 = vmatmul.mubr.bf16.gmra.mrb[0].mxu0 %v4548
        %v4926 = vpop.f32.mrb[0].mxu0
        %v4927 = vadd.f32 0.0, %v4926
        %v4928 = vpop.f32.mrb[0].mxu0
        %v4929 = vadd.f32 0.0, %v4928
        %v4930 = vpop.f32.mrb[0].mxu0
        %v4931 = vadd.f32 0.0, %v4930
        %v4932 = vpop.f32.mrb[0].mxu0
        %v4933 = vadd.f32 0.0, %v4932
        %4934 = vmatprep.mubr.bf16.mxu0 %v4551
        %4935 = vmatmul.mubr.bf16.gmra.mrb[0].mxu0 %v4550
        %v4936 = vpop.f32.mrb[0].mxu0
        %v4937 = vadd.f32 0.0, %v4936
        %v4938 = vpop.f32.mrb[0].mxu0
        %v4939 = vadd.f32 0.0, %v4938
        %v4940 = vpop.f32.mrb[0].mxu0
        %v4941 = vadd.f32 0.0, %v4940
        %v4942 = vpop.f32.mrb[0].mxu0
        %v4943 = vadd.f32 0.0, %v4942
        %4944 = vmatprep.mubr.bf16.mxu0 %v4553
        %4945 = vmatmul.mubr.bf16.gmra.mrb[0].mxu0 %v4552
        %v4946 = vpop.f32.mrb[0].mxu0
        %v4947 = vadd.f32 0.0, %v4946
        %v4948 = vpop.f32.mrb[0].mxu0
        %v4949 = vadd.f32 0.0, %v4948
        %v4950 = vpop.f32.mrb[0].mxu0
        %v4951 = vadd.f32 0.0, %v4950
        %v4952 = vpop.f32.mrb[0].mxu0
        %v4953 = vadd.f32 0.0, %v4952
        %4954 = vmatprep.mubr.bf16.mxu0 %v4555
        %4955 = vmatmul.mubr.bf16.gmra.mrb[0].mxu0 %v4554
        %v4956 = vpop.f32.mrb[0].mxu0
        %v4957 = vadd.f32 0.0, %v4956
        %v4958 = vpop.f32.mrb[0].mxu0
        %v4959 = vadd.f32 0.0, %v4958
        %v4960 = vpop.f32.mrb[0].mxu0
        %v4961 = vadd.f32 0.0, %v4960
        %v4962 = vpop.f32.mrb[0].mxu0
        %v4963 = vadd.f32 0.0, %v4962
        %4964 = vmatprep.mubr.bf16.mxu0 %v4557
        %4965 = vmatmul.mubr.bf16.gmra.mrb[0].mxu0 %v4556
        %v4966 = vpop.f32.mrb[0].mxu0
        %v4967 = vadd.f32 0.0, %v4966
        %v4968 = vpop.f32.mrb[0].mxu0
        %v4969 = vadd.f32 0.0, %v4968
        %v4970 = vpop.f32.mrb[0].mxu0
        %v4971 = vadd.f32 0.0, %v4970
        %v4972 = vpop.f32.mrb[0].mxu0
        %v4973 = vadd.f32 0.0, %v4972
        %4974 = vmatprep.mubr.bf16.mxu0 %v4559
        %4975 = vmatmul.mubr.bf16.gmra.mrb[0].mxu0 %v4558
        %v4976 = vpop.f32.mrb[0].mxu0
        %v4977 = vadd.f32 0.0, %v4976
        %v4978 = vpop.f32.mrb[0].mxu0
        %v4979 = vadd.f32 0.0, %v4978
        %v4980 = vpop.f32.mrb[0].mxu0
        %v4981 = vadd.f32 0.0, %v4980
        %v4982 = vpop.f32.mrb[0].mxu0
        %v4983 = vadd.f32 0.0, %v4982
        %4984 = vmatprep.mubr.bf16.mxu0 %v4561
        %4985 = vmatmul.mubr.bf16.gmra.mrb[0].mxu0 %v4560
        %v4986 = vpop.f32.mrb[0].mxu0
        %v4987 = vadd.f32 0.0, %v4986
        %v4988 = vpop.f32.mrb[0].mxu0
        %v4989 = vadd.f32 0.0, %v4988
        %v4990 = vpop.f32.mrb[0].mxu0
        %v4991 = vadd.f32 0.0, %v4990
        %v4992 = vpop.f32.mrb[0].mxu0
        %v4993 = vadd.f32 0.0, %v4992
        %4994 = vmatprep.mubr.bf16.mxu0 %v4563
        %4995 = vmatmul.mubr.bf16.gmra.mrb[0].mxu0 %v4562
        %v4996 = vpop.f32.mrb[0].mxu0
        %v4997 = vadd.f32 0.0, %v4996
        %v4998 = vpop.f32.mrb[0].mxu0
        %v4999 = vadd.f32 0.0, %v4998
        %v5000 = vpop.f32.mrb[0].mxu0
        %v5001 = vadd.f32 0.0, %v5000
        %v5002 = vpop.f32.mrb[0].mxu0
        %v5003 = vadd.f32 0.0, %v5002
        %5004 = vmatprep.mubr.bf16.mxu0 %v4565
        %5005 = vmatmul.mubr.bf16.gmra.mrb[0].mxu0 %v4564
        %v5006 = vpop.f32.mrb[0].mxu0
        %v5007 = vadd.f32 0.0, %v5006
        %v5008 = vpop.f32.mrb[0].mxu0
        %v5009 = vadd.f32 0.0, %v5008
        %v5010 = vpop.f32.mrb[0].mxu0
        %v5011 = vadd.f32 0.0, %v5010
        %v5012 = vpop.f32.mrb[0].mxu0
        %v5013 = vadd.f32 0.0, %v5012
        %5014 = vmatprep.mubr.bf16.mxu0 %v4567
        %5015 = vmatmul.mubr.bf16.gmra.mrb[0].mxu0 %v4566
        %v5016 = vpop.f32.mrb[0].mxu0
        %v5017 = vadd.f32 0.0, %v5016
        %v5018 = vpop.f32.mrb[0].mxu0
        %v5019 = vadd.f32 0.0, %v5018
        %v5020 = vpop.f32.mrb[0].mxu0
        %v5021 = vadd.f32 0.0, %v5020
        %v5022 = vpop.f32.mrb[0].mxu0
        %v5023 = vadd.f32 0.0, %v5022
        %5024 = vmatprep.mubr.bf16.mxu0 %v4569
        %5025 = vmatmul.mubr.bf16.gmra.mrb[0].mxu0 %v4568
        %v5026 = vpop.f32.mrb[0].mxu0
        %v5027 = vadd.f32 0.0, %v5026
        %v5028 = vpop.f32.mrb[0].mxu0
        %v5029 = vadd.f32 0.0, %v5028
        %v5030 = vpop.f32.mrb[0].mxu0
        %v5031 = vadd.f32 0.0, %v5030
        %v5032 = vpop.f32.mrb[0].mxu0
        %v5033 = vadd.f32 0.0, %v5032
        %5034 = vmatprep.mubr.bf16.mxu0 %v4571
        %5035 = vmatmul.mubr.bf16.gmra.mrb[0].mxu0 %v4570
        %v5036 = vpop.f32.mrb[0].mxu0
        %v5037 = vadd.f32 0.0, %v5036
        %v5038 = vpop.f32.mrb[0].mxu0
        %v5039 = vadd.f32 0.0, %v5038
        %v5040 = vpop.f32.mrb[0].mxu0
        %v5041 = vadd.f32 0.0, %v5040
        %v5042 = vpop.f32.mrb[0].mxu0
        %v5043 = vadd.f32 0.0, %v5042
        %5044 = vmatprep.mubr.bf16.mxu0 %v4573
        %5045 = vmatmul.mubr.bf16.gmra.mrb[0].mxu0 %v4572
        %v5046 = vpop.f32.mrb[0].mxu0
        %v5047 = vadd.f32 0.0, %v5046
        %v5048 = vpop.f32.mrb[0].mxu0
        %v5049 = vadd.f32 0.0, %v5048
        %v5050 = vpop.f32.mrb[0].mxu0
        %v5051 = vadd.f32 0.0, %v5050
        %v5052 = vpop.f32.mrb[0].mxu0
        %v5053 = vadd.f32 0.0, %v5052
        %5054 = vmatprep.mubr.bf16.mxu0 %v4575
        %5055 = vmatmul.mubr.bf16.gmra.mrb[0].mxu0 %v4574
        %v5056 = vpop.f32.mrb[0].mxu0
        %v5057 = vadd.f32 0.0, %v5056
        %v5058 = vpop.f32.mrb[0].mxu0
        %v5059 = vadd.f32 0.0, %v5058
        %v5060 = vpop.f32.mrb[0].mxu0
        %v5061 = vadd.f32 0.0, %v5060
        %v5062 = vpop.f32.mrb[0].mxu0
        %v5063 = vadd.f32 0.0, %v5062
        %5064 = vmatprep.mubr.bf16.mxu0 %v4577
        %5065 = vmatmul.mubr.bf16.gmra.mrb[0].mxu0 %v4576
        %v5066 = vpop.f32.mrb[0].mxu0
        %v5067 = vadd.f32 0.0, %v5066
        %v5068 = vpop.f32.mrb[0].mxu0
        %v5069 = vadd.f32 0.0, %v5068
        %v5070 = vpop.f32.mrb[0].mxu0
        %v5071 = vadd.f32 0.0, %v5070
        %v5072 = vpop.f32.mrb[0].mxu0
        %v5073 = vadd.f32 0.0, %v5072
        %5074 = vmatprep.mubr.bf16.mxu0 %v4579
        %5075 = vmatmul.mubr.bf16.gmra.mrb[0].mxu0 %v4578
        %v5076 = vpop.f32.mrb[0].mxu0
        %v5077 = vadd.f32 0.0, %v5076
        %v5078 = vpop.f32.mrb[0].mxu0
        %v5079 = vadd.f32 0.0, %v5078
        %v5080 = vpop.f32.mrb[0].mxu0
        %v5081 = vadd.f32 0.0, %v5080
        %v5082 = vpop.f32.mrb[0].mxu0
        %v5083 = vadd.f32 0.0, %v5082
        %5084 = vmatprep.mubr.bf16.mxu0 %v4581
        %5085 = vmatmul.mubr.bf16.gmra.mrb[0].mxu0 %v4580
        %v5086 = vpop.f32.mrb[0].mxu0
        %v5087 = vadd.f32 0.0, %v5086
        %v5088 = vpop.f32.mrb[0].mxu0
        %v5089 = vadd.f32 0.0, %v5088
        %v5090 = vpop.f32.mrb[0].mxu0
        %v5091 = vadd.f32 0.0, %v5090
        %v5092 = vpop.f32.mrb[0].mxu0
        %v5093 = vadd.f32 0.0, %v5092
        %5094 = vmatprep.mubr.bf16.mxu0 %v4583
        %5095 = vmatmul.mubr.bf16.gmra.mrb[0].mxu0 %v4582
        %v5096 = vpop.f32.mrb[0].mxu0
        %v5097 = vadd.f32 0.0, %v5096
        %v5098 = vpop.f32.mrb[0].mxu0
        %v5099 = vadd.f32 0.0, %v5098
        %v5100 = vpop.f32.mrb[0].mxu0
        %v5101 = vadd.f32 0.0, %v5100
        %v5102 = vpop.f32.mrb[0].mxu0
        %v5103 = vadd.f32 0.0, %v5102
        %5104 = vmatprep.mubr.bf16.mxu0 %v4585
        %5105 = vmatmul.mubr.bf16.gmra.mrb[0].mxu0 %v4584
        %v5106 = vpop.f32.mrb[0].mxu0
        %v5107 = vadd.f32 0.0, %v5106
        %v5108 = vpop.f32.mrb[0].mxu0
        %v5109 = vadd.f32 0.0, %v5108
        %v5110 = vpop.f32.mrb[0].mxu0
        %v5111 = vadd.f32 0.0, %v5110
        %v5112 = vpop.f32.mrb[0].mxu0
        %v5113 = vadd.f32 0.0, %v5112
        %5114 = vdwg.mxu0
        %v5115 = vadd.f32 %v4160, %v4837
        %v5116 = vadd.f32 %v4161, %v4839
        %v5117 = vadd.f32 %v4162, %v4841
        %v5118 = vadd.f32 %v4163, %v4843
        %v5119 = vadd.f32 %v4164, %v4847
        %v5120 = vadd.f32 %v4165, %v4849
        %v5121 = vadd.f32 %v4166, %v4851
        %v5122 = vadd.f32 %v4167, %v4853
        %v5123 = vadd.f32 %v4168, %v4857
        %v5124 = vadd.f32 %v4169, %v4859
        %v5125 = vadd.f32 %v4170, %v4861
        %v5126 = vadd.f32 %v4171, %v4863
        %v5127 = vadd.f32 %v4172, %v4867
        %v5128 = vadd.f32 %v4173, %v4869
        %v5129 = vadd.f32 %v4174, %v4871
        %v5130 = vadd.f32 %v4175, %v4873
        %v5131 = vadd.f32 %v4176, %v4877
        %v5132 = vadd.f32 %v4177, %v4879
        %v5133 = vadd.f32 %v4178, %v4881
        %v5134 = vadd.f32 %v4179, %v4883
        %v5135 = vadd.f32 %v4180, %v4887
        %v5136 = vadd.f32 %v4181, %v4889
        %v5137 = vadd.f32 %v4182, %v4891
        %v5138 = vadd.f32 %v4183, %v4893
        %v5139 = vadd.f32 %v4184, %v4897
        %v5140 = vadd.f32 %v4185, %v4899
        %v5141 = vadd.f32 %v4186, %v4901
        %v5142 = vadd.f32 %v4187, %v4903
        %v5143 = vadd.f32 %v4188, %v4907
        %v5144 = vadd.f32 %v4189, %v4909
        %v5145 = vadd.f32 %v4190, %v4911
        %v5146 = vadd.f32 %v4191, %v4913
        %v5147 = vadd.f32 %v4192, %v4917
        %v5148 = vadd.f32 %v4193, %v4919
        %v5149 = vadd.f32 %v4194, %v4921
        %v5150 = vadd.f32 %v4195, %v4923
        %v5151 = vadd.f32 %v4196, %v4927
        %v5152 = vadd.f32 %v4197, %v4929
        %v5153 = vadd.f32 %v4198, %v4931
        %v5154 = vadd.f32 %v4199, %v4933
        %v5155 = vadd.f32 %v4200, %v4937
        %v5156 = vadd.f32 %v4201, %v4939
        %v5157 = vadd.f32 %v4202, %v4941
        %v5158 = vadd.f32 %v4203, %v4943
        %v5159 = vadd.f32 %v4204, %v4947
        %v5160 = vadd.f32 %v4205, %v4949
        %v5161 = vadd.f32 %v4206, %v4951
        %v5162 = vadd.f32 %v4207, %v4953
        %v5163 = vadd.f32 %v4208, %v4957
        %v5164 = vadd.f32 %v4209, %v4959
        %v5165 = vadd.f32 %v4210, %v4961
        %v5166 = vadd.f32 %v4211, %v4963
        %v5167 = vadd.f32 %v4212, %v4967
        %v5168 = vadd.f32 %v4213, %v4969
        %v5169 = vadd.f32 %v4214, %v4971
        %v5170 = vadd.f32 %v4215, %v4973
        %v5171 = vadd.f32 %v4216, %v4977
        %v5172 = vadd.f32 %v4217, %v4979
        %v5173 = vadd.f32 %v4218, %v4981
        %v5174 = vadd.f32 %v4219, %v4983
        %v5175 = vadd.f32 %v4220, %v4987
        %v5176 = vadd.f32 %v4221, %v4989
        %v5177 = vadd.f32 %v4222, %v4991
        %v5178 = vadd.f32 %v4223, %v4993
        %v5179 = vadd.f32 %v4224, %v4997
        %v5180 = vadd.f32 %v4225, %v4999
        %v5181 = vadd.f32 %v4226, %v5001
        %v5182 = vadd.f32 %v4227, %v5003
        %v5183 = vadd.f32 %v4228, %v5007
        %v5184 = vadd.f32 %v4229, %v5009
        %v5185 = vadd.f32 %v4230, %v5011
        %v5186 = vadd.f32 %v4231, %v5013
        %v5187 = vadd.f32 %v4232, %v5017
        %v5188 = vadd.f32 %v4233, %v5019
        %v5189 = vadd.f32 %v4234, %v5021
        %v5190 = vadd.f32 %v4235, %v5023
        %v5191 = vadd.f32 %v4236, %v5027
        %v5192 = vadd.f32 %v4237, %v5029
        %v5193 = vadd.f32 %v4238, %v5031
        %v5194 = vadd.f32 %v4239, %v5033
        %v5195 = vadd.f32 %v4240, %v5037
        %v5196 = vadd.f32 %v4241, %v5039
        %v5197 = vadd.f32 %v4242, %v5041
        %v5198 = vadd.f32 %v4243, %v5043
        %v5199 = vadd.f32 %v4244, %v5047
        %v5200 = vadd.f32 %v4245, %v5049
        %v5201 = vadd.f32 %v4246, %v5051
        %v5202 = vadd.f32 %v4247, %v5053
        %v5203 = vadd.f32 %v4248, %v5057
        %v5204 = vadd.f32 %v4249, %v5059
        %v5205 = vadd.f32 %v4250, %v5061
        %v5206 = vadd.f32 %v4251, %v5063
        %v5207 = vadd.f32 %v4252, %v5067
        %v5208 = vadd.f32 %v4253, %v5069
        %v5209 = vadd.f32 %v4254, %v5071
        %v5210 = vadd.f32 %v4255, %v5073
        %v5211 = vadd.f32 %v4256, %v5077
        %v5212 = vadd.f32 %v4257, %v5079
        %v5213 = vadd.f32 %v4258, %v5081
        %v5214 = vadd.f32 %v4259, %v5083
        %v5215 = vadd.f32 %v4260, %v5087
        %v5216 = vadd.f32 %v4261, %v5089
        %v5217 = vadd.f32 %v4262, %v5091
        %v5218 = vadd.f32 %v4263, %v5093
        %v5219 = vadd.f32 %v4264, %v5097
        %v5220 = vadd.f32 %v4265, %v5099
        %v5221 = vadd.f32 %v4266, %v5101
        %v5222 = vadd.f32 %v4267, %v5103
        %v5223 = vadd.f32 %v4268, %v5107
        %v5224 = vadd.f32 %v4269, %v5109
        %v5225 = vadd.f32 %v4270, %v5111
        %v5226 = vadd.f32 %v4271, %v5113
        %v5227 = vmax.f32 %v5115, %v5116
        %v5228 = vmax.f32 %v5117, %v5118
        %v5229 = vmax.f32 %v5119, %v5120
        %v5230 = vmax.f32 %v5121, %v5122
        %v5231 = vmax.f32 %v5123, %v5124
        %v5232 = vmax.f32 %v5125, %v5126
        %v5233 = vmax.f32 %v5127, %v5128
        %v5234 = vmax.f32 %v5129, %v5130
        %v5235 = vmax.f32 %v5131, %v5132
        %v5236 = vmax.f32 %v5133, %v5134
        %v5237 = vmax.f32 %v5135, %v5136
        %v5238 = vmax.f32 %v5137, %v5138
        %v5239 = vmax.f32 %v5139, %v5140
        %v5240 = vmax.f32 %v5141, %v5142
        %v5241 = vmax.f32 %v5143, %v5144
        %v5242 = vmax.f32 %v5145, %v5146
        %v5243 = vmax.f32 %v5147, %v5148
        %v5244 = vmax.f32 %v5149, %v5150
        %v5245 = vmax.f32 %v5151, %v5152
        %v5246 = vmax.f32 %v5153, %v5154
        %v5247 = vmax.f32 %v5155, %v5156
        %v5248 = vmax.f32 %v5157, %v5158
        %v5249 = vmax.f32 %v5159, %v5160
        %v5250 = vmax.f32 %v5161, %v5162
        %v5251 = vmax.f32 %v5163, %v5164
        %v5252 = vmax.f32 %v5165, %v5166
        %v5253 = vmax.f32 %v5167, %v5168
        %v5254 = vmax.f32 %v5169, %v5170
        %v5255 = vmax.f32 %v5171, %v5172
        %v5256 = vmax.f32 %v5173, %v5174
        %v5257 = vmax.f32 %v5175, %v5176
        %v5258 = vmax.f32 %v5177, %v5178
        %v5259 = vmax.f32 %v5179, %v5180
        %v5260 = vmax.f32 %v5181, %v5182
        %v5261 = vmax.f32 %v5183, %v5184
        %v5262 = vmax.f32 %v5185, %v5186
        %v5263 = vmax.f32 %v5187, %v5188
        %v5264 = vmax.f32 %v5189, %v5190
        %v5265 = vmax.f32 %v5191, %v5192
        %v5266 = vmax.f32 %v5193, %v5194
        %v5267 = vmax.f32 %v5195, %v5196
        %v5268 = vmax.f32 %v5197, %v5198
        %v5269 = vmax.f32 %v5199, %v5200
        %v5270 = vmax.f32 %v5201, %v5202
        %v5271 = vmax.f32 %v5203, %v5204
        %v5272 = vmax.f32 %v5205, %v5206
        %v5273 = vmax.f32 %v5207, %v5208
        %v5274 = vmax.f32 %v5209, %v5210
        %v5275 = vmax.f32 %v5211, %v5212
        %v5276 = vmax.f32 %v5213, %v5214
        %v5277 = vmax.f32 %v5215, %v5216
        %v5278 = vmax.f32 %v5217, %v5218
        %v5279 = vmax.f32 %v5219, %v5220
        %v5280 = vmax.f32 %v5221, %v5222
        %v5281 = vmax.f32 %v5223, %v5224
        %v5282 = vmax.f32 %v5225, %v5226
        %v5283 = vmax.f32 %v5227, %v5229
        %v5284 = vmax.f32 %v5228, %v5230
        %v5285 = vmax.f32 %v5231, %v5233
        %v5286 = vmax.f32 %v5232, %v5234
        %v5287 = vmax.f32 %v5235, %v5237
        %v5288 = vmax.f32 %v5236, %v5238
        %v5289 = vmax.f32 %v5239, %v5241
        %v5290 = vmax.f32 %v5240, %v5242
        %v5291 = vmax.f32 %v5243, %v5245
        %v5292 = vmax.f32 %v5244, %v5246
        %v5293 = vmax.f32 %v5247, %v5249
        %v5294 = vmax.f32 %v5248, %v5250
        %v5295 = vmax.f32 %v5251, %v5253
        %v5296 = vmax.f32 %v5252, %v5254
        %v5297 = vmax.f32 %v5255, %v5257
        %v5298 = vmax.f32 %v5256, %v5258
        %v5299 = vmax.f32 %v5259, %v5261
        %v5300 = vmax.f32 %v5260, %v5262
        %v5301 = vmax.f32 %v5263, %v5265
        %v5302 = vmax.f32 %v5264, %v5266
        %v5303 = vmax.f32 %v5267, %v5269
        %v5304 = vmax.f32 %v5268, %v5270
        %v5305 = vmax.f32 %v5271, %v5273
        %v5306 = vmax.f32 %v5272, %v5274
        %v5307 = vmax.f32 %v5275, %v5277
        %v5308 = vmax.f32 %v5276, %v5278
        %v5309 = vmax.f32 %v5279, %v5281
        %v5310 = vmax.f32 %v5280, %v5282
        %v5311 = vld [vmem:[%s2] sm:$0x1]
        %v5313 = vlaneseq
        %v5314 = vshrl.u32 %v5313, 7
        %v5315 = vsub.s32 0, %v5314
        %v5316 = vrot.slane %v5311, %v5315
        %v5318 = vadd.f32 %v5283, %v5316
        %v5319 = vadd.f32 %v5284, %v5316
        %v5320 = vadd.f32 %v5285, %v5316
        %v5321 = vadd.f32 %v5286, %v5316
        %v5322 = vadd.f32 %v5287, %v5316
        %v5323 = vadd.f32 %v5288, %v5316
        %v5324 = vadd.f32 %v5289, %v5316
        %v5325 = vadd.f32 %v5290, %v5316
        %v5326 = vadd.f32 %v5291, %v5316
        %v5327 = vadd.f32 %v5292, %v5316
        %v5328 = vadd.f32 %v5293, %v5316
        %v5329 = vadd.f32 %v5294, %v5316
        %v5330 = vadd.f32 %v5295, %v5316
        %v5331 = vadd.f32 %v5296, %v5316
        %v5332 = vadd.f32 %v5297, %v5316
        %v5333 = vadd.f32 %v5298, %v5316
        %v5334 = vadd.f32 %v5299, %v5316
        %v5335 = vadd.f32 %v5300, %v5316
        %v5336 = vadd.f32 %v5301, %v5316
        %v5337 = vadd.f32 %v5302, %v5316
        %v5338 = vadd.f32 %v5303, %v5316
        %v5339 = vadd.f32 %v5304, %v5316
        %v5340 = vadd.f32 %v5305, %v5316
        %v5341 = vadd.f32 %v5306, %v5316
        %v5342 = vadd.f32 %v5307, %v5316
        %v5343 = vadd.f32 %v5308, %v5316
        %v5344 = vadd.f32 %v5309, %v5316
        %v5345 = vadd.f32 %v5310, %v5316
        %v5346 = vmax.f32 %v5318, 0.0
        %v5347 = vmax.f32 %v5319, 0.0
        %v5348 = vmax.f32 %v5320, 0.0
        %v5349 = vmax.f32 %v5321, 0.0
        %v5350 = vmax.f32 %v5322, 0.0
        %v5351 = vmax.f32 %v5323, 0.0
        %v5352 = vmax.f32 %v5324, 0.0
        %v5353 = vmax.f32 %v5325, 0.0
        %v5354 = vmax.f32 %v5326, 0.0
        %v5355 = vmax.f32 %v5327, 0.0
        %v5356 = vmax.f32 %v5328, 0.0
        %v5357 = vmax.f32 %v5329, 0.0
        %v5358 = vmax.f32 %v5330, 0.0
        %v5359 = vmax.f32 %v5331, 0.0
        %v5360 = vmax.f32 %v5332, 0.0
        %v5361 = vmax.f32 %v5333, 0.0
        %v5362 = vmax.f32 %v5334, 0.0
        %v5363 = vmax.f32 %v5335, 0.0
        %v5364 = vmax.f32 %v5336, 0.0
        %v5365 = vmax.f32 %v5337, 0.0
        %v5366 = vmax.f32 %v5338, 0.0
        %v5367 = vmax.f32 %v5339, 0.0
        %v5368 = vmax.f32 %v5340, 0.0
        %v5369 = vmax.f32 %v5341, 0.0
        %v5370 = vmax.f32 %v5342, 0.0
        %v5371 = vmax.f32 %v5343, 0.0
        %v5372 = vmax.f32 %v5344, 0.0
        %v5373 = vmax.f32 %v5345, 0.0
        %v5374 = vpack.c.bf16 %v5347, %v5346
        %v5375 = vpack.c.bf16 %v5349, %v5348
        %v5376 = vpack.c.bf16 %v5351, %v5350
        %v5377 = vpack.c.bf16 %v5353, %v5352
        %v5378 = vpack.c.bf16 %v5355, %v5354
        %v5379 = vpack.c.bf16 %v5357, %v5356
        %v5380 = vpack.c.bf16 %v5359, %v5358
        %v5381 = vpack.c.bf16 %v5361, %v5360
        %v5382 = vpack.c.bf16 %v5363, %v5362
        %v5383 = vpack.c.bf16 %v5365, %v5364
        %v5384 = vpack.c.bf16 %v5367, %v5366
        %v5385 = vpack.c.bf16 %v5369, %v5368
        %v5386 = vpack.c.bf16 %v5371, %v5370
        %v5387 = vpack.c.bf16 %v5373, %v5372
        %5388 = vst [vmem:[#allocation2] sm:$0xff] %v5374
        %5389 = vst [vmem:[#allocation2 + $0x8] sm:$0xff] %v5375
        %5390 = vst [vmem:[#allocation2 + $0x10] sm:$0xff] %v5376
        %5391 = vst [vmem:[#allocation2 + $0x18] sm:$0xff] %v5377
        %5392 = vst [vmem:[#allocation2 + $0x20] sm:$0xff] %v5378
        %5393 = vst [vmem:[#allocation2 + $0x28] sm:$0xff] %v5379
        %5394 = vst [vmem:[#allocation2 + $0x30] sm:$0xff] %v5380
        %5395 = vst [vmem:[#allocation2 + $0x38] sm:$0xff] %v5381
        %5396 = vst [vmem:[#allocation2 + $0x40] sm:$0xff] %v5382
        %5397 = vst [vmem:[#allocation2 + $0x48] sm:$0xff] %v5383
        %5398 = vst [vmem:[#allocation2 + $0x50] sm:$0xff] %v5384
        %5399 = vst [vmem:[#allocation2 + $0x58] sm:$0xff] %v5385
        %5400 = vst [vmem:[#allocation2 + $0x60] sm:$0xff] %v5386
        %5401 = vst [vmem:[#allocation2 + $0x68] sm:$0xff] %v5387
        %v5402 = vld [vmem:[#allocation2] sm:$0xff]
        %v5403 = vld [vmem:[#allocation2 + $0x8] sm:$0xff]
        %v5404 = vld [vmem:[#allocation2 + $0x10] sm:$0xff]
        %v5405 = vld [vmem:[#allocation2 + $0x18] sm:$0xff]
        %v5406 = vld [vmem:[#allocation2 + $0x20] sm:$0xff]
        %v5407 = vld [vmem:[#allocation2 + $0x28] sm:$0xff]
        %v5408 = vld [vmem:[#allocation2 + $0x30] sm:$0xff]
        %v5409 = vld [vmem:[#allocation2 + $0x38] sm:$0xff]
        %v5410 = vld [vmem:[#allocation2 + $0x40] sm:$0xff]
        %v5411 = vld [vmem:[#allocation2 + $0x48] sm:$0xff]
        %v5412 = vld [vmem:[%s3] sm:$0xff]
        %v5413 = vld [vmem:[%s3 + $0x8] sm:$0xff]
        %v5414 = vld [vmem:[%s3 + $0x10] sm:$0xff]
        %v5415 = vld [vmem:[%s3 + $0x18] sm:$0xff]
        %v5416 = vld [vmem:[%s3 + $0x20] sm:$0xff]
        %v5417 = vld [vmem:[%s3 + $0x28] sm:$0xff]
        %v5418 = vld [vmem:[%s3 + $0x30] sm:$0xff]
        %v5419 = vld [vmem:[%s3 + $0x38] sm:$0xff]
        %v5420 = vld [vmem:[%s3 + $0x40] sm:$0xff]
        %v5421 = vld [vmem:[%s3 + $0x48] sm:$0xff]
        %v5422 = vld [vmem:[%s3 + $0x50] sm:$0xff]
        %v5423 = vld [vmem:[%s3 + $0x58] sm:$0xff]
        %v5424 = vld [vmem:[%s3 + $0x60] sm:$0xff]
        %v5425 = vld [vmem:[%s3 + $0x68] sm:$0xff]
        %v5426 = vld [vmem:[%s3 + $0x70] sm:$0xff]
        %v5427 = vld [vmem:[%s3 + $0x78] sm:$0xff]
        %s5428 = scalar_lea.vmem [#allocation2], 8
        %v5429 = vld [vmem:[%s5428] sm:$0xff]
        %v5430 = vld [vmem:[%s5428 + $0x8] sm:$0xff]
        %v5431 = vld [vmem:[%s5428 + $0x10] sm:$0xff]
        %v5432 = vld [vmem:[%s5428 + $0x18] sm:$0xff]
        %v5433 = vld [vmem:[%s5428 + $0x20] sm:$0xff]
        %v5434 = vld [vmem:[%s5428 + $0x28] sm:$0xff]
        %v5435 = vld [vmem:[%s5428 + $0x30] sm:$0xff]
        %v5436 = vld [vmem:[%s5428 + $0x38] sm:$0xff]
        %v5437 = vld [vmem:[%s5428 + $0x40] sm:$0xff]
        %v5438 = vld [vmem:[%s5428 + $0x48] sm:$0xff]
        %s5439 = scalar_lea.vmem %s3, 128
        %v5440 = vld [vmem:[%s5439] sm:$0xff]
        %v5441 = vld [vmem:[%s5439 + $0x8] sm:$0xff]
        %v5442 = vld [vmem:[%s5439 + $0x10] sm:$0xff]
        %v5443 = vld [vmem:[%s5439 + $0x18] sm:$0xff]
        %v5444 = vld [vmem:[%s5439 + $0x20] sm:$0xff]
        %v5445 = vld [vmem:[%s5439 + $0x28] sm:$0xff]
        %v5446 = vld [vmem:[%s5439 + $0x30] sm:$0xff]
        %v5447 = vld [vmem:[%s5439 + $0x38] sm:$0xff]
        %v5448 = vld [vmem:[%s5439 + $0x40] sm:$0xff]
        %v5449 = vld [vmem:[%s5439 + $0x48] sm:$0xff]
        %v5450 = vld [vmem:[%s5439 + $0x50] sm:$0xff]
        %v5451 = vld [vmem:[%s5439 + $0x58] sm:$0xff]
        %v5452 = vld [vmem:[%s5439 + $0x60] sm:$0xff]
        %v5453 = vld [vmem:[%s5439 + $0x68] sm:$0xff]
        %v5454 = vld [vmem:[%s5439 + $0x70] sm:$0xff]
        %v5455 = vld [vmem:[%s5439 + $0x78] sm:$0xff]
        %v5472 = vunpack.c.l.b16 %v5440
        %v5473 = vunpack.c.h.b16 %v5440
        %v5474 = vunpack.c.l.b16 %v5441
        %v5475 = vunpack.c.h.b16 %v5441
        %v5476 = vunpack.c.l.b16 %v5442
        %v5477 = vunpack.c.h.b16 %v5442
        %v5478 = vunpack.c.l.b16 %v5443
        %v5479 = vunpack.c.h.b16 %v5443
        %v5480 = vunpack.c.l.b16 %v5444
        %v5481 = vunpack.c.h.b16 %v5444
        %v5482 = vunpack.c.l.b16 %v5445
        %v5483 = vunpack.c.h.b16 %v5445
        %v5484 = vunpack.c.l.b16 %v5446
        %v5485 = vunpack.c.h.b16 %v5446
        %v5486 = vunpack.c.l.b16 %v5447
        %v5487 = vunpack.c.h.b16 %v5447
        %v5488 = vunpack.c.l.b16 %v5448
        %v5489 = vunpack.c.h.b16 %v5448
        %v5490 = vunpack.c.l.b16 %v5449
        %v5491 = vunpack.c.h.b16 %v5449
        %v5492 = vunpack.c.l.b16 %v5450
        %v5493 = vunpack.c.h.b16 %v5450
        %v5494 = vunpack.c.l.b16 %v5451
        %v5495 = vunpack.c.h.b16 %v5451
        %v5496 = vunpack.c.l.b16 %v5452
        %v5497 = vunpack.c.h.b16 %v5452
        %v5498 = vunpack.c.l.b16 %v5453
        %v5499 = vunpack.c.h.b16 %v5453
        %v5500 = vunpack.c.l.b16 %v5454
        %v5501 = vunpack.c.h.b16 %v5454
        %v5502 = vunpack.c.l.b16 %v5455
        %v5503 = vunpack.c.h.b16 %v5455
        %v5504 = vpack.c.b16 %v5474, %v5472
        %v5505 = vpack.c.b16 %v5475, %v5473
        %v5506 = vpack.c.b16 %v5478, %v5476
        %v5507 = vpack.c.b16 %v5479, %v5477
        %v5508 = vpack.c.b16 %v5482, %v5480
        %v5509 = vpack.c.b16 %v5483, %v5481
        %v5510 = vpack.c.b16 %v5486, %v5484
        %v5511 = vpack.c.b16 %v5487, %v5485
        %v5512 = vpack.c.b16 %v5490, %v5488
        %v5513 = vpack.c.b16 %v5491, %v5489
        %v5514 = vpack.c.b16 %v5494, %v5492
        %v5515 = vpack.c.b16 %v5495, %v5493
        %v5516 = vpack.c.b16 %v5498, %v5496
        %v5517 = vpack.c.b16 %v5499, %v5497
        %v5518 = vpack.c.b16 %v5502, %v5500
        %v5519 = vpack.c.b16 %v5503, %v5501
        %5536 = vmatprep.subr.bf16.mxu0 %v5505
        %5537 = vmatpush1.bf16.msra.mxu0 %v5504
        %5538 = vmatprep.subr.bf16.mxu0 %v5507
        %5539 = vmatpush1.bf16.msra.mxu0 %v5506
        %5540 = vmatprep.subr.bf16.mxu0 %v5509
        %5541 = vmatpush1.bf16.msra.mxu0 %v5508
        %5542 = vmatprep.subr.bf16.mxu0 %v5511
        %5543 = vmatpush1.bf16.msra.mxu0 %v5510
        %5544 = vmatprep.subr.bf16.mxu0 %v5513
        %5545 = vmatpush1.bf16.msra.mxu0 %v5512
        %5546 = vmatprep.subr.bf16.mxu0 %v5515
        %5547 = vmatpush1.bf16.msra.mxu0 %v5514
        %5548 = vmatprep.subr.bf16.mxu0 %v5517
        %5549 = vmatpush1.bf16.msra.mxu0 %v5516
        %5550 = vmatprep.subr.bf16.mxu0 %v5519
        %5551 = vmatpush1.bf16.msra.mxu0 %v5518
        %5552 = vmatprep.subr.bf16.mxu0 0
        %5553 = vmatpush1.bf16.msra.mxu0 0
        %5554 = vmatprep.subr.bf16.mxu0 0
        %5555 = vmatpush1.bf16.msra.mxu0 0
        %5556 = vmatprep.subr.bf16.mxu0 0
        %5557 = vmatpush1.bf16.msra.mxu0 0
        %5558 = vmatprep.subr.bf16.mxu0 0
        %5559 = vmatpush1.bf16.msra.mxu0 0
        %5560 = vmatprep.subr.bf16.mxu0 0
        %5561 = vmatpush1.bf16.msra.mxu0 0
        %5562 = vmatprep.subr.bf16.mxu0 0
        %5563 = vmatpush1.bf16.msra.mxu0 0
        %5564 = vmatprep.subr.bf16.mxu0 0
        %5565 = vmatpush1.bf16.msra.mxu0 0
        %5566 = vmatprep.subr.bf16.mxu0 0
        %5567 = vmatpush1.bf16.msra.mxu0 0
        %5568 = vmatprep.mubr.bf16.mxu0 0
        %5569 = vmatmul.mubr.bf16.gmra.mrb[0].mxu0 %v5429
        %v5570 = vpop.f32.mrb[0].mxu0
        %v5571 = vadd.f32 0.0, %v5570
        %v5572 = vpop.f32.mrb[0].mxu0
        %v5573 = vadd.f32 0.0, %v5572
        %v5574 = vpop.f32.mrb[0].mxu0
        %v5575 = vadd.f32 0.0, %v5574
        %v5576 = vpop.f32.mrb[0].mxu0
        %v5577 = vadd.f32 0.0, %v5576
        %5578 = vmatprep.mubr.bf16.mxu0 0
        %5579 = vmatmul.mubr.bf16.gmra.mrb[0].mxu0 %v5430
        %v5580 = vpop.f32.mrb[0].mxu0
        %v5581 = vadd.f32 0.0, %v5580
        %v5582 = vpop.f32.mrb[0].mxu0
        %v5583 = vadd.f32 0.0, %v5582
        %v5584 = vpop.f32.mrb[0].mxu0
        %v5585 = vadd.f32 0.0, %v5584
        %v5586 = vpop.f32.mrb[0].mxu0
        %v5587 = vadd.f32 0.0, %v5586
        %5588 = vmatprep.mubr.bf16.mxu0 0
        %5589 = vmatmul.mubr.bf16.gmra.mrb[0].mxu0 %v5431
        %v5590 = vpop.f32.mrb[0].mxu0
        %v5591 = vadd.f32 0.0, %v5590
        %v5592 = vpop.f32.mrb[0].mxu0
        %v5593 = vadd.f32 0.0, %v5592
        %v5594 = vpop.f32.mrb[0].mxu0
        %v5595 = vadd.f32 0.0, %v5594
        %v5596 = vpop.f32.mrb[0].mxu0
        %v5597 = vadd.f32 0.0, %v5596
        %5598 = vmatprep.mubr.bf16.mxu0 0
        %5599 = vmatmul.mubr.bf16.gmra.mrb[0].mxu0 %v5432
        %v5600 = vpop.f32.mrb[0].mxu0
        %v5601 = vadd.f32 0.0, %v5600
        %v5602 = vpop.f32.mrb[0].mxu0
        %v5603 = vadd.f32 0.0, %v5602
        %v5604 = vpop.f32.mrb[0].mxu0
        %v5605 = vadd.f32 0.0, %v5604
        %v5606 = vpop.f32.mrb[0].mxu0
        %v5607 = vadd.f32 0.0, %v5606
        %5608 = vmatprep.mubr.bf16.mxu0 0
        %5609 = vmatmul.mubr.bf16.gmra.mrb[0].mxu0 %v5433
        %v5610 = vpop.f32.mrb[0].mxu0
        %v5611 = vadd.f32 0.0, %v5610
        %v5612 = vpop.f32.mrb[0].mxu0
        %v5613 = vadd.f32 0.0, %v5612
        %v5614 = vpop.f32.mrb[0].mxu0
        %v5615 = vadd.f32 0.0, %v5614
        %v5616 = vpop.f32.mrb[0].mxu0
        %v5617 = vadd.f32 0.0, %v5616
        %5618 = vmatprep.mubr.bf16.mxu0 0
        %5619 = vmatmul.mubr.bf16.gmra.mrb[0].mxu0 %v5434
        %v5620 = vpop.f32.mrb[0].mxu0
        %v5621 = vadd.f32 0.0, %v5620
        %v5622 = vpop.f32.mrb[0].mxu0
        %v5623 = vadd.f32 0.0, %v5622
        %v5624 = vpop.f32.mrb[0].mxu0
        %v5625 = vadd.f32 0.0, %v5624
        %v5626 = vpop.f32.mrb[0].mxu0
        %v5627 = vadd.f32 0.0, %v5626
        %5628 = vmatprep.mubr.bf16.mxu0 0
        %5629 = vmatmul.mubr.bf16.gmra.mrb[0].mxu0 %v5435
        %v5630 = vpop.f32.mrb[0].mxu0
        %v5631 = vadd.f32 0.0, %v5630
        %v5632 = vpop.f32.mrb[0].mxu0
        %v5633 = vadd.f32 0.0, %v5632
        %v5634 = vpop.f32.mrb[0].mxu0
        %v5635 = vadd.f32 0.0, %v5634
        %v5636 = vpop.f32.mrb[0].mxu0
        %v5637 = vadd.f32 0.0, %v5636
        %5638 = vmatprep.mubr.bf16.mxu0 0
        %5639 = vmatmul.mubr.bf16.gmra.mrb[0].mxu0 %v5436
        %v5640 = vpop.f32.mrb[0].mxu0
        %v5641 = vadd.f32 0.0, %v5640
        %v5642 = vpop.f32.mrb[0].mxu0
        %v5643 = vadd.f32 0.0, %v5642
        %v5644 = vpop.f32.mrb[0].mxu0
        %v5645 = vadd.f32 0.0, %v5644
        %v5646 = vpop.f32.mrb[0].mxu0
        %v5647 = vadd.f32 0.0, %v5646
        %5648 = vmatprep.mubr.bf16.mxu0 0
        %5649 = vmatmul.mubr.bf16.gmra.mrb[0].mxu0 %v5437
        %v5650 = vpop.f32.mrb[0].mxu0
        %v5651 = vadd.f32 0.0, %v5650
        %v5652 = vpop.f32.mrb[0].mxu0
        %v5653 = vadd.f32 0.0, %v5652
        %v5654 = vpop.f32.mrb[0].mxu0
        %v5655 = vadd.f32 0.0, %v5654
        %v5656 = vpop.f32.mrb[0].mxu0
        %v5657 = vadd.f32 0.0, %v5656
        %5658 = vmatprep.mubr.bf16.mxu0 0
        %5659 = vmatmul.mubr.bf16.gmra.mrb[0].mxu0 %v5438
        %v5660 = vpop.f32.mrb[0].mxu0
        %v5661 = vadd.f32 0.0, %v5660
        %v5662 = vpop.f32.mrb[0].mxu0
        %v5663 = vadd.f32 0.0, %v5662
        %v5664 = vpop.f32.mrb[0].mxu0
        %v5665 = vadd.f32 0.0, %v5664
        %v5666 = vpop.f32.mrb[0].mxu0
        %v5667 = vadd.f32 0.0, %v5666
        %5668 = vdwg.mxu0
        %v5685 = vunpack.c.l.b16 %v5412
        %v5686 = vunpack.c.h.b16 %v5412
        %v5687 = vunpack.c.l.b16 %v5413
        %v5688 = vunpack.c.h.b16 %v5413
        %v5689 = vunpack.c.l.b16 %v5414
        %v5690 = vunpack.c.h.b16 %v5414
        %v5691 = vunpack.c.l.b16 %v5415
        %v5692 = vunpack.c.h.b16 %v5415
        %v5693 = vunpack.c.l.b16 %v5416
        %v5694 = vunpack.c.h.b16 %v5416
        %v5695 = vunpack.c.l.b16 %v5417
        %v5696 = vunpack.c.h.b16 %v5417
        %v5697 = vunpack.c.l.b16 %v5418
        %v5698 = vunpack.c.h.b16 %v5418
        %v5699 = vunpack.c.l.b16 %v5419
        %v5700 = vunpack.c.h.b16 %v5419
        %v5701 = vunpack.c.l.b16 %v5420
        %v5702 = vunpack.c.h.b16 %v5420
        %v5703 = vunpack.c.l.b16 %v5421
        %v5704 = vunpack.c.h.b16 %v5421
        %v5705 = vunpack.c.l.b16 %v5422
        %v5706 = vunpack.c.h.b16 %v5422
        %v5707 = vunpack.c.l.b16 %v5423
        %v5708 = vunpack.c.h.b16 %v5423
        %v5709 = vunpack.c.l.b16 %v5424
        %v5710 = vunpack.c.h.b16 %v5424
        %v5711 = vunpack.c.l.b16 %v5425
        %v5712 = vunpack.c.h.b16 %v5425
        %v5713 = vunpack.c.l.b16 %v5426
        %v5714 = vunpack.c.h.b16 %v5426
        %v5715 = vunpack.c.l.b16 %v5427
        %v5716 = vunpack.c.h.b16 %v5427
        %v5717 = vpack.c.b16 %v5687, %v5685
        %v5718 = vpack.c.b16 %v5688, %v5686
        %v5719 = vpack.c.b16 %v5691, %v5689
        %v5720 = vpack.c.b16 %v5692, %v5690
        %v5721 = vpack.c.b16 %v5695, %v5693
        %v5722 = vpack.c.b16 %v5696, %v5694
        %v5723 = vpack.c.b16 %v5699, %v5697
        %v5724 = vpack.c.b16 %v5700, %v5698
        %v5725 = vpack.c.b16 %v5703, %v5701
        %v5726 = vpack.c.b16 %v5704, %v5702
        %v5727 = vpack.c.b16 %v5707, %v5705
        %v5728 = vpack.c.b16 %v5708, %v5706
        %v5729 = vpack.c.b16 %v5711, %v5709
        %v5730 = vpack.c.b16 %v5712, %v5710
        %v5731 = vpack.c.b16 %v5715, %v5713
        %v5732 = vpack.c.b16 %v5716, %v5714
        %5749 = vmatprep.subr.bf16.mxu0 %v5718
        %5750 = vmatpush1.bf16.msra.mxu0 %v5717
        %5751 = vmatprep.subr.bf16.mxu0 %v5720
        %5752 = vmatpush1.bf16.msra.mxu0 %v5719
        %5753 = vmatprep.subr.bf16.mxu0 %v5722
        %5754 = vmatpush1.bf16.msra.mxu0 %v5721
        %5755 = vmatprep.subr.bf16.mxu0 %v5724
        %5756 = vmatpush1.bf16.msra.mxu0 %v5723
        %5757 = vmatprep.subr.bf16.mxu0 %v5726
        %5758 = vmatpush1.bf16.msra.mxu0 %v5725
        %5759 = vmatprep.subr.bf16.mxu0 %v5728
        %5760 = vmatpush1.bf16.msra.mxu0 %v5727
        %5761 = vmatprep.subr.bf16.mxu0 %v5730
        %5762 = vmatpush1.bf16.msra.mxu0 %v5729
        %5763 = vmatprep.subr.bf16.mxu0 %v5732
        %5764 = vmatpush1.bf16.msra.mxu0 %v5731
        %5765 = vmatprep.subr.bf16.mxu0 0
        %5766 = vmatpush1.bf16.msra.mxu0 0
        %5767 = vmatprep.subr.bf16.mxu0 0
        %5768 = vmatpush1.bf16.msra.mxu0 0
        %5769 = vmatprep.subr.bf16.mxu0 0
        %5770 = vmatpush1.bf16.msra.mxu0 0
        %5771 = vmatprep.subr.bf16.mxu0 0
        %5772 = vmatpush1.bf16.msra.mxu0 0
        %5773 = vmatprep.subr.bf16.mxu0 0
        %5774 = vmatpush1.bf16.msra.mxu0 0
        %5775 = vmatprep.subr.bf16.mxu0 0
        %5776 = vmatpush1.bf16.msra.mxu0 0
        %5777 = vmatprep.subr.bf16.mxu0 0
        %5778 = vmatpush1.bf16.msra.mxu0 0
        %5779 = vmatprep.subr.bf16.mxu0 0
        %5780 = vmatpush1.bf16.msra.mxu0 0
        %5781 = vmatprep.mubr.bf16.mxu0 0
        %5782 = vmatmul.mubr.bf16.gmra.mrb[0].mxu0 %v5402
        %v5783 = vpop.f32.mrb[0].mxu0
        %v5784 = vadd.f32 %v5571, %v5783
        %v5785 = vpop.f32.mrb[0].mxu0
        %v5786 = vadd.f32 %v5573, %v5785
        %v5787 = vpop.f32.mrb[0].mxu0
        %v5788 = vadd.f32 %v5575, %v5787
        %v5789 = vpop.f32.mrb[0].mxu0
        %v5790 = vadd.f32 %v5577, %v5789
        %5791 = vmatprep.mubr.bf16.mxu0 0
        %5792 = vmatmul.mubr.bf16.gmra.mrb[0].mxu0 %v5403
        %v5793 = vpop.f32.mrb[0].mxu0
        %v5794 = vadd.f32 %v5581, %v5793
        %v5795 = vpop.f32.mrb[0].mxu0
        %v5796 = vadd.f32 %v5583, %v5795
        %v5797 = vpop.f32.mrb[0].mxu0
        %v5798 = vadd.f32 %v5585, %v5797
        %v5799 = vpop.f32.mrb[0].mxu0
        %v5800 = vadd.f32 %v5587, %v5799
        %5801 = vmatprep.mubr.bf16.mxu0 0
        %5802 = vmatmul.mubr.bf16.gmra.mrb[0].mxu0 %v5404
        %v5803 = vpop.f32.mrb[0].mxu0
        %v5804 = vadd.f32 %v5591, %v5803
        %v5805 = vpop.f32.mrb[0].mxu0
        %v5806 = vadd.f32 %v5593, %v5805
        %v5807 = vpop.f32.mrb[0].mxu0
        %v5808 = vadd.f32 %v5595, %v5807
        %v5809 = vpop.f32.mrb[0].mxu0
        %v5810 = vadd.f32 %v5597, %v5809
        %5811 = vmatprep.mubr.bf16.mxu0 0
        %5812 = vmatmul.mubr.bf16.gmra.mrb[0].mxu0 %v5405
        %v5813 = vpop.f32.mrb[0].mxu0
        %v5814 = vadd.f32 %v5601, %v5813
        %v5815 = vpop.f32.mrb[0].mxu0
        %v5816 = vadd.f32 %v5603, %v5815
        %v5817 = vpop.f32.mrb[0].mxu0
        %v5818 = vadd.f32 %v5605, %v5817
        %v5819 = vpop.f32.mrb[0].mxu0
        %v5820 = vadd.f32 %v5607, %v5819
        %5821 = vmatprep.mubr.bf16.mxu0 0
        %5822 = vmatmul.mubr.bf16.gmra.mrb[0].mxu0 %v5406
        %v5823 = vpop.f32.mrb[0].mxu0
        %v5824 = vadd.f32 %v5611, %v5823
        %v5825 = vpop.f32.mrb[0].mxu0
        %v5826 = vadd.f32 %v5613, %v5825
        %v5827 = vpop.f32.mrb[0].mxu0
        %v5828 = vadd.f32 %v5615, %v5827
        %v5829 = vpop.f32.mrb[0].mxu0
        %v5830 = vadd.f32 %v5617, %v5829
        %5831 = vmatprep.mubr.bf16.mxu0 0
        %5832 = vmatmul.mubr.bf16.gmra.mrb[0].mxu0 %v5407
        %v5833 = vpop.f32.mrb[0].mxu0
        %v5834 = vadd.f32 %v5621, %v5833
        %v5835 = vpop.f32.mrb[0].mxu0
        %v5836 = vadd.f32 %v5623, %v5835
        %v5837 = vpop.f32.mrb[0].mxu0
        %v5838 = vadd.f32 %v5625, %v5837
        %v5839 = vpop.f32.mrb[0].mxu0
        %v5840 = vadd.f32 %v5627, %v5839
        %5841 = vmatprep.mubr.bf16.mxu0 0
        %5842 = vmatmul.mubr.bf16.gmra.mrb[0].mxu0 %v5408
        %v5843 = vpop.f32.mrb[0].mxu0
        %v5844 = vadd.f32 %v5631, %v5843
        %v5845 = vpop.f32.mrb[0].mxu0
        %v5846 = vadd.f32 %v5633, %v5845
        %v5847 = vpop.f32.mrb[0].mxu0
        %v5848 = vadd.f32 %v5635, %v5847
        %v5849 = vpop.f32.mrb[0].mxu0
        %v5850 = vadd.f32 %v5637, %v5849
        %5851 = vmatprep.mubr.bf16.mxu0 0
        %5852 = vmatmul.mubr.bf16.gmra.mrb[0].mxu0 %v5409
        %v5853 = vpop.f32.mrb[0].mxu0
        %v5854 = vadd.f32 %v5641, %v5853
        %v5855 = vpop.f32.mrb[0].mxu0
        %v5856 = vadd.f32 %v5643, %v5855
        %v5857 = vpop.f32.mrb[0].mxu0
        %v5858 = vadd.f32 %v5645, %v5857
        %v5859 = vpop.f32.mrb[0].mxu0
        %v5860 = vadd.f32 %v5647, %v5859
        %5861 = vmatprep.mubr.bf16.mxu0 0
        %5862 = vmatmul.mubr.bf16.gmra.mrb[0].mxu0 %v5410
        %v5863 = vpop.f32.mrb[0].mxu0
        %v5864 = vadd.f32 %v5651, %v5863
        %v5865 = vpop.f32.mrb[0].mxu0
        %v5866 = vadd.f32 %v5653, %v5865
        %v5867 = vpop.f32.mrb[0].mxu0
        %v5868 = vadd.f32 %v5655, %v5867
        %v5869 = vpop.f32.mrb[0].mxu0
        %v5870 = vadd.f32 %v5657, %v5869
        %5871 = vmatprep.mubr.bf16.mxu0 0
        %5872 = vmatmul.mubr.bf16.gmra.mrb[0].mxu0 %v5411
        %v5873 = vpop.f32.mrb[0].mxu0
        %v5874 = vadd.f32 %v5661, %v5873
        %v5875 = vpop.f32.mrb[0].mxu0
        %v5876 = vadd.f32 %v5663, %v5875
        %v5877 = vpop.f32.mrb[0].mxu0
        %v5878 = vadd.f32 %v5665, %v5877
        %v5879 = vpop.f32.mrb[0].mxu0
        %v5880 = vadd.f32 %v5667, %v5879
        %5881 = vdwg.mxu0
        %s5882 = scalar_lea.vmem [#allocation2], 16
        %v5883 = vld [vmem:[%s5882] sm:$0xff]
        %v5884 = vld [vmem:[%s5882 + $0x8] sm:$0xff]
        %v5885 = vld [vmem:[%s5882 + $0x10] sm:$0xff]
        %v5886 = vld [vmem:[%s5882 + $0x18] sm:$0xff]
        %v5887 = vld [vmem:[%s5882 + $0x20] sm:$0xff]
        %v5888 = vld [vmem:[%s5882 + $0x28] sm:$0xff]
        %v5889 = vld [vmem:[%s5882 + $0x30] sm:$0xff]
        %v5890 = vld [vmem:[%s5882 + $0x38] sm:$0xff]
        %v5891 = vld [vmem:[%s5882 + $0x40] sm:$0xff]
        %v5892 = vld [vmem:[%s5882 + $0x48] sm:$0xff]
        %s5893 = scalar_lea.vmem %s3, 256
        %v5894 = vld [vmem:[%s5893] sm:$0xff]
        %v5895 = vld [vmem:[%s5893 + $0x8] sm:$0xff]
        %v5896 = vld [vmem:[%s5893 + $0x10] sm:$0xff]
        %v5897 = vld [vmem:[%s5893 + $0x18] sm:$0xff]
        %v5898 = vld [vmem:[%s5893 + $0x20] sm:$0xff]
        %v5899 = vld [vmem:[%s5893 + $0x28] sm:$0xff]
        %v5900 = vld [vmem:[%s5893 + $0x30] sm:$0xff]
        %v5901 = vld [vmem:[%s5893 + $0x38] sm:$0xff]
        %v5902 = vld [vmem:[%s5893 + $0x40] sm:$0xff]
        %v5903 = vld [vmem:[%s5893 + $0x48] sm:$0xff]
        %v5904 = vld [vmem:[%s5893 + $0x50] sm:$0xff]
        %v5905 = vld [vmem:[%s5893 + $0x58] sm:$0xff]
        %v5906 = vld [vmem:[%s5893 + $0x60] sm:$0xff]
        %v5907 = vld [vmem:[%s5893 + $0x68] sm:$0xff]
        %v5908 = vld [vmem:[%s5893 + $0x70] sm:$0xff]
        %v5909 = vld [vmem:[%s5893 + $0x78] sm:$0xff]
        %v5926 = vunpack.c.l.b16 %v5894
        %v5927 = vunpack.c.h.b16 %v5894
        %v5928 = vunpack.c.l.b16 %v5895
        %v5929 = vunpack.c.h.b16 %v5895
        %v5930 = vunpack.c.l.b16 %v5896
        %v5931 = vunpack.c.h.b16 %v5896
        %v5932 = vunpack.c.l.b16 %v5897
        %v5933 = vunpack.c.h.b16 %v5897
        %v5934 = vunpack.c.l.b16 %v5898
        %v5935 = vunpack.c.h.b16 %v5898
        %v5936 = vunpack.c.l.b16 %v5899
        %v5937 = vunpack.c.h.b16 %v5899
        %v5938 = vunpack.c.l.b16 %v5900
        %v5939 = vunpack.c.h.b16 %v5900
        %v5940 = vunpack.c.l.b16 %v5901
        %v5941 = vunpack.c.h.b16 %v5901
        %v5942 = vunpack.c.l.b16 %v5902
        %v5943 = vunpack.c.h.b16 %v5902
        %v5944 = vunpack.c.l.b16 %v5903
        %v5945 = vunpack.c.h.b16 %v5903
        %v5946 = vunpack.c.l.b16 %v5904
        %v5947 = vunpack.c.h.b16 %v5904
        %v5948 = vunpack.c.l.b16 %v5905
        %v5949 = vunpack.c.h.b16 %v5905
        %v5950 = vunpack.c.l.b16 %v5906
        %v5951 = vunpack.c.h.b16 %v5906
        %v5952 = vunpack.c.l.b16 %v5907
        %v5953 = vunpack.c.h.b16 %v5907
        %v5954 = vunpack.c.l.b16 %v5908
        %v5955 = vunpack.c.h.b16 %v5908
        %v5956 = vunpack.c.l.b16 %v5909
        %v5957 = vunpack.c.h.b16 %v5909
        %v5958 = vpack.c.b16 %v5928, %v5926
        %v5959 = vpack.c.b16 %v5929, %v5927
        %v5960 = vpack.c.b16 %v5932, %v5930
        %v5961 = vpack.c.b16 %v5933, %v5931
        %v5962 = vpack.c.b16 %v5936, %v5934
        %v5963 = vpack.c.b16 %v5937, %v5935
        %v5964 = vpack.c.b16 %v5940, %v5938
        %v5965 = vpack.c.b16 %v5941, %v5939
        %v5966 = vpack.c.b16 %v5944, %v5942
        %v5967 = vpack.c.b16 %v5945, %v5943
        %v5968 = vpack.c.b16 %v5948, %v5946
        %v5969 = vpack.c.b16 %v5949, %v5947
        %v5970 = vpack.c.b16 %v5952, %v5950
        %v5971 = vpack.c.b16 %v5953, %v5951
        %v5972 = vpack.c.b16 %v5956, %v5954
        %v5973 = vpack.c.b16 %v5957, %v5955
        %5990 = vmatprep.subr.bf16.mxu0 %v5959
        %5991 = vmatpush1.bf16.msra.mxu0 %v5958
        %5992 = vmatprep.subr.bf16.mxu0 %v5961
        %5993 = vmatpush1.bf16.msra.mxu0 %v5960
        %5994 = vmatprep.subr.bf16.mxu0 %v5963
        %5995 = vmatpush1.bf16.msra.mxu0 %v5962
        %5996 = vmatprep.subr.bf16.mxu0 %v5965
        %5997 = vmatpush1.bf16.msra.mxu0 %v5964
        %5998 = vmatprep.subr.bf16.mxu0 %v5967
        %5999 = vmatpush1.bf16.msra.mxu0 %v5966
        %6000 = vmatprep.subr.bf16.mxu0 %v5969
        %6001 = vmatpush1.bf16.msra.mxu0 %v5968
        %6002 = vmatprep.subr.bf16.mxu0 %v5971
        %6003 = vmatpush1.bf16.msra.mxu0 %v5970
        %6004 = vmatprep.subr.bf16.mxu0 %v5973
        %6005 = vmatpush1.bf16.msra.mxu0 %v5972
        %6006 = vmatprep.subr.bf16.mxu0 0
        %6007 = vmatpush1.bf16.msra.mxu0 0
        %6008 = vmatprep.subr.bf16.mxu0 0
        %6009 = vmatpush1.bf16.msra.mxu0 0
        %6010 = vmatprep.subr.bf16.mxu0 0
        %6011 = vmatpush1.bf16.msra.mxu0 0
        %6012 = vmatprep.subr.bf16.mxu0 0
        %6013 = vmatpush1.bf16.msra.mxu0 0
        %6014 = vmatprep.subr.bf16.mxu0 0
        %6015 = vmatpush1.bf16.msra.mxu0 0
        %6016 = vmatprep.subr.bf16.mxu0 0
        %6017 = vmatpush1.bf16.msra.mxu0 0
        %6018 = vmatprep.subr.bf16.mxu0 0
        %6019 = vmatpush1.bf16.msra.mxu0 0
        %6020 = vmatprep.subr.bf16.mxu0 0
        %6021 = vmatpush1.bf16.msra.mxu0 0
        %6022 = vmatprep.mubr.bf16.mxu0 0
        %6023 = vmatmul.mubr.bf16.gmra.mrb[0].mxu0 %v5883
        %v6024 = vpop.f32.mrb[0].mxu0
        %v6025 = vadd.f32 0.0, %v6024
        %v6026 = vpop.f32.mrb[0].mxu0
        %v6027 = vadd.f32 0.0, %v6026
        %v6028 = vpop.f32.mrb[0].mxu0
        %v6029 = vadd.f32 0.0, %v6028
        %v6030 = vpop.f32.mrb[0].mxu0
        %v6031 = vadd.f32 0.0, %v6030
        %6032 = vmatprep.mubr.bf16.mxu0 0
        %6033 = vmatmul.mubr.bf16.gmra.mrb[0].mxu0 %v5884
        %v6034 = vpop.f32.mrb[0].mxu0
        %v6035 = vadd.f32 0.0, %v6034
        %v6036 = vpop.f32.mrb[0].mxu0
        %v6037 = vadd.f32 0.0, %v6036
        %v6038 = vpop.f32.mrb[0].mxu0
        %v6039 = vadd.f32 0.0, %v6038
        %v6040 = vpop.f32.mrb[0].mxu0
        %v6041 = vadd.f32 0.0, %v6040
        %6042 = vmatprep.mubr.bf16.mxu0 0
        %6043 = vmatmul.mubr.bf16.gmra.mrb[0].mxu0 %v5885
        %v6044 = vpop.f32.mrb[0].mxu0
        %v6045 = vadd.f32 0.0, %v6044
        %v6046 = vpop.f32.mrb[0].mxu0
        %v6047 = vadd.f32 0.0, %v6046
        %v6048 = vpop.f32.mrb[0].mxu0
        %v6049 = vadd.f32 0.0, %v6048
        %v6050 = vpop.f32.mrb[0].mxu0
        %v6051 = vadd.f32 0.0, %v6050
        %6052 = vmatprep.mubr.bf16.mxu0 0
        %6053 = vmatmul.mubr.bf16.gmra.mrb[0].mxu0 %v5886
        %v6054 = vpop.f32.mrb[0].mxu0
        %v6055 = vadd.f32 0.0, %v6054
        %v6056 = vpop.f32.mrb[0].mxu0
        %v6057 = vadd.f32 0.0, %v6056
        %v6058 = vpop.f32.mrb[0].mxu0
        %v6059 = vadd.f32 0.0, %v6058
        %v6060 = vpop.f32.mrb[0].mxu0
        %v6061 = vadd.f32 0.0, %v6060
        %6062 = vmatprep.mubr.bf16.mxu0 0
        %6063 = vmatmul.mubr.bf16.gmra.mrb[0].mxu0 %v5887
        %v6064 = vpop.f32.mrb[0].mxu0
        %v6065 = vadd.f32 0.0, %v6064
        %v6066 = vpop.f32.mrb[0].mxu0
        %v6067 = vadd.f32 0.0, %v6066
        %v6068 = vpop.f32.mrb[0].mxu0
        %v6069 = vadd.f32 0.0, %v6068
        %v6070 = vpop.f32.mrb[0].mxu0
        %v6071 = vadd.f32 0.0, %v6070
        %6072 = vmatprep.mubr.bf16.mxu0 0
        %6073 = vmatmul.mubr.bf16.gmra.mrb[0].mxu0 %v5888
        %v6074 = vpop.f32.mrb[0].mxu0
        %v6075 = vadd.f32 0.0, %v6074
        %v6076 = vpop.f32.mrb[0].mxu0
        %v6077 = vadd.f32 0.0, %v6076
        %v6078 = vpop.f32.mrb[0].mxu0
        %v6079 = vadd.f32 0.0, %v6078
        %v6080 = vpop.f32.mrb[0].mxu0
        %v6081 = vadd.f32 0.0, %v6080
        %6082 = vmatprep.mubr.bf16.mxu0 0
        %6083 = vmatmul.mubr.bf16.gmra.mrb[0].mxu0 %v5889
        %v6084 = vpop.f32.mrb[0].mxu0
        %v6085 = vadd.f32 0.0, %v6084
        %v6086 = vpop.f32.mrb[0].mxu0
        %v6087 = vadd.f32 0.0, %v6086
        %v6088 = vpop.f32.mrb[0].mxu0
        %v6089 = vadd.f32 0.0, %v6088
        %v6090 = vpop.f32.mrb[0].mxu0
        %v6091 = vadd.f32 0.0, %v6090
        %6092 = vmatprep.mubr.bf16.mxu0 0
        %6093 = vmatmul.mubr.bf16.gmra.mrb[0].mxu0 %v5890
        %v6094 = vpop.f32.mrb[0].mxu0
        %v6095 = vadd.f32 0.0, %v6094
        %v6096 = vpop.f32.mrb[0].mxu0
        %v6097 = vadd.f32 0.0, %v6096
        %v6098 = vpop.f32.mrb[0].mxu0
        %v6099 = vadd.f32 0.0, %v6098
        %v6100 = vpop.f32.mrb[0].mxu0
        %v6101 = vadd.f32 0.0, %v6100
        %6102 = vmatprep.mubr.bf16.mxu0 0
        %6103 = vmatmul.mubr.bf16.gmra.mrb[0].mxu0 %v5891
        %v6104 = vpop.f32.mrb[0].mxu0
        %v6105 = vadd.f32 0.0, %v6104
        %v6106 = vpop.f32.mrb[0].mxu0
        %v6107 = vadd.f32 0.0, %v6106
        %v6108 = vpop.f32.mrb[0].mxu0
        %v6109 = vadd.f32 0.0, %v6108
        %v6110 = vpop.f32.mrb[0].mxu0
        %v6111 = vadd.f32 0.0, %v6110
        %6112 = vmatprep.mubr.bf16.mxu0 0
        %6113 = vmatmul.mubr.bf16.gmra.mrb[0].mxu0 %v5892
        %v6114 = vpop.f32.mrb[0].mxu0
        %v6115 = vadd.f32 0.0, %v6114
        %v6116 = vpop.f32.mrb[0].mxu0
        %v6117 = vadd.f32 0.0, %v6116
        %v6118 = vpop.f32.mrb[0].mxu0
        %v6119 = vadd.f32 0.0, %v6118
        %v6120 = vpop.f32.mrb[0].mxu0
        %v6121 = vadd.f32 0.0, %v6120
        %6122 = vdwg.mxu0
        %v6123 = vadd.f32 %v5784, %v6025
        %v6124 = vadd.f32 %v5786, %v6027
        %v6125 = vadd.f32 %v5788, %v6029
        %v6126 = vadd.f32 %v5790, %v6031
        %v6127 = vadd.f32 %v5794, %v6035
        %v6128 = vadd.f32 %v5796, %v6037
        %v6129 = vadd.f32 %v5798, %v6039
        %v6130 = vadd.f32 %v5800, %v6041
        %v6131 = vadd.f32 %v5804, %v6045
        %v6132 = vadd.f32 %v5806, %v6047
        %v6133 = vadd.f32 %v5808, %v6049
        %v6134 = vadd.f32 %v5810, %v6051
        %v6135 = vadd.f32 %v5814, %v6055
        %v6136 = vadd.f32 %v5816, %v6057
        %v6137 = vadd.f32 %v5818, %v6059
        %v6138 = vadd.f32 %v5820, %v6061
        %v6139 = vadd.f32 %v5824, %v6065
        %v6140 = vadd.f32 %v5826, %v6067
        %v6141 = vadd.f32 %v5828, %v6069
        %v6142 = vadd.f32 %v5830, %v6071
        %v6143 = vadd.f32 %v5834, %v6075
        %v6144 = vadd.f32 %v5836, %v6077
        %v6145 = vadd.f32 %v5838, %v6079
        %v6146 = vadd.f32 %v5840, %v6081
        %v6147 = vadd.f32 %v5844, %v6085
        %v6148 = vadd.f32 %v5846, %v6087
        %v6149 = vadd.f32 %v5848, %v6089
        %v6150 = vadd.f32 %v5850, %v6091
        %v6151 = vadd.f32 %v5854, %v6095
        %v6152 = vadd.f32 %v5856, %v6097
        %v6153 = vadd.f32 %v5858, %v6099
        %v6154 = vadd.f32 %v5860, %v6101
        %v6155 = vadd.f32 %v5864, %v6105
        %v6156 = vadd.f32 %v5866, %v6107
        %v6157 = vadd.f32 %v5868, %v6109
        %v6158 = vadd.f32 %v5870, %v6111
        %v6159 = vadd.f32 %v5874, %v6115
        %v6160 = vadd.f32 %v5876, %v6117
        %v6161 = vadd.f32 %v5878, %v6119
        %v6162 = vadd.f32 %v5880, %v6121
        %s6163 = scalar_lea.vmem [#allocation2], 24
        %v6164 = vld [vmem:[%s6163] sm:$0xff]
        %v6165 = vld [vmem:[%s6163 + $0x8] sm:$0xff]
        %v6166 = vld [vmem:[%s6163 + $0x10] sm:$0xff]
        %v6167 = vld [vmem:[%s6163 + $0x18] sm:$0xff]
        %v6168 = vld [vmem:[%s6163 + $0x20] sm:$0xff]
        %v6169 = vld [vmem:[%s6163 + $0x28] sm:$0xff]
        %v6170 = vld [vmem:[%s6163 + $0x30] sm:$0xff]
        %v6171 = vld [vmem:[%s6163 + $0x38] sm:$0xff]
        %v6172 = vld [vmem:[%s6163 + $0x40] sm:$0xff]
        %v6173 = vld [vmem:[%s6163 + $0x48] sm:$0xff]
        %s6174 = scalar_lea.vmem %s3, 384
        %v6175 = vld [vmem:[%s6174] sm:$0xff]
        %v6176 = vld [vmem:[%s6174 + $0x8] sm:$0xff]
        %v6177 = vld [vmem:[%s6174 + $0x10] sm:$0xff]
        %v6178 = vld [vmem:[%s6174 + $0x18] sm:$0xff]
        %v6179 = vld [vmem:[%s6174 + $0x20] sm:$0xff]
        %v6180 = vld [vmem:[%s6174 + $0x28] sm:$0xff]
        %v6181 = vld [vmem:[%s6174 + $0x30] sm:$0xff]
        %v6182 = vld [vmem:[%s6174 + $0x38] sm:$0xff]
        %v6183 = vld [vmem:[%s6174 + $0x40] sm:$0xff]
        %v6184 = vld [vmem:[%s6174 + $0x48] sm:$0xff]
        %v6185 = vld [vmem:[%s6174 + $0x50] sm:$0xff]
        %v6186 = vld [vmem:[%s6174 + $0x58] sm:$0xff]
        %v6187 = vld [vmem:[%s6174 + $0x60] sm:$0xff]
        %v6188 = vld [vmem:[%s6174 + $0x68] sm:$0xff]
        %v6189 = vld [vmem:[%s6174 + $0x70] sm:$0xff]
        %v6190 = vld [vmem:[%s6174 + $0x78] sm:$0xff]
        %v6207 = vunpack.c.l.b16 %v6175
        %v6208 = vunpack.c.h.b16 %v6175
        %v6209 = vunpack.c.l.b16 %v6176
        %v6210 = vunpack.c.h.b16 %v6176
        %v6211 = vunpack.c.l.b16 %v6177
        %v6212 = vunpack.c.h.b16 %v6177
        %v6213 = vunpack.c.l.b16 %v6178
        %v6214 = vunpack.c.h.b16 %v6178
        %v6215 = vunpack.c.l.b16 %v6179
        %v6216 = vunpack.c.h.b16 %v6179
        %v6217 = vunpack.c.l.b16 %v6180
        %v6218 = vunpack.c.h.b16 %v6180
        %v6219 = vunpack.c.l.b16 %v6181
        %v6220 = vunpack.c.h.b16 %v6181
        %v6221 = vunpack.c.l.b16 %v6182
        %v6222 = vunpack.c.h.b16 %v6182
        %v6223 = vunpack.c.l.b16 %v6183
        %v6224 = vunpack.c.h.b16 %v6183
        %v6225 = vunpack.c.l.b16 %v6184
        %v6226 = vunpack.c.h.b16 %v6184
        %v6227 = vunpack.c.l.b16 %v6185
        %v6228 = vunpack.c.h.b16 %v6185
        %v6229 = vunpack.c.l.b16 %v6186
        %v6230 = vunpack.c.h.b16 %v6186
        %v6231 = vunpack.c.l.b16 %v6187
        %v6232 = vunpack.c.h.b16 %v6187
        %v6233 = vunpack.c.l.b16 %v6188
        %v6234 = vunpack.c.h.b16 %v6188
        %v6235 = vunpack.c.l.b16 %v6189
        %v6236 = vunpack.c.h.b16 %v6189
        %v6237 = vunpack.c.l.b16 %v6190
        %v6238 = vunpack.c.h.b16 %v6190
        %v6239 = vpack.c.b16 %v6209, %v6207
        %v6240 = vpack.c.b16 %v6210, %v6208
        %v6241 = vpack.c.b16 %v6213, %v6211
        %v6242 = vpack.c.b16 %v6214, %v6212
        %v6243 = vpack.c.b16 %v6217, %v6215
        %v6244 = vpack.c.b16 %v6218, %v6216
        %v6245 = vpack.c.b16 %v6221, %v6219
        %v6246 = vpack.c.b16 %v6222, %v6220
        %v6247 = vpack.c.b16 %v6225, %v6223
        %v6248 = vpack.c.b16 %v6226, %v6224
        %v6249 = vpack.c.b16 %v6229, %v6227
        %v6250 = vpack.c.b16 %v6230, %v6228
        %v6251 = vpack.c.b16 %v6233, %v6231
        %v6252 = vpack.c.b16 %v6234, %v6232
        %v6253 = vpack.c.b16 %v6237, %v6235
        %v6254 = vpack.c.b16 %v6238, %v6236
        %6271 = vmatprep.subr.bf16.mxu0 %v6240
        %6272 = vmatpush1.bf16.msra.mxu0 %v6239
        %6273 = vmatprep.subr.bf16.mxu0 %v6242
        %6274 = vmatpush1.bf16.msra.mxu0 %v6241
        %6275 = vmatprep.subr.bf16.mxu0 %v6244
        %6276 = vmatpush1.bf16.msra.mxu0 %v6243
        %6277 = vmatprep.subr.bf16.mxu0 %v6246
        %6278 = vmatpush1.bf16.msra.mxu0 %v6245
        %6279 = vmatprep.subr.bf16.mxu0 %v6248
        %6280 = vmatpush1.bf16.msra.mxu0 %v6247
        %6281 = vmatprep.subr.bf16.mxu0 %v6250
        %6282 = vmatpush1.bf16.msra.mxu0 %v6249
        %6283 = vmatprep.subr.bf16.mxu0 %v6252
        %6284 = vmatpush1.bf16.msra.mxu0 %v6251
        %6285 = vmatprep.subr.bf16.mxu0 %v6254
        %6286 = vmatpush1.bf16.msra.mxu0 %v6253
        %6287 = vmatprep.subr.bf16.mxu0 0
        %6288 = vmatpush1.bf16.msra.mxu0 0
        %6289 = vmatprep.subr.bf16.mxu0 0
        %6290 = vmatpush1.bf16.msra.mxu0 0
        %6291 = vmatprep.subr.bf16.mxu0 0
        %6292 = vmatpush1.bf16.msra.mxu0 0
        %6293 = vmatprep.subr.bf16.mxu0 0
        %6294 = vmatpush1.bf16.msra.mxu0 0
        %6295 = vmatprep.subr.bf16.mxu0 0
        %6296 = vmatpush1.bf16.msra.mxu0 0
        %6297 = vmatprep.subr.bf16.mxu0 0
        %6298 = vmatpush1.bf16.msra.mxu0 0
        %6299 = vmatprep.subr.bf16.mxu0 0
        %6300 = vmatpush1.bf16.msra.mxu0 0
        %6301 = vmatprep.subr.bf16.mxu0 0
        %6302 = vmatpush1.bf16.msra.mxu0 0
        %6303 = vmatprep.mubr.bf16.mxu0 0
        %6304 = vmatmul.mubr.bf16.gmra.mrb[0].mxu0 %v6164
        %v6305 = vpop.f32.mrb[0].mxu0
        %v6306 = vadd.f32 0.0, %v6305
        %v6307 = vpop.f32.mrb[0].mxu0
        %v6308 = vadd.f32 0.0, %v6307
        %v6309 = vpop.f32.mrb[0].mxu0
        %v6310 = vadd.f32 0.0, %v6309
        %v6311 = vpop.f32.mrb[0].mxu0
        %v6312 = vadd.f32 0.0, %v6311
        %6313 = vmatprep.mubr.bf16.mxu0 0
        %6314 = vmatmul.mubr.bf16.gmra.mrb[0].mxu0 %v6165
        %v6315 = vpop.f32.mrb[0].mxu0
        %v6316 = vadd.f32 0.0, %v6315
        %v6317 = vpop.f32.mrb[0].mxu0
        %v6318 = vadd.f32 0.0, %v6317
        %v6319 = vpop.f32.mrb[0].mxu0
        %v6320 = vadd.f32 0.0, %v6319
        %v6321 = vpop.f32.mrb[0].mxu0
        %v6322 = vadd.f32 0.0, %v6321
        %6323 = vmatprep.mubr.bf16.mxu0 0
        %6324 = vmatmul.mubr.bf16.gmra.mrb[0].mxu0 %v6166
        %v6325 = vpop.f32.mrb[0].mxu0
        %v6326 = vadd.f32 0.0, %v6325
        %v6327 = vpop.f32.mrb[0].mxu0
        %v6328 = vadd.f32 0.0, %v6327
        %v6329 = vpop.f32.mrb[0].mxu0
        %v6330 = vadd.f32 0.0, %v6329
        %v6331 = vpop.f32.mrb[0].mxu0
        %v6332 = vadd.f32 0.0, %v6331
        %6333 = vmatprep.mubr.bf16.mxu0 0
        %6334 = vmatmul.mubr.bf16.gmra.mrb[0].mxu0 %v6167
        %v6335 = vpop.f32.mrb[0].mxu0
        %v6336 = vadd.f32 0.0, %v6335
        %v6337 = vpop.f32.mrb[0].mxu0
        %v6338 = vadd.f32 0.0, %v6337
        %v6339 = vpop.f32.mrb[0].mxu0
        %v6340 = vadd.f32 0.0, %v6339
        %v6341 = vpop.f32.mrb[0].mxu0
        %v6342 = vadd.f32 0.0, %v6341
        %6343 = vmatprep.mubr.bf16.mxu0 0
        %6344 = vmatmul.mubr.bf16.gmra.mrb[0].mxu0 %v6168
        %v6345 = vpop.f32.mrb[0].mxu0
        %v6346 = vadd.f32 0.0, %v6345
        %v6347 = vpop.f32.mrb[0].mxu0
        %v6348 = vadd.f32 0.0, %v6347
        %v6349 = vpop.f32.mrb[0].mxu0
        %v6350 = vadd.f32 0.0, %v6349
        %v6351 = vpop.f32.mrb[0].mxu0
        %v6352 = vadd.f32 0.0, %v6351
        %6353 = vmatprep.mubr.bf16.mxu0 0
        %6354 = vmatmul.mubr.bf16.gmra.mrb[0].mxu0 %v6169
        %v6355 = vpop.f32.mrb[0].mxu0
        %v6356 = vadd.f32 0.0, %v6355
        %v6357 = vpop.f32.mrb[0].mxu0
        %v6358 = vadd.f32 0.0, %v6357
        %v6359 = vpop.f32.mrb[0].mxu0
        %v6360 = vadd.f32 0.0, %v6359
        %v6361 = vpop.f32.mrb[0].mxu0
        %v6362 = vadd.f32 0.0, %v6361
        %6363 = vmatprep.mubr.bf16.mxu0 0
        %6364 = vmatmul.mubr.bf16.gmra.mrb[0].mxu0 %v6170
        %v6365 = vpop.f32.mrb[0].mxu0
        %v6366 = vadd.f32 0.0, %v6365
        %v6367 = vpop.f32.mrb[0].mxu0
        %v6368 = vadd.f32 0.0, %v6367
        %v6369 = vpop.f32.mrb[0].mxu0
        %v6370 = vadd.f32 0.0, %v6369
        %v6371 = vpop.f32.mrb[0].mxu0
        %v6372 = vadd.f32 0.0, %v6371
        %6373 = vmatprep.mubr.bf16.mxu0 0
        %6374 = vmatmul.mubr.bf16.gmra.mrb[0].mxu0 %v6171
        %v6375 = vpop.f32.mrb[0].mxu0
        %v6376 = vadd.f32 0.0, %v6375
        %v6377 = vpop.f32.mrb[0].mxu0
        %v6378 = vadd.f32 0.0, %v6377
        %v6379 = vpop.f32.mrb[0].mxu0
        %v6380 = vadd.f32 0.0, %v6379
        %v6381 = vpop.f32.mrb[0].mxu0
        %v6382 = vadd.f32 0.0, %v6381
        %6383 = vmatprep.mubr.bf16.mxu0 0
        %6384 = vmatmul.mubr.bf16.gmra.mrb[0].mxu0 %v6172
        %v6385 = vpop.f32.mrb[0].mxu0
        %v6386 = vadd.f32 0.0, %v6385
        %v6387 = vpop.f32.mrb[0].mxu0
        %v6388 = vadd.f32 0.0, %v6387
        %v6389 = vpop.f32.mrb[0].mxu0
        %v6390 = vadd.f32 0.0, %v6389
        %v6391 = vpop.f32.mrb[0].mxu0
        %v6392 = vadd.f32 0.0, %v6391
        %6393 = vmatprep.mubr.bf16.mxu0 0
        %6394 = vmatmul.mubr.bf16.gmra.mrb[0].mxu0 %v6173
        %v6395 = vpop.f32.mrb[0].mxu0
        %v6396 = vadd.f32 0.0, %v6395
        %v6397 = vpop.f32.mrb[0].mxu0
        %v6398 = vadd.f32 0.0, %v6397
        %v6399 = vpop.f32.mrb[0].mxu0
        %v6400 = vadd.f32 0.0, %v6399
        %v6401 = vpop.f32.mrb[0].mxu0
        %v6402 = vadd.f32 0.0, %v6401
        %6403 = vdwg.mxu0
        %v6404 = vadd.f32 %v6123, %v6306
        %v6405 = vadd.f32 %v6124, %v6308
        %v6406 = vadd.f32 %v6125, %v6310
        %v6407 = vadd.f32 %v6126, %v6312
        %v6408 = vadd.f32 %v6127, %v6316
        %v6409 = vadd.f32 %v6128, %v6318
        %v6410 = vadd.f32 %v6129, %v6320
        %v6411 = vadd.f32 %v6130, %v6322
        %v6412 = vadd.f32 %v6131, %v6326
        %v6413 = vadd.f32 %v6132, %v6328
        %v6414 = vadd.f32 %v6133, %v6330
        %v6415 = vadd.f32 %v6134, %v6332
        %v6416 = vadd.f32 %v6135, %v6336
        %v6417 = vadd.f32 %v6136, %v6338
        %v6418 = vadd.f32 %v6137, %v6340
        %v6419 = vadd.f32 %v6138, %v6342
        %v6420 = vadd.f32 %v6139, %v6346
        %v6421 = vadd.f32 %v6140, %v6348
        %v6422 = vadd.f32 %v6141, %v6350
        %v6423 = vadd.f32 %v6142, %v6352
        %v6424 = vadd.f32 %v6143, %v6356
        %v6425 = vadd.f32 %v6144, %v6358
        %v6426 = vadd.f32 %v6145, %v6360
        %v6427 = vadd.f32 %v6146, %v6362
        %v6428 = vadd.f32 %v6147, %v6366
        %v6429 = vadd.f32 %v6148, %v6368
        %v6430 = vadd.f32 %v6149, %v6370
        %v6431 = vadd.f32 %v6150, %v6372
        %v6432 = vadd.f32 %v6151, %v6376
        %v6433 = vadd.f32 %v6152, %v6378
        %v6434 = vadd.f32 %v6153, %v6380
        %v6435 = vadd.f32 %v6154, %v6382
        %v6436 = vadd.f32 %v6155, %v6386
        %v6437 = vadd.f32 %v6156, %v6388
        %v6438 = vadd.f32 %v6157, %v6390
        %v6439 = vadd.f32 %v6158, %v6392
        %v6440 = vadd.f32 %v6159, %v6396
        %v6441 = vadd.f32 %v6160, %v6398
        %v6442 = vadd.f32 %v6161, %v6400
        %v6443 = vadd.f32 %v6162, %v6402
        %s6444 = scalar_lea.vmem [#allocation2], 32
        %v6445 = vld [vmem:[%s6444] sm:$0xff]
        %v6446 = vld [vmem:[%s6444 + $0x8] sm:$0xff]
        %v6447 = vld [vmem:[%s6444 + $0x10] sm:$0xff]
        %v6448 = vld [vmem:[%s6444 + $0x18] sm:$0xff]
        %v6449 = vld [vmem:[%s6444 + $0x20] sm:$0xff]
        %v6450 = vld [vmem:[%s6444 + $0x28] sm:$0xff]
        %v6451 = vld [vmem:[%s6444 + $0x30] sm:$0xff]
        %v6452 = vld [vmem:[%s6444 + $0x38] sm:$0xff]
        %v6453 = vld [vmem:[%s6444 + $0x40] sm:$0xff]
        %v6454 = vld [vmem:[%s6444 + $0x48] sm:$0xff]
        %s6455 = scalar_lea.vmem %s3, 512
        %v6456 = vld [vmem:[%s6455] sm:$0xff]
        %v6457 = vld [vmem:[%s6455 + $0x8] sm:$0xff]
        %v6458 = vld [vmem:[%s6455 + $0x10] sm:$0xff]
        %v6459 = vld [vmem:[%s6455 + $0x18] sm:$0xff]
        %v6460 = vld [vmem:[%s6455 + $0x20] sm:$0xff]
        %v6461 = vld [vmem:[%s6455 + $0x28] sm:$0xff]
        %v6462 = vld [vmem:[%s6455 + $0x30] sm:$0xff]
        %v6463 = vld [vmem:[%s6455 + $0x38] sm:$0xff]
        %v6464 = vld [vmem:[%s6455 + $0x40] sm:$0xff]
        %v6465 = vld [vmem:[%s6455 + $0x48] sm:$0xff]
        %v6466 = vld [vmem:[%s6455 + $0x50] sm:$0xff]
        %v6467 = vld [vmem:[%s6455 + $0x58] sm:$0xff]
        %v6468 = vld [vmem:[%s6455 + $0x60] sm:$0xff]
        %v6469 = vld [vmem:[%s6455 + $0x68] sm:$0xff]
        %v6470 = vld [vmem:[%s6455 + $0x70] sm:$0xff]
        %v6471 = vld [vmem:[%s6455 + $0x78] sm:$0xff]
        %v6488 = vunpack.c.l.b16 %v6456
        %v6489 = vunpack.c.h.b16 %v6456
        %v6490 = vunpack.c.l.b16 %v6457
        %v6491 = vunpack.c.h.b16 %v6457
        %v6492 = vunpack.c.l.b16 %v6458
        %v6493 = vunpack.c.h.b16 %v6458
        %v6494 = vunpack.c.l.b16 %v6459
        %v6495 = vunpack.c.h.b16 %v6459
        %v6496 = vunpack.c.l.b16 %v6460
        %v6497 = vunpack.c.h.b16 %v6460
        %v6498 = vunpack.c.l.b16 %v6461
        %v6499 = vunpack.c.h.b16 %v6461
        %v6500 = vunpack.c.l.b16 %v6462
        %v6501 = vunpack.c.h.b16 %v6462
        %v6502 = vunpack.c.l.b16 %v6463
        %v6503 = vunpack.c.h.b16 %v6463
        %v6504 = vunpack.c.l.b16 %v6464
        %v6505 = vunpack.c.h.b16 %v6464
        %v6506 = vunpack.c.l.b16 %v6465
        %v6507 = vunpack.c.h.b16 %v6465
        %v6508 = vunpack.c.l.b16 %v6466
        %v6509 = vunpack.c.h.b16 %v6466
        %v6510 = vunpack.c.l.b16 %v6467
        %v6511 = vunpack.c.h.b16 %v6467
        %v6512 = vunpack.c.l.b16 %v6468
        %v6513 = vunpack.c.h.b16 %v6468
        %v6514 = vunpack.c.l.b16 %v6469
        %v6515 = vunpack.c.h.b16 %v6469
        %v6516 = vunpack.c.l.b16 %v6470
        %v6517 = vunpack.c.h.b16 %v6470
        %v6518 = vunpack.c.l.b16 %v6471
        %v6519 = vunpack.c.h.b16 %v6471
        %v6520 = vpack.c.b16 %v6490, %v6488
        %v6521 = vpack.c.b16 %v6491, %v6489
        %v6522 = vpack.c.b16 %v6494, %v6492
        %v6523 = vpack.c.b16 %v6495, %v6493
        %v6524 = vpack.c.b16 %v6498, %v6496
        %v6525 = vpack.c.b16 %v6499, %v6497
        %v6526 = vpack.c.b16 %v6502, %v6500
        %v6527 = vpack.c.b16 %v6503, %v6501
        %v6528 = vpack.c.b16 %v6506, %v6504
        %v6529 = vpack.c.b16 %v6507, %v6505
        %v6530 = vpack.c.b16 %v6510, %v6508
        %v6531 = vpack.c.b16 %v6511, %v6509
        %v6532 = vpack.c.b16 %v6514, %v6512
        %v6533 = vpack.c.b16 %v6515, %v6513
        %v6534 = vpack.c.b16 %v6518, %v6516
        %v6535 = vpack.c.b16 %v6519, %v6517
        %6552 = vmatprep.subr.bf16.mxu0 %v6521
        %6553 = vmatpush1.bf16.msra.mxu0 %v6520
        %6554 = vmatprep.subr.bf16.mxu0 %v6523
        %6555 = vmatpush1.bf16.msra.mxu0 %v6522
        %6556 = vmatprep.subr.bf16.mxu0 %v6525
        %6557 = vmatpush1.bf16.msra.mxu0 %v6524
        %6558 = vmatprep.subr.bf16.mxu0 %v6527
        %6559 = vmatpush1.bf16.msra.mxu0 %v6526
        %6560 = vmatprep.subr.bf16.mxu0 %v6529
        %6561 = vmatpush1.bf16.msra.mxu0 %v6528
        %6562 = vmatprep.subr.bf16.mxu0 %v6531
        %6563 = vmatpush1.bf16.msra.mxu0 %v6530
        %6564 = vmatprep.subr.bf16.mxu0 %v6533
        %6565 = vmatpush1.bf16.msra.mxu0 %v6532
        %6566 = vmatprep.subr.bf16.mxu0 %v6535
        %6567 = vmatpush1.bf16.msra.mxu0 %v6534
        %6568 = vmatprep.subr.bf16.mxu0 0
        %6569 = vmatpush1.bf16.msra.mxu0 0
        %6570 = vmatprep.subr.bf16.mxu0 0
        %6571 = vmatpush1.bf16.msra.mxu0 0
        %6572 = vmatprep.subr.bf16.mxu0 0
        %6573 = vmatpush1.bf16.msra.mxu0 0
        %6574 = vmatprep.subr.bf16.mxu0 0
        %6575 = vmatpush1.bf16.msra.mxu0 0
        %6576 = vmatprep.subr.bf16.mxu0 0
        %6577 = vmatpush1.bf16.msra.mxu0 0
        %6578 = vmatprep.subr.bf16.mxu0 0
        %6579 = vmatpush1.bf16.msra.mxu0 0
        %6580 = vmatprep.subr.bf16.mxu0 0
        %6581 = vmatpush1.bf16.msra.mxu0 0
        %6582 = vmatprep.subr.bf16.mxu0 0
        %6583 = vmatpush1.bf16.msra.mxu0 0
        %6584 = vmatprep.mubr.bf16.mxu0 0
        %6585 = vmatmul.mubr.bf16.gmra.mrb[0].mxu0 %v6445
        %v6586 = vpop.f32.mrb[0].mxu0
        %v6587 = vadd.f32 0.0, %v6586
        %v6588 = vpop.f32.mrb[0].mxu0
        %v6589 = vadd.f32 0.0, %v6588
        %v6590 = vpop.f32.mrb[0].mxu0
        %v6591 = vadd.f32 0.0, %v6590
        %v6592 = vpop.f32.mrb[0].mxu0
        %v6593 = vadd.f32 0.0, %v6592
        %6594 = vmatprep.mubr.bf16.mxu0 0
        %6595 = vmatmul.mubr.bf16.gmra.mrb[0].mxu0 %v6446
        %v6596 = vpop.f32.mrb[0].mxu0
        %v6597 = vadd.f32 0.0, %v6596
        %v6598 = vpop.f32.mrb[0].mxu0
        %v6599 = vadd.f32 0.0, %v6598
        %v6600 = vpop.f32.mrb[0].mxu0
        %v6601 = vadd.f32 0.0, %v6600
        %v6602 = vpop.f32.mrb[0].mxu0
        %v6603 = vadd.f32 0.0, %v6602
        %6604 = vmatprep.mubr.bf16.mxu0 0
        %6605 = vmatmul.mubr.bf16.gmra.mrb[0].mxu0 %v6447
        %v6606 = vpop.f32.mrb[0].mxu0
        %v6607 = vadd.f32 0.0, %v6606
        %v6608 = vpop.f32.mrb[0].mxu0
        %v6609 = vadd.f32 0.0, %v6608
        %v6610 = vpop.f32.mrb[0].mxu0
        %v6611 = vadd.f32 0.0, %v6610
        %v6612 = vpop.f32.mrb[0].mxu0
        %v6613 = vadd.f32 0.0, %v6612
        %6614 = vmatprep.mubr.bf16.mxu0 0
        %6615 = vmatmul.mubr.bf16.gmra.mrb[0].mxu0 %v6448
        %v6616 = vpop.f32.mrb[0].mxu0
        %v6617 = vadd.f32 0.0, %v6616
        %v6618 = vpop.f32.mrb[0].mxu0
        %v6619 = vadd.f32 0.0, %v6618
        %v6620 = vpop.f32.mrb[0].mxu0
        %v6621 = vadd.f32 0.0, %v6620
        %v6622 = vpop.f32.mrb[0].mxu0
        %v6623 = vadd.f32 0.0, %v6622
        %6624 = vmatprep.mubr.bf16.mxu0 0
        %6625 = vmatmul.mubr.bf16.gmra.mrb[0].mxu0 %v6449
        %v6626 = vpop.f32.mrb[0].mxu0
        %v6627 = vadd.f32 0.0, %v6626
        %v6628 = vpop.f32.mrb[0].mxu0
        %v6629 = vadd.f32 0.0, %v6628
        %v6630 = vpop.f32.mrb[0].mxu0
        %v6631 = vadd.f32 0.0, %v6630
        %v6632 = vpop.f32.mrb[0].mxu0
        %v6633 = vadd.f32 0.0, %v6632
        %6634 = vmatprep.mubr.bf16.mxu0 0
        %6635 = vmatmul.mubr.bf16.gmra.mrb[0].mxu0 %v6450
        %v6636 = vpop.f32.mrb[0].mxu0
        %v6637 = vadd.f32 0.0, %v6636
        %v6638 = vpop.f32.mrb[0].mxu0
        %v6639 = vadd.f32 0.0, %v6638
        %v6640 = vpop.f32.mrb[0].mxu0
        %v6641 = vadd.f32 0.0, %v6640
        %v6642 = vpop.f32.mrb[0].mxu0
        %v6643 = vadd.f32 0.0, %v6642
        %6644 = vmatprep.mubr.bf16.mxu0 0
        %6645 = vmatmul.mubr.bf16.gmra.mrb[0].mxu0 %v6451
        %v6646 = vpop.f32.mrb[0].mxu0
        %v6647 = vadd.f32 0.0, %v6646
        %v6648 = vpop.f32.mrb[0].mxu0
        %v6649 = vadd.f32 0.0, %v6648
        %v6650 = vpop.f32.mrb[0].mxu0
        %v6651 = vadd.f32 0.0, %v6650
        %v6652 = vpop.f32.mrb[0].mxu0
        %v6653 = vadd.f32 0.0, %v6652
        %6654 = vmatprep.mubr.bf16.mxu0 0
        %6655 = vmatmul.mubr.bf16.gmra.mrb[0].mxu0 %v6452
        %v6656 = vpop.f32.mrb[0].mxu0
        %v6657 = vadd.f32 0.0, %v6656
        %v6658 = vpop.f32.mrb[0].mxu0
        %v6659 = vadd.f32 0.0, %v6658
        %v6660 = vpop.f32.mrb[0].mxu0
        %v6661 = vadd.f32 0.0, %v6660
        %v6662 = vpop.f32.mrb[0].mxu0
        %v6663 = vadd.f32 0.0, %v6662
        %6664 = vmatprep.mubr.bf16.mxu0 0
        %6665 = vmatmul.mubr.bf16.gmra.mrb[0].mxu0 %v6453
        %v6666 = vpop.f32.mrb[0].mxu0
        %v6667 = vadd.f32 0.0, %v6666
        %v6668 = vpop.f32.mrb[0].mxu0
        %v6669 = vadd.f32 0.0, %v6668
        %v6670 = vpop.f32.mrb[0].mxu0
        %v6671 = vadd.f32 0.0, %v6670
        %v6672 = vpop.f32.mrb[0].mxu0
        %v6673 = vadd.f32 0.0, %v6672
        %6674 = vmatprep.mubr.bf16.mxu0 0
        %6675 = vmatmul.mubr.bf16.gmra.mrb[0].mxu0 %v6454
        %v6676 = vpop.f32.mrb[0].mxu0
        %v6677 = vadd.f32 0.0, %v6676
        %v6678 = vpop.f32.mrb[0].mxu0
        %v6679 = vadd.f32 0.0, %v6678
        %v6680 = vpop.f32.mrb[0].mxu0
        %v6681 = vadd.f32 0.0, %v6680
        %v6682 = vpop.f32.mrb[0].mxu0
        %v6683 = vadd.f32 0.0, %v6682
        %6684 = vdwg.mxu0
        %v6685 = vadd.f32 %v6404, %v6587
        %v6686 = vadd.f32 %v6405, %v6589
        %v6687 = vadd.f32 %v6406, %v6591
        %v6688 = vadd.f32 %v6407, %v6593
        %v6689 = vadd.f32 %v6408, %v6597
        %v6690 = vadd.f32 %v6409, %v6599
        %v6691 = vadd.f32 %v6410, %v6601
        %v6692 = vadd.f32 %v6411, %v6603
        %v6693 = vadd.f32 %v6412, %v6607
        %v6694 = vadd.f32 %v6413, %v6609
        %v6695 = vadd.f32 %v6414, %v6611
        %v6696 = vadd.f32 %v6415, %v6613
        %v6697 = vadd.f32 %v6416, %v6617
        %v6698 = vadd.f32 %v6417, %v6619
        %v6699 = vadd.f32 %v6418, %v6621
        %v6700 = vadd.f32 %v6419, %v6623
        %v6701 = vadd.f32 %v6420, %v6627
        %v6702 = vadd.f32 %v6421, %v6629
        %v6703 = vadd.f32 %v6422, %v6631
        %v6704 = vadd.f32 %v6423, %v6633
        %v6705 = vadd.f32 %v6424, %v6637
        %v6706 = vadd.f32 %v6425, %v6639
        %v6707 = vadd.f32 %v6426, %v6641
        %v6708 = vadd.f32 %v6427, %v6643
        %v6709 = vadd.f32 %v6428, %v6647
        %v6710 = vadd.f32 %v6429, %v6649
        %v6711 = vadd.f32 %v6430, %v6651
        %v6712 = vadd.f32 %v6431, %v6653
        %v6713 = vadd.f32 %v6432, %v6657
        %v6714 = vadd.f32 %v6433, %v6659
        %v6715 = vadd.f32 %v6434, %v6661
        %v6716 = vadd.f32 %v6435, %v6663
        %v6717 = vadd.f32 %v6436, %v6667
        %v6718 = vadd.f32 %v6437, %v6669
        %v6719 = vadd.f32 %v6438, %v6671
        %v6720 = vadd.f32 %v6439, %v6673
        %v6721 = vadd.f32 %v6440, %v6677
        %v6722 = vadd.f32 %v6441, %v6679
        %v6723 = vadd.f32 %v6442, %v6681
        %v6724 = vadd.f32 %v6443, %v6683
        %v6725 = vmax.f32 %v6685, %v6686
        %v6726 = vmax.f32 %v6687, %v6688
        %v6727 = vmax.f32 %v6689, %v6690
        %v6728 = vmax.f32 %v6691, %v6692
        %v6729 = vmax.f32 %v6693, %v6694
        %v6730 = vmax.f32 %v6695, %v6696
        %v6731 = vmax.f32 %v6697, %v6698
        %v6732 = vmax.f32 %v6699, %v6700
        %v6733 = vmax.f32 %v6701, %v6702
        %v6734 = vmax.f32 %v6703, %v6704
        %v6735 = vmax.f32 %v6705, %v6706
        %v6736 = vmax.f32 %v6707, %v6708
        %v6737 = vmax.f32 %v6709, %v6710
        %v6738 = vmax.f32 %v6711, %v6712
        %v6739 = vmax.f32 %v6713, %v6714
        %v6740 = vmax.f32 %v6715, %v6716
        %v6741 = vmax.f32 %v6717, %v6718
        %v6742 = vmax.f32 %v6719, %v6720
        %v6743 = vmax.f32 %v6721, %v6722
        %v6744 = vmax.f32 %v6723, %v6724
        %v6745 = vmax.f32 %v6725, %v6727
        %v6746 = vmax.f32 %v6726, %v6728
        %v6747 = vmax.f32 %v6729, %v6731
        %v6748 = vmax.f32 %v6730, %v6732
        %v6749 = vmax.f32 %v6733, %v6735
        %v6750 = vmax.f32 %v6734, %v6736
        %v6751 = vmax.f32 %v6737, %v6739
        %v6752 = vmax.f32 %v6738, %v6740
        %v6753 = vmax.f32 %v6741, %v6743
        %v6754 = vmax.f32 %v6742, %v6744
        %v6755 = vld [vmem:[%s4] sm:$0x1]
        %v6757 = vlaneseq
        %v6758 = vshrl.u32 %v6757, 7
        %v6759 = vsub.s32 0, %v6758
        %v6760 = vrot.slane %v6755, %v6759
        %v6762 = vadd.f32 %v6745, %v6760
        %v6763 = vadd.f32 %v6746, %v6760
        %v6764 = vadd.f32 %v6747, %v6760
        %v6765 = vadd.f32 %v6748, %v6760
        %v6766 = vadd.f32 %v6749, %v6760
        %v6767 = vadd.f32 %v6750, %v6760
        %v6768 = vadd.f32 %v6751, %v6760
        %v6769 = vadd.f32 %v6752, %v6760
        %v6770 = vadd.f32 %v6753, %v6760
        %v6771 = vadd.f32 %v6754, %v6760
        %v6772 = vmax.f32 %v6762, 0.0
        %v6773 = vmax.f32 %v6763, 0.0
        %v6774 = vmax.f32 %v6764, 0.0
        %v6775 = vmax.f32 %v6765, 0.0
        %v6776 = vmax.f32 %v6766, 0.0
        %v6777 = vmax.f32 %v6767, 0.0
        %v6778 = vmax.f32 %v6768, 0.0
        %v6779 = vmax.f32 %v6769, 0.0
        %v6780 = vmax.f32 %v6770, 0.0
        %v6781 = vmax.f32 %v6771, 0.0
        %v6782 = vpack.c.bf16 %v6773, %v6772
        %v6783 = vpack.c.bf16 %v6775, %v6774
        %v6784 = vpack.c.bf16 %v6777, %v6776
        %v6785 = vpack.c.bf16 %v6779, %v6778
        %v6786 = vpack.c.bf16 %v6781, %v6780
        %6787 = vst [vmem:[#allocation3] sm:$0xff] %v6782
        %6788 = vst [vmem:[#allocation3 + $0x8] sm:$0xff] %v6783
        %6789 = vst [vmem:[#allocation3 + $0x10] sm:$0xff] %v6784
        %6790 = vst [vmem:[#allocation3 + $0x18] sm:$0xff] %v6785
        %6791 = vst [vmem:[#allocation3 + $0x20] sm:$0xff] %v6786
        %v6792 = vld [vmem:[#allocation3] sm:$0xff]
        %v6793 = vld [vmem:[%s5] sm:$0xf]
        %v6794 = vld [vmem:[%s5 + $0x4] sm:$0xf]
        %v6795 = vld [vmem:[%s5 + $0x8] sm:$0xf]
        %v6796 = vld [vmem:[%s5 + $0xc] sm:$0xf]
        %v6797 = vld [vmem:[%s5 + $0x10] sm:$0xf]
        %v6798 = vld [vmem:[%s5 + $0x14] sm:$0xf]
        %v6799 = vld [vmem:[%s5 + $0x18] sm:$0xf]
        %v6800 = vld [vmem:[%s5 + $0x1c] sm:$0xf]
        %v6801 = vld [vmem:[%s5 + $0x20] sm:$0xf]
        %v6802 = vld [vmem:[%s5 + $0x24] sm:$0xf]
        %v6803 = vld [vmem:[%s5 + $0x28] sm:$0xf]
        %v6804 = vld [vmem:[%s5 + $0x2c] sm:$0xf]
        %v6805 = vld [vmem:[%s5 + $0x30] sm:$0xf]
        %v6806 = vld [vmem:[%s5 + $0x34] sm:$0xf]
        %v6807 = vld [vmem:[%s5 + $0x38] sm:$0xf]
        %v6808 = vld [vmem:[%s5 + $0x3c] sm:$0xf]
        %s6809 = scalar_lea.vmem [#allocation3], 8
        %v6810 = vld [vmem:[%s6809] sm:$0xff]
        %s6811 = scalar_lea.vmem %s5, 64
        %v6812 = vld [vmem:[%s6811] sm:$0xf]
        %v6813 = vld [vmem:[%s6811 + $0x4] sm:$0xf]
        %v6814 = vld [vmem:[%s6811 + $0x8] sm:$0xf]
        %v6815 = vld [vmem:[%s6811 + $0xc] sm:$0xf]
        %v6816 = vld [vmem:[%s6811 + $0x10] sm:$0xf]
        %v6817 = vld [vmem:[%s6811 + $0x14] sm:$0xf]
        %v6818 = vld [vmem:[%s6811 + $0x18] sm:$0xf]
        %v6819 = vld [vmem:[%s6811 + $0x1c] sm:$0xf]
        %v6820 = vld [vmem:[%s6811 + $0x20] sm:$0xf]
        %v6821 = vld [vmem:[%s6811 + $0x24] sm:$0xf]
        %v6822 = vld [vmem:[%s6811 + $0x28] sm:$0xf]
        %v6823 = vld [vmem:[%s6811 + $0x2c] sm:$0xf]
        %v6824 = vld [vmem:[%s6811 + $0x30] sm:$0xf]
        %v6825 = vld [vmem:[%s6811 + $0x34] sm:$0xf]
        %v6826 = vld [vmem:[%s6811 + $0x38] sm:$0xf]
        %v6827 = vld [vmem:[%s6811 + $0x3c] sm:$0xf]
        %v6844 = vunpack.c.l.b16 %v6812
        %v6845 = vunpack.c.l.b16 %v6813
        %v6846 = vunpack.c.l.b16 %v6814
        %v6847 = vunpack.c.l.b16 %v6815
        %v6848 = vunpack.c.l.b16 %v6816
        %v6849 = vunpack.c.l.b16 %v6817
        %v6850 = vunpack.c.l.b16 %v6818
        %v6851 = vunpack.c.l.b16 %v6819
        %v6852 = vunpack.c.l.b16 %v6820
        %v6853 = vunpack.c.l.b16 %v6821
        %v6854 = vunpack.c.l.b16 %v6822
        %v6855 = vunpack.c.l.b16 %v6823
        %v6856 = vunpack.c.l.b16 %v6824
        %v6857 = vunpack.c.l.b16 %v6825
        %v6858 = vunpack.c.l.b16 %v6826
        %v6859 = vunpack.c.l.b16 %v6827
        %v6860 = vpack.c.b16 %v6845, %v6844
        %v6861 = vpack.c.b16 %v6847, %v6846
        %v6862 = vpack.c.b16 %v6849, %v6848
        %v6863 = vpack.c.b16 %v6851, %v6850
        %v6864 = vpack.c.b16 %v6853, %v6852
        %v6865 = vpack.c.b16 %v6855, %v6854
        %v6866 = vpack.c.b16 %v6857, %v6856
        %v6867 = vpack.c.b16 %v6859, %v6858
        %6876 = vmatprep.subr.bf16.mxu0 0
        %6877 = vmatpush1.bf16.msra.mxu0 %v6860
        %6878 = vmatprep.subr.bf16.mxu0 0
        %6879 = vmatpush1.bf16.msra.mxu0 %v6861
        %6880 = vmatprep.subr.bf16.mxu0 0
        %6881 = vmatpush1.bf16.msra.mxu0 %v6862
        %6882 = vmatprep.subr.bf16.mxu0 0
        %6883 = vmatpush1.bf16.msra.mxu0 %v6863
        %6884 = vmatprep.subr.bf16.mxu0 0
        %6885 = vmatpush1.bf16.msra.mxu0 %v6864
        %6886 = vmatprep.subr.bf16.mxu0 0
        %6887 = vmatpush1.bf16.msra.mxu0 %v6865
        %6888 = vmatprep.subr.bf16.mxu0 0
        %6889 = vmatpush1.bf16.msra.mxu0 %v6866
        %6890 = vmatprep.subr.bf16.mxu0 0
        %6891 = vmatpush1.bf16.msra.mxu0 %v6867
        %6892 = vmatprep.subr.bf16.mxu0 0
        %6893 = vmatpush1.bf16.msra.mxu0 0
        %6894 = vmatprep.subr.bf16.mxu0 0
        %6895 = vmatpush1.bf16.msra.mxu0 0
        %6896 = vmatprep.subr.bf16.mxu0 0
        %6897 = vmatpush1.bf16.msra.mxu0 0
        %6898 = vmatprep.subr.bf16.mxu0 0
        %6899 = vmatpush1.bf16.msra.mxu0 0
        %6900 = vmatprep.subr.bf16.mxu0 0
        %6901 = vmatpush1.bf16.msra.mxu0 0
        %6902 = vmatprep.subr.bf16.mxu0 0
        %6903 = vmatpush1.bf16.msra.mxu0 0
        %6904 = vmatprep.subr.bf16.mxu0 0
        %6905 = vmatpush1.bf16.msra.mxu0 0
        %6906 = vmatprep.subr.bf16.mxu0 0
        %6907 = vmatpush1.bf16.msra.mxu0 0
        %6908 = vmatprep.mubr.bf16.mxu0 0
        %6909 = vmatmul.mubr.bf16.gmra.mrb[0].mxu0 %v6810
        %v6910 = vpop.f32.mrb[0].mxu0
        %v6911 = vadd.f32 0.0, %v6910
        %v6912 = vpop.f32.mrb[0].mxu0
        %v6913 = vpop.f32.mrb[0].mxu0
        %v6914 = vadd.f32 0.0, %v6913
        %v6915 = vpop.f32.mrb[0].mxu0
        %6916 = vdwg.mxu0
        %v6933 = vunpack.c.l.b16 %v6793
        %v6934 = vunpack.c.l.b16 %v6794
        %v6935 = vunpack.c.l.b16 %v6795
        %v6936 = vunpack.c.l.b16 %v6796
        %v6937 = vunpack.c.l.b16 %v6797
        %v6938 = vunpack.c.l.b16 %v6798
        %v6939 = vunpack.c.l.b16 %v6799
        %v6940 = vunpack.c.l.b16 %v6800
        %v6941 = vunpack.c.l.b16 %v6801
        %v6942 = vunpack.c.l.b16 %v6802
        %v6943 = vunpack.c.l.b16 %v6803
        %v6944 = vunpack.c.l.b16 %v6804
        %v6945 = vunpack.c.l.b16 %v6805
        %v6946 = vunpack.c.l.b16 %v6806
        %v6947 = vunpack.c.l.b16 %v6807
        %v6948 = vunpack.c.l.b16 %v6808
        %v6949 = vpack.c.b16 %v6934, %v6933
        %v6950 = vpack.c.b16 %v6936, %v6935
        %v6951 = vpack.c.b16 %v6938, %v6937
        %v6952 = vpack.c.b16 %v6940, %v6939
        %v6953 = vpack.c.b16 %v6942, %v6941
        %v6954 = vpack.c.b16 %v6944, %v6943
        %v6955 = vpack.c.b16 %v6946, %v6945
        %v6956 = vpack.c.b16 %v6948, %v6947
        %6965 = vmatprep.subr.bf16.mxu0 0
        %6966 = vmatpush1.bf16.msra.mxu0 %v6949
        %6967 = vmatprep.subr.bf16.mxu0 0
        %6968 = vmatpush1.bf16.msra.mxu0 %v6950
        %6969 = vmatprep.subr.bf16.mxu0 0
        %6970 = vmatpush1.bf16.msra.mxu0 %v6951
        %6971 = vmatprep.subr.bf16.mxu0 0
        %6972 = vmatpush1.bf16.msra.mxu0 %v6952
        %6973 = vmatprep.subr.bf16.mxu0 0
        %6974 = vmatpush1.bf16.msra.mxu0 %v6953
        %6975 = vmatprep.subr.bf16.mxu0 0
        %6976 = vmatpush1.bf16.msra.mxu0 %v6954
        %6977 = vmatprep.subr.bf16.mxu0 0
        %6978 = vmatpush1.bf16.msra.mxu0 %v6955
        %6979 = vmatprep.subr.bf16.mxu0 0
        %6980 = vmatpush1.bf16.msra.mxu0 %v6956
        %6981 = vmatprep.subr.bf16.mxu0 0
        %6982 = vmatpush1.bf16.msra.mxu0 0
        %6983 = vmatprep.subr.bf16.mxu0 0
        %6984 = vmatpush1.bf16.msra.mxu0 0
        %6985 = vmatprep.subr.bf16.mxu0 0
        %6986 = vmatpush1.bf16.msra.mxu0 0
        %6987 = vmatprep.subr.bf16.mxu0 0
        %6988 = vmatpush1.bf16.msra.mxu0 0
        %6989 = vmatprep.subr.bf16.mxu0 0
        %6990 = vmatpush1.bf16.msra.mxu0 0
        %6991 = vmatprep.subr.bf16.mxu0 0
        %6992 = vmatpush1.bf16.msra.mxu0 0
        %6993 = vmatprep.subr.bf16.mxu0 0
        %6994 = vmatpush1.bf16.msra.mxu0 0
        %6995 = vmatprep.subr.bf16.mxu0 0
        %6996 = vmatpush1.bf16.msra.mxu0 0
        %6997 = vmatprep.mubr.bf16.mxu0 0
        %6998 = vmatmul.mubr.bf16.gmra.mrb[0].mxu0 %v6792
        %v6999 = vpop.f32.mrb[0].mxu0
        %v7000 = vadd.f32 %v6911, %v6999
        %v7001 = vpop.f32.mrb[0].mxu0
        %v7002 = vpop.f32.mrb[0].mxu0
        %v7003 = vadd.f32 %v6914, %v7002
        %v7004 = vpop.f32.mrb[0].mxu0
        %7005 = vdwg.mxu0
        %s7006 = scalar_lea.vmem [#allocation3], 16
        %v7007 = vld [vmem:[%s7006] sm:$0xff]
        %s7008 = scalar_lea.vmem %s5, 128
        %v7009 = vld [vmem:[%s7008] sm:$0xf]
        %v7010 = vld [vmem:[%s7008 + $0x4] sm:$0xf]
        %v7011 = vld [vmem:[%s7008 + $0x8] sm:$0xf]
        %v7012 = vld [vmem:[%s7008 + $0xc] sm:$0xf]
        %v7013 = vld [vmem:[%s7008 + $0x10] sm:$0xf]
        %v7014 = vld [vmem:[%s7008 + $0x14] sm:$0xf]
        %v7015 = vld [vmem:[%s7008 + $0x18] sm:$0xf]
        %v7016 = vld [vmem:[%s7008 + $0x1c] sm:$0xf]
        %v7017 = vld [vmem:[%s7008 + $0x20] sm:$0xf]
        %v7018 = vld [vmem:[%s7008 + $0x24] sm:$0xf]
        %v7019 = vld [vmem:[%s7008 + $0x28] sm:$0xf]
        %v7020 = vld [vmem:[%s7008 + $0x2c] sm:$0xf]
        %v7021 = vld [vmem:[%s7008 + $0x30] sm:$0xf]
        %v7022 = vld [vmem:[%s7008 + $0x34] sm:$0xf]
        %v7023 = vld [vmem:[%s7008 + $0x38] sm:$0xf]
        %v7024 = vld [vmem:[%s7008 + $0x3c] sm:$0xf]
        %v7041 = vunpack.c.l.b16 %v7009
        %v7042 = vunpack.c.l.b16 %v7010
        %v7043 = vunpack.c.l.b16 %v7011
        %v7044 = vunpack.c.l.b16 %v7012
        %v7045 = vunpack.c.l.b16 %v7013
        %v7046 = vunpack.c.l.b16 %v7014
        %v7047 = vunpack.c.l.b16 %v7015
        %v7048 = vunpack.c.l.b16 %v7016
        %v7049 = vunpack.c.l.b16 %v7017
        %v7050 = vunpack.c.l.b16 %v7018
        %v7051 = vunpack.c.l.b16 %v7019
        %v7052 = vunpack.c.l.b16 %v7020
        %v7053 = vunpack.c.l.b16 %v7021
        %v7054 = vunpack.c.l.b16 %v7022
        %v7055 = vunpack.c.l.b16 %v7023
        %v7056 = vunpack.c.l.b16 %v7024
        %v7057 = vpack.c.b16 %v7042, %v7041
        %v7058 = vpack.c.b16 %v7044, %v7043
        %v7059 = vpack.c.b16 %v7046, %v7045
        %v7060 = vpack.c.b16 %v7048, %v7047
        %v7061 = vpack.c.b16 %v7050, %v7049
        %v7062 = vpack.c.b16 %v7052, %v7051
        %v7063 = vpack.c.b16 %v7054, %v7053
        %v7064 = vpack.c.b16 %v7056, %v7055
        %7073 = vmatprep.subr.bf16.mxu0 0
        %7074 = vmatpush1.bf16.msra.mxu0 %v7057
        %7075 = vmatprep.subr.bf16.mxu0 0
        %7076 = vmatpush1.bf16.msra.mxu0 %v7058
        %7077 = vmatprep.subr.bf16.mxu0 0
        %7078 = vmatpush1.bf16.msra.mxu0 %v7059
        %7079 = vmatprep.subr.bf16.mxu0 0
        %7080 = vmatpush1.bf16.msra.mxu0 %v7060
        %7081 = vmatprep.subr.bf16.mxu0 0
        %7082 = vmatpush1.bf16.msra.mxu0 %v7061
        %7083 = vmatprep.subr.bf16.mxu0 0
        %7084 = vmatpush1.bf16.msra.mxu0 %v7062
        %7085 = vmatprep.subr.bf16.mxu0 0
        %7086 = vmatpush1.bf16.msra.mxu0 %v7063
        %7087 = vmatprep.subr.bf16.mxu0 0
        %7088 = vmatpush1.bf16.msra.mxu0 %v7064
        %7089 = vmatprep.subr.bf16.mxu0 0
        %7090 = vmatpush1.bf16.msra.mxu0 0
        %7091 = vmatprep.subr.bf16.mxu0 0
        %7092 = vmatpush1.bf16.msra.mxu0 0
        %7093 = vmatprep.subr.bf16.mxu0 0
        %7094 = vmatpush1.bf16.msra.mxu0 0
        %7095 = vmatprep.subr.bf16.mxu0 0
        %7096 = vmatpush1.bf16.msra.mxu0 0
        %7097 = vmatprep.subr.bf16.mxu0 0
        %7098 = vmatpush1.bf16.msra.mxu0 0
        %7099 = vmatprep.subr.bf16.mxu0 0
        %7100 = vmatpush1.bf16.msra.mxu0 0
        %7101 = vmatprep.subr.bf16.mxu0 0
        %7102 = vmatpush1.bf16.msra.mxu0 0
        %7103 = vmatprep.subr.bf16.mxu0 0
        %7104 = vmatpush1.bf16.msra.mxu0 0
        %7105 = vmatprep.mubr.bf16.mxu0 0
        %7106 = vmatmul.mubr.bf16.gmra.mrb[0].mxu0 %v7007
        %v7107 = vpop.f32.mrb[0].mxu0
        %v7108 = vadd.f32 0.0, %v7107
        %v7109 = vpop.f32.mrb[0].mxu0
        %v7110 = vpop.f32.mrb[0].mxu0
        %v7111 = vadd.f32 0.0, %v7110
        %v7112 = vpop.f32.mrb[0].mxu0
        %7113 = vdwg.mxu0
        %v7114 = vadd.f32 %v7000, %v7108
        %v7115 = vadd.f32 %v7003, %v7111
        %s7116 = scalar_lea.vmem [#allocation3], 24
        %v7117 = vld [vmem:[%s7116] sm:$0xff]
        %s7118 = scalar_lea.vmem %s5, 192
        %v7119 = vld [vmem:[%s7118] sm:$0xf]
        %v7120 = vld [vmem:[%s7118 + $0x4] sm:$0xf]
        %v7121 = vld [vmem:[%s7118 + $0x8] sm:$0xf]
        %v7122 = vld [vmem:[%s7118 + $0xc] sm:$0xf]
        %v7123 = vld [vmem:[%s7118 + $0x10] sm:$0xf]
        %v7124 = vld [vmem:[%s7118 + $0x14] sm:$0xf]
        %v7125 = vld [vmem:[%s7118 + $0x18] sm:$0xf]
        %v7126 = vld [vmem:[%s7118 + $0x1c] sm:$0xf]
        %v7127 = vld [vmem:[%s7118 + $0x20] sm:$0xf]
        %v7128 = vld [vmem:[%s7118 + $0x24] sm:$0xf]
        %v7129 = vld [vmem:[%s7118 + $0x28] sm:$0xf]
        %v7130 = vld [vmem:[%s7118 + $0x2c] sm:$0xf]
        %v7131 = vld [vmem:[%s7118 + $0x30] sm:$0xf]
        %v7132 = vld [vmem:[%s7118 + $0x34] sm:$0xf]
        %v7133 = vld [vmem:[%s7118 + $0x38] sm:$0xf]
        %v7134 = vld [vmem:[%s7118 + $0x3c] sm:$0xf]
        %v7151 = vunpack.c.l.b16 %v7119
        %v7152 = vunpack.c.l.b16 %v7120
        %v7153 = vunpack.c.l.b16 %v7121
        %v7154 = vunpack.c.l.b16 %v7122
        %v7155 = vunpack.c.l.b16 %v7123
        %v7156 = vunpack.c.l.b16 %v7124
        %v7157 = vunpack.c.l.b16 %v7125
        %v7158 = vunpack.c.l.b16 %v7126
        %v7159 = vunpack.c.l.b16 %v7127
        %v7160 = vunpack.c.l.b16 %v7128
        %v7161 = vunpack.c.l.b16 %v7129
        %v7162 = vunpack.c.l.b16 %v7130
        %v7163 = vunpack.c.l.b16 %v7131
        %v7164 = vunpack.c.l.b16 %v7132
        %v7165 = vunpack.c.l.b16 %v7133
        %v7166 = vunpack.c.l.b16 %v7134
        %v7167 = vpack.c.b16 %v7152, %v7151
        %v7168 = vpack.c.b16 %v7154, %v7153
        %v7169 = vpack.c.b16 %v7156, %v7155
        %v7170 = vpack.c.b16 %v7158, %v7157
        %v7171 = vpack.c.b16 %v7160, %v7159
        %v7172 = vpack.c.b16 %v7162, %v7161
        %v7173 = vpack.c.b16 %v7164, %v7163
        %v7174 = vpack.c.b16 %v7166, %v7165
        %7183 = vmatprep.subr.bf16.mxu0 0
        %7184 = vmatpush1.bf16.msra.mxu0 %v7167
        %7185 = vmatprep.subr.bf16.mxu0 0
        %7186 = vmatpush1.bf16.msra.mxu0 %v7168
        %7187 = vmatprep.subr.bf16.mxu0 0
        %7188 = vmatpush1.bf16.msra.mxu0 %v7169
        %7189 = vmatprep.subr.bf16.mxu0 0
        %7190 = vmatpush1.bf16.msra.mxu0 %v7170
        %7191 = vmatprep.subr.bf16.mxu0 0
        %7192 = vmatpush1.bf16.msra.mxu0 %v7171
        %7193 = vmatprep.subr.bf16.mxu0 0
        %7194 = vmatpush1.bf16.msra.mxu0 %v7172
        %7195 = vmatprep.subr.bf16.mxu0 0
        %7196 = vmatpush1.bf16.msra.mxu0 %v7173
        %7197 = vmatprep.subr.bf16.mxu0 0
        %7198 = vmatpush1.bf16.msra.mxu0 %v7174
        %7199 = vmatprep.subr.bf16.mxu0 0
        %7200 = vmatpush1.bf16.msra.mxu0 0
        %7201 = vmatprep.subr.bf16.mxu0 0
        %7202 = vmatpush1.bf16.msra.mxu0 0
        %7203 = vmatprep.subr.bf16.mxu0 0
        %7204 = vmatpush1.bf16.msra.mxu0 0
        %7205 = vmatprep.subr.bf16.mxu0 0
        %7206 = vmatpush1.bf16.msra.mxu0 0
        %7207 = vmatprep.subr.bf16.mxu0 0
        %7208 = vmatpush1.bf16.msra.mxu0 0
        %7209 = vmatprep.subr.bf16.mxu0 0
        %7210 = vmatpush1.bf16.msra.mxu0 0
        %7211 = vmatprep.subr.bf16.mxu0 0
        %7212 = vmatpush1.bf16.msra.mxu0 0
        %7213 = vmatprep.subr.bf16.mxu0 0
        %7214 = vmatpush1.bf16.msra.mxu0 0
        %7215 = vmatprep.mubr.bf16.mxu0 0
        %7216 = vmatmul.mubr.bf16.gmra.mrb[0].mxu0 %v7117
        %v7217 = vpop.f32.mrb[0].mxu0
        %v7218 = vadd.f32 0.0, %v7217
        %v7219 = vpop.f32.mrb[0].mxu0
        %v7220 = vpop.f32.mrb[0].mxu0
        %v7221 = vadd.f32 0.0, %v7220
        %v7222 = vpop.f32.mrb[0].mxu0
        %7223 = vdwg.mxu0
        %v7224 = vadd.f32 %v7114, %v7218
        %v7225 = vadd.f32 %v7115, %v7221
        %s7226 = scalar_lea.vmem [#allocation3], 32
        %v7227 = vld [vmem:[%s7226] sm:$0xff]
        %s7228 = scalar_lea.vmem %s5, 256
        %v7229 = vld [vmem:[%s7228] sm:$0xf]
        %v7230 = vld [vmem:[%s7228 + $0x4] sm:$0xf]
        %v7231 = vld [vmem:[%s7228 + $0x8] sm:$0xf]
        %v7232 = vld [vmem:[%s7228 + $0xc] sm:$0xf]
        %v7233 = vld [vmem:[%s7228 + $0x10] sm:$0xf]
        %v7234 = vld [vmem:[%s7228 + $0x14] sm:$0xf]
        %v7235 = vld [vmem:[%s7228 + $0x18] sm:$0xf]
        %v7236 = vld [vmem:[%s7228 + $0x1c] sm:$0xf]
        %v7237 = vld [vmem:[%s7228 + $0x20] sm:$0xf]
        %v7238 = vld [vmem:[%s7228 + $0x24] sm:$0xf]
        %v7239 = vld [vmem:[%s7228 + $0x28] sm:$0xf]
        %v7240 = vld [vmem:[%s7228 + $0x2c] sm:$0xf]
        %v7241 = vld [vmem:[%s7228 + $0x30] sm:$0xf]
        %v7242 = vld [vmem:[%s7228 + $0x34] sm:$0xf]
        %v7243 = vld [vmem:[%s7228 + $0x38] sm:$0xf]
        %v7244 = vld [vmem:[%s7228 + $0x3c] sm:$0xf]
        %v7261 = vunpack.c.l.b16 %v7229
        %v7262 = vunpack.c.l.b16 %v7230
        %v7263 = vunpack.c.l.b16 %v7231
        %v7264 = vunpack.c.l.b16 %v7232
        %v7265 = vunpack.c.l.b16 %v7233
        %v7266 = vunpack.c.l.b16 %v7234
        %v7267 = vunpack.c.l.b16 %v7235
        %v7268 = vunpack.c.l.b16 %v7236
        %v7269 = vunpack.c.l.b16 %v7237
        %v7270 = vunpack.c.l.b16 %v7238
        %v7271 = vunpack.c.l.b16 %v7239
        %v7272 = vunpack.c.l.b16 %v7240
        %v7273 = vunpack.c.l.b16 %v7241
        %v7274 = vunpack.c.l.b16 %v7242
        %v7275 = vunpack.c.l.b16 %v7243
        %v7276 = vunpack.c.l.b16 %v7244
        %v7277 = vpack.c.b16 %v7262, %v7261
        %v7278 = vpack.c.b16 %v7264, %v7263
        %v7279 = vpack.c.b16 %v7266, %v7265
        %v7280 = vpack.c.b16 %v7268, %v7267
        %v7281 = vpack.c.b16 %v7270, %v7269
        %v7282 = vpack.c.b16 %v7272, %v7271
        %v7283 = vpack.c.b16 %v7274, %v7273
        %v7284 = vpack.c.b16 %v7276, %v7275
        %7293 = vmatprep.subr.bf16.mxu0 0
        %7294 = vmatpush1.bf16.msra.mxu0 %v7277
        %7295 = vmatprep.subr.bf16.mxu0 0
        %7296 = vmatpush1.bf16.msra.mxu0 %v7278
        %7297 = vmatprep.subr.bf16.mxu0 0
        %7298 = vmatpush1.bf16.msra.mxu0 %v7279
        %7299 = vmatprep.subr.bf16.mxu0 0
        %7300 = vmatpush1.bf16.msra.mxu0 %v7280
        %7301 = vmatprep.subr.bf16.mxu0 0
        %7302 = vmatpush1.bf16.msra.mxu0 %v7281
        %7303 = vmatprep.subr.bf16.mxu0 0
        %7304 = vmatpush1.bf16.msra.mxu0 %v7282
        %7305 = vmatprep.subr.bf16.mxu0 0
        %7306 = vmatpush1.bf16.msra.mxu0 %v7283
        %7307 = vmatprep.subr.bf16.mxu0 0
        %7308 = vmatpush1.bf16.msra.mxu0 %v7284
        %7309 = vmatprep.subr.bf16.mxu0 0
        %7310 = vmatpush1.bf16.msra.mxu0 0
        %7311 = vmatprep.subr.bf16.mxu0 0
        %7312 = vmatpush1.bf16.msra.mxu0 0
        %7313 = vmatprep.subr.bf16.mxu0 0
        %7314 = vmatpush1.bf16.msra.mxu0 0
        %7315 = vmatprep.subr.bf16.mxu0 0
        %7316 = vmatpush1.bf16.msra.mxu0 0
        %7317 = vmatprep.subr.bf16.mxu0 0
        %7318 = vmatpush1.bf16.msra.mxu0 0
        %7319 = vmatprep.subr.bf16.mxu0 0
        %7320 = vmatpush1.bf16.msra.mxu0 0
        %7321 = vmatprep.subr.bf16.mxu0 0
        %7322 = vmatpush1.bf16.msra.mxu0 0
        %7323 = vmatprep.subr.bf16.mxu0 0
        %7324 = vmatpush1.bf16.msra.mxu0 0
        %7325 = vmatprep.mubr.bf16.mxu0 0
        %7326 = vmatmul.mubr.bf16.gmra.mrb[0].mxu0 %v7227
        %v7327 = vpop.f32.mrb[0].mxu0
        %v7328 = vadd.f32 0.0, %v7327
        %v7329 = vpop.f32.mrb[0].mxu0
        %v7330 = vpop.f32.mrb[0].mxu0
        %v7331 = vadd.f32 0.0, %v7330
        %v7332 = vpop.f32.mrb[0].mxu0
        %7333 = vdwg.mxu0
        %v7334 = vadd.f32 %v7224, %v7328
        %v7335 = vadd.f32 %v7225, %v7331
        %v7336 = vld [vmem:[%s6] sm:$0x1]
        %v7338 = vlaneseq
        %v7339 = vshrl.u32 %v7338, 7
        %v7340 = vsub.s32 0, %v7339
        %v7341 = vrot.slane %v7336, %v7340
        %v7343 = vadd.f32 %v7334, %v7341
        %v7344 = vadd.f32 %v7335, %v7341
        %v7345 = vmax.f32 %v7343, 0.0
        %v7346 = vmax.f32 %v7344, 0.0
        %v7347 = vpack.c.bf16 %v7346, %v7345
        %v7348 = vld [vmem:[%s7] sm:$0xf]
        %v7349 = vld [vmem:[%s7 + $0x4] sm:$0xf]
        %v7350 = vld [vmem:[%s7 + $0x8] sm:$0xf]
        %v7351 = vld [vmem:[%s7 + $0xc] sm:$0xf]
        %v7352 = vld [vmem:[%s7 + $0x10] sm:$0xf]
        %v7353 = vld [vmem:[%s7 + $0x14] sm:$0xf]
        %v7354 = vld [vmem:[%s7 + $0x18] sm:$0xf]
        %v7355 = vld [vmem:[%s7 + $0x1c] sm:$0xf]
        %v7356 = vld [vmem:[%s7 + $0x20] sm:$0xf]
        %v7357 = vld [vmem:[%s7 + $0x24] sm:$0xf]
        %v7358 = vld [vmem:[%s7 + $0x28] sm:$0xf]
        %v7359 = vld [vmem:[%s7 + $0x2c] sm:$0xf]
        %v7360 = vld [vmem:[%s7 + $0x30] sm:$0xf]
        %v7361 = vld [vmem:[%s7 + $0x34] sm:$0xf]
        %v7362 = vld [vmem:[%s7 + $0x38] sm:$0xf]
        %v7363 = vld [vmem:[%s7 + $0x3c] sm:$0xf]
        %v7364 = vld [vmem:[%s8] sm:$0x1]
        %v7366 = vlaneseq
        %v7367 = vshrl.u32 %v7366, 7
        %v7368 = vsub.s32 0, %v7367
        %v7369 = vrot.slane %v7364, %v7368
        %v7387 = vunpack.c.l.b16 %v7348
        %v7388 = vunpack.c.l.b16 %v7349
        %v7389 = vunpack.c.l.b16 %v7350
        %v7390 = vunpack.c.l.b16 %v7351
        %v7391 = vunpack.c.l.b16 %v7352
        %v7392 = vunpack.c.l.b16 %v7353
        %v7393 = vunpack.c.l.b16 %v7354
        %v7394 = vunpack.c.l.b16 %v7355
        %v7395 = vunpack.c.l.b16 %v7356
        %v7396 = vunpack.c.l.b16 %v7357
        %v7397 = vunpack.c.l.b16 %v7358
        %v7398 = vunpack.c.l.b16 %v7359
        %v7399 = vunpack.c.l.b16 %v7360
        %v7400 = vunpack.c.l.b16 %v7361
        %v7401 = vunpack.c.l.b16 %v7362
        %v7402 = vunpack.c.l.b16 %v7363
        %v7403 = vpack.c.b16 %v7388, %v7387
        %v7404 = vpack.c.b16 %v7390, %v7389
        %v7405 = vpack.c.b16 %v7392, %v7391
        %v7406 = vpack.c.b16 %v7394, %v7393
        %v7407 = vpack.c.b16 %v7396, %v7395
        %v7408 = vpack.c.b16 %v7398, %v7397
        %v7409 = vpack.c.b16 %v7400, %v7399
        %v7410 = vpack.c.b16 %v7402, %v7401
        %7419 = vmatprep.subr.bf16.mxu0 0
        %7420 = vmatpush1.bf16.msra.mxu0 %v7403
        %7421 = vmatprep.subr.bf16.mxu0 0
        %7422 = vmatpush1.bf16.msra.mxu0 %v7404
        %7423 = vmatprep.subr.bf16.mxu0 0
        %7424 = vmatpush1.bf16.msra.mxu0 %v7405
        %7425 = vmatprep.subr.bf16.mxu0 0
        %7426 = vmatpush1.bf16.msra.mxu0 %v7406
        %7427 = vmatprep.subr.bf16.mxu0 0
        %7428 = vmatpush1.bf16.msra.mxu0 %v7407
        %7429 = vmatprep.subr.bf16.mxu0 0
        %7430 = vmatpush1.bf16.msra.mxu0 %v7408
        %7431 = vmatprep.subr.bf16.mxu0 0
        %7432 = vmatpush1.bf16.msra.mxu0 %v7409
        %7433 = vmatprep.subr.bf16.mxu0 0
        %7434 = vmatpush1.bf16.msra.mxu0 %v7410
        %7435 = vmatprep.subr.bf16.mxu0 0
        %7436 = vmatpush1.bf16.msra.mxu0 0
        %7437 = vmatprep.subr.bf16.mxu0 0
        %7438 = vmatpush1.bf16.msra.mxu0 0
        %7439 = vmatprep.subr.bf16.mxu0 0
        %7440 = vmatpush1.bf16.msra.mxu0 0
        %7441 = vmatprep.subr.bf16.mxu0 0
        %7442 = vmatpush1.bf16.msra.mxu0 0
        %7443 = vmatprep.subr.bf16.mxu0 0
        %7444 = vmatpush1.bf16.msra.mxu0 0
        %7445 = vmatprep.subr.bf16.mxu0 0
        %7446 = vmatpush1.bf16.msra.mxu0 0
        %7447 = vmatprep.subr.bf16.mxu0 0
        %7448 = vmatpush1.bf16.msra.mxu0 0
        %7449 = vmatprep.subr.bf16.mxu0 0
        %7450 = vmatpush1.bf16.msra.mxu0 0
        %7451 = vmatprep.mubr.bf16.mxu0 0
        %7452 = vmatmul.mubr.bf16.gmra.mrb[0].mxu0 %v7347
        %v7453 = vpop.f32.mrb[0].mxu0
        %v7454 = vadd.f32 %v7369, %v7453
        %v7455 = vpop.f32.mrb[0].mxu0
        %v7456 = vpop.f32.mrb[0].mxu0
        %v7457 = vadd.f32 %v7369, %v7456
        %v7458 = vpop.f32.mrb[0].mxu0
        %7459 = vdwg.mxu0
        %v7460 = vmax.f32 %v7454, 0.0
        %v7461 = vmax.f32 %v7457, 0.0
        %v7462 = vpack.c.bf16 %v7461, %v7460
        %v7463 = vld [vmem:[%s9] sm:$0xf]
        %v7464 = vld [vmem:[%s9 + $0x4] sm:$0xf]
        %v7465 = vld [vmem:[%s9 + $0x8] sm:$0xf]
        %v7466 = vld [vmem:[%s9 + $0xc] sm:$0xf]
        %v7467 = vld [vmem:[%s9 + $0x10] sm:$0xf]
        %v7468 = vld [vmem:[%s9 + $0x14] sm:$0xf]
        %v7469 = vld [vmem:[%s9 + $0x18] sm:$0xf]
        %v7470 = vld [vmem:[%s9 + $0x1c] sm:$0xf]
        %v7471 = vld [vmem:[%s9 + $0x20] sm:$0xf]
        %v7472 = vld [vmem:[%s9 + $0x24] sm:$0xf]
        %v7473 = vld [vmem:[%s9 + $0x28] sm:$0xf]
        %v7474 = vld [vmem:[%s9 + $0x2c] sm:$0xf]
        %v7475 = vld [vmem:[%s9 + $0x30] sm:$0xf]
        %v7476 = vld [vmem:[%s9 + $0x34] sm:$0xf]
        %v7477 = vld [vmem:[%s9 + $0x38] sm:$0xf]
        %v7478 = vld [vmem:[%s9 + $0x3c] sm:$0xf]
        %v7479 = vld [vmem:[%s10] sm:$0x1]
        %v7481 = vlaneseq
        %v7482 = vshrl.u32 %v7481, 7
        %v7483 = vsub.s32 0, %v7482
        %v7484 = vrot.slane %v7479, %v7483
        %v7502 = vunpack.c.l.b16 %v7463
        %v7503 = vunpack.c.l.b16 %v7464
        %v7504 = vunpack.c.l.b16 %v7465
        %v7505 = vunpack.c.l.b16 %v7466
        %v7506 = vunpack.c.l.b16 %v7467
        %v7507 = vunpack.c.l.b16 %v7468
        %v7508 = vunpack.c.l.b16 %v7469
        %v7509 = vunpack.c.l.b16 %v7470
        %v7510 = vunpack.c.l.b16 %v7471
        %v7511 = vunpack.c.l.b16 %v7472
        %v7512 = vunpack.c.l.b16 %v7473
        %v7513 = vunpack.c.l.b16 %v7474
        %v7514 = vunpack.c.l.b16 %v7475
        %v7515 = vunpack.c.l.b16 %v7476
        %v7516 = vunpack.c.l.b16 %v7477
        %v7517 = vunpack.c.l.b16 %v7478
        %v7518 = vpack.c.b16 %v7503, %v7502
        %v7519 = vpack.c.b16 %v7505, %v7504
        %v7520 = vpack.c.b16 %v7507, %v7506
        %v7521 = vpack.c.b16 %v7509, %v7508
        %v7522 = vpack.c.b16 %v7511, %v7510
        %v7523 = vpack.c.b16 %v7513, %v7512
        %v7524 = vpack.c.b16 %v7515, %v7514
        %v7525 = vpack.c.b16 %v7517, %v7516
        %7534 = vmatprep.subr.bf16.mxu0 0
        %7535 = vmatpush1.bf16.msra.mxu0 %v7518
        %7536 = vmatprep.subr.bf16.mxu0 0
        %7537 = vmatpush1.bf16.msra.mxu0 %v7519
        %7538 = vmatprep.subr.bf16.mxu0 0
        %7539 = vmatpush1.bf16.msra.mxu0 %v7520
        %7540 = vmatprep.subr.bf16.mxu0 0
        %7541 = vmatpush1.bf16.msra.mxu0 %v7521
        %7542 = vmatprep.subr.bf16.mxu0 0
        %7543 = vmatpush1.bf16.msra.mxu0 %v7522
        %7544 = vmatprep.subr.bf16.mxu0 0
        %7545 = vmatpush1.bf16.msra.mxu0 %v7523
        %7546 = vmatprep.subr.bf16.mxu0 0
        %7547 = vmatpush1.bf16.msra.mxu0 %v7524
        %7548 = vmatprep.subr.bf16.mxu0 0
        %7549 = vmatpush1.bf16.msra.mxu0 %v7525
        %7550 = vmatprep.subr.bf16.mxu0 0
        %7551 = vmatpush1.bf16.msra.mxu0 0
        %7552 = vmatprep.subr.bf16.mxu0 0
        %7553 = vmatpush1.bf16.msra.mxu0 0
        %7554 = vmatprep.subr.bf16.mxu0 0
        %7555 = vmatpush1.bf16.msra.mxu0 0
        %7556 = vmatprep.subr.bf16.mxu0 0
        %7557 = vmatpush1.bf16.msra.mxu0 0
        %7558 = vmatprep.subr.bf16.mxu0 0
        %7559 = vmatpush1.bf16.msra.mxu0 0
        %7560 = vmatprep.subr.bf16.mxu0 0
        %7561 = vmatpush1.bf16.msra.mxu0 0
        %7562 = vmatprep.subr.bf16.mxu0 0
        %7563 = vmatpush1.bf16.msra.mxu0 0
        %7564 = vmatprep.subr.bf16.mxu0 0
        %7565 = vmatpush1.bf16.msra.mxu0 0
        %7566 = vmatprep.mubr.bf16.mxu0 0
        %7567 = vmatmul.mubr.bf16.gmra.mrb[0].mxu0 %v7462
        %v7568 = vpop.f32.mrb[0].mxu0
        %v7569 = vadd.f32 %v7484, %v7568
        %v7570 = vpop.f32.mrb[0].mxu0
        %v7571 = vpop.f32.mrb[0].mxu0
        %v7572 = vadd.f32 %v7484, %v7571
        %v7573 = vpop.f32.mrb[0].mxu0
        %7574 = vdwg.mxu0
        %7575 = vst [vmem:[%s675] sm:$0xff] %v7569
        %7576 = vst [vmem:[%s675 + $0x8] sm:$0xff] %v7572
        %s7577 = smul.u32 2, %s22
        %p7578 = scmp.lt.s32.totalorder %s7577, 3
        %s7579 = scalar_select %p7578, %s7577, 3
        %s7580 = smul.addr %s7579, 8
        %s7581 = scalar_lea.vmem %s11, %s7580
        // Predicated region
        $region103: #{lenet_forward.1} parent=97 // pred_check
          %p7582 = pneg %p276
        $region104: #{lenet_forward.1} parent=97 // pred_check_branch
          %7584 = sbr.rel (%p7582) target = $region106
        $region105: #{lenet_forward.1} parent=97 // pred_region
          %s7585 = smul.u32 2, %s22
        $region106: #{lenet_forward.1} parent=97 // pred_fallthru
          _
      $region98: #{lenet_forward.1} parent=5 // pred_fallthru
        _
      %p7586 = scmp.le.s32.totalorder 2, %s17
      // Predicated region
      $region107: #{lenet_forward.1} parent=5 // pred_check
        %p7587 = pneg %p7586
      $region108: #{lenet_forward.1} parent=5 // pred_check_branch
        %7589 = sbr.rel (%p7587) target = $region110
      $region109: #{lenet_forward.1} parent=5 // pred_region
        %s7590 = ssub.s32 %s17, 2
        // Predicated region
        $region111: #{lenet_forward.1} parent=109 // pred_check
          %p7591 = pneg %p282
        $region112: #{lenet_forward.1} parent=109 // pred_check_branch
          %7593 = sbr.rel (%p7591) target = $region114
        $region113: #{lenet_forward.1} parent=109 // pred_region
          %s7594 = smul.u32 2, %s23
          %p7595 = scmp.lt.s32.totalorder %s7594, 3
          %s7596 = scalar_select %p7595, %s7594, 3
          %s7597 = smul.addr %s7596, 8
          %s7598 = scalar_lea.vmem %s11, %s7597
        $region114: #{lenet_forward.1} parent=109 // pred_fallthru
          _
      $region110: #{lenet_forward.1} parent=5 // pred_fallthru
        _
    $region6: #{lenet_forward.1} parent=1 // loop_footer
      %s21 = sadd.s32 1, %s17
    $region7: #{lenet_forward.1} parent=1 // loop_footer_branch
      %16 = sbr.rel target = $region3
    $region8: #{lenet_forward.1} parent=1 // loop_exit
      _

</llo_original>
